<compile_context>
chip_gen: v7x
topology: tpu7x:2x2x1
jax: 0.10.0
libtpu: 0.0.40
codegen_flags: <defaults>
</compile_context>

<pallas_src>
import functools
import numpy as np

import jax
import jax.numpy as jnp
from jax.experimental import pallas as pl
from jax.experimental.pallas import tpu as pltpu


# ----------------------------- in-kernel helpers -----------------------------

def _linear(x, w_bf16, b_f32, relu=False):
    """x: (M, K) f32 value; w_bf16: (K, N) bf16 value; b_f32: (1, N) f32 -> (M, N) f32."""
    y = jnp.dot(x.astype(jnp.bfloat16), w_bf16,
                preferred_element_type=jnp.float32) + b_f32
    if relu:
        y = jnp.maximum(y, 0.0)
    return y


def _layernorm(y, g, b, eps=1e-6):
    mu = jnp.mean(y, axis=-1, keepdims=True)
    c = y - mu
    var = jnp.mean(c * c, axis=-1, keepdims=True)
    return c * jax.lax.rsqrt(var + eps) * g + b


def _mha(q, k, v, neg_mask, wo_bf16, bo_f32, num_heads):
    """q: (Sq, D), k/v: (Sk, D) f32 (already projected); neg_mask: (Sq, Sk) or None
    (already multiplied by -1e9, hoisted out of the head loop).

    Per-head softmax(q_h k_h^T) v_h; per-head contexts are lane-concatenated (they are
    contiguous column blocks of D) and projected with ONE (Sq,D)@(D,D) W_o matmul."""
    D = q.shape[-1]
    dh = D // num_heads
    q = q * (1.0 / float(np.sqrt(dh)))            # scale folded into Q once
    ctx = []
    for h in range(num_heads):
        lo = h * dh
        qh = q[:, lo:lo + dh].astype(jnp.bfloat16)           # (Sq, dh)
        kh = k[:, lo:lo + dh].astype(jnp.bfloat16)           # (Sk, dh)
        vh = v[:, lo:lo + dh].astype(jnp.bfloat16)           # (Sk, dh)
        s = jax.lax.dot_general(qh, kh, (((1,), (1,)), ((), ())),
                                preferred_element_type=jnp.float32)   # (Sq, Sk)
        if neg_mask is not None:
            s = s + neg_mask
        s = s - jnp.max(s, axis=-1, keepdims=True)
        e = jnp.exp(s)
        p = e * pl.reciprocal(jnp.sum(e, axis=-1, keepdims=True), approx=True)
        ctx.append(jnp.dot(p.astype(jnp.bfloat16), vh,
                           preferred_element_type=jnp.float32))       # (Sq, dh)
    ctx = jnp.concatenate(ctx, axis=-1).astype(jnp.bfloat16)          # (Sq, D)
    return jnp.dot(ctx, wo_bf16, preferred_element_type=jnp.float32) + bo_f32


# ----------------------------- the fused whole-forward kernel -----------------------------

def _transformer_kernel(
        # per-batch activations (leading batch dim squeezed by BlockSpec)
        x_enc_ref, x_dec_ref, pad_ref,
        # encoder embedding + positional encoding
        pe_enc_ref, w_emb_ref, b_emb_ref,
        # encoder layers (stacked over L)
        e_wqkv_ref, e_bqkv_ref, e_wo_ref, e_bo_ref,
        e_g1_ref, e_b1_ref,
        e_w1_ref, e_bf1_ref, e_w2_ref, e_bf2_ref,
        e_g2_ref, e_b2_ref,
        # decoder layers (stacked over L)
        d_wqkv_ref, d_bqkv_ref, d_wo1_ref, d_bo1_ref,
        d_g1_ref, d_b1_ref,
        d_wq2_ref, d_bq2_ref, d_wkv2_ref, d_bkv2_ref, d_wo2_ref, d_bo2_ref,
        d_g2_ref, d_b2_ref,
        d_w1_ref, d_bf1_ref, d_w2_ref, d_bf2_ref,
        d_g3_ref, d_b3_ref,
        # final projection
        wf_ref, bf_ref,
        # output
        o_ref,
        *, num_heads, num_layers):
    D = w_emb_ref.shape[1]

    # --- decoder self-attention mask: causal + padding, built once in-kernel ---
    x = x_dec_ref[...]                                        # (Sd, D) f32
    Sd = x.shape[0]
    row = jax.lax.broadcasted_iota(jnp.int32, (Sd, Sd), 0)
    col = jax.lax.broadcasted_iota(jnp.int32, (Sd, Sd), 1)
    look_ahead = (col > row).astype(jnp.float32)              # (Sd, Sd)
    neg_mask = jnp.maximum(pad_ref[...], look_ahead) * (-1e9)  # hoisted, reused all layers

    # --- encoder: Linear(In->D) + ReLU embedding, + 2D positional encoding ---
    h = jnp.dot(x_enc_ref[...].astype(jnp.bfloat16), w_emb_ref[...],
                preferred_element_type=jnp.float32) + b_emb_ref[...]
    h = jnp.maximum(h, 0.0) + pe_enc_ref[0]                   # (Se, D)

    for l in range(num_layers):
        qkv = _linear(h, e_wqkv_ref[l], e_bqkv_ref[l])        # fused QKV: one (Se,D)@(D,3D)
        attn = _mha(qkv[:, :D], qkv[:, D:2 * D], qkv[:, 2 * D:], None,
                    e_wo_ref[l], e_bo_ref[l], num_heads)
        h = _layernorm(h + attn, e_g1_ref[l], e_b1_ref[l])
        ff = _linear(h, e_w1_ref[l], e_bf1_ref[l], relu=True)
        ff = _linear(ff, e_w2_ref[l], e_bf2_ref[l])
        h = _layernorm(h + ff, e_g2_ref[l], e_b2_ref[l])
    enc = h                                                   # (Se, D), stays in VMEM

    # --- decoder ---
    for l in range(num_layers):
        # masked self-attention
        qkv = _linear(x, d_wqkv_ref[l], d_bqkv_ref[l])
        a1 = _mha(qkv[:, :D], qkv[:, D:2 * D], qkv[:, 2 * D:], neg_mask,
                  d_wo1_ref[l], d_bo1_ref[l], num_heads)
        x = _layernorm(a1 + x, d_g1_ref[l], d_b1_ref[l])
        # cross-attention (mask is None, matching the reference call path)
        q2 = _linear(x, d_wq2_ref[l], d_bq2_ref[l])
        kv2 = _linear(enc, d_wkv2_ref[l], d_bkv2_ref[l])      # fused K/V projection
        a2 = _mha(q2, kv2[:, :D], kv2[:, D:], None,
                  d_wo2_ref[l], d_bo2_ref[l], num_heads)
        x = _layernorm(a2 + x, d_g2_ref[l], d_b2_ref[l])
        # FFN
        ff = _linear(x, d_w1_ref[l], d_bf1_ref[l], relu=True)
        ff = _linear(ff, d_w2_ref[l], d_bf2_ref[l])
        x = _layernorm(ff + x, d_g3_ref[l], d_b3_ref[l])

    # --- final linear ---
    o_ref[...] = jnp.dot(x.astype(jnp.bfloat16), wf_ref[...],
                         preferred_element_type=jnp.float32) + bf_ref[...]


# ----------------------------- wrapper -----------------------------

def transformer_forward(enc_input, target, params, *, num_heads, num_layers):
    B, Se, In = enc_input.shape
    Sd = target.shape[1]
    D = params['w_emb'].shape[1]
    V = params['wf'].shape[1]

    # plain-JAX glue: decoder token-embedding gather + scale + positional encoding,
    # and the per-batch padding indicator (full mask is built in-kernel with an iota).
    x_dec = params['dec_emb'][target] * jnp.sqrt(jnp.float32(D)) + params['pe_dec'][:, :Sd, :]
    pad = (target == 0).astype(jnp.float32).reshape(B, 1, Sd)

    def inv(a):  # grid-invariant (weight) spec: whole array, DMA'd once across the grid
        shp = a.shape
        return pl.BlockSpec(shp, lambda b, _s=shp: (0,) * len(_s))

    e, d = params['enc'], params['dec']
    operands = [
        enc_input, x_dec, pad,
        params['pe_enc'], params['w_emb'], params['b_emb'],
        e['wqkv'], e['bqkv'], e['wo'], e['bo'], e['g1'], e['b1'],
        e['w1'], e['bf1'], e['w2'], e['bf2'], e['g2'], e['b2'],
        d['wqkv'], d['bqkv'], d['wo1'], d['bo1'], d['g1'], d['b1'],
        d['wq2'], d['bq2'], d['wkv2'], d['bkv2'], d['wo2'], d['bo2'],
        d['g2'], d['b2'],
        d['w1'], d['bf1'], d['w2'], d['bf2'], d['g3'], d['b3'],
        params['wf'], params['bf'],
    ]
    in_specs = [
        pl.BlockSpec((None, Se, In), lambda b: (b, 0, 0)),   # encoder input, per batch
        pl.BlockSpec((None, Sd, D), lambda b: (b, 0, 0)),    # embedded decoder input
        pl.BlockSpec((None, 1, Sd), lambda b: (b, 0, 0)),    # padding indicator
    ] + [inv(a) for a in operands[3:]]

    kernel = functools.partial(_transformer_kernel,
                               num_heads=num_heads, num_layers=num_layers)
    return pl.pallas_call(
        kernel,
        out_shape=jax.ShapeDtypeStruct((B, Sd, V), jnp.float32),
        grid=(B,),
        in_specs=in_specs,
        out_specs=pl.BlockSpec((None, Sd, V), lambda b: (b, 0, 0)),
        compiler_params=pltpu.CompilerParams(
            dimension_semantics=("parallel",),          # B>=2 keeps both v7x TCs busy
            vmem_limit_bytes=48 * 1024 * 1024),
    )(*operands)


# ----------------------------- positional encodings (host numpy) -----------------------------

def pos_encoding_1d(model_dim, seq_len):
    pos = np.arange(seq_len)[:, None].astype(np.float32)
    i = np.arange(model_dim)[None, :].astype(np.float32)
    rates = 1.0 / np.power(10000.0, (2.0 * np.floor(i / 2)) / np.float32(model_dim))
    ang = pos * rates
    ang[:, 0::2] = np.sin(ang[:, 0::2])
    ang[:, 1::2] = np.cos(ang[:, 1::2])
    return jnp.asarray(ang[None], jnp.float32)                # (1, seq, d)


def pos_encoding_2d(model_dim, height, width):
    d2 = model_dim // 2
    row_pos = np.repeat(np.arange(height)[:, None], width, axis=1).reshape(-1, 1).astype(np.float32)
    col_pos = np.tile(np.arange(width)[None, :], (height, 1)).reshape(-1, 1).astype(np.float32)
    i = np.arange(d2)[None, :].astype(np.float32)
    rates = 1.0 / np.power(10000.0, (2.0 * np.floor(i / 2)) / np.float32(d2))
    ar = row_pos * rates
    ac = col_pos * rates
    ar[:, 0::2] = np.sin(ar[:, 0::2]); ar[:, 1::2] = np.cos(ar[:, 1::2])
    ac[:, 0::2] = np.sin(ac[:, 0::2]); ac[:, 1::2] = np.cos(ac[:, 1::2])
    pe = np.concatenate([ar, ac], axis=1)[None]               # (1, h*w, d)
    return jnp.asarray(pe, jnp.float32)


# ----------------------------- parameter init (bf16 weights, stacked per layer) -----------------------------

def init_params(key, model_dim, input_dim, num_layers, vocab_size,
                sequence_length, height, width, ff_dim):
    D, F = model_dim, ff_dim
    keys = iter(jax.random.split(key, 256))

    def w(din, dout):   # matmul weights live in bf16 (halved DMA, no in-kernel cast)
        return (jax.random.normal(next(keys), (din, dout), jnp.float32) * 0.02
                ).astype(jnp.bfloat16)

    def bias(dout):
        return jnp.zeros((1, dout), jnp.float32)

    def ones(dout):
        return jnp.ones((1, dout), jnp.float32)

    w_emb, b_emb = w(input_dim, D), bias(D)

    enc_keys = ['wqkv', 'bqkv', 'wo', 'bo', 'g1', 'b1',
                'w1', 'bf1', 'w2', 'bf2', 'g2', 'b2']
    enc = {k: [] for k in enc_keys}
    for _ in range(num_layers):
        wq, wk, wv, wo = w(D, D), w(D, D), w(D, D), w(D, D)
        enc['wqkv'].append(jnp.concatenate([wq, wk, wv], axis=1)); enc['bqkv'].append(bias(3 * D))
        enc['wo'].append(wo); enc['bo'].append(bias(D))
        enc['g1'].append(ones(D)); enc['b1'].append(bias(D))
        enc['w1'].append(w(D, F)); enc['bf1'].append(bias(F))
        enc['w2'].append(w(F, D)); enc['bf2'].append(bias(D))
        enc['g2'].append(ones(D)); enc['b2'].append(bias(D))
    enc = {k: jnp.stack(v, axis=0) for k, v in enc.items()}

    dec_keys = ['wqkv', 'bqkv', 'wo1', 'bo1', 'g1', 'b1',
                'wq2', 'bq2', 'wkv2', 'bkv2', 'wo2', 'bo2', 'g2', 'b2',
                'w1', 'bf1', 'w2', 'bf2', 'g3', 'b3']
    dec = {k: [] for k in dec_keys}
    for _ in range(num_layers):
        wq, wk, wv, wo = w(D, D), w(D, D), w(D, D), w(D, D)
        dec['wqkv'].append(jnp.concatenate([wq, wk, wv], axis=1)); dec['bqkv'].append(bias(3 * D))
        dec['wo1'].append(wo); dec['bo1'].append(bias(D))
        dec['g1'].append(ones(D)); dec['b1'].append(bias(D))
        wq2, wk2, wv2, wo2 = w(D, D), w(D, D), w(D, D), w(D, D)
        dec['wq2'].append(wq2); dec['bq2'].append(bias(D))
        dec['wkv2'].append(jnp.concatenate([wk2, wv2], axis=1)); dec['bkv2'].append(bias(2 * D))
        dec['wo2'].append(wo2); dec['bo2'].append(bias(D))
        dec['g2'].append(ones(D)); dec['b2'].append(bias(D))
        dec['w1'].append(w(D, F)); dec['bf1'].append(bias(F))
        dec['w2'].append(w(F, D)); dec['bf2'].append(bias(D))
        dec['g3'].append(ones(D)); dec['b3'].append(bias(D))
    dec = {k: jnp.stack(v, axis=0) for k, v in dec.items()}

    dec_emb = jax.random.normal(next(keys), (vocab_size, D), jnp.float32) * 0.02
    wf, bf = w(D, vocab_size), bias(vocab_size)

    return {
        'pe_enc': pos_encoding_2d(D, height, width),
        'w_emb': w_emb, 'b_emb': b_emb,
        'enc': enc,
        'dec_emb': dec_emb,
        'pe_dec': pos_encoding_1d(D, sequence_length),
        'dec': dec,
        'wf': wf, 'bf': bf,
    }


# ----------------------------- main -----------------------------

if __name__ == "__main__":
    MODEL_DIM = 32
    INPUT_DIM = 16
    NUM_HEADS = 4
    NUM_LAYERS = 2
    VOCAB = 32
    SEQ_LEN = 8            # decoder sequence length
    HEIGHT, WIDTH = 4, 4   # encoder spatial grid -> enc seq = 16
    FF_DIM = 64
    B = 2

    root = jax.random.PRNGKey(0)
    k_params, k_inp, k_tgt = jax.random.split(root, 3)

    params = init_params(k_params, MODEL_DIM, INPUT_DIM, NUM_LAYERS, VOCAB,
                         SEQ_LEN, HEIGHT, WIDTH, FF_DIM)

    enc_input = jax.random.normal(k_inp, (B, HEIGHT * WIDTH, INPUT_DIM), jnp.float32)
    target = jax.random.randint(k_tgt, (B, SEQ_LEN), 0, VOCAB, jnp.int32)
    target = target.at[:, -1].set(0)   # include a pad token so the padding mask is exercised

    fwd = jax.jit(functools.partial(transformer_forward,
                                    num_heads=NUM_HEADS, num_layers=NUM_LAYERS))
    logits = fwd(enc_input, target, params)
    jax.block_until_ready(logits)

    assert logits.shape == (B, SEQ_LEN, VOCAB)
    assert bool(jnp.all(jnp.isfinite(logits)))
    print("KERNEL_OK")
</pallas_src>

<mosaic_0001>
module attributes {stable_mosaic.version = 11 : i64} {
  func.func @_transformer_kernel(%arg0: i32, %arg1: memref<1x16x16xf32, #tpu.memory_space<vmem>>, %arg2: memref<1x8x32xf32, #tpu.memory_space<vmem>>, %arg3: memref<1x1x8xf32, #tpu.memory_space<vmem>>, %arg4: memref<1x16x32xf32, #tpu.memory_space<vmem>>, %arg5: memref<16x32xbf16, #tpu.memory_space<vmem>>, %arg6: memref<1x32xf32, #tpu.memory_space<vmem>>, %arg7: memref<2x32x96xbf16, #tpu.memory_space<vmem>>, %arg8: memref<2x1x96xf32, #tpu.memory_space<vmem>>, %arg9: memref<2x32x32xbf16, #tpu.memory_space<vmem>>, %arg10: memref<2x1x32xf32, #tpu.memory_space<vmem>>, %arg11: memref<2x1x32xf32, #tpu.memory_space<vmem>>, %arg12: memref<2x1x32xf32, #tpu.memory_space<vmem>>, %arg13: memref<2x32x64xbf16, #tpu.memory_space<vmem>>, %arg14: memref<2x1x64xf32, #tpu.memory_space<vmem>>, %arg15: memref<2x64x32xbf16, #tpu.memory_space<vmem>>, %arg16: memref<2x1x32xf32, #tpu.memory_space<vmem>>, %arg17: memref<2x1x32xf32, #tpu.memory_space<vmem>>, %arg18: memref<2x1x32xf32, #tpu.memory_space<vmem>>, %arg19: memref<2x32x96xbf16, #tpu.memory_space<vmem>>, %arg20: memref<2x1x96xf32, #tpu.memory_space<vmem>>, %arg21: memref<2x32x32xbf16, #tpu.memory_space<vmem>>, %arg22: memref<2x1x32xf32, #tpu.memory_space<vmem>>, %arg23: memref<2x1x32xf32, #tpu.memory_space<vmem>>, %arg24: memref<2x1x32xf32, #tpu.memory_space<vmem>>, %arg25: memref<2x32x32xbf16, #tpu.memory_space<vmem>>, %arg26: memref<2x1x32xf32, #tpu.memory_space<vmem>>, %arg27: memref<2x32x64xbf16, #tpu.memory_space<vmem>>, %arg28: memref<2x1x64xf32, #tpu.memory_space<vmem>>, %arg29: memref<2x32x32xbf16, #tpu.memory_space<vmem>>, %arg30: memref<2x1x32xf32, #tpu.memory_space<vmem>>, %arg31: memref<2x1x32xf32, #tpu.memory_space<vmem>>, %arg32: memref<2x1x32xf32, #tpu.memory_space<vmem>>, %arg33: memref<2x32x64xbf16, #tpu.memory_space<vmem>>, %arg34: memref<2x1x64xf32, #tpu.memory_space<vmem>>, %arg35: memref<2x64x32xbf16, #tpu.memory_space<vmem>>, %arg36: memref<2x1x32xf32, #tpu.memory_space<vmem>>, %arg37: memref<2x1x32xf32, #tpu.memory_space<vmem>>, %arg38: memref<2x1x32xf32, #tpu.memory_space<vmem>>, %arg39: memref<32x32xbf16, #tpu.memory_space<vmem>>, %arg40: memref<1x32xf32, #tpu.memory_space<vmem>>, %arg41: memref<1x8x32xf32, #tpu.memory_space<vmem>>) attributes {dimension_semantics = [#tpu.dimension_semantics<parallel>], iteration_bounds = array<i64: 2>, scalar_prefetch = 0 : i64, scratch_operands = 0 : i64, tpu.core_type = #tpu.core_type<tc>, window_params = [{transform_indices = @transform_0, window_bounds = array<i64: 1, 16, 16>}, {transform_indices = @transform_1, window_bounds = array<i64: 1, 8, 32>}, {transform_indices = @transform_2, window_bounds = array<i64: 1, 1, 8>}, {pipeline_mode = #tpu.pipeline_mode<synchronous>, transform_indices = @transform_3, window_bounds = array<i64: 1, 16, 32>}, {pipeline_mode = #tpu.pipeline_mode<synchronous>, transform_indices = @transform_4, window_bounds = array<i64: 16, 32>}, {pipeline_mode = #tpu.pipeline_mode<synchronous>, transform_indices = @transform_5, window_bounds = array<i64: 1, 32>}, {pipeline_mode = #tpu.pipeline_mode<synchronous>, transform_indices = @transform_6, window_bounds = array<i64: 2, 32, 96>}, {pipeline_mode = #tpu.pipeline_mode<synchronous>, transform_indices = @transform_7, window_bounds = array<i64: 2, 1, 96>}, {pipeline_mode = #tpu.pipeline_mode<synchronous>, transform_indices = @transform_8, window_bounds = array<i64: 2, 32, 32>}, {pipeline_mode = #tpu.pipeline_mode<synchronous>, transform_indices = @transform_9, window_bounds = array<i64: 2, 1, 32>}, {pipeline_mode = #tpu.pipeline_mode<synchronous>, transform_indices = @transform_10, window_bounds = array<i64: 2, 1, 32>}, {pipeline_mode = #tpu.pipeline_mode<synchronous>, transform_indices = @transform_11, window_bounds = array<i64: 2, 1, 32>}, {pipeline_mode = #tpu.pipeline_mode<synchronous>, transform_indices = @transform_12, window_bounds = array<i64: 2, 32, 64>}, {pipeline_mode = #tpu.pipeline_mode<synchronous>, transform_indices = @transform_13, window_bounds = array<i64: 2, 1, 64>}, {pipeline_mode = #tpu.pipeline_mode<synchronous>, transform_indices = @transform_14, window_bounds = array<i64: 2, 64, 32>}, {pipeline_mode = #tpu.pipeline_mode<synchronous>, transform_indices = @transform_15, window_bounds = array<i64: 2, 1, 32>}, {pipeline_mode = #tpu.pipeline_mode<synchronous>, transform_indices = @transform_16, window_bounds = array<i64: 2, 1, 32>}, {pipeline_mode = #tpu.pipeline_mode<synchronous>, transform_indices = @transform_17, window_bounds = array<i64: 2, 1, 32>}, {pipeline_mode = #tpu.pipeline_mode<synchronous>, transform_indices = @transform_18, window_bounds = array<i64: 2, 32, 96>}, {pipeline_mode = #tpu.pipeline_mode<synchronous>, transform_indices = @transform_19, window_bounds = array<i64: 2, 1, 96>}, {pipeline_mode = #tpu.pipeline_mode<synchronous>, transform_indices = @transform_20, window_bounds = array<i64: 2, 32, 32>}, {pipeline_mode = #tpu.pipeline_mode<synchronous>, transform_indices = @transform_21, window_bounds = array<i64: 2, 1, 32>}, {pipeline_mode = #tpu.pipeline_mode<synchronous>, transform_indices = @transform_22, window_bounds = array<i64: 2, 1, 32>}, {pipeline_mode = #tpu.pipeline_mode<synchronous>, transform_indices = @transform_23, window_bounds = array<i64: 2, 1, 32>}, {pipeline_mode = #tpu.pipeline_mode<synchronous>, transform_indices = @transform_24, window_bounds = array<i64: 2, 32, 32>}, {pipeline_mode = #tpu.pipeline_mode<synchronous>, transform_indices = @transform_25, window_bounds = array<i64: 2, 1, 32>}, {pipeline_mode = #tpu.pipeline_mode<synchronous>, transform_indices = @transform_26, window_bounds = array<i64: 2, 32, 64>}, {pipeline_mode = #tpu.pipeline_mode<synchronous>, transform_indices = @transform_27, window_bounds = array<i64: 2, 1, 64>}, {pipeline_mode = #tpu.pipeline_mode<synchronous>, transform_indices = @transform_28, window_bounds = array<i64: 2, 32, 32>}, {pipeline_mode = #tpu.pipeline_mode<synchronous>, transform_indices = @transform_29, window_bounds = array<i64: 2, 1, 32>}, {pipeline_mode = #tpu.pipeline_mode<synchronous>, transform_indices = @transform_30, window_bounds = array<i64: 2, 1, 32>}, {pipeline_mode = #tpu.pipeline_mode<synchronous>, transform_indices = @transform_31, window_bounds = array<i64: 2, 1, 32>}, {pipeline_mode = #tpu.pipeline_mode<synchronous>, transform_indices = @transform_32, window_bounds = array<i64: 2, 32, 64>}, {pipeline_mode = #tpu.pipeline_mode<synchronous>, transform_indices = @transform_33, window_bounds = array<i64: 2, 1, 64>}, {pipeline_mode = #tpu.pipeline_mode<synchronous>, transform_indices = @transform_34, window_bounds = array<i64: 2, 64, 32>}, {pipeline_mode = #tpu.pipeline_mode<synchronous>, transform_indices = @transform_35, window_bounds = array<i64: 2, 1, 32>}, {pipeline_mode = #tpu.pipeline_mode<synchronous>, transform_indices = @transform_36, window_bounds = array<i64: 2, 1, 32>}, {pipeline_mode = #tpu.pipeline_mode<synchronous>, transform_indices = @transform_37, window_bounds = array<i64: 2, 1, 32>}, {pipeline_mode = #tpu.pipeline_mode<synchronous>, transform_indices = @transform_38, window_bounds = array<i64: 32, 32>}, {pipeline_mode = #tpu.pipeline_mode<synchronous>, transform_indices = @transform_39, window_bounds = array<i64: 1, 32>}, {transform_indices = @transform_40, window_bounds = array<i64: 1, 8, 32>}]} {
    %c0 = arith.constant 0 : index
    %c0_0 = arith.constant 0 : index
    %c0_1 = arith.constant 0 : index
    %0 = vector.load %arg2[%c0, %c0_0, %c0_1] : memref<1x8x32xf32, #tpu.memory_space<vmem>>, vector<1x8x32xf32>
    %1 = vector.shape_cast %0 : vector<1x8x32xf32> to vector<8x32xf32>
    %2 = tpu.iota {dimensions = array<i32: 0>} : vector<8x8xi32>
    %3 = tpu.iota {dimensions = array<i32: 1>} : vector<8x8xi32>
    %4 = arith.cmpi sgt, %3, %2 : vector<8x8xi32>
    %5 = arith.extui %4 : vector<8x8xi1> to vector<8x8xi32>
    %6 = arith.sitofp %5 : vector<8x8xi32> to vector<8x8xf32>
    %c0_2 = arith.constant 0 : index
    %c0_3 = arith.constant 0 : index
    %c0_4 = arith.constant 0 : index
    %7 = vector.load %arg3[%c0_2, %c0_3, %c0_4] : memref<1x1x8xf32, #tpu.memory_space<vmem>>, vector<1x1x8xf32>
    %8 = vector.shape_cast %7 : vector<1x1x8xf32> to vector<1x8xf32>
    %9 = vector.broadcast %8 : vector<1x8xf32> to vector<8x8xf32>
    %10 = arith.maximumf %9, %6 : vector<8x8xf32>
    %cst = arith.constant -1.000000e+09 : f32
    %11 = vector.broadcast %cst : f32 to vector<8x8xf32>
    %12 = arith.mulf %10, %11 : vector<8x8xf32>
    %c0_5 = arith.constant 0 : index
    %c0_6 = arith.constant 0 : index
    %c0_7 = arith.constant 0 : index
    %13 = vector.load %arg1[%c0_5, %c0_6, %c0_7] : memref<1x16x16xf32, #tpu.memory_space<vmem>>, vector<1x16x16xf32>
    %14 = vector.shape_cast %13 : vector<1x16x16xf32> to vector<16x16xf32>
    %15 = arith.truncf %14 : vector<16x16xf32> to vector<16x16xbf16>
    %c0_8 = arith.constant 0 : index
    %c0_9 = arith.constant 0 : index
    %16 = vector.load %arg5[%c0_8, %c0_9] : memref<16x32xbf16, #tpu.memory_space<vmem>>, vector<16x32xbf16>
    %cst_10 = arith.constant dense<0.000000e+00> : vector<16x32xf32>
    %17 = tpu.matmul %15, %16, %cst_10 {dimension_numbers = #tpu.dot_dimension_numbers<[1], [0], [0], [1], [0, 0, 1, 1], [], []>} : vector<16x16xbf16>, vector<16x32xbf16>, vector<16x32xf32> -> vector<16x32xf32>
    %c0_11 = arith.constant 0 : index
    %c0_12 = arith.constant 0 : index
    %18 = vector.load %arg6[%c0_11, %c0_12] : memref<1x32xf32, #tpu.memory_space<vmem>>, vector<1x32xf32>
    %19 = vector.broadcast %18 : vector<1x32xf32> to vector<16x32xf32>
    %20 = arith.addf %17, %19 : vector<16x32xf32>
    %cst_13 = arith.constant 0.000000e+00 : f32
    %21 = vector.broadcast %cst_13 : f32 to vector<16x32xf32>
    %22 = arith.maximumf %20, %21 : vector<16x32xf32>
    %c0_14 = arith.constant 0 : index
    %c0_15 = arith.constant 0 : index
    %c0_16 = arith.constant 0 : index
    %23 = vector.load %arg4[%c0_14, %c0_15, %c0_16] : memref<1x16x32xf32, #tpu.memory_space<vmem>>, vector<1x16x32xf32>
    %24 = vector.shape_cast %23 : vector<1x16x32xf32> to vector<16x32xf32>
    %25 = arith.addf %22, %24 : vector<16x32xf32>
    %c0_17 = arith.constant 0 : index
    %c0_18 = arith.constant 0 : index
    %c0_19 = arith.constant 0 : index
    %26 = vector.load %arg7[%c0_17, %c0_18, %c0_19] : memref<2x32x96xbf16, #tpu.memory_space<vmem>>, vector<1x32x96xbf16>
    %27 = vector.shape_cast %26 : vector<1x32x96xbf16> to vector<32x96xbf16>
    %c0_20 = arith.constant 0 : index
    %c0_21 = arith.constant 0 : index
    %c0_22 = arith.constant 0 : index
    %28 = vector.load %arg8[%c0_20, %c0_21, %c0_22] : memref<2x1x96xf32, #tpu.memory_space<vmem>>, vector<1x1x96xf32>
    %29 = vector.shape_cast %28 : vector<1x1x96xf32> to vector<1x96xf32>
    %30 = arith.truncf %25 : vector<16x32xf32> to vector<16x32xbf16>
    %cst_23 = arith.constant dense<0.000000e+00> : vector<16x96xf32>
    %31 = tpu.matmul %30, %27, %cst_23 {dimension_numbers = #tpu.dot_dimension_numbers<[1], [0], [0], [1], [0, 0, 1, 1], [], []>} : vector<16x32xbf16>, vector<32x96xbf16>, vector<16x96xf32> -> vector<16x96xf32>
    %32 = vector.broadcast %29 : vector<1x96xf32> to vector<16x96xf32>
    %33 = arith.addf %31, %32 : vector<16x96xf32>
    %34 = vector.extract_strided_slice %33 {offsets = [0, 0], sizes = [16, 32], strides = [1, 1]} : vector<16x96xf32> to vector<16x32xf32>
    %35 = vector.extract_strided_slice %33 {offsets = [0, 32], sizes = [16, 32], strides = [1, 1]} : vector<16x96xf32> to vector<16x32xf32>
    %36 = vector.extract_strided_slice %33 {offsets = [0, 64], sizes = [16, 32], strides = [1, 1]} : vector<16x96xf32> to vector<16x32xf32>
    %c0_24 = arith.constant 0 : index
    %c0_25 = arith.constant 0 : index
    %c0_26 = arith.constant 0 : index
    %37 = vector.load %arg9[%c0_24, %c0_25, %c0_26] : memref<2x32x32xbf16, #tpu.memory_space<vmem>>, vector<1x32x32xbf16>
    %38 = vector.shape_cast %37 : vector<1x32x32xbf16> to vector<32x32xbf16>
    %c0_27 = arith.constant 0 : index
    %c0_28 = arith.constant 0 : index
    %c0_29 = arith.constant 0 : index
    %39 = vector.load %arg10[%c0_27, %c0_28, %c0_29] : memref<2x1x32xf32, #tpu.memory_space<vmem>>, vector<1x1x32xf32>
    %40 = vector.shape_cast %39 : vector<1x1x32xf32> to vector<1x32xf32>
    %cst_30 = arith.constant 0.353553385 : f32
    %41 = vector.broadcast %cst_30 : f32 to vector<16x32xf32>
    %42 = arith.mulf %34, %41 : vector<16x32xf32>
    %43 = vector.extract_strided_slice %42 {offsets = [0, 0], sizes = [16, 8], strides = [1, 1]} : vector<16x32xf32> to vector<16x8xf32>
    %44 = arith.truncf %43 : vector<16x8xf32> to vector<16x8xbf16>
    %45 = vector.extract_strided_slice %35 {offsets = [0, 0], sizes = [16, 8], strides = [1, 1]} : vector<16x32xf32> to vector<16x8xf32>
    %46 = arith.truncf %45 : vector<16x8xf32> to vector<16x8xbf16>
    %47 = vector.extract_strided_slice %36 {offsets = [0, 0], sizes = [16, 8], strides = [1, 1]} : vector<16x32xf32> to vector<16x8xf32>
    %48 = arith.truncf %47 : vector<16x8xf32> to vector<16x8xbf16>
    %cst_31 = arith.constant dense<0.000000e+00> : vector<16x16xf32>
    %49 = tpu.matmul %44, %46, %cst_31 {dimension_numbers = #tpu.dot_dimension_numbers<[1], [1], [0], [0], [0, 0, 1, 0], [], []>} : vector<16x8xbf16>, vector<16x8xbf16>, vector<16x16xf32> -> vector<16x16xf32>
    %cst_32 = arith.constant dense<0xFF800000> : vector<16xf32>
    %50 = vector.multi_reduction <maximumf>, %49, %cst_32 [1] : vector<16x16xf32> to vector<16xf32>
    %51 = vector.shape_cast %50 : vector<16xf32> to vector<16x1xf32>
    %52 = vector.broadcast %51 : vector<16x1xf32> to vector<16x16xf32>
    %53 = arith.subf %49, %52 : vector<16x16xf32>
    %54 = math.exp %53 : vector<16x16xf32>
    %cst_33 = arith.constant dense<0.000000e+00> : vector<16xf32>
    %55 = vector.multi_reduction <add>, %54, %cst_33 [1] : vector<16x16xf32> to vector<16xf32>
    %56 = vector.shape_cast %55 : vector<16xf32> to vector<16x1xf32>
    %57 = tpu.reciprocal %56 {approx = true} : vector<16x1xf32> -> vector<16x1xf32>
    %58 = vector.broadcast %57 : vector<16x1xf32> to vector<16x16xf32>
    %59 = arith.mulf %54, %58 : vector<16x16xf32>
    %60 = arith.truncf %59 : vector<16x16xf32> to vector<16x16xbf16>
    %cst_34 = arith.constant dense<0.000000e+00> : vector<16x8xf32>
    %61 = tpu.matmul %60, %48, %cst_34 {dimension_numbers = #tpu.dot_dimension_numbers<[1], [0], [0], [1], [0, 0, 1, 1], [], []>} : vector<16x16xbf16>, vector<16x8xbf16>, vector<16x8xf32> -> vector<16x8xf32>
    %62 = vector.extract_strided_slice %42 {offsets = [0, 8], sizes = [16, 8], strides = [1, 1]} : vector<16x32xf32> to vector<16x8xf32>
    %63 = arith.truncf %62 : vector<16x8xf32> to vector<16x8xbf16>
    %64 = vector.extract_strided_slice %35 {offsets = [0, 8], sizes = [16, 8], strides = [1, 1]} : vector<16x32xf32> to vector<16x8xf32>
    %65 = arith.truncf %64 : vector<16x8xf32> to vector<16x8xbf16>
    %66 = vector.extract_strided_slice %36 {offsets = [0, 8], sizes = [16, 8], strides = [1, 1]} : vector<16x32xf32> to vector<16x8xf32>
    %67 = arith.truncf %66 : vector<16x8xf32> to vector<16x8xbf16>
    %cst_35 = arith.constant dense<0.000000e+00> : vector<16x16xf32>
    %68 = tpu.matmul %63, %65, %cst_35 {dimension_numbers = #tpu.dot_dimension_numbers<[1], [1], [0], [0], [0, 0, 1, 0], [], []>} : vector<16x8xbf16>, vector<16x8xbf16>, vector<16x16xf32> -> vector<16x16xf32>
    %cst_36 = arith.constant dense<0xFF800000> : vector<16xf32>
    %69 = vector.multi_reduction <maximumf>, %68, %cst_36 [1] : vector<16x16xf32> to vector<16xf32>
    %70 = vector.shape_cast %69 : vector<16xf32> to vector<16x1xf32>
    %71 = vector.broadcast %70 : vector<16x1xf32> to vector<16x16xf32>
    %72 = arith.subf %68, %71 : vector<16x16xf32>
    %73 = math.exp %72 : vector<16x16xf32>
    %cst_37 = arith.constant dense<0.000000e+00> : vector<16xf32>
    %74 = vector.multi_reduction <add>, %73, %cst_37 [1] : vector<16x16xf32> to vector<16xf32>
    %75 = vector.shape_cast %74 : vector<16xf32> to vector<16x1xf32>
    %76 = tpu.reciprocal %75 {approx = true} : vector<16x1xf32> -> vector<16x1xf32>
    %77 = vector.broadcast %76 : vector<16x1xf32> to vector<16x16xf32>
    %78 = arith.mulf %73, %77 : vector<16x16xf32>
    %79 = arith.truncf %78 : vector<16x16xf32> to vector<16x16xbf16>
    %cst_38 = arith.constant dense<0.000000e+00> : vector<16x8xf32>
    %80 = tpu.matmul %79, %67, %cst_38 {dimension_numbers = #tpu.dot_dimension_numbers<[1], [0], [0], [1], [0, 0, 1, 1], [], []>} : vector<16x16xbf16>, vector<16x8xbf16>, vector<16x8xf32> -> vector<16x8xf32>
    %81 = vector.extract_strided_slice %42 {offsets = [0, 16], sizes = [16, 8], strides = [1, 1]} : vector<16x32xf32> to vector<16x8xf32>
    %82 = arith.truncf %81 : vector<16x8xf32> to vector<16x8xbf16>
    %83 = vector.extract_strided_slice %35 {offsets = [0, 16], sizes = [16, 8], strides = [1, 1]} : vector<16x32xf32> to vector<16x8xf32>
    %84 = arith.truncf %83 : vector<16x8xf32> to vector<16x8xbf16>
    %85 = vector.extract_strided_slice %36 {offsets = [0, 16], sizes = [16, 8], strides = [1, 1]} : vector<16x32xf32> to vector<16x8xf32>
    %86 = arith.truncf %85 : vector<16x8xf32> to vector<16x8xbf16>
    %cst_39 = arith.constant dense<0.000000e+00> : vector<16x16xf32>
    %87 = tpu.matmul %82, %84, %cst_39 {dimension_numbers = #tpu.dot_dimension_numbers<[1], [1], [0], [0], [0, 0, 1, 0], [], []>} : vector<16x8xbf16>, vector<16x8xbf16>, vector<16x16xf32> -> vector<16x16xf32>
    %cst_40 = arith.constant dense<0xFF800000> : vector<16xf32>
    %88 = vector.multi_reduction <maximumf>, %87, %cst_40 [1] : vector<16x16xf32> to vector<16xf32>
    %89 = vector.shape_cast %88 : vector<16xf32> to vector<16x1xf32>
    %90 = vector.broadcast %89 : vector<16x1xf32> to vector<16x16xf32>
    %91 = arith.subf %87, %90 : vector<16x16xf32>
    %92 = math.exp %91 : vector<16x16xf32>
    %cst_41 = arith.constant dense<0.000000e+00> : vector<16xf32>
    %93 = vector.multi_reduction <add>, %92, %cst_41 [1] : vector<16x16xf32> to vector<16xf32>
    %94 = vector.shape_cast %93 : vector<16xf32> to vector<16x1xf32>
    %95 = tpu.reciprocal %94 {approx = true} : vector<16x1xf32> -> vector<16x1xf32>
    %96 = vector.broadcast %95 : vector<16x1xf32> to vector<16x16xf32>
    %97 = arith.mulf %92, %96 : vector<16x16xf32>
    %98 = arith.truncf %97 : vector<16x16xf32> to vector<16x16xbf16>
    %cst_42 = arith.constant dense<0.000000e+00> : vector<16x8xf32>
    %99 = tpu.matmul %98, %86, %cst_42 {dimension_numbers = #tpu.dot_dimension_numbers<[1], [0], [0], [1], [0, 0, 1, 1], [], []>} : vector<16x16xbf16>, vector<16x8xbf16>, vector<16x8xf32> -> vector<16x8xf32>
    %100 = vector.extract_strided_slice %42 {offsets = [0, 24], sizes = [16, 8], strides = [1, 1]} : vector<16x32xf32> to vector<16x8xf32>
    %101 = arith.truncf %100 : vector<16x8xf32> to vector<16x8xbf16>
    %102 = vector.extract_strided_slice %35 {offsets = [0, 24], sizes = [16, 8], strides = [1, 1]} : vector<16x32xf32> to vector<16x8xf32>
    %103 = arith.truncf %102 : vector<16x8xf32> to vector<16x8xbf16>
    %104 = vector.extract_strided_slice %36 {offsets = [0, 24], sizes = [16, 8], strides = [1, 1]} : vector<16x32xf32> to vector<16x8xf32>
    %105 = arith.truncf %104 : vector<16x8xf32> to vector<16x8xbf16>
    %cst_43 = arith.constant dense<0.000000e+00> : vector<16x16xf32>
    %106 = tpu.matmul %101, %103, %cst_43 {dimension_numbers = #tpu.dot_dimension_numbers<[1], [1], [0], [0], [0, 0, 1, 0], [], []>} : vector<16x8xbf16>, vector<16x8xbf16>, vector<16x16xf32> -> vector<16x16xf32>
    %cst_44 = arith.constant dense<0xFF800000> : vector<16xf32>
    %107 = vector.multi_reduction <maximumf>, %106, %cst_44 [1] : vector<16x16xf32> to vector<16xf32>
    %108 = vector.shape_cast %107 : vector<16xf32> to vector<16x1xf32>
    %109 = vector.broadcast %108 : vector<16x1xf32> to vector<16x16xf32>
    %110 = arith.subf %106, %109 : vector<16x16xf32>
    %111 = math.exp %110 : vector<16x16xf32>
    %cst_45 = arith.constant dense<0.000000e+00> : vector<16xf32>
    %112 = vector.multi_reduction <add>, %111, %cst_45 [1] : vector<16x16xf32> to vector<16xf32>
    %113 = vector.shape_cast %112 : vector<16xf32> to vector<16x1xf32>
    %114 = tpu.reciprocal %113 {approx = true} : vector<16x1xf32> -> vector<16x1xf32>
    %115 = vector.broadcast %114 : vector<16x1xf32> to vector<16x16xf32>
    %116 = arith.mulf %111, %115 : vector<16x16xf32>
    %117 = arith.truncf %116 : vector<16x16xf32> to vector<16x16xbf16>
    %cst_46 = arith.constant dense<0.000000e+00> : vector<16x8xf32>
    %118 = tpu.matmul %117, %105, %cst_46 {dimension_numbers = #tpu.dot_dimension_numbers<[1], [0], [0], [1], [0, 0, 1, 1], [], []>} : vector<16x16xbf16>, vector<16x8xbf16>, vector<16x8xf32> -> vector<16x8xf32>
    %119 = tpu.concatenate %61, %80, %99, %118 in 1 : vector<16x8xf32>, vector<16x8xf32>, vector<16x8xf32>, vector<16x8xf32> -> vector<16x32xf32>
    %120 = arith.truncf %119 : vector<16x32xf32> to vector<16x32xbf16>
    %cst_47 = arith.constant dense<0.000000e+00> : vector<16x32xf32>
    %121 = tpu.matmul %120, %38, %cst_47 {dimension_numbers = #tpu.dot_dimension_numbers<[1], [0], [0], [1], [0, 0, 1, 1], [], []>} : vector<16x32xbf16>, vector<32x32xbf16>, vector<16x32xf32> -> vector<16x32xf32>
    %122 = vector.broadcast %40 : vector<1x32xf32> to vector<16x32xf32>
    %123 = arith.addf %121, %122 : vector<16x32xf32>
    %124 = arith.addf %25, %123 : vector<16x32xf32>
    %c0_48 = arith.constant 0 : index
    %c0_49 = arith.constant 0 : index
    %c0_50 = arith.constant 0 : index
    %125 = vector.load %arg11[%c0_48, %c0_49, %c0_50] : memref<2x1x32xf32, #tpu.memory_space<vmem>>, vector<1x1x32xf32>
    %126 = vector.shape_cast %125 : vector<1x1x32xf32> to vector<1x32xf32>
    %c0_51 = arith.constant 0 : index
    %c0_52 = arith.constant 0 : index
    %c0_53 = arith.constant 0 : index
    %127 = vector.load %arg12[%c0_51, %c0_52, %c0_53] : memref<2x1x32xf32, #tpu.memory_space<vmem>>, vector<1x1x32xf32>
    %128 = vector.shape_cast %127 : vector<1x1x32xf32> to vector<1x32xf32>
    %cst_54 = arith.constant dense<0.000000e+00> : vector<16xf32>
    %129 = vector.multi_reduction <add>, %124, %cst_54 [1] : vector<16x32xf32> to vector<16xf32>
    %130 = vector.shape_cast %129 : vector<16xf32> to vector<16x1xf32>
    %cst_55 = arith.constant 3.200000e+01 : f32
    %131 = vector.broadcast %cst_55 : f32 to vector<16x1xf32>
    %132 = arith.divf %130, %131 : vector<16x1xf32>
    %133 = vector.broadcast %132 : vector<16x1xf32> to vector<16x32xf32>
    %134 = arith.subf %124, %133 : vector<16x32xf32>
    %135 = arith.mulf %134, %134 : vector<16x32xf32>
    %cst_56 = arith.constant dense<0.000000e+00> : vector<16xf32>
    %136 = vector.multi_reduction <add>, %135, %cst_56 [1] : vector<16x32xf32> to vector<16xf32>
    %137 = vector.shape_cast %136 : vector<16xf32> to vector<16x1xf32>
    %cst_57 = arith.constant 3.200000e+01 : f32
    %138 = vector.broadcast %cst_57 : f32 to vector<16x1xf32>
    %139 = arith.divf %137, %138 : vector<16x1xf32>
    %cst_58 = arith.constant 9.99999997E-7 : f32
    %140 = vector.broadcast %cst_58 : f32 to vector<16x1xf32>
    %141 = arith.addf %139, %140 : vector<16x1xf32>
    %142 = math.rsqrt %141 : vector<16x1xf32>
    %143 = vector.broadcast %142 : vector<16x1xf32> to vector<16x32xf32>
    %144 = arith.mulf %134, %143 : vector<16x32xf32>
    %145 = vector.broadcast %126 : vector<1x32xf32> to vector<16x32xf32>
    %146 = arith.mulf %144, %145 : vector<16x32xf32>
    %147 = vector.broadcast %128 : vector<1x32xf32> to vector<16x32xf32>
    %148 = arith.addf %146, %147 : vector<16x32xf32>
    %c0_59 = arith.constant 0 : index
    %c0_60 = arith.constant 0 : index
    %c0_61 = arith.constant 0 : index
    %149 = vector.load %arg13[%c0_59, %c0_60, %c0_61] : memref<2x32x64xbf16, #tpu.memory_space<vmem>>, vector<1x32x64xbf16>
    %150 = vector.shape_cast %149 : vector<1x32x64xbf16> to vector<32x64xbf16>
    %c0_62 = arith.constant 0 : index
    %c0_63 = arith.constant 0 : index
    %c0_64 = arith.constant 0 : index
    %151 = vector.load %arg14[%c0_62, %c0_63, %c0_64] : memref<2x1x64xf32, #tpu.memory_space<vmem>>, vector<1x1x64xf32>
    %152 = vector.shape_cast %151 : vector<1x1x64xf32> to vector<1x64xf32>
    %153 = arith.truncf %148 : vector<16x32xf32> to vector<16x32xbf16>
    %cst_65 = arith.constant dense<0.000000e+00> : vector<16x64xf32>
    %154 = tpu.matmul %153, %150, %cst_65 {dimension_numbers = #tpu.dot_dimension_numbers<[1], [0], [0], [1], [0, 0, 1, 1], [], []>} : vector<16x32xbf16>, vector<32x64xbf16>, vector<16x64xf32> -> vector<16x64xf32>
    %155 = vector.broadcast %152 : vector<1x64xf32> to vector<16x64xf32>
    %156 = arith.addf %154, %155 : vector<16x64xf32>
    %cst_66 = arith.constant 0.000000e+00 : f32
    %157 = vector.broadcast %cst_66 : f32 to vector<16x64xf32>
    %158 = arith.maximumf %156, %157 : vector<16x64xf32>
    %c0_67 = arith.constant 0 : index
    %c0_68 = arith.constant 0 : index
    %c0_69 = arith.constant 0 : index
    %159 = vector.load %arg15[%c0_67, %c0_68, %c0_69] : memref<2x64x32xbf16, #tpu.memory_space<vmem>>, vector<1x64x32xbf16>
    %160 = vector.shape_cast %159 : vector<1x64x32xbf16> to vector<64x32xbf16>
    %c0_70 = arith.constant 0 : index
    %c0_71 = arith.constant 0 : index
    %c0_72 = arith.constant 0 : index
    %161 = vector.load %arg16[%c0_70, %c0_71, %c0_72] : memref<2x1x32xf32, #tpu.memory_space<vmem>>, vector<1x1x32xf32>
    %162 = vector.shape_cast %161 : vector<1x1x32xf32> to vector<1x32xf32>
    %163 = arith.truncf %158 : vector<16x64xf32> to vector<16x64xbf16>
    %cst_73 = arith.constant dense<0.000000e+00> : vector<16x32xf32>
    %164 = tpu.matmul %163, %160, %cst_73 {dimension_numbers = #tpu.dot_dimension_numbers<[1], [0], [0], [1], [0, 0, 1, 1], [], []>} : vector<16x64xbf16>, vector<64x32xbf16>, vector<16x32xf32> -> vector<16x32xf32>
    %165 = vector.broadcast %162 : vector<1x32xf32> to vector<16x32xf32>
    %166 = arith.addf %164, %165 : vector<16x32xf32>
    %167 = arith.addf %148, %166 : vector<16x32xf32>
    %c0_74 = arith.constant 0 : index
    %c0_75 = arith.constant 0 : index
    %c0_76 = arith.constant 0 : index
    %168 = vector.load %arg17[%c0_74, %c0_75, %c0_76] : memref<2x1x32xf32, #tpu.memory_space<vmem>>, vector<1x1x32xf32>
    %169 = vector.shape_cast %168 : vector<1x1x32xf32> to vector<1x32xf32>
    %c0_77 = arith.constant 0 : index
    %c0_78 = arith.constant 0 : index
    %c0_79 = arith.constant 0 : index
    %170 = vector.load %arg18[%c0_77, %c0_78, %c0_79] : memref<2x1x32xf32, #tpu.memory_space<vmem>>, vector<1x1x32xf32>
    %171 = vector.shape_cast %170 : vector<1x1x32xf32> to vector<1x32xf32>
    %cst_80 = arith.constant dense<0.000000e+00> : vector<16xf32>
    %172 = vector.multi_reduction <add>, %167, %cst_80 [1] : vector<16x32xf32> to vector<16xf32>
    %173 = vector.shape_cast %172 : vector<16xf32> to vector<16x1xf32>
    %cst_81 = arith.constant 3.200000e+01 : f32
    %174 = vector.broadcast %cst_81 : f32 to vector<16x1xf32>
    %175 = arith.divf %173, %174 : vector<16x1xf32>
    %176 = vector.broadcast %175 : vector<16x1xf32> to vector<16x32xf32>
    %177 = arith.subf %167, %176 : vector<16x32xf32>
    %178 = arith.mulf %177, %177 : vector<16x32xf32>
    %cst_82 = arith.constant dense<0.000000e+00> : vector<16xf32>
    %179 = vector.multi_reduction <add>, %178, %cst_82 [1] : vector<16x32xf32> to vector<16xf32>
    %180 = vector.shape_cast %179 : vector<16xf32> to vector<16x1xf32>
    %cst_83 = arith.constant 3.200000e+01 : f32
    %181 = vector.broadcast %cst_83 : f32 to vector<16x1xf32>
    %182 = arith.divf %180, %181 : vector<16x1xf32>
    %cst_84 = arith.constant 9.99999997E-7 : f32
    %183 = vector.broadcast %cst_84 : f32 to vector<16x1xf32>
    %184 = arith.addf %182, %183 : vector<16x1xf32>
    %185 = math.rsqrt %184 : vector<16x1xf32>
    %186 = vector.broadcast %185 : vector<16x1xf32> to vector<16x32xf32>
    %187 = arith.mulf %177, %186 : vector<16x32xf32>
    %188 = vector.broadcast %169 : vector<1x32xf32> to vector<16x32xf32>
    %189 = arith.mulf %187, %188 : vector<16x32xf32>
    %190 = vector.broadcast %171 : vector<1x32xf32> to vector<16x32xf32>
    %191 = arith.addf %189, %190 : vector<16x32xf32>
    %c1 = arith.constant 1 : index
    %c0_85 = arith.constant 0 : index
    %c0_86 = arith.constant 0 : index
    %192 = vector.load %arg7[%c1, %c0_85, %c0_86] : memref<2x32x96xbf16, #tpu.memory_space<vmem>>, vector<1x32x96xbf16>
    %193 = vector.shape_cast %192 : vector<1x32x96xbf16> to vector<32x96xbf16>
    %c1_87 = arith.constant 1 : index
    %c0_88 = arith.constant 0 : index
    %c0_89 = arith.constant 0 : index
    %194 = vector.load %arg8[%c1_87, %c0_88, %c0_89] : memref<2x1x96xf32, #tpu.memory_space<vmem>>, vector<1x1x96xf32>
    %195 = vector.shape_cast %194 : vector<1x1x96xf32> to vector<1x96xf32>
    %196 = arith.truncf %191 : vector<16x32xf32> to vector<16x32xbf16>
    %cst_90 = arith.constant dense<0.000000e+00> : vector<16x96xf32>
    %197 = tpu.matmul %196, %193, %cst_90 {dimension_numbers = #tpu.dot_dimension_numbers<[1], [0], [0], [1], [0, 0, 1, 1], [], []>} : vector<16x32xbf16>, vector<32x96xbf16>, vector<16x96xf32> -> vector<16x96xf32>
    %198 = vector.broadcast %195 : vector<1x96xf32> to vector<16x96xf32>
    %199 = arith.addf %197, %198 : vector<16x96xf32>
    %200 = vector.extract_strided_slice %199 {offsets = [0, 0], sizes = [16, 32], strides = [1, 1]} : vector<16x96xf32> to vector<16x32xf32>
    %201 = vector.extract_strided_slice %199 {offsets = [0, 32], sizes = [16, 32], strides = [1, 1]} : vector<16x96xf32> to vector<16x32xf32>
    %202 = vector.extract_strided_slice %199 {offsets = [0, 64], sizes = [16, 32], strides = [1, 1]} : vector<16x96xf32> to vector<16x32xf32>
    %c1_91 = arith.constant 1 : index
    %c0_92 = arith.constant 0 : index
    %c0_93 = arith.constant 0 : index
    %203 = vector.load %arg9[%c1_91, %c0_92, %c0_93] : memref<2x32x32xbf16, #tpu.memory_space<vmem>>, vector<1x32x32xbf16>
    %204 = vector.shape_cast %203 : vector<1x32x32xbf16> to vector<32x32xbf16>
    %c1_94 = arith.constant 1 : index
    %c0_95 = arith.constant 0 : index
    %c0_96 = arith.constant 0 : index
    %205 = vector.load %arg10[%c1_94, %c0_95, %c0_96] : memref<2x1x32xf32, #tpu.memory_space<vmem>>, vector<1x1x32xf32>
    %206 = vector.shape_cast %205 : vector<1x1x32xf32> to vector<1x32xf32>
    %cst_97 = arith.constant 0.353553385 : f32
    %207 = vector.broadcast %cst_97 : f32 to vector<16x32xf32>
    %208 = arith.mulf %200, %207 : vector<16x32xf32>
    %209 = vector.extract_strided_slice %208 {offsets = [0, 0], sizes = [16, 8], strides = [1, 1]} : vector<16x32xf32> to vector<16x8xf32>
    %210 = arith.truncf %209 : vector<16x8xf32> to vector<16x8xbf16>
    %211 = vector.extract_strided_slice %201 {offsets = [0, 0], sizes = [16, 8], strides = [1, 1]} : vector<16x32xf32> to vector<16x8xf32>
    %212 = arith.truncf %211 : vector<16x8xf32> to vector<16x8xbf16>
    %213 = vector.extract_strided_slice %202 {offsets = [0, 0], sizes = [16, 8], strides = [1, 1]} : vector<16x32xf32> to vector<16x8xf32>
    %214 = arith.truncf %213 : vector<16x8xf32> to vector<16x8xbf16>
    %cst_98 = arith.constant dense<0.000000e+00> : vector<16x16xf32>
    %215 = tpu.matmul %210, %212, %cst_98 {dimension_numbers = #tpu.dot_dimension_numbers<[1], [1], [0], [0], [0, 0, 1, 0], [], []>} : vector<16x8xbf16>, vector<16x8xbf16>, vector<16x16xf32> -> vector<16x16xf32>
    %cst_99 = arith.constant dense<0xFF800000> : vector<16xf32>
    %216 = vector.multi_reduction <maximumf>, %215, %cst_99 [1] : vector<16x16xf32> to vector<16xf32>
    %217 = vector.shape_cast %216 : vector<16xf32> to vector<16x1xf32>
    %218 = vector.broadcast %217 : vector<16x1xf32> to vector<16x16xf32>
    %219 = arith.subf %215, %218 : vector<16x16xf32>
    %220 = math.exp %219 : vector<16x16xf32>
    %cst_100 = arith.constant dense<0.000000e+00> : vector<16xf32>
    %221 = vector.multi_reduction <add>, %220, %cst_100 [1] : vector<16x16xf32> to vector<16xf32>
    %222 = vector.shape_cast %221 : vector<16xf32> to vector<16x1xf32>
    %223 = tpu.reciprocal %222 {approx = true} : vector<16x1xf32> -> vector<16x1xf32>
    %224 = vector.broadcast %223 : vector<16x1xf32> to vector<16x16xf32>
    %225 = arith.mulf %220, %224 : vector<16x16xf32>
    %226 = arith.truncf %225 : vector<16x16xf32> to vector<16x16xbf16>
    %cst_101 = arith.constant dense<0.000000e+00> : vector<16x8xf32>
    %227 = tpu.matmul %226, %214, %cst_101 {dimension_numbers = #tpu.dot_dimension_numbers<[1], [0], [0], [1], [0, 0, 1, 1], [], []>} : vector<16x16xbf16>, vector<16x8xbf16>, vector<16x8xf32> -> vector<16x8xf32>
    %228 = vector.extract_strided_slice %208 {offsets = [0, 8], sizes = [16, 8], strides = [1, 1]} : vector<16x32xf32> to vector<16x8xf32>
    %229 = arith.truncf %228 : vector<16x8xf32> to vector<16x8xbf16>
    %230 = vector.extract_strided_slice %201 {offsets = [0, 8], sizes = [16, 8], strides = [1, 1]} : vector<16x32xf32> to vector<16x8xf32>
    %231 = arith.truncf %230 : vector<16x8xf32> to vector<16x8xbf16>
    %232 = vector.extract_strided_slice %202 {offsets = [0, 8], sizes = [16, 8], strides = [1, 1]} : vector<16x32xf32> to vector<16x8xf32>
    %233 = arith.truncf %232 : vector<16x8xf32> to vector<16x8xbf16>
    %cst_102 = arith.constant dense<0.000000e+00> : vector<16x16xf32>
    %234 = tpu.matmul %229, %231, %cst_102 {dimension_numbers = #tpu.dot_dimension_numbers<[1], [1], [0], [0], [0, 0, 1, 0], [], []>} : vector<16x8xbf16>, vector<16x8xbf16>, vector<16x16xf32> -> vector<16x16xf32>
    %cst_103 = arith.constant dense<0xFF800000> : vector<16xf32>
    %235 = vector.multi_reduction <maximumf>, %234, %cst_103 [1] : vector<16x16xf32> to vector<16xf32>
    %236 = vector.shape_cast %235 : vector<16xf32> to vector<16x1xf32>
    %237 = vector.broadcast %236 : vector<16x1xf32> to vector<16x16xf32>
    %238 = arith.subf %234, %237 : vector<16x16xf32>
    %239 = math.exp %238 : vector<16x16xf32>
    %cst_104 = arith.constant dense<0.000000e+00> : vector<16xf32>
    %240 = vector.multi_reduction <add>, %239, %cst_104 [1] : vector<16x16xf32> to vector<16xf32>
    %241 = vector.shape_cast %240 : vector<16xf32> to vector<16x1xf32>
    %242 = tpu.reciprocal %241 {approx = true} : vector<16x1xf32> -> vector<16x1xf32>
    %243 = vector.broadcast %242 : vector<16x1xf32> to vector<16x16xf32>
    %244 = arith.mulf %239, %243 : vector<16x16xf32>
    %245 = arith.truncf %244 : vector<16x16xf32> to vector<16x16xbf16>
    %cst_105 = arith.constant dense<0.000000e+00> : vector<16x8xf32>
    %246 = tpu.matmul %245, %233, %cst_105 {dimension_numbers = #tpu.dot_dimension_numbers<[1], [0], [0], [1], [0, 0, 1, 1], [], []>} : vector<16x16xbf16>, vector<16x8xbf16>, vector<16x8xf32> -> vector<16x8xf32>
    %247 = vector.extract_strided_slice %208 {offsets = [0, 16], sizes = [16, 8], strides = [1, 1]} : vector<16x32xf32> to vector<16x8xf32>
    %248 = arith.truncf %247 : vector<16x8xf32> to vector<16x8xbf16>
    %249 = vector.extract_strided_slice %201 {offsets = [0, 16], sizes = [16, 8], strides = [1, 1]} : vector<16x32xf32> to vector<16x8xf32>
    %250 = arith.truncf %249 : vector<16x8xf32> to vector<16x8xbf16>
    %251 = vector.extract_strided_slice %202 {offsets = [0, 16], sizes = [16, 8], strides = [1, 1]} : vector<16x32xf32> to vector<16x8xf32>
    %252 = arith.truncf %251 : vector<16x8xf32> to vector<16x8xbf16>
    %cst_106 = arith.constant dense<0.000000e+00> : vector<16x16xf32>
    %253 = tpu.matmul %248, %250, %cst_106 {dimension_numbers = #tpu.dot_dimension_numbers<[1], [1], [0], [0], [0, 0, 1, 0], [], []>} : vector<16x8xbf16>, vector<16x8xbf16>, vector<16x16xf32> -> vector<16x16xf32>
    %cst_107 = arith.constant dense<0xFF800000> : vector<16xf32>
    %254 = vector.multi_reduction <maximumf>, %253, %cst_107 [1] : vector<16x16xf32> to vector<16xf32>
    %255 = vector.shape_cast %254 : vector<16xf32> to vector<16x1xf32>
    %256 = vector.broadcast %255 : vector<16x1xf32> to vector<16x16xf32>
    %257 = arith.subf %253, %256 : vector<16x16xf32>
    %258 = math.exp %257 : vector<16x16xf32>
    %cst_108 = arith.constant dense<0.000000e+00> : vector<16xf32>
    %259 = vector.multi_reduction <add>, %258, %cst_108 [1] : vector<16x16xf32> to vector<16xf32>
    %260 = vector.shape_cast %259 : vector<16xf32> to vector<16x1xf32>
    %261 = tpu.reciprocal %260 {approx = true} : vector<16x1xf32> -> vector<16x1xf32>
    %262 = vector.broadcast %261 : vector<16x1xf32> to vector<16x16xf32>
    %263 = arith.mulf %258, %262 : vector<16x16xf32>
    %264 = arith.truncf %263 : vector<16x16xf32> to vector<16x16xbf16>
    %cst_109 = arith.constant dense<0.000000e+00> : vector<16x8xf32>
    %265 = tpu.matmul %264, %252, %cst_109 {dimension_numbers = #tpu.dot_dimension_numbers<[1], [0], [0], [1], [0, 0, 1, 1], [], []>} : vector<16x16xbf16>, vector<16x8xbf16>, vector<16x8xf32> -> vector<16x8xf32>
    %266 = vector.extract_strided_slice %208 {offsets = [0, 24], sizes = [16, 8], strides = [1, 1]} : vector<16x32xf32> to vector<16x8xf32>
    %267 = arith.truncf %266 : vector<16x8xf32> to vector<16x8xbf16>
    %268 = vector.extract_strided_slice %201 {offsets = [0, 24], sizes = [16, 8], strides = [1, 1]} : vector<16x32xf32> to vector<16x8xf32>
    %269 = arith.truncf %268 : vector<16x8xf32> to vector<16x8xbf16>
    %270 = vector.extract_strided_slice %202 {offsets = [0, 24], sizes = [16, 8], strides = [1, 1]} : vector<16x32xf32> to vector<16x8xf32>
    %271 = arith.truncf %270 : vector<16x8xf32> to vector<16x8xbf16>
    %cst_110 = arith.constant dense<0.000000e+00> : vector<16x16xf32>
    %272 = tpu.matmul %267, %269, %cst_110 {dimension_numbers = #tpu.dot_dimension_numbers<[1], [1], [0], [0], [0, 0, 1, 0], [], []>} : vector<16x8xbf16>, vector<16x8xbf16>, vector<16x16xf32> -> vector<16x16xf32>
    %cst_111 = arith.constant dense<0xFF800000> : vector<16xf32>
    %273 = vector.multi_reduction <maximumf>, %272, %cst_111 [1] : vector<16x16xf32> to vector<16xf32>
    %274 = vector.shape_cast %273 : vector<16xf32> to vector<16x1xf32>
    %275 = vector.broadcast %274 : vector<16x1xf32> to vector<16x16xf32>
    %276 = arith.subf %272, %275 : vector<16x16xf32>
    %277 = math.exp %276 : vector<16x16xf32>
    %cst_112 = arith.constant dense<0.000000e+00> : vector<16xf32>
    %278 = vector.multi_reduction <add>, %277, %cst_112 [1] : vector<16x16xf32> to vector<16xf32>
    %279 = vector.shape_cast %278 : vector<16xf32> to vector<16x1xf32>
    %280 = tpu.reciprocal %279 {approx = true} : vector<16x1xf32> -> vector<16x1xf32>
    %281 = vector.broadcast %280 : vector<16x1xf32> to vector<16x16xf32>
    %282 = arith.mulf %277, %281 : vector<16x16xf32>
    %283 = arith.truncf %282 : vector<16x16xf32> to vector<16x16xbf16>
    %cst_113 = arith.constant dense<0.000000e+00> : vector<16x8xf32>
    %284 = tpu.matmul %283, %271, %cst_113 {dimension_numbers = #tpu.dot_dimension_numbers<[1], [0], [0], [1], [0, 0, 1, 1], [], []>} : vector<16x16xbf16>, vector<16x8xbf16>, vector<16x8xf32> -> vector<16x8xf32>
    %285 = tpu.concatenate %227, %246, %265, %284 in 1 : vector<16x8xf32>, vector<16x8xf32>, vector<16x8xf32>, vector<16x8xf32> -> vector<16x32xf32>
    %286 = arith.truncf %285 : vector<16x32xf32> to vector<16x32xbf16>
    %cst_114 = arith.constant dense<0.000000e+00> : vector<16x32xf32>
    %287 = tpu.matmul %286, %204, %cst_114 {dimension_numbers = #tpu.dot_dimension_numbers<[1], [0], [0], [1], [0, 0, 1, 1], [], []>} : vector<16x32xbf16>, vector<32x32xbf16>, vector<16x32xf32> -> vector<16x32xf32>
    %288 = vector.broadcast %206 : vector<1x32xf32> to vector<16x32xf32>
    %289 = arith.addf %287, %288 : vector<16x32xf32>
    %290 = arith.addf %191, %289 : vector<16x32xf32>
    %c1_115 = arith.constant 1 : index
    %c0_116 = arith.constant 0 : index
    %c0_117 = arith.constant 0 : index
    %291 = vector.load %arg11[%c1_115, %c0_116, %c0_117] : memref<2x1x32xf32, #tpu.memory_space<vmem>>, vector<1x1x32xf32>
    %292 = vector.shape_cast %291 : vector<1x1x32xf32> to vector<1x32xf32>
    %c1_118 = arith.constant 1 : index
    %c0_119 = arith.constant 0 : index
    %c0_120 = arith.constant 0 : index
    %293 = vector.load %arg12[%c1_118, %c0_119, %c0_120] : memref<2x1x32xf32, #tpu.memory_space<vmem>>, vector<1x1x32xf32>
    %294 = vector.shape_cast %293 : vector<1x1x32xf32> to vector<1x32xf32>
    %cst_121 = arith.constant dense<0.000000e+00> : vector<16xf32>
    %295 = vector.multi_reduction <add>, %290, %cst_121 [1] : vector<16x32xf32> to vector<16xf32>
    %296 = vector.shape_cast %295 : vector<16xf32> to vector<16x1xf32>
    %cst_122 = arith.constant 3.200000e+01 : f32
    %297 = vector.broadcast %cst_122 : f32 to vector<16x1xf32>
    %298 = arith.divf %296, %297 : vector<16x1xf32>
    %299 = vector.broadcast %298 : vector<16x1xf32> to vector<16x32xf32>
    %300 = arith.subf %290, %299 : vector<16x32xf32>
    %301 = arith.mulf %300, %300 : vector<16x32xf32>
    %cst_123 = arith.constant dense<0.000000e+00> : vector<16xf32>
    %302 = vector.multi_reduction <add>, %301, %cst_123 [1] : vector<16x32xf32> to vector<16xf32>
    %303 = vector.shape_cast %302 : vector<16xf32> to vector<16x1xf32>
    %cst_124 = arith.constant 3.200000e+01 : f32
    %304 = vector.broadcast %cst_124 : f32 to vector<16x1xf32>
    %305 = arith.divf %303, %304 : vector<16x1xf32>
    %cst_125 = arith.constant 9.99999997E-7 : f32
    %306 = vector.broadcast %cst_125 : f32 to vector<16x1xf32>
    %307 = arith.addf %305, %306 : vector<16x1xf32>
    %308 = math.rsqrt %307 : vector<16x1xf32>
    %309 = vector.broadcast %308 : vector<16x1xf32> to vector<16x32xf32>
    %310 = arith.mulf %300, %309 : vector<16x32xf32>
    %311 = vector.broadcast %292 : vector<1x32xf32> to vector<16x32xf32>
    %312 = arith.mulf %310, %311 : vector<16x32xf32>
    %313 = vector.broadcast %294 : vector<1x32xf32> to vector<16x32xf32>
    %314 = arith.addf %312, %313 : vector<16x32xf32>
    %c1_126 = arith.constant 1 : index
    %c0_127 = arith.constant 0 : index
    %c0_128 = arith.constant 0 : index
    %315 = vector.load %arg13[%c1_126, %c0_127, %c0_128] : memref<2x32x64xbf16, #tpu.memory_space<vmem>>, vector<1x32x64xbf16>
    %316 = vector.shape_cast %315 : vector<1x32x64xbf16> to vector<32x64xbf16>
    %c1_129 = arith.constant 1 : index
    %c0_130 = arith.constant 0 : index
    %c0_131 = arith.constant 0 : index
    %317 = vector.load %arg14[%c1_129, %c0_130, %c0_131] : memref<2x1x64xf32, #tpu.memory_space<vmem>>, vector<1x1x64xf32>
    %318 = vector.shape_cast %317 : vector<1x1x64xf32> to vector<1x64xf32>
    %319 = arith.truncf %314 : vector<16x32xf32> to vector<16x32xbf16>
    %cst_132 = arith.constant dense<0.000000e+00> : vector<16x64xf32>
    %320 = tpu.matmul %319, %316, %cst_132 {dimension_numbers = #tpu.dot_dimension_numbers<[1], [0], [0], [1], [0, 0, 1, 1], [], []>} : vector<16x32xbf16>, vector<32x64xbf16>, vector<16x64xf32> -> vector<16x64xf32>
    %321 = vector.broadcast %318 : vector<1x64xf32> to vector<16x64xf32>
    %322 = arith.addf %320, %321 : vector<16x64xf32>
    %cst_133 = arith.constant 0.000000e+00 : f32
    %323 = vector.broadcast %cst_133 : f32 to vector<16x64xf32>
    %324 = arith.maximumf %322, %323 : vector<16x64xf32>
    %c1_134 = arith.constant 1 : index
    %c0_135 = arith.constant 0 : index
    %c0_136 = arith.constant 0 : index
    %325 = vector.load %arg15[%c1_134, %c0_135, %c0_136] : memref<2x64x32xbf16, #tpu.memory_space<vmem>>, vector<1x64x32xbf16>
    %326 = vector.shape_cast %325 : vector<1x64x32xbf16> to vector<64x32xbf16>
    %c1_137 = arith.constant 1 : index
    %c0_138 = arith.constant 0 : index
    %c0_139 = arith.constant 0 : index
    %327 = vector.load %arg16[%c1_137, %c0_138, %c0_139] : memref<2x1x32xf32, #tpu.memory_space<vmem>>, vector<1x1x32xf32>
    %328 = vector.shape_cast %327 : vector<1x1x32xf32> to vector<1x32xf32>
    %329 = arith.truncf %324 : vector<16x64xf32> to vector<16x64xbf16>
    %cst_140 = arith.constant dense<0.000000e+00> : vector<16x32xf32>
    %330 = tpu.matmul %329, %326, %cst_140 {dimension_numbers = #tpu.dot_dimension_numbers<[1], [0], [0], [1], [0, 0, 1, 1], [], []>} : vector<16x64xbf16>, vector<64x32xbf16>, vector<16x32xf32> -> vector<16x32xf32>
    %331 = vector.broadcast %328 : vector<1x32xf32> to vector<16x32xf32>
    %332 = arith.addf %330, %331 : vector<16x32xf32>
    %333 = arith.addf %314, %332 : vector<16x32xf32>
    %c1_141 = arith.constant 1 : index
    %c0_142 = arith.constant 0 : index
    %c0_143 = arith.constant 0 : index
    %334 = vector.load %arg17[%c1_141, %c0_142, %c0_143] : memref<2x1x32xf32, #tpu.memory_space<vmem>>, vector<1x1x32xf32>
    %335 = vector.shape_cast %334 : vector<1x1x32xf32> to vector<1x32xf32>
    %c1_144 = arith.constant 1 : index
    %c0_145 = arith.constant 0 : index
    %c0_146 = arith.constant 0 : index
    %336 = vector.load %arg18[%c1_144, %c0_145, %c0_146] : memref<2x1x32xf32, #tpu.memory_space<vmem>>, vector<1x1x32xf32>
    %337 = vector.shape_cast %336 : vector<1x1x32xf32> to vector<1x32xf32>
    %cst_147 = arith.constant dense<0.000000e+00> : vector<16xf32>
    %338 = vector.multi_reduction <add>, %333, %cst_147 [1] : vector<16x32xf32> to vector<16xf32>
    %339 = vector.shape_cast %338 : vector<16xf32> to vector<16x1xf32>
    %cst_148 = arith.constant 3.200000e+01 : f32
    %340 = vector.broadcast %cst_148 : f32 to vector<16x1xf32>
    %341 = arith.divf %339, %340 : vector<16x1xf32>
    %342 = vector.broadcast %341 : vector<16x1xf32> to vector<16x32xf32>
    %343 = arith.subf %333, %342 : vector<16x32xf32>
    %344 = arith.mulf %343, %343 : vector<16x32xf32>
    %cst_149 = arith.constant dense<0.000000e+00> : vector<16xf32>
    %345 = vector.multi_reduction <add>, %344, %cst_149 [1] : vector<16x32xf32> to vector<16xf32>
    %346 = vector.shape_cast %345 : vector<16xf32> to vector<16x1xf32>
    %cst_150 = arith.constant 3.200000e+01 : f32
    %347 = vector.broadcast %cst_150 : f32 to vector<16x1xf32>
    %348 = arith.divf %346, %347 : vector<16x1xf32>
    %cst_151 = arith.constant 9.99999997E-7 : f32
    %349 = vector.broadcast %cst_151 : f32 to vector<16x1xf32>
    %350 = arith.addf %348, %349 : vector<16x1xf32>
    %351 = math.rsqrt %350 : vector<16x1xf32>
    %352 = vector.broadcast %351 : vector<16x1xf32> to vector<16x32xf32>
    %353 = arith.mulf %343, %352 : vector<16x32xf32>
    %354 = vector.broadcast %335 : vector<1x32xf32> to vector<16x32xf32>
    %355 = arith.mulf %353, %354 : vector<16x32xf32>
    %356 = vector.broadcast %337 : vector<1x32xf32> to vector<16x32xf32>
    %357 = arith.addf %355, %356 : vector<16x32xf32>
    %c0_152 = arith.constant 0 : index
    %c0_153 = arith.constant 0 : index
    %c0_154 = arith.constant 0 : index
    %358 = vector.load %arg19[%c0_152, %c0_153, %c0_154] : memref<2x32x96xbf16, #tpu.memory_space<vmem>>, vector<1x32x96xbf16>
    %359 = vector.shape_cast %358 : vector<1x32x96xbf16> to vector<32x96xbf16>
    %c0_155 = arith.constant 0 : index
    %c0_156 = arith.constant 0 : index
    %c0_157 = arith.constant 0 : index
    %360 = vector.load %arg20[%c0_155, %c0_156, %c0_157] : memref<2x1x96xf32, #tpu.memory_space<vmem>>, vector<1x1x96xf32>
    %361 = vector.shape_cast %360 : vector<1x1x96xf32> to vector<1x96xf32>
    %362 = arith.truncf %1 : vector<8x32xf32> to vector<8x32xbf16>
    %cst_158 = arith.constant dense<0.000000e+00> : vector<8x96xf32>
    %363 = tpu.matmul %362, %359, %cst_158 {dimension_numbers = #tpu.dot_dimension_numbers<[1], [0], [0], [1], [0, 0, 1, 1], [], []>} : vector<8x32xbf16>, vector<32x96xbf16>, vector<8x96xf32> -> vector<8x96xf32>
    %364 = vector.broadcast %361 : vector<1x96xf32> to vector<8x96xf32>
    %365 = arith.addf %363, %364 : vector<8x96xf32>
    %366 = vector.extract_strided_slice %365 {offsets = [0, 0], sizes = [8, 32], strides = [1, 1]} : vector<8x96xf32> to vector<8x32xf32>
    %367 = vector.extract_strided_slice %365 {offsets = [0, 32], sizes = [8, 32], strides = [1, 1]} : vector<8x96xf32> to vector<8x32xf32>
    %368 = vector.extract_strided_slice %365 {offsets = [0, 64], sizes = [8, 32], strides = [1, 1]} : vector<8x96xf32> to vector<8x32xf32>
    %c0_159 = arith.constant 0 : index
    %c0_160 = arith.constant 0 : index
    %c0_161 = arith.constant 0 : index
    %369 = vector.load %arg21[%c0_159, %c0_160, %c0_161] : memref<2x32x32xbf16, #tpu.memory_space<vmem>>, vector<1x32x32xbf16>
    %370 = vector.shape_cast %369 : vector<1x32x32xbf16> to vector<32x32xbf16>
    %c0_162 = arith.constant 0 : index
    %c0_163 = arith.constant 0 : index
    %c0_164 = arith.constant 0 : index
    %371 = vector.load %arg22[%c0_162, %c0_163, %c0_164] : memref<2x1x32xf32, #tpu.memory_space<vmem>>, vector<1x1x32xf32>
    %372 = vector.shape_cast %371 : vector<1x1x32xf32> to vector<1x32xf32>
    %cst_165 = arith.constant 0.353553385 : f32
    %373 = vector.broadcast %cst_165 : f32 to vector<8x32xf32>
    %374 = arith.mulf %366, %373 : vector<8x32xf32>
    %375 = vector.extract_strided_slice %374 {offsets = [0, 0], sizes = [8, 8], strides = [1, 1]} : vector<8x32xf32> to vector<8x8xf32>
    %376 = arith.truncf %375 : vector<8x8xf32> to vector<8x8xbf16>
    %377 = vector.extract_strided_slice %367 {offsets = [0, 0], sizes = [8, 8], strides = [1, 1]} : vector<8x32xf32> to vector<8x8xf32>
    %378 = arith.truncf %377 : vector<8x8xf32> to vector<8x8xbf16>
    %379 = vector.extract_strided_slice %368 {offsets = [0, 0], sizes = [8, 8], strides = [1, 1]} : vector<8x32xf32> to vector<8x8xf32>
    %380 = arith.truncf %379 : vector<8x8xf32> to vector<8x8xbf16>
    %cst_166 = arith.constant dense<0.000000e+00> : vector<8x8xf32>
    %381 = tpu.matmul %376, %378, %cst_166 {dimension_numbers = #tpu.dot_dimension_numbers<[1], [1], [0], [0], [0, 0, 1, 0], [], []>} : vector<8x8xbf16>, vector<8x8xbf16>, vector<8x8xf32> -> vector<8x8xf32>
    %382 = arith.addf %381, %12 : vector<8x8xf32>
    %cst_167 = arith.constant dense<0xFF800000> : vector<8xf32>
    %383 = vector.multi_reduction <maximumf>, %382, %cst_167 [1] : vector<8x8xf32> to vector<8xf32>
    %384 = vector.shape_cast %383 : vector<8xf32> to vector<8x1xf32>
    %385 = vector.broadcast %384 : vector<8x1xf32> to vector<8x8xf32>
    %386 = arith.subf %382, %385 : vector<8x8xf32>
    %387 = math.exp %386 : vector<8x8xf32>
    %cst_168 = arith.constant dense<0.000000e+00> : vector<8xf32>
    %388 = vector.multi_reduction <add>, %387, %cst_168 [1] : vector<8x8xf32> to vector<8xf32>
    %389 = vector.shape_cast %388 : vector<8xf32> to vector<8x1xf32>
    %390 = tpu.reciprocal %389 {approx = true} : vector<8x1xf32> -> vector<8x1xf32>
    %391 = vector.broadcast %390 : vector<8x1xf32> to vector<8x8xf32>
    %392 = arith.mulf %387, %391 : vector<8x8xf32>
    %393 = arith.truncf %392 : vector<8x8xf32> to vector<8x8xbf16>
    %cst_169 = arith.constant dense<0.000000e+00> : vector<8x8xf32>
    %394 = tpu.matmul %393, %380, %cst_169 {dimension_numbers = #tpu.dot_dimension_numbers<[1], [0], [0], [1], [0, 0, 1, 1], [], []>} : vector<8x8xbf16>, vector<8x8xbf16>, vector<8x8xf32> -> vector<8x8xf32>
    %395 = vector.extract_strided_slice %374 {offsets = [0, 8], sizes = [8, 8], strides = [1, 1]} : vector<8x32xf32> to vector<8x8xf32>
    %396 = arith.truncf %395 : vector<8x8xf32> to vector<8x8xbf16>
    %397 = vector.extract_strided_slice %367 {offsets = [0, 8], sizes = [8, 8], strides = [1, 1]} : vector<8x32xf32> to vector<8x8xf32>
    %398 = arith.truncf %397 : vector<8x8xf32> to vector<8x8xbf16>
    %399 = vector.extract_strided_slice %368 {offsets = [0, 8], sizes = [8, 8], strides = [1, 1]} : vector<8x32xf32> to vector<8x8xf32>
    %400 = arith.truncf %399 : vector<8x8xf32> to vector<8x8xbf16>
    %cst_170 = arith.constant dense<0.000000e+00> : vector<8x8xf32>
    %401 = tpu.matmul %396, %398, %cst_170 {dimension_numbers = #tpu.dot_dimension_numbers<[1], [1], [0], [0], [0, 0, 1, 0], [], []>} : vector<8x8xbf16>, vector<8x8xbf16>, vector<8x8xf32> -> vector<8x8xf32>
    %402 = arith.addf %401, %12 : vector<8x8xf32>
    %cst_171 = arith.constant dense<0xFF800000> : vector<8xf32>
    %403 = vector.multi_reduction <maximumf>, %402, %cst_171 [1] : vector<8x8xf32> to vector<8xf32>
    %404 = vector.shape_cast %403 : vector<8xf32> to vector<8x1xf32>
    %405 = vector.broadcast %404 : vector<8x1xf32> to vector<8x8xf32>
    %406 = arith.subf %402, %405 : vector<8x8xf32>
    %407 = math.exp %406 : vector<8x8xf32>
    %cst_172 = arith.constant dense<0.000000e+00> : vector<8xf32>
    %408 = vector.multi_reduction <add>, %407, %cst_172 [1] : vector<8x8xf32> to vector<8xf32>
    %409 = vector.shape_cast %408 : vector<8xf32> to vector<8x1xf32>
    %410 = tpu.reciprocal %409 {approx = true} : vector<8x1xf32> -> vector<8x1xf32>
    %411 = vector.broadcast %410 : vector<8x1xf32> to vector<8x8xf32>
    %412 = arith.mulf %407, %411 : vector<8x8xf32>
    %413 = arith.truncf %412 : vector<8x8xf32> to vector<8x8xbf16>
    %cst_173 = arith.constant dense<0.000000e+00> : vector<8x8xf32>
    %414 = tpu.matmul %413, %400, %cst_173 {dimension_numbers = #tpu.dot_dimension_numbers<[1], [0], [0], [1], [0, 0, 1, 1], [], []>} : vector<8x8xbf16>, vector<8x8xbf16>, vector<8x8xf32> -> vector<8x8xf32>
    %415 = vector.extract_strided_slice %374 {offsets = [0, 16], sizes = [8, 8], strides = [1, 1]} : vector<8x32xf32> to vector<8x8xf32>
    %416 = arith.truncf %415 : vector<8x8xf32> to vector<8x8xbf16>
    %417 = vector.extract_strided_slice %367 {offsets = [0, 16], sizes = [8, 8], strides = [1, 1]} : vector<8x32xf32> to vector<8x8xf32>
    %418 = arith.truncf %417 : vector<8x8xf32> to vector<8x8xbf16>
    %419 = vector.extract_strided_slice %368 {offsets = [0, 16], sizes = [8, 8], strides = [1, 1]} : vector<8x32xf32> to vector<8x8xf32>
    %420 = arith.truncf %419 : vector<8x8xf32> to vector<8x8xbf16>
    %cst_174 = arith.constant dense<0.000000e+00> : vector<8x8xf32>
    %421 = tpu.matmul %416, %418, %cst_174 {dimension_numbers = #tpu.dot_dimension_numbers<[1], [1], [0], [0], [0, 0, 1, 0], [], []>} : vector<8x8xbf16>, vector<8x8xbf16>, vector<8x8xf32> -> vector<8x8xf32>
    %422 = arith.addf %421, %12 : vector<8x8xf32>
    %cst_175 = arith.constant dense<0xFF800000> : vector<8xf32>
    %423 = vector.multi_reduction <maximumf>, %422, %cst_175 [1] : vector<8x8xf32> to vector<8xf32>
    %424 = vector.shape_cast %423 : vector<8xf32> to vector<8x1xf32>
    %425 = vector.broadcast %424 : vector<8x1xf32> to vector<8x8xf32>
    %426 = arith.subf %422, %425 : vector<8x8xf32>
    %427 = math.exp %426 : vector<8x8xf32>
    %cst_176 = arith.constant dense<0.000000e+00> : vector<8xf32>
    %428 = vector.multi_reduction <add>, %427, %cst_176 [1] : vector<8x8xf32> to vector<8xf32>
    %429 = vector.shape_cast %428 : vector<8xf32> to vector<8x1xf32>
    %430 = tpu.reciprocal %429 {approx = true} : vector<8x1xf32> -> vector<8x1xf32>
    %431 = vector.broadcast %430 : vector<8x1xf32> to vector<8x8xf32>
    %432 = arith.mulf %427, %431 : vector<8x8xf32>
    %433 = arith.truncf %432 : vector<8x8xf32> to vector<8x8xbf16>
    %cst_177 = arith.constant dense<0.000000e+00> : vector<8x8xf32>
    %434 = tpu.matmul %433, %420, %cst_177 {dimension_numbers = #tpu.dot_dimension_numbers<[1], [0], [0], [1], [0, 0, 1, 1], [], []>} : vector<8x8xbf16>, vector<8x8xbf16>, vector<8x8xf32> -> vector<8x8xf32>
    %435 = vector.extract_strided_slice %374 {offsets = [0, 24], sizes = [8, 8], strides = [1, 1]} : vector<8x32xf32> to vector<8x8xf32>
    %436 = arith.truncf %435 : vector<8x8xf32> to vector<8x8xbf16>
    %437 = vector.extract_strided_slice %367 {offsets = [0, 24], sizes = [8, 8], strides = [1, 1]} : vector<8x32xf32> to vector<8x8xf32>
    %438 = arith.truncf %437 : vector<8x8xf32> to vector<8x8xbf16>
    %439 = vector.extract_strided_slice %368 {offsets = [0, 24], sizes = [8, 8], strides = [1, 1]} : vector<8x32xf32> to vector<8x8xf32>
    %440 = arith.truncf %439 : vector<8x8xf32> to vector<8x8xbf16>
    %cst_178 = arith.constant dense<0.000000e+00> : vector<8x8xf32>
    %441 = tpu.matmul %436, %438, %cst_178 {dimension_numbers = #tpu.dot_dimension_numbers<[1], [1], [0], [0], [0, 0, 1, 0], [], []>} : vector<8x8xbf16>, vector<8x8xbf16>, vector<8x8xf32> -> vector<8x8xf32>
    %442 = arith.addf %441, %12 : vector<8x8xf32>
    %cst_179 = arith.constant dense<0xFF800000> : vector<8xf32>
    %443 = vector.multi_reduction <maximumf>, %442, %cst_179 [1] : vector<8x8xf32> to vector<8xf32>
    %444 = vector.shape_cast %443 : vector<8xf32> to vector<8x1xf32>
    %445 = vector.broadcast %444 : vector<8x1xf32> to vector<8x8xf32>
    %446 = arith.subf %442, %445 : vector<8x8xf32>
    %447 = math.exp %446 : vector<8x8xf32>
    %cst_180 = arith.constant dense<0.000000e+00> : vector<8xf32>
    %448 = vector.multi_reduction <add>, %447, %cst_180 [1] : vector<8x8xf32> to vector<8xf32>
    %449 = vector.shape_cast %448 : vector<8xf32> to vector<8x1xf32>
    %450 = tpu.reciprocal %449 {approx = true} : vector<8x1xf32> -> vector<8x1xf32>
    %451 = vector.broadcast %450 : vector<8x1xf32> to vector<8x8xf32>
    %452 = arith.mulf %447, %451 : vector<8x8xf32>
    %453 = arith.truncf %452 : vector<8x8xf32> to vector<8x8xbf16>
    %cst_181 = arith.constant dense<0.000000e+00> : vector<8x8xf32>
    %454 = tpu.matmul %453, %440, %cst_181 {dimension_numbers = #tpu.dot_dimension_numbers<[1], [0], [0], [1], [0, 0, 1, 1], [], []>} : vector<8x8xbf16>, vector<8x8xbf16>, vector<8x8xf32> -> vector<8x8xf32>
    %455 = tpu.concatenate %394, %414, %434, %454 in 1 : vector<8x8xf32>, vector<8x8xf32>, vector<8x8xf32>, vector<8x8xf32> -> vector<8x32xf32>
    %456 = arith.truncf %455 : vector<8x32xf32> to vector<8x32xbf16>
    %cst_182 = arith.constant dense<0.000000e+00> : vector<8x32xf32>
    %457 = tpu.matmul %456, %370, %cst_182 {dimension_numbers = #tpu.dot_dimension_numbers<[1], [0], [0], [1], [0, 0, 1, 1], [], []>} : vector<8x32xbf16>, vector<32x32xbf16>, vector<8x32xf32> -> vector<8x32xf32>
    %458 = vector.broadcast %372 : vector<1x32xf32> to vector<8x32xf32>
    %459 = arith.addf %457, %458 : vector<8x32xf32>
    %460 = arith.addf %459, %1 : vector<8x32xf32>
    %c0_183 = arith.constant 0 : index
    %c0_184 = arith.constant 0 : index
    %c0_185 = arith.constant 0 : index
    %461 = vector.load %arg23[%c0_183, %c0_184, %c0_185] : memref<2x1x32xf32, #tpu.memory_space<vmem>>, vector<1x1x32xf32>
    %462 = vector.shape_cast %461 : vector<1x1x32xf32> to vector<1x32xf32>
    %c0_186 = arith.constant 0 : index
    %c0_187 = arith.constant 0 : index
    %c0_188 = arith.constant 0 : index
    %463 = vector.load %arg24[%c0_186, %c0_187, %c0_188] : memref<2x1x32xf32, #tpu.memory_space<vmem>>, vector<1x1x32xf32>
    %464 = vector.shape_cast %463 : vector<1x1x32xf32> to vector<1x32xf32>
    %cst_189 = arith.constant dense<0.000000e+00> : vector<8xf32>
    %465 = vector.multi_reduction <add>, %460, %cst_189 [1] : vector<8x32xf32> to vector<8xf32>
    %466 = vector.shape_cast %465 : vector<8xf32> to vector<8x1xf32>
    %cst_190 = arith.constant 3.200000e+01 : f32
    %467 = vector.broadcast %cst_190 : f32 to vector<8x1xf32>
    %468 = arith.divf %466, %467 : vector<8x1xf32>
    %469 = vector.broadcast %468 : vector<8x1xf32> to vector<8x32xf32>
    %470 = arith.subf %460, %469 : vector<8x32xf32>
    %471 = arith.mulf %470, %470 : vector<8x32xf32>
    %cst_191 = arith.constant dense<0.000000e+00> : vector<8xf32>
    %472 = vector.multi_reduction <add>, %471, %cst_191 [1] : vector<8x32xf32> to vector<8xf32>
    %473 = vector.shape_cast %472 : vector<8xf32> to vector<8x1xf32>
    %cst_192 = arith.constant 3.200000e+01 : f32
    %474 = vector.broadcast %cst_192 : f32 to vector<8x1xf32>
    %475 = arith.divf %473, %474 : vector<8x1xf32>
    %cst_193 = arith.constant 9.99999997E-7 : f32
    %476 = vector.broadcast %cst_193 : f32 to vector<8x1xf32>
    %477 = arith.addf %475, %476 : vector<8x1xf32>
    %478 = math.rsqrt %477 : vector<8x1xf32>
    %479 = vector.broadcast %478 : vector<8x1xf32> to vector<8x32xf32>
    %480 = arith.mulf %470, %479 : vector<8x32xf32>
    %481 = vector.broadcast %462 : vector<1x32xf32> to vector<8x32xf32>
    %482 = arith.mulf %480, %481 : vector<8x32xf32>
    %483 = vector.broadcast %464 : vector<1x32xf32> to vector<8x32xf32>
    %484 = arith.addf %482, %483 : vector<8x32xf32>
    %c0_194 = arith.constant 0 : index
    %c0_195 = arith.constant 0 : index
    %c0_196 = arith.constant 0 : index
    %485 = vector.load %arg25[%c0_194, %c0_195, %c0_196] : memref<2x32x32xbf16, #tpu.memory_space<vmem>>, vector<1x32x32xbf16>
    %486 = vector.shape_cast %485 : vector<1x32x32xbf16> to vector<32x32xbf16>
    %c0_197 = arith.constant 0 : index
    %c0_198 = arith.constant 0 : index
    %c0_199 = arith.constant 0 : index
    %487 = vector.load %arg26[%c0_197, %c0_198, %c0_199] : memref<2x1x32xf32, #tpu.memory_space<vmem>>, vector<1x1x32xf32>
    %488 = vector.shape_cast %487 : vector<1x1x32xf32> to vector<1x32xf32>
    %489 = arith.truncf %484 : vector<8x32xf32> to vector<8x32xbf16>
    %cst_200 = arith.constant dense<0.000000e+00> : vector<8x32xf32>
    %490 = tpu.matmul %489, %486, %cst_200 {dimension_numbers = #tpu.dot_dimension_numbers<[1], [0], [0], [1], [0, 0, 1, 1], [], []>} : vector<8x32xbf16>, vector<32x32xbf16>, vector<8x32xf32> -> vector<8x32xf32>
    %491 = vector.broadcast %488 : vector<1x32xf32> to vector<8x32xf32>
    %492 = arith.addf %490, %491 : vector<8x32xf32>
    %c0_201 = arith.constant 0 : index
    %c0_202 = arith.constant 0 : index
    %c0_203 = arith.constant 0 : index
    %493 = vector.load %arg27[%c0_201, %c0_202, %c0_203] : memref<2x32x64xbf16, #tpu.memory_space<vmem>>, vector<1x32x64xbf16>
    %494 = vector.shape_cast %493 : vector<1x32x64xbf16> to vector<32x64xbf16>
    %c0_204 = arith.constant 0 : index
    %c0_205 = arith.constant 0 : index
    %c0_206 = arith.constant 0 : index
    %495 = vector.load %arg28[%c0_204, %c0_205, %c0_206] : memref<2x1x64xf32, #tpu.memory_space<vmem>>, vector<1x1x64xf32>
    %496 = vector.shape_cast %495 : vector<1x1x64xf32> to vector<1x64xf32>
    %497 = arith.truncf %357 : vector<16x32xf32> to vector<16x32xbf16>
    %cst_207 = arith.constant dense<0.000000e+00> : vector<16x64xf32>
    %498 = tpu.matmul %497, %494, %cst_207 {dimension_numbers = #tpu.dot_dimension_numbers<[1], [0], [0], [1], [0, 0, 1, 1], [], []>} : vector<16x32xbf16>, vector<32x64xbf16>, vector<16x64xf32> -> vector<16x64xf32>
    %499 = vector.broadcast %496 : vector<1x64xf32> to vector<16x64xf32>
    %500 = arith.addf %498, %499 : vector<16x64xf32>
    %501 = vector.extract_strided_slice %500 {offsets = [0, 0], sizes = [16, 32], strides = [1, 1]} : vector<16x64xf32> to vector<16x32xf32>
    %502 = vector.extract_strided_slice %500 {offsets = [0, 32], sizes = [16, 32], strides = [1, 1]} : vector<16x64xf32> to vector<16x32xf32>
    %c0_208 = arith.constant 0 : index
    %c0_209 = arith.constant 0 : index
    %c0_210 = arith.constant 0 : index
    %503 = vector.load %arg29[%c0_208, %c0_209, %c0_210] : memref<2x32x32xbf16, #tpu.memory_space<vmem>>, vector<1x32x32xbf16>
    %504 = vector.shape_cast %503 : vector<1x32x32xbf16> to vector<32x32xbf16>
    %c0_211 = arith.constant 0 : index
    %c0_212 = arith.constant 0 : index
    %c0_213 = arith.constant 0 : index
    %505 = vector.load %arg30[%c0_211, %c0_212, %c0_213] : memref<2x1x32xf32, #tpu.memory_space<vmem>>, vector<1x1x32xf32>
    %506 = vector.shape_cast %505 : vector<1x1x32xf32> to vector<1x32xf32>
    %cst_214 = arith.constant 0.353553385 : f32
    %507 = vector.broadcast %cst_214 : f32 to vector<8x32xf32>
    %508 = arith.mulf %492, %507 : vector<8x32xf32>
    %509 = vector.extract_strided_slice %508 {offsets = [0, 0], sizes = [8, 8], strides = [1, 1]} : vector<8x32xf32> to vector<8x8xf32>
    %510 = arith.truncf %509 : vector<8x8xf32> to vector<8x8xbf16>
    %511 = vector.extract_strided_slice %501 {offsets = [0, 0], sizes = [16, 8], strides = [1, 1]} : vector<16x32xf32> to vector<16x8xf32>
    %512 = arith.truncf %511 : vector<16x8xf32> to vector<16x8xbf16>
    %513 = vector.extract_strided_slice %502 {offsets = [0, 0], sizes = [16, 8], strides = [1, 1]} : vector<16x32xf32> to vector<16x8xf32>
    %514 = arith.truncf %513 : vector<16x8xf32> to vector<16x8xbf16>
    %cst_215 = arith.constant dense<0.000000e+00> : vector<8x16xf32>
    %515 = tpu.matmul %510, %512, %cst_215 {dimension_numbers = #tpu.dot_dimension_numbers<[1], [1], [0], [0], [0, 0, 1, 0], [], []>} : vector<8x8xbf16>, vector<16x8xbf16>, vector<8x16xf32> -> vector<8x16xf32>
    %cst_216 = arith.constant dense<0xFF800000> : vector<8xf32>
    %516 = vector.multi_reduction <maximumf>, %515, %cst_216 [1] : vector<8x16xf32> to vector<8xf32>
    %517 = vector.shape_cast %516 : vector<8xf32> to vector<8x1xf32>
    %518 = vector.broadcast %517 : vector<8x1xf32> to vector<8x16xf32>
    %519 = arith.subf %515, %518 : vector<8x16xf32>
    %520 = math.exp %519 : vector<8x16xf32>
    %cst_217 = arith.constant dense<0.000000e+00> : vector<8xf32>
    %521 = vector.multi_reduction <add>, %520, %cst_217 [1] : vector<8x16xf32> to vector<8xf32>
    %522 = vector.shape_cast %521 : vector<8xf32> to vector<8x1xf32>
    %523 = tpu.reciprocal %522 {approx = true} : vector<8x1xf32> -> vector<8x1xf32>
    %524 = vector.broadcast %523 : vector<8x1xf32> to vector<8x16xf32>
    %525 = arith.mulf %520, %524 : vector<8x16xf32>
    %526 = arith.truncf %525 : vector<8x16xf32> to vector<8x16xbf16>
    %cst_218 = arith.constant dense<0.000000e+00> : vector<8x8xf32>
    %527 = tpu.matmul %526, %514, %cst_218 {dimension_numbers = #tpu.dot_dimension_numbers<[1], [0], [0], [1], [0, 0, 1, 1], [], []>} : vector<8x16xbf16>, vector<16x8xbf16>, vector<8x8xf32> -> vector<8x8xf32>
    %528 = vector.extract_strided_slice %508 {offsets = [0, 8], sizes = [8, 8], strides = [1, 1]} : vector<8x32xf32> to vector<8x8xf32>
    %529 = arith.truncf %528 : vector<8x8xf32> to vector<8x8xbf16>
    %530 = vector.extract_strided_slice %501 {offsets = [0, 8], sizes = [16, 8], strides = [1, 1]} : vector<16x32xf32> to vector<16x8xf32>
    %531 = arith.truncf %530 : vector<16x8xf32> to vector<16x8xbf16>
    %532 = vector.extract_strided_slice %502 {offsets = [0, 8], sizes = [16, 8], strides = [1, 1]} : vector<16x32xf32> to vector<16x8xf32>
    %533 = arith.truncf %532 : vector<16x8xf32> to vector<16x8xbf16>
    %cst_219 = arith.constant dense<0.000000e+00> : vector<8x16xf32>
    %534 = tpu.matmul %529, %531, %cst_219 {dimension_numbers = #tpu.dot_dimension_numbers<[1], [1], [0], [0], [0, 0, 1, 0], [], []>} : vector<8x8xbf16>, vector<16x8xbf16>, vector<8x16xf32> -> vector<8x16xf32>
    %cst_220 = arith.constant dense<0xFF800000> : vector<8xf32>
    %535 = vector.multi_reduction <maximumf>, %534, %cst_220 [1] : vector<8x16xf32> to vector<8xf32>
    %536 = vector.shape_cast %535 : vector<8xf32> to vector<8x1xf32>
    %537 = vector.broadcast %536 : vector<8x1xf32> to vector<8x16xf32>
    %538 = arith.subf %534, %537 : vector<8x16xf32>
    %539 = math.exp %538 : vector<8x16xf32>
    %cst_221 = arith.constant dense<0.000000e+00> : vector<8xf32>
    %540 = vector.multi_reduction <add>, %539, %cst_221 [1] : vector<8x16xf32> to vector<8xf32>
    %541 = vector.shape_cast %540 : vector<8xf32> to vector<8x1xf32>
    %542 = tpu.reciprocal %541 {approx = true} : vector<8x1xf32> -> vector<8x1xf32>
    %543 = vector.broadcast %542 : vector<8x1xf32> to vector<8x16xf32>
    %544 = arith.mulf %539, %543 : vector<8x16xf32>
    %545 = arith.truncf %544 : vector<8x16xf32> to vector<8x16xbf16>
    %cst_222 = arith.constant dense<0.000000e+00> : vector<8x8xf32>
    %546 = tpu.matmul %545, %533, %cst_222 {dimension_numbers = #tpu.dot_dimension_numbers<[1], [0], [0], [1], [0, 0, 1, 1], [], []>} : vector<8x16xbf16>, vector<16x8xbf16>, vector<8x8xf32> -> vector<8x8xf32>
    %547 = vector.extract_strided_slice %508 {offsets = [0, 16], sizes = [8, 8], strides = [1, 1]} : vector<8x32xf32> to vector<8x8xf32>
    %548 = arith.truncf %547 : vector<8x8xf32> to vector<8x8xbf16>
    %549 = vector.extract_strided_slice %501 {offsets = [0, 16], sizes = [16, 8], strides = [1, 1]} : vector<16x32xf32> to vector<16x8xf32>
    %550 = arith.truncf %549 : vector<16x8xf32> to vector<16x8xbf16>
    %551 = vector.extract_strided_slice %502 {offsets = [0, 16], sizes = [16, 8], strides = [1, 1]} : vector<16x32xf32> to vector<16x8xf32>
    %552 = arith.truncf %551 : vector<16x8xf32> to vector<16x8xbf16>
    %cst_223 = arith.constant dense<0.000000e+00> : vector<8x16xf32>
    %553 = tpu.matmul %548, %550, %cst_223 {dimension_numbers = #tpu.dot_dimension_numbers<[1], [1], [0], [0], [0, 0, 1, 0], [], []>} : vector<8x8xbf16>, vector<16x8xbf16>, vector<8x16xf32> -> vector<8x16xf32>
    %cst_224 = arith.constant dense<0xFF800000> : vector<8xf32>
    %554 = vector.multi_reduction <maximumf>, %553, %cst_224 [1] : vector<8x16xf32> to vector<8xf32>
    %555 = vector.shape_cast %554 : vector<8xf32> to vector<8x1xf32>
    %556 = vector.broadcast %555 : vector<8x1xf32> to vector<8x16xf32>
    %557 = arith.subf %553, %556 : vector<8x16xf32>
    %558 = math.exp %557 : vector<8x16xf32>
    %cst_225 = arith.constant dense<0.000000e+00> : vector<8xf32>
    %559 = vector.multi_reduction <add>, %558, %cst_225 [1] : vector<8x16xf32> to vector<8xf32>
    %560 = vector.shape_cast %559 : vector<8xf32> to vector<8x1xf32>
    %561 = tpu.reciprocal %560 {approx = true} : vector<8x1xf32> -> vector<8x1xf32>
    %562 = vector.broadcast %561 : vector<8x1xf32> to vector<8x16xf32>
    %563 = arith.mulf %558, %562 : vector<8x16xf32>
    %564 = arith.truncf %563 : vector<8x16xf32> to vector<8x16xbf16>
    %cst_226 = arith.constant dense<0.000000e+00> : vector<8x8xf32>
    %565 = tpu.matmul %564, %552, %cst_226 {dimension_numbers = #tpu.dot_dimension_numbers<[1], [0], [0], [1], [0, 0, 1, 1], [], []>} : vector<8x16xbf16>, vector<16x8xbf16>, vector<8x8xf32> -> vector<8x8xf32>
    %566 = vector.extract_strided_slice %508 {offsets = [0, 24], sizes = [8, 8], strides = [1, 1]} : vector<8x32xf32> to vector<8x8xf32>
    %567 = arith.truncf %566 : vector<8x8xf32> to vector<8x8xbf16>
    %568 = vector.extract_strided_slice %501 {offsets = [0, 24], sizes = [16, 8], strides = [1, 1]} : vector<16x32xf32> to vector<16x8xf32>
    %569 = arith.truncf %568 : vector<16x8xf32> to vector<16x8xbf16>
    %570 = vector.extract_strided_slice %502 {offsets = [0, 24], sizes = [16, 8], strides = [1, 1]} : vector<16x32xf32> to vector<16x8xf32>
    %571 = arith.truncf %570 : vector<16x8xf32> to vector<16x8xbf16>
    %cst_227 = arith.constant dense<0.000000e+00> : vector<8x16xf32>
    %572 = tpu.matmul %567, %569, %cst_227 {dimension_numbers = #tpu.dot_dimension_numbers<[1], [1], [0], [0], [0, 0, 1, 0], [], []>} : vector<8x8xbf16>, vector<16x8xbf16>, vector<8x16xf32> -> vector<8x16xf32>
    %cst_228 = arith.constant dense<0xFF800000> : vector<8xf32>
    %573 = vector.multi_reduction <maximumf>, %572, %cst_228 [1] : vector<8x16xf32> to vector<8xf32>
    %574 = vector.shape_cast %573 : vector<8xf32> to vector<8x1xf32>
    %575 = vector.broadcast %574 : vector<8x1xf32> to vector<8x16xf32>
    %576 = arith.subf %572, %575 : vector<8x16xf32>
    %577 = math.exp %576 : vector<8x16xf32>
    %cst_229 = arith.constant dense<0.000000e+00> : vector<8xf32>
    %578 = vector.multi_reduction <add>, %577, %cst_229 [1] : vector<8x16xf32> to vector<8xf32>
    %579 = vector.shape_cast %578 : vector<8xf32> to vector<8x1xf32>
    %580 = tpu.reciprocal %579 {approx = true} : vector<8x1xf32> -> vector<8x1xf32>
    %581 = vector.broadcast %580 : vector<8x1xf32> to vector<8x16xf32>
    %582 = arith.mulf %577, %581 : vector<8x16xf32>
    %583 = arith.truncf %582 : vector<8x16xf32> to vector<8x16xbf16>
    %cst_230 = arith.constant dense<0.000000e+00> : vector<8x8xf32>
    %584 = tpu.matmul %583, %571, %cst_230 {dimension_numbers = #tpu.dot_dimension_numbers<[1], [0], [0], [1], [0, 0, 1, 1], [], []>} : vector<8x16xbf16>, vector<16x8xbf16>, vector<8x8xf32> -> vector<8x8xf32>
    %585 = tpu.concatenate %527, %546, %565, %584 in 1 : vector<8x8xf32>, vector<8x8xf32>, vector<8x8xf32>, vector<8x8xf32> -> vector<8x32xf32>
    %586 = arith.truncf %585 : vector<8x32xf32> to vector<8x32xbf16>
    %cst_231 = arith.constant dense<0.000000e+00> : vector<8x32xf32>
    %587 = tpu.matmul %586, %504, %cst_231 {dimension_numbers = #tpu.dot_dimension_numbers<[1], [0], [0], [1], [0, 0, 1, 1], [], []>} : vector<8x32xbf16>, vector<32x32xbf16>, vector<8x32xf32> -> vector<8x32xf32>
    %588 = vector.broadcast %506 : vector<1x32xf32> to vector<8x32xf32>
    %589 = arith.addf %587, %588 : vector<8x32xf32>
    %590 = arith.addf %589, %484 : vector<8x32xf32>
    %c0_232 = arith.constant 0 : index
    %c0_233 = arith.constant 0 : index
    %c0_234 = arith.constant 0 : index
    %591 = vector.load %arg31[%c0_232, %c0_233, %c0_234] : memref<2x1x32xf32, #tpu.memory_space<vmem>>, vector<1x1x32xf32>
    %592 = vector.shape_cast %591 : vector<1x1x32xf32> to vector<1x32xf32>
    %c0_235 = arith.constant 0 : index
    %c0_236 = arith.constant 0 : index
    %c0_237 = arith.constant 0 : index
    %593 = vector.load %arg32[%c0_235, %c0_236, %c0_237] : memref<2x1x32xf32, #tpu.memory_space<vmem>>, vector<1x1x32xf32>
    %594 = vector.shape_cast %593 : vector<1x1x32xf32> to vector<1x32xf32>
    %cst_238 = arith.constant dense<0.000000e+00> : vector<8xf32>
    %595 = vector.multi_reduction <add>, %590, %cst_238 [1] : vector<8x32xf32> to vector<8xf32>
    %596 = vector.shape_cast %595 : vector<8xf32> to vector<8x1xf32>
    %cst_239 = arith.constant 3.200000e+01 : f32
    %597 = vector.broadcast %cst_239 : f32 to vector<8x1xf32>
    %598 = arith.divf %596, %597 : vector<8x1xf32>
    %599 = vector.broadcast %598 : vector<8x1xf32> to vector<8x32xf32>
    %600 = arith.subf %590, %599 : vector<8x32xf32>
    %601 = arith.mulf %600, %600 : vector<8x32xf32>
    %cst_240 = arith.constant dense<0.000000e+00> : vector<8xf32>
    %602 = vector.multi_reduction <add>, %601, %cst_240 [1] : vector<8x32xf32> to vector<8xf32>
    %603 = vector.shape_cast %602 : vector<8xf32> to vector<8x1xf32>
    %cst_241 = arith.constant 3.200000e+01 : f32
    %604 = vector.broadcast %cst_241 : f32 to vector<8x1xf32>
    %605 = arith.divf %603, %604 : vector<8x1xf32>
    %cst_242 = arith.constant 9.99999997E-7 : f32
    %606 = vector.broadcast %cst_242 : f32 to vector<8x1xf32>
    %607 = arith.addf %605, %606 : vector<8x1xf32>
    %608 = math.rsqrt %607 : vector<8x1xf32>
    %609 = vector.broadcast %608 : vector<8x1xf32> to vector<8x32xf32>
    %610 = arith.mulf %600, %609 : vector<8x32xf32>
    %611 = vector.broadcast %592 : vector<1x32xf32> to vector<8x32xf32>
    %612 = arith.mulf %610, %611 : vector<8x32xf32>
    %613 = vector.broadcast %594 : vector<1x32xf32> to vector<8x32xf32>
    %614 = arith.addf %612, %613 : vector<8x32xf32>
    %c0_243 = arith.constant 0 : index
    %c0_244 = arith.constant 0 : index
    %c0_245 = arith.constant 0 : index
    %615 = vector.load %arg33[%c0_243, %c0_244, %c0_245] : memref<2x32x64xbf16, #tpu.memory_space<vmem>>, vector<1x32x64xbf16>
    %616 = vector.shape_cast %615 : vector<1x32x64xbf16> to vector<32x64xbf16>
    %c0_246 = arith.constant 0 : index
    %c0_247 = arith.constant 0 : index
    %c0_248 = arith.constant 0 : index
    %617 = vector.load %arg34[%c0_246, %c0_247, %c0_248] : memref<2x1x64xf32, #tpu.memory_space<vmem>>, vector<1x1x64xf32>
    %618 = vector.shape_cast %617 : vector<1x1x64xf32> to vector<1x64xf32>
    %619 = arith.truncf %614 : vector<8x32xf32> to vector<8x32xbf16>
    %cst_249 = arith.constant dense<0.000000e+00> : vector<8x64xf32>
    %620 = tpu.matmul %619, %616, %cst_249 {dimension_numbers = #tpu.dot_dimension_numbers<[1], [0], [0], [1], [0, 0, 1, 1], [], []>} : vector<8x32xbf16>, vector<32x64xbf16>, vector<8x64xf32> -> vector<8x64xf32>
    %621 = vector.broadcast %618 : vector<1x64xf32> to vector<8x64xf32>
    %622 = arith.addf %620, %621 : vector<8x64xf32>
    %cst_250 = arith.constant 0.000000e+00 : f32
    %623 = vector.broadcast %cst_250 : f32 to vector<8x64xf32>
    %624 = arith.maximumf %622, %623 : vector<8x64xf32>
    %c0_251 = arith.constant 0 : index
    %c0_252 = arith.constant 0 : index
    %c0_253 = arith.constant 0 : index
    %625 = vector.load %arg35[%c0_251, %c0_252, %c0_253] : memref<2x64x32xbf16, #tpu.memory_space<vmem>>, vector<1x64x32xbf16>
    %626 = vector.shape_cast %625 : vector<1x64x32xbf16> to vector<64x32xbf16>
    %c0_254 = arith.constant 0 : index
    %c0_255 = arith.constant 0 : index
    %c0_256 = arith.constant 0 : index
    %627 = vector.load %arg36[%c0_254, %c0_255, %c0_256] : memref<2x1x32xf32, #tpu.memory_space<vmem>>, vector<1x1x32xf32>
    %628 = vector.shape_cast %627 : vector<1x1x32xf32> to vector<1x32xf32>
    %629 = arith.truncf %624 : vector<8x64xf32> to vector<8x64xbf16>
    %cst_257 = arith.constant dense<0.000000e+00> : vector<8x32xf32>
    %630 = tpu.matmul %629, %626, %cst_257 {dimension_numbers = #tpu.dot_dimension_numbers<[1], [0], [0], [1], [0, 0, 1, 1], [], []>} : vector<8x64xbf16>, vector<64x32xbf16>, vector<8x32xf32> -> vector<8x32xf32>
    %631 = vector.broadcast %628 : vector<1x32xf32> to vector<8x32xf32>
    %632 = arith.addf %630, %631 : vector<8x32xf32>
    %633 = arith.addf %632, %614 : vector<8x32xf32>
    %c0_258 = arith.constant 0 : index
    %c0_259 = arith.constant 0 : index
    %c0_260 = arith.constant 0 : index
    %634 = vector.load %arg37[%c0_258, %c0_259, %c0_260] : memref<2x1x32xf32, #tpu.memory_space<vmem>>, vector<1x1x32xf32>
    %635 = vector.shape_cast %634 : vector<1x1x32xf32> to vector<1x32xf32>
    %c0_261 = arith.constant 0 : index
    %c0_262 = arith.constant 0 : index
    %c0_263 = arith.constant 0 : index
    %636 = vector.load %arg38[%c0_261, %c0_262, %c0_263] : memref<2x1x32xf32, #tpu.memory_space<vmem>>, vector<1x1x32xf32>
    %637 = vector.shape_cast %636 : vector<1x1x32xf32> to vector<1x32xf32>
    %cst_264 = arith.constant dense<0.000000e+00> : vector<8xf32>
    %638 = vector.multi_reduction <add>, %633, %cst_264 [1] : vector<8x32xf32> to vector<8xf32>
    %639 = vector.shape_cast %638 : vector<8xf32> to vector<8x1xf32>
    %cst_265 = arith.constant 3.200000e+01 : f32
    %640 = vector.broadcast %cst_265 : f32 to vector<8x1xf32>
    %641 = arith.divf %639, %640 : vector<8x1xf32>
    %642 = vector.broadcast %641 : vector<8x1xf32> to vector<8x32xf32>
    %643 = arith.subf %633, %642 : vector<8x32xf32>
    %644 = arith.mulf %643, %643 : vector<8x32xf32>
    %cst_266 = arith.constant dense<0.000000e+00> : vector<8xf32>
    %645 = vector.multi_reduction <add>, %644, %cst_266 [1] : vector<8x32xf32> to vector<8xf32>
    %646 = vector.shape_cast %645 : vector<8xf32> to vector<8x1xf32>
    %cst_267 = arith.constant 3.200000e+01 : f32
    %647 = vector.broadcast %cst_267 : f32 to vector<8x1xf32>
    %648 = arith.divf %646, %647 : vector<8x1xf32>
    %cst_268 = arith.constant 9.99999997E-7 : f32
    %649 = vector.broadcast %cst_268 : f32 to vector<8x1xf32>
    %650 = arith.addf %648, %649 : vector<8x1xf32>
    %651 = math.rsqrt %650 : vector<8x1xf32>
    %652 = vector.broadcast %651 : vector<8x1xf32> to vector<8x32xf32>
    %653 = arith.mulf %643, %652 : vector<8x32xf32>
    %654 = vector.broadcast %635 : vector<1x32xf32> to vector<8x32xf32>
    %655 = arith.mulf %653, %654 : vector<8x32xf32>
    %656 = vector.broadcast %637 : vector<1x32xf32> to vector<8x32xf32>
    %657 = arith.addf %655, %656 : vector<8x32xf32>
    %c1_269 = arith.constant 1 : index
    %c0_270 = arith.constant 0 : index
    %c0_271 = arith.constant 0 : index
    %658 = vector.load %arg19[%c1_269, %c0_270, %c0_271] : memref<2x32x96xbf16, #tpu.memory_space<vmem>>, vector<1x32x96xbf16>
    %659 = vector.shape_cast %658 : vector<1x32x96xbf16> to vector<32x96xbf16>
    %c1_272 = arith.constant 1 : index
    %c0_273 = arith.constant 0 : index
    %c0_274 = arith.constant 0 : index
    %660 = vector.load %arg20[%c1_272, %c0_273, %c0_274] : memref<2x1x96xf32, #tpu.memory_space<vmem>>, vector<1x1x96xf32>
    %661 = vector.shape_cast %660 : vector<1x1x96xf32> to vector<1x96xf32>
    %662 = arith.truncf %657 : vector<8x32xf32> to vector<8x32xbf16>
    %cst_275 = arith.constant dense<0.000000e+00> : vector<8x96xf32>
    %663 = tpu.matmul %662, %659, %cst_275 {dimension_numbers = #tpu.dot_dimension_numbers<[1], [0], [0], [1], [0, 0, 1, 1], [], []>} : vector<8x32xbf16>, vector<32x96xbf16>, vector<8x96xf32> -> vector<8x96xf32>
    %664 = vector.broadcast %661 : vector<1x96xf32> to vector<8x96xf32>
    %665 = arith.addf %663, %664 : vector<8x96xf32>
    %666 = vector.extract_strided_slice %665 {offsets = [0, 0], sizes = [8, 32], strides = [1, 1]} : vector<8x96xf32> to vector<8x32xf32>
    %667 = vector.extract_strided_slice %665 {offsets = [0, 32], sizes = [8, 32], strides = [1, 1]} : vector<8x96xf32> to vector<8x32xf32>
    %668 = vector.extract_strided_slice %665 {offsets = [0, 64], sizes = [8, 32], strides = [1, 1]} : vector<8x96xf32> to vector<8x32xf32>
    %c1_276 = arith.constant 1 : index
    %c0_277 = arith.constant 0 : index
    %c0_278 = arith.constant 0 : index
    %669 = vector.load %arg21[%c1_276, %c0_277, %c0_278] : memref<2x32x32xbf16, #tpu.memory_space<vmem>>, vector<1x32x32xbf16>
    %670 = vector.shape_cast %669 : vector<1x32x32xbf16> to vector<32x32xbf16>
    %c1_279 = arith.constant 1 : index
    %c0_280 = arith.constant 0 : index
    %c0_281 = arith.constant 0 : index
    %671 = vector.load %arg22[%c1_279, %c0_280, %c0_281] : memref<2x1x32xf32, #tpu.memory_space<vmem>>, vector<1x1x32xf32>
    %672 = vector.shape_cast %671 : vector<1x1x32xf32> to vector<1x32xf32>
    %cst_282 = arith.constant 0.353553385 : f32
    %673 = vector.broadcast %cst_282 : f32 to vector<8x32xf32>
    %674 = arith.mulf %666, %673 : vector<8x32xf32>
    %675 = vector.extract_strided_slice %674 {offsets = [0, 0], sizes = [8, 8], strides = [1, 1]} : vector<8x32xf32> to vector<8x8xf32>
    %676 = arith.truncf %675 : vector<8x8xf32> to vector<8x8xbf16>
    %677 = vector.extract_strided_slice %667 {offsets = [0, 0], sizes = [8, 8], strides = [1, 1]} : vector<8x32xf32> to vector<8x8xf32>
    %678 = arith.truncf %677 : vector<8x8xf32> to vector<8x8xbf16>
    %679 = vector.extract_strided_slice %668 {offsets = [0, 0], sizes = [8, 8], strides = [1, 1]} : vector<8x32xf32> to vector<8x8xf32>
    %680 = arith.truncf %679 : vector<8x8xf32> to vector<8x8xbf16>
    %cst_283 = arith.constant dense<0.000000e+00> : vector<8x8xf32>
    %681 = tpu.matmul %676, %678, %cst_283 {dimension_numbers = #tpu.dot_dimension_numbers<[1], [1], [0], [0], [0, 0, 1, 0], [], []>} : vector<8x8xbf16>, vector<8x8xbf16>, vector<8x8xf32> -> vector<8x8xf32>
    %682 = arith.addf %681, %12 : vector<8x8xf32>
    %cst_284 = arith.constant dense<0xFF800000> : vector<8xf32>
    %683 = vector.multi_reduction <maximumf>, %682, %cst_284 [1] : vector<8x8xf32> to vector<8xf32>
    %684 = vector.shape_cast %683 : vector<8xf32> to vector<8x1xf32>
    %685 = vector.broadcast %684 : vector<8x1xf32> to vector<8x8xf32>
    %686 = arith.subf %682, %685 : vector<8x8xf32>
    %687 = math.exp %686 : vector<8x8xf32>
    %cst_285 = arith.constant dense<0.000000e+00> : vector<8xf32>
    %688 = vector.multi_reduction <add>, %687, %cst_285 [1] : vector<8x8xf32> to vector<8xf32>
    %689 = vector.shape_cast %688 : vector<8xf32> to vector<8x1xf32>
    %690 = tpu.reciprocal %689 {approx = true} : vector<8x1xf32> -> vector<8x1xf32>
    %691 = vector.broadcast %690 : vector<8x1xf32> to vector<8x8xf32>
    %692 = arith.mulf %687, %691 : vector<8x8xf32>
    %693 = arith.truncf %692 : vector<8x8xf32> to vector<8x8xbf16>
    %cst_286 = arith.constant dense<0.000000e+00> : vector<8x8xf32>
    %694 = tpu.matmul %693, %680, %cst_286 {dimension_numbers = #tpu.dot_dimension_numbers<[1], [0], [0], [1], [0, 0, 1, 1], [], []>} : vector<8x8xbf16>, vector<8x8xbf16>, vector<8x8xf32> -> vector<8x8xf32>
    %695 = vector.extract_strided_slice %674 {offsets = [0, 8], sizes = [8, 8], strides = [1, 1]} : vector<8x32xf32> to vector<8x8xf32>
    %696 = arith.truncf %695 : vector<8x8xf32> to vector<8x8xbf16>
    %697 = vector.extract_strided_slice %667 {offsets = [0, 8], sizes = [8, 8], strides = [1, 1]} : vector<8x32xf32> to vector<8x8xf32>
    %698 = arith.truncf %697 : vector<8x8xf32> to vector<8x8xbf16>
    %699 = vector.extract_strided_slice %668 {offsets = [0, 8], sizes = [8, 8], strides = [1, 1]} : vector<8x32xf32> to vector<8x8xf32>
    %700 = arith.truncf %699 : vector<8x8xf32> to vector<8x8xbf16>
    %cst_287 = arith.constant dense<0.000000e+00> : vector<8x8xf32>
    %701 = tpu.matmul %696, %698, %cst_287 {dimension_numbers = #tpu.dot_dimension_numbers<[1], [1], [0], [0], [0, 0, 1, 0], [], []>} : vector<8x8xbf16>, vector<8x8xbf16>, vector<8x8xf32> -> vector<8x8xf32>
    %702 = arith.addf %701, %12 : vector<8x8xf32>
    %cst_288 = arith.constant dense<0xFF800000> : vector<8xf32>
    %703 = vector.multi_reduction <maximumf>, %702, %cst_288 [1] : vector<8x8xf32> to vector<8xf32>
    %704 = vector.shape_cast %703 : vector<8xf32> to vector<8x1xf32>
    %705 = vector.broadcast %704 : vector<8x1xf32> to vector<8x8xf32>
    %706 = arith.subf %702, %705 : vector<8x8xf32>
    %707 = math.exp %706 : vector<8x8xf32>
    %cst_289 = arith.constant dense<0.000000e+00> : vector<8xf32>
    %708 = vector.multi_reduction <add>, %707, %cst_289 [1] : vector<8x8xf32> to vector<8xf32>
    %709 = vector.shape_cast %708 : vector<8xf32> to vector<8x1xf32>
    %710 = tpu.reciprocal %709 {approx = true} : vector<8x1xf32> -> vector<8x1xf32>
    %711 = vector.broadcast %710 : vector<8x1xf32> to vector<8x8xf32>
    %712 = arith.mulf %707, %711 : vector<8x8xf32>
    %713 = arith.truncf %712 : vector<8x8xf32> to vector<8x8xbf16>
    %cst_290 = arith.constant dense<0.000000e+00> : vector<8x8xf32>
    %714 = tpu.matmul %713, %700, %cst_290 {dimension_numbers = #tpu.dot_dimension_numbers<[1], [0], [0], [1], [0, 0, 1, 1], [], []>} : vector<8x8xbf16>, vector<8x8xbf16>, vector<8x8xf32> -> vector<8x8xf32>
    %715 = vector.extract_strided_slice %674 {offsets = [0, 16], sizes = [8, 8], strides = [1, 1]} : vector<8x32xf32> to vector<8x8xf32>
    %716 = arith.truncf %715 : vector<8x8xf32> to vector<8x8xbf16>
    %717 = vector.extract_strided_slice %667 {offsets = [0, 16], sizes = [8, 8], strides = [1, 1]} : vector<8x32xf32> to vector<8x8xf32>
    %718 = arith.truncf %717 : vector<8x8xf32> to vector<8x8xbf16>
    %719 = vector.extract_strided_slice %668 {offsets = [0, 16], sizes = [8, 8], strides = [1, 1]} : vector<8x32xf32> to vector<8x8xf32>
    %720 = arith.truncf %719 : vector<8x8xf32> to vector<8x8xbf16>
    %cst_291 = arith.constant dense<0.000000e+00> : vector<8x8xf32>
    %721 = tpu.matmul %716, %718, %cst_291 {dimension_numbers = #tpu.dot_dimension_numbers<[1], [1], [0], [0], [0, 0, 1, 0], [], []>} : vector<8x8xbf16>, vector<8x8xbf16>, vector<8x8xf32> -> vector<8x8xf32>
    %722 = arith.addf %721, %12 : vector<8x8xf32>
    %cst_292 = arith.constant dense<0xFF800000> : vector<8xf32>
    %723 = vector.multi_reduction <maximumf>, %722, %cst_292 [1] : vector<8x8xf32> to vector<8xf32>
    %724 = vector.shape_cast %723 : vector<8xf32> to vector<8x1xf32>
    %725 = vector.broadcast %724 : vector<8x1xf32> to vector<8x8xf32>
    %726 = arith.subf %722, %725 : vector<8x8xf32>
    %727 = math.exp %726 : vector<8x8xf32>
    %cst_293 = arith.constant dense<0.000000e+00> : vector<8xf32>
    %728 = vector.multi_reduction <add>, %727, %cst_293 [1] : vector<8x8xf32> to vector<8xf32>
    %729 = vector.shape_cast %728 : vector<8xf32> to vector<8x1xf32>
    %730 = tpu.reciprocal %729 {approx = true} : vector<8x1xf32> -> vector<8x1xf32>
    %731 = vector.broadcast %730 : vector<8x1xf32> to vector<8x8xf32>
    %732 = arith.mulf %727, %731 : vector<8x8xf32>
    %733 = arith.truncf %732 : vector<8x8xf32> to vector<8x8xbf16>
    %cst_294 = arith.constant dense<0.000000e+00> : vector<8x8xf32>
    %734 = tpu.matmul %733, %720, %cst_294 {dimension_numbers = #tpu.dot_dimension_numbers<[1], [0], [0], [1], [0, 0, 1, 1], [], []>} : vector<8x8xbf16>, vector<8x8xbf16>, vector<8x8xf32> -> vector<8x8xf32>
    %735 = vector.extract_strided_slice %674 {offsets = [0, 24], sizes = [8, 8], strides = [1, 1]} : vector<8x32xf32> to vector<8x8xf32>
    %736 = arith.truncf %735 : vector<8x8xf32> to vector<8x8xbf16>
    %737 = vector.extract_strided_slice %667 {offsets = [0, 24], sizes = [8, 8], strides = [1, 1]} : vector<8x32xf32> to vector<8x8xf32>
    %738 = arith.truncf %737 : vector<8x8xf32> to vector<8x8xbf16>
    %739 = vector.extract_strided_slice %668 {offsets = [0, 24], sizes = [8, 8], strides = [1, 1]} : vector<8x32xf32> to vector<8x8xf32>
    %740 = arith.truncf %739 : vector<8x8xf32> to vector<8x8xbf16>
    %cst_295 = arith.constant dense<0.000000e+00> : vector<8x8xf32>
    %741 = tpu.matmul %736, %738, %cst_295 {dimension_numbers = #tpu.dot_dimension_numbers<[1], [1], [0], [0], [0, 0, 1, 0], [], []>} : vector<8x8xbf16>, vector<8x8xbf16>, vector<8x8xf32> -> vector<8x8xf32>
    %742 = arith.addf %741, %12 : vector<8x8xf32>
    %cst_296 = arith.constant dense<0xFF800000> : vector<8xf32>
    %743 = vector.multi_reduction <maximumf>, %742, %cst_296 [1] : vector<8x8xf32> to vector<8xf32>
    %744 = vector.shape_cast %743 : vector<8xf32> to vector<8x1xf32>
    %745 = vector.broadcast %744 : vector<8x1xf32> to vector<8x8xf32>
    %746 = arith.subf %742, %745 : vector<8x8xf32>
    %747 = math.exp %746 : vector<8x8xf32>
    %cst_297 = arith.constant dense<0.000000e+00> : vector<8xf32>
    %748 = vector.multi_reduction <add>, %747, %cst_297 [1] : vector<8x8xf32> to vector<8xf32>
    %749 = vector.shape_cast %748 : vector<8xf32> to vector<8x1xf32>
    %750 = tpu.reciprocal %749 {approx = true} : vector<8x1xf32> -> vector<8x1xf32>
    %751 = vector.broadcast %750 : vector<8x1xf32> to vector<8x8xf32>
    %752 = arith.mulf %747, %751 : vector<8x8xf32>
    %753 = arith.truncf %752 : vector<8x8xf32> to vector<8x8xbf16>
    %cst_298 = arith.constant dense<0.000000e+00> : vector<8x8xf32>
    %754 = tpu.matmul %753, %740, %cst_298 {dimension_numbers = #tpu.dot_dimension_numbers<[1], [0], [0], [1], [0, 0, 1, 1], [], []>} : vector<8x8xbf16>, vector<8x8xbf16>, vector<8x8xf32> -> vector<8x8xf32>
    %755 = tpu.concatenate %694, %714, %734, %754 in 1 : vector<8x8xf32>, vector<8x8xf32>, vector<8x8xf32>, vector<8x8xf32> -> vector<8x32xf32>
    %756 = arith.truncf %755 : vector<8x32xf32> to vector<8x32xbf16>
    %cst_299 = arith.constant dense<0.000000e+00> : vector<8x32xf32>
    %757 = tpu.matmul %756, %670, %cst_299 {dimension_numbers = #tpu.dot_dimension_numbers<[1], [0], [0], [1], [0, 0, 1, 1], [], []>} : vector<8x32xbf16>, vector<32x32xbf16>, vector<8x32xf32> -> vector<8x32xf32>
    %758 = vector.broadcast %672 : vector<1x32xf32> to vector<8x32xf32>
    %759 = arith.addf %757, %758 : vector<8x32xf32>
    %760 = arith.addf %759, %657 : vector<8x32xf32>
    %c1_300 = arith.constant 1 : index
    %c0_301 = arith.constant 0 : index
    %c0_302 = arith.constant 0 : index
    %761 = vector.load %arg23[%c1_300, %c0_301, %c0_302] : memref<2x1x32xf32, #tpu.memory_space<vmem>>, vector<1x1x32xf32>
    %762 = vector.shape_cast %761 : vector<1x1x32xf32> to vector<1x32xf32>
    %c1_303 = arith.constant 1 : index
    %c0_304 = arith.constant 0 : index
    %c0_305 = arith.constant 0 : index
    %763 = vector.load %arg24[%c1_303, %c0_304, %c0_305] : memref<2x1x32xf32, #tpu.memory_space<vmem>>, vector<1x1x32xf32>
    %764 = vector.shape_cast %763 : vector<1x1x32xf32> to vector<1x32xf32>
    %cst_306 = arith.constant dense<0.000000e+00> : vector<8xf32>
    %765 = vector.multi_reduction <add>, %760, %cst_306 [1] : vector<8x32xf32> to vector<8xf32>
    %766 = vector.shape_cast %765 : vector<8xf32> to vector<8x1xf32>
    %cst_307 = arith.constant 3.200000e+01 : f32
    %767 = vector.broadcast %cst_307 : f32 to vector<8x1xf32>
    %768 = arith.divf %766, %767 : vector<8x1xf32>
    %769 = vector.broadcast %768 : vector<8x1xf32> to vector<8x32xf32>
    %770 = arith.subf %760, %769 : vector<8x32xf32>
    %771 = arith.mulf %770, %770 : vector<8x32xf32>
    %cst_308 = arith.constant dense<0.000000e+00> : vector<8xf32>
    %772 = vector.multi_reduction <add>, %771, %cst_308 [1] : vector<8x32xf32> to vector<8xf32>
    %773 = vector.shape_cast %772 : vector<8xf32> to vector<8x1xf32>
    %cst_309 = arith.constant 3.200000e+01 : f32
    %774 = vector.broadcast %cst_309 : f32 to vector<8x1xf32>
    %775 = arith.divf %773, %774 : vector<8x1xf32>
    %cst_310 = arith.constant 9.99999997E-7 : f32
    %776 = vector.broadcast %cst_310 : f32 to vector<8x1xf32>
    %777 = arith.addf %775, %776 : vector<8x1xf32>
    %778 = math.rsqrt %777 : vector<8x1xf32>
    %779 = vector.broadcast %778 : vector<8x1xf32> to vector<8x32xf32>
    %780 = arith.mulf %770, %779 : vector<8x32xf32>
    %781 = vector.broadcast %762 : vector<1x32xf32> to vector<8x32xf32>
    %782 = arith.mulf %780, %781 : vector<8x32xf32>
    %783 = vector.broadcast %764 : vector<1x32xf32> to vector<8x32xf32>
    %784 = arith.addf %782, %783 : vector<8x32xf32>
    %c1_311 = arith.constant 1 : index
    %c0_312 = arith.constant 0 : index
    %c0_313 = arith.constant 0 : index
    %785 = vector.load %arg25[%c1_311, %c0_312, %c0_313] : memref<2x32x32xbf16, #tpu.memory_space<vmem>>, vector<1x32x32xbf16>
    %786 = vector.shape_cast %785 : vector<1x32x32xbf16> to vector<32x32xbf16>
    %c1_314 = arith.constant 1 : index
    %c0_315 = arith.constant 0 : index
    %c0_316 = arith.constant 0 : index
    %787 = vector.load %arg26[%c1_314, %c0_315, %c0_316] : memref<2x1x32xf32, #tpu.memory_space<vmem>>, vector<1x1x32xf32>
    %788 = vector.shape_cast %787 : vector<1x1x32xf32> to vector<1x32xf32>
    %789 = arith.truncf %784 : vector<8x32xf32> to vector<8x32xbf16>
    %cst_317 = arith.constant dense<0.000000e+00> : vector<8x32xf32>
    %790 = tpu.matmul %789, %786, %cst_317 {dimension_numbers = #tpu.dot_dimension_numbers<[1], [0], [0], [1], [0, 0, 1, 1], [], []>} : vector<8x32xbf16>, vector<32x32xbf16>, vector<8x32xf32> -> vector<8x32xf32>
    %791 = vector.broadcast %788 : vector<1x32xf32> to vector<8x32xf32>
    %792 = arith.addf %790, %791 : vector<8x32xf32>
    %c1_318 = arith.constant 1 : index
    %c0_319 = arith.constant 0 : index
    %c0_320 = arith.constant 0 : index
    %793 = vector.load %arg27[%c1_318, %c0_319, %c0_320] : memref<2x32x64xbf16, #tpu.memory_space<vmem>>, vector<1x32x64xbf16>
    %794 = vector.shape_cast %793 : vector<1x32x64xbf16> to vector<32x64xbf16>
    %c1_321 = arith.constant 1 : index
    %c0_322 = arith.constant 0 : index
    %c0_323 = arith.constant 0 : index
    %795 = vector.load %arg28[%c1_321, %c0_322, %c0_323] : memref<2x1x64xf32, #tpu.memory_space<vmem>>, vector<1x1x64xf32>
    %796 = vector.shape_cast %795 : vector<1x1x64xf32> to vector<1x64xf32>
    %797 = arith.truncf %357 : vector<16x32xf32> to vector<16x32xbf16>
    %cst_324 = arith.constant dense<0.000000e+00> : vector<16x64xf32>
    %798 = tpu.matmul %797, %794, %cst_324 {dimension_numbers = #tpu.dot_dimension_numbers<[1], [0], [0], [1], [0, 0, 1, 1], [], []>} : vector<16x32xbf16>, vector<32x64xbf16>, vector<16x64xf32> -> vector<16x64xf32>
    %799 = vector.broadcast %796 : vector<1x64xf32> to vector<16x64xf32>
    %800 = arith.addf %798, %799 : vector<16x64xf32>
    %801 = vector.extract_strided_slice %800 {offsets = [0, 0], sizes = [16, 32], strides = [1, 1]} : vector<16x64xf32> to vector<16x32xf32>
    %802 = vector.extract_strided_slice %800 {offsets = [0, 32], sizes = [16, 32], strides = [1, 1]} : vector<16x64xf32> to vector<16x32xf32>
    %c1_325 = arith.constant 1 : index
    %c0_326 = arith.constant 0 : index
    %c0_327 = arith.constant 0 : index
    %803 = vector.load %arg29[%c1_325, %c0_326, %c0_327] : memref<2x32x32xbf16, #tpu.memory_space<vmem>>, vector<1x32x32xbf16>
    %804 = vector.shape_cast %803 : vector<1x32x32xbf16> to vector<32x32xbf16>
    %c1_328 = arith.constant 1 : index
    %c0_329 = arith.constant 0 : index
    %c0_330 = arith.constant 0 : index
    %805 = vector.load %arg30[%c1_328, %c0_329, %c0_330] : memref<2x1x32xf32, #tpu.memory_space<vmem>>, vector<1x1x32xf32>
    %806 = vector.shape_cast %805 : vector<1x1x32xf32> to vector<1x32xf32>
    %cst_331 = arith.constant 0.353553385 : f32
    %807 = vector.broadcast %cst_331 : f32 to vector<8x32xf32>
    %808 = arith.mulf %792, %807 : vector<8x32xf32>
    %809 = vector.extract_strided_slice %808 {offsets = [0, 0], sizes = [8, 8], strides = [1, 1]} : vector<8x32xf32> to vector<8x8xf32>
    %810 = arith.truncf %809 : vector<8x8xf32> to vector<8x8xbf16>
    %811 = vector.extract_strided_slice %801 {offsets = [0, 0], sizes = [16, 8], strides = [1, 1]} : vector<16x32xf32> to vector<16x8xf32>
    %812 = arith.truncf %811 : vector<16x8xf32> to vector<16x8xbf16>
    %813 = vector.extract_strided_slice %802 {offsets = [0, 0], sizes = [16, 8], strides = [1, 1]} : vector<16x32xf32> to vector<16x8xf32>
    %814 = arith.truncf %813 : vector<16x8xf32> to vector<16x8xbf16>
    %cst_332 = arith.constant dense<0.000000e+00> : vector<8x16xf32>
    %815 = tpu.matmul %810, %812, %cst_332 {dimension_numbers = #tpu.dot_dimension_numbers<[1], [1], [0], [0], [0, 0, 1, 0], [], []>} : vector<8x8xbf16>, vector<16x8xbf16>, vector<8x16xf32> -> vector<8x16xf32>
    %cst_333 = arith.constant dense<0xFF800000> : vector<8xf32>
    %816 = vector.multi_reduction <maximumf>, %815, %cst_333 [1] : vector<8x16xf32> to vector<8xf32>
    %817 = vector.shape_cast %816 : vector<8xf32> to vector<8x1xf32>
    %818 = vector.broadcast %817 : vector<8x1xf32> to vector<8x16xf32>
    %819 = arith.subf %815, %818 : vector<8x16xf32>
    %820 = math.exp %819 : vector<8x16xf32>
    %cst_334 = arith.constant dense<0.000000e+00> : vector<8xf32>
    %821 = vector.multi_reduction <add>, %820, %cst_334 [1] : vector<8x16xf32> to vector<8xf32>
    %822 = vector.shape_cast %821 : vector<8xf32> to vector<8x1xf32>
    %823 = tpu.reciprocal %822 {approx = true} : vector<8x1xf32> -> vector<8x1xf32>
    %824 = vector.broadcast %823 : vector<8x1xf32> to vector<8x16xf32>
    %825 = arith.mulf %820, %824 : vector<8x16xf32>
    %826 = arith.truncf %825 : vector<8x16xf32> to vector<8x16xbf16>
    %cst_335 = arith.constant dense<0.000000e+00> : vector<8x8xf32>
    %827 = tpu.matmul %826, %814, %cst_335 {dimension_numbers = #tpu.dot_dimension_numbers<[1], [0], [0], [1], [0, 0, 1, 1], [], []>} : vector<8x16xbf16>, vector<16x8xbf16>, vector<8x8xf32> -> vector<8x8xf32>
    %828 = vector.extract_strided_slice %808 {offsets = [0, 8], sizes = [8, 8], strides = [1, 1]} : vector<8x32xf32> to vector<8x8xf32>
    %829 = arith.truncf %828 : vector<8x8xf32> to vector<8x8xbf16>
    %830 = vector.extract_strided_slice %801 {offsets = [0, 8], sizes = [16, 8], strides = [1, 1]} : vector<16x32xf32> to vector<16x8xf32>
    %831 = arith.truncf %830 : vector<16x8xf32> to vector<16x8xbf16>
    %832 = vector.extract_strided_slice %802 {offsets = [0, 8], sizes = [16, 8], strides = [1, 1]} : vector<16x32xf32> to vector<16x8xf32>
    %833 = arith.truncf %832 : vector<16x8xf32> to vector<16x8xbf16>
    %cst_336 = arith.constant dense<0.000000e+00> : vector<8x16xf32>
    %834 = tpu.matmul %829, %831, %cst_336 {dimension_numbers = #tpu.dot_dimension_numbers<[1], [1], [0], [0], [0, 0, 1, 0], [], []>} : vector<8x8xbf16>, vector<16x8xbf16>, vector<8x16xf32> -> vector<8x16xf32>
    %cst_337 = arith.constant dense<0xFF800000> : vector<8xf32>
    %835 = vector.multi_reduction <maximumf>, %834, %cst_337 [1] : vector<8x16xf32> to vector<8xf32>
    %836 = vector.shape_cast %835 : vector<8xf32> to vector<8x1xf32>
    %837 = vector.broadcast %836 : vector<8x1xf32> to vector<8x16xf32>
    %838 = arith.subf %834, %837 : vector<8x16xf32>
    %839 = math.exp %838 : vector<8x16xf32>
    %cst_338 = arith.constant dense<0.000000e+00> : vector<8xf32>
    %840 = vector.multi_reduction <add>, %839, %cst_338 [1] : vector<8x16xf32> to vector<8xf32>
    %841 = vector.shape_cast %840 : vector<8xf32> to vector<8x1xf32>
    %842 = tpu.reciprocal %841 {approx = true} : vector<8x1xf32> -> vector<8x1xf32>
    %843 = vector.broadcast %842 : vector<8x1xf32> to vector<8x16xf32>
    %844 = arith.mulf %839, %843 : vector<8x16xf32>
    %845 = arith.truncf %844 : vector<8x16xf32> to vector<8x16xbf16>
    %cst_339 = arith.constant dense<0.000000e+00> : vector<8x8xf32>
    %846 = tpu.matmul %845, %833, %cst_339 {dimension_numbers = #tpu.dot_dimension_numbers<[1], [0], [0], [1], [0, 0, 1, 1], [], []>} : vector<8x16xbf16>, vector<16x8xbf16>, vector<8x8xf32> -> vector<8x8xf32>
    %847 = vector.extract_strided_slice %808 {offsets = [0, 16], sizes = [8, 8], strides = [1, 1]} : vector<8x32xf32> to vector<8x8xf32>
    %848 = arith.truncf %847 : vector<8x8xf32> to vector<8x8xbf16>
    %849 = vector.extract_strided_slice %801 {offsets = [0, 16], sizes = [16, 8], strides = [1, 1]} : vector<16x32xf32> to vector<16x8xf32>
    %850 = arith.truncf %849 : vector<16x8xf32> to vector<16x8xbf16>
    %851 = vector.extract_strided_slice %802 {offsets = [0, 16], sizes = [16, 8], strides = [1, 1]} : vector<16x32xf32> to vector<16x8xf32>
    %852 = arith.truncf %851 : vector<16x8xf32> to vector<16x8xbf16>
    %cst_340 = arith.constant dense<0.000000e+00> : vector<8x16xf32>
    %853 = tpu.matmul %848, %850, %cst_340 {dimension_numbers = #tpu.dot_dimension_numbers<[1], [1], [0], [0], [0, 0, 1, 0], [], []>} : vector<8x8xbf16>, vector<16x8xbf16>, vector<8x16xf32> -> vector<8x16xf32>
    %cst_341 = arith.constant dense<0xFF800000> : vector<8xf32>
    %854 = vector.multi_reduction <maximumf>, %853, %cst_341 [1] : vector<8x16xf32> to vector<8xf32>
    %855 = vector.shape_cast %854 : vector<8xf32> to vector<8x1xf32>
    %856 = vector.broadcast %855 : vector<8x1xf32> to vector<8x16xf32>
    %857 = arith.subf %853, %856 : vector<8x16xf32>
    %858 = math.exp %857 : vector<8x16xf32>
    %cst_342 = arith.constant dense<0.000000e+00> : vector<8xf32>
    %859 = vector.multi_reduction <add>, %858, %cst_342 [1] : vector<8x16xf32> to vector<8xf32>
    %860 = vector.shape_cast %859 : vector<8xf32> to vector<8x1xf32>
    %861 = tpu.reciprocal %860 {approx = true} : vector<8x1xf32> -> vector<8x1xf32>
    %862 = vector.broadcast %861 : vector<8x1xf32> to vector<8x16xf32>
    %863 = arith.mulf %858, %862 : vector<8x16xf32>
    %864 = arith.truncf %863 : vector<8x16xf32> to vector<8x16xbf16>
    %cst_343 = arith.constant dense<0.000000e+00> : vector<8x8xf32>
    %865 = tpu.matmul %864, %852, %cst_343 {dimension_numbers = #tpu.dot_dimension_numbers<[1], [0], [0], [1], [0, 0, 1, 1], [], []>} : vector<8x16xbf16>, vector<16x8xbf16>, vector<8x8xf32> -> vector<8x8xf32>
    %866 = vector.extract_strided_slice %808 {offsets = [0, 24], sizes = [8, 8], strides = [1, 1]} : vector<8x32xf32> to vector<8x8xf32>
    %867 = arith.truncf %866 : vector<8x8xf32> to vector<8x8xbf16>
    %868 = vector.extract_strided_slice %801 {offsets = [0, 24], sizes = [16, 8], strides = [1, 1]} : vector<16x32xf32> to vector<16x8xf32>
    %869 = arith.truncf %868 : vector<16x8xf32> to vector<16x8xbf16>
    %870 = vector.extract_strided_slice %802 {offsets = [0, 24], sizes = [16, 8], strides = [1, 1]} : vector<16x32xf32> to vector<16x8xf32>
    %871 = arith.truncf %870 : vector<16x8xf32> to vector<16x8xbf16>
    %cst_344 = arith.constant dense<0.000000e+00> : vector<8x16xf32>
    %872 = tpu.matmul %867, %869, %cst_344 {dimension_numbers = #tpu.dot_dimension_numbers<[1], [1], [0], [0], [0, 0, 1, 0], [], []>} : vector<8x8xbf16>, vector<16x8xbf16>, vector<8x16xf32> -> vector<8x16xf32>
    %cst_345 = arith.constant dense<0xFF800000> : vector<8xf32>
    %873 = vector.multi_reduction <maximumf>, %872, %cst_345 [1] : vector<8x16xf32> to vector<8xf32>
    %874 = vector.shape_cast %873 : vector<8xf32> to vector<8x1xf32>
    %875 = vector.broadcast %874 : vector<8x1xf32> to vector<8x16xf32>
    %876 = arith.subf %872, %875 : vector<8x16xf32>
    %877 = math.exp %876 : vector<8x16xf32>
    %cst_346 = arith.constant dense<0.000000e+00> : vector<8xf32>
    %878 = vector.multi_reduction <add>, %877, %cst_346 [1] : vector<8x16xf32> to vector<8xf32>
    %879 = vector.shape_cast %878 : vector<8xf32> to vector<8x1xf32>
    %880 = tpu.reciprocal %879 {approx = true} : vector<8x1xf32> -> vector<8x1xf32>
    %881 = vector.broadcast %880 : vector<8x1xf32> to vector<8x16xf32>
    %882 = arith.mulf %877, %881 : vector<8x16xf32>
    %883 = arith.truncf %882 : vector<8x16xf32> to vector<8x16xbf16>
    %cst_347 = arith.constant dense<0.000000e+00> : vector<8x8xf32>
    %884 = tpu.matmul %883, %871, %cst_347 {dimension_numbers = #tpu.dot_dimension_numbers<[1], [0], [0], [1], [0, 0, 1, 1], [], []>} : vector<8x16xbf16>, vector<16x8xbf16>, vector<8x8xf32> -> vector<8x8xf32>
    %885 = tpu.concatenate %827, %846, %865, %884 in 1 : vector<8x8xf32>, vector<8x8xf32>, vector<8x8xf32>, vector<8x8xf32> -> vector<8x32xf32>
    %886 = arith.truncf %885 : vector<8x32xf32> to vector<8x32xbf16>
    %cst_348 = arith.constant dense<0.000000e+00> : vector<8x32xf32>
    %887 = tpu.matmul %886, %804, %cst_348 {dimension_numbers = #tpu.dot_dimension_numbers<[1], [0], [0], [1], [0, 0, 1, 1], [], []>} : vector<8x32xbf16>, vector<32x32xbf16>, vector<8x32xf32> -> vector<8x32xf32>
    %888 = vector.broadcast %806 : vector<1x32xf32> to vector<8x32xf32>
    %889 = arith.addf %887, %888 : vector<8x32xf32>
    %890 = arith.addf %889, %784 : vector<8x32xf32>
    %c1_349 = arith.constant 1 : index
    %c0_350 = arith.constant 0 : index
    %c0_351 = arith.constant 0 : index
    %891 = vector.load %arg31[%c1_349, %c0_350, %c0_351] : memref<2x1x32xf32, #tpu.memory_space<vmem>>, vector<1x1x32xf32>
    %892 = vector.shape_cast %891 : vector<1x1x32xf32> to vector<1x32xf32>
    %c1_352 = arith.constant 1 : index
    %c0_353 = arith.constant 0 : index
    %c0_354 = arith.constant 0 : index
    %893 = vector.load %arg32[%c1_352, %c0_353, %c0_354] : memref<2x1x32xf32, #tpu.memory_space<vmem>>, vector<1x1x32xf32>
    %894 = vector.shape_cast %893 : vector<1x1x32xf32> to vector<1x32xf32>
    %cst_355 = arith.constant dense<0.000000e+00> : vector<8xf32>
    %895 = vector.multi_reduction <add>, %890, %cst_355 [1] : vector<8x32xf32> to vector<8xf32>
    %896 = vector.shape_cast %895 : vector<8xf32> to vector<8x1xf32>
    %cst_356 = arith.constant 3.200000e+01 : f32
    %897 = vector.broadcast %cst_356 : f32 to vector<8x1xf32>
    %898 = arith.divf %896, %897 : vector<8x1xf32>
    %899 = vector.broadcast %898 : vector<8x1xf32> to vector<8x32xf32>
    %900 = arith.subf %890, %899 : vector<8x32xf32>
    %901 = arith.mulf %900, %900 : vector<8x32xf32>
    %cst_357 = arith.constant dense<0.000000e+00> : vector<8xf32>
    %902 = vector.multi_reduction <add>, %901, %cst_357 [1] : vector<8x32xf32> to vector<8xf32>
    %903 = vector.shape_cast %902 : vector<8xf32> to vector<8x1xf32>
    %cst_358 = arith.constant 3.200000e+01 : f32
    %904 = vector.broadcast %cst_358 : f32 to vector<8x1xf32>
    %905 = arith.divf %903, %904 : vector<8x1xf32>
    %cst_359 = arith.constant 9.99999997E-7 : f32
    %906 = vector.broadcast %cst_359 : f32 to vector<8x1xf32>
    %907 = arith.addf %905, %906 : vector<8x1xf32>
    %908 = math.rsqrt %907 : vector<8x1xf32>
    %909 = vector.broadcast %908 : vector<8x1xf32> to vector<8x32xf32>
    %910 = arith.mulf %900, %909 : vector<8x32xf32>
    %911 = vector.broadcast %892 : vector<1x32xf32> to vector<8x32xf32>
    %912 = arith.mulf %910, %911 : vector<8x32xf32>
    %913 = vector.broadcast %894 : vector<1x32xf32> to vector<8x32xf32>
    %914 = arith.addf %912, %913 : vector<8x32xf32>
    %c1_360 = arith.constant 1 : index
    %c0_361 = arith.constant 0 : index
    %c0_362 = arith.constant 0 : index
    %915 = vector.load %arg33[%c1_360, %c0_361, %c0_362] : memref<2x32x64xbf16, #tpu.memory_space<vmem>>, vector<1x32x64xbf16>
    %916 = vector.shape_cast %915 : vector<1x32x64xbf16> to vector<32x64xbf16>
    %c1_363 = arith.constant 1 : index
    %c0_364 = arith.constant 0 : index
    %c0_365 = arith.constant 0 : index
    %917 = vector.load %arg34[%c1_363, %c0_364, %c0_365] : memref<2x1x64xf32, #tpu.memory_space<vmem>>, vector<1x1x64xf32>
    %918 = vector.shape_cast %917 : vector<1x1x64xf32> to vector<1x64xf32>
    %919 = arith.truncf %914 : vector<8x32xf32> to vector<8x32xbf16>
    %cst_366 = arith.constant dense<0.000000e+00> : vector<8x64xf32>
    %920 = tpu.matmul %919, %916, %cst_366 {dimension_numbers = #tpu.dot_dimension_numbers<[1], [0], [0], [1], [0, 0, 1, 1], [], []>} : vector<8x32xbf16>, vector<32x64xbf16>, vector<8x64xf32> -> vector<8x64xf32>
    %921 = vector.broadcast %918 : vector<1x64xf32> to vector<8x64xf32>
    %922 = arith.addf %920, %921 : vector<8x64xf32>
    %cst_367 = arith.constant 0.000000e+00 : f32
    %923 = vector.broadcast %cst_367 : f32 to vector<8x64xf32>
    %924 = arith.maximumf %922, %923 : vector<8x64xf32>
    %c1_368 = arith.constant 1 : index
    %c0_369 = arith.constant 0 : index
    %c0_370 = arith.constant 0 : index
    %925 = vector.load %arg35[%c1_368, %c0_369, %c0_370] : memref<2x64x32xbf16, #tpu.memory_space<vmem>>, vector<1x64x32xbf16>
    %926 = vector.shape_cast %925 : vector<1x64x32xbf16> to vector<64x32xbf16>
    %c1_371 = arith.constant 1 : index
    %c0_372 = arith.constant 0 : index
    %c0_373 = arith.constant 0 : index
    %927 = vector.load %arg36[%c1_371, %c0_372, %c0_373] : memref<2x1x32xf32, #tpu.memory_space<vmem>>, vector<1x1x32xf32>
    %928 = vector.shape_cast %927 : vector<1x1x32xf32> to vector<1x32xf32>
    %929 = arith.truncf %924 : vector<8x64xf32> to vector<8x64xbf16>
    %cst_374 = arith.constant dense<0.000000e+00> : vector<8x32xf32>
    %930 = tpu.matmul %929, %926, %cst_374 {dimension_numbers = #tpu.dot_dimension_numbers<[1], [0], [0], [1], [0, 0, 1, 1], [], []>} : vector<8x64xbf16>, vector<64x32xbf16>, vector<8x32xf32> -> vector<8x32xf32>
    %931 = vector.broadcast %928 : vector<1x32xf32> to vector<8x32xf32>
    %932 = arith.addf %930, %931 : vector<8x32xf32>
    %933 = arith.addf %932, %914 : vector<8x32xf32>
    %c1_375 = arith.constant 1 : index
    %c0_376 = arith.constant 0 : index
    %c0_377 = arith.constant 0 : index
    %934 = vector.load %arg37[%c1_375, %c0_376, %c0_377] : memref<2x1x32xf32, #tpu.memory_space<vmem>>, vector<1x1x32xf32>
    %935 = vector.shape_cast %934 : vector<1x1x32xf32> to vector<1x32xf32>
    %c1_378 = arith.constant 1 : index
    %c0_379 = arith.constant 0 : index
    %c0_380 = arith.constant 0 : index
    %936 = vector.load %arg38[%c1_378, %c0_379, %c0_380] : memref<2x1x32xf32, #tpu.memory_space<vmem>>, vector<1x1x32xf32>
    %937 = vector.shape_cast %936 : vector<1x1x32xf32> to vector<1x32xf32>
    %cst_381 = arith.constant dense<0.000000e+00> : vector<8xf32>
    %938 = vector.multi_reduction <add>, %933, %cst_381 [1] : vector<8x32xf32> to vector<8xf32>
    %939 = vector.shape_cast %938 : vector<8xf32> to vector<8x1xf32>
    %cst_382 = arith.constant 3.200000e+01 : f32
    %940 = vector.broadcast %cst_382 : f32 to vector<8x1xf32>
    %941 = arith.divf %939, %940 : vector<8x1xf32>
    %942 = vector.broadcast %941 : vector<8x1xf32> to vector<8x32xf32>
    %943 = arith.subf %933, %942 : vector<8x32xf32>
    %944 = arith.mulf %943, %943 : vector<8x32xf32>
    %cst_383 = arith.constant dense<0.000000e+00> : vector<8xf32>
    %945 = vector.multi_reduction <add>, %944, %cst_383 [1] : vector<8x32xf32> to vector<8xf32>
    %946 = vector.shape_cast %945 : vector<8xf32> to vector<8x1xf32>
    %cst_384 = arith.constant 3.200000e+01 : f32
    %947 = vector.broadcast %cst_384 : f32 to vector<8x1xf32>
    %948 = arith.divf %946, %947 : vector<8x1xf32>
    %cst_385 = arith.constant 9.99999997E-7 : f32
    %949 = vector.broadcast %cst_385 : f32 to vector<8x1xf32>
    %950 = arith.addf %948, %949 : vector<8x1xf32>
    %951 = math.rsqrt %950 : vector<8x1xf32>
    %952 = vector.broadcast %951 : vector<8x1xf32> to vector<8x32xf32>
    %953 = arith.mulf %943, %952 : vector<8x32xf32>
    %954 = vector.broadcast %935 : vector<1x32xf32> to vector<8x32xf32>
    %955 = arith.mulf %953, %954 : vector<8x32xf32>
    %956 = vector.broadcast %937 : vector<1x32xf32> to vector<8x32xf32>
    %957 = arith.addf %955, %956 : vector<8x32xf32>
    %958 = arith.truncf %957 : vector<8x32xf32> to vector<8x32xbf16>
    %c0_386 = arith.constant 0 : index
    %c0_387 = arith.constant 0 : index
    %959 = vector.load %arg39[%c0_386, %c0_387] : memref<32x32xbf16, #tpu.memory_space<vmem>>, vector<32x32xbf16>
    %cst_388 = arith.constant dense<0.000000e+00> : vector<8x32xf32>
    %960 = tpu.matmul %958, %959, %cst_388 {dimension_numbers = #tpu.dot_dimension_numbers<[1], [0], [0], [1], [0, 0, 1, 1], [], []>} : vector<8x32xbf16>, vector<32x32xbf16>, vector<8x32xf32> -> vector<8x32xf32>
    %c0_389 = arith.constant 0 : index
    %c0_390 = arith.constant 0 : index
    %961 = vector.load %arg40[%c0_389, %c0_390] : memref<1x32xf32, #tpu.memory_space<vmem>>, vector<1x32xf32>
    %962 = vector.broadcast %961 : vector<1x32xf32> to vector<8x32xf32>
    %963 = arith.addf %960, %962 : vector<8x32xf32>
    %c0_391 = arith.constant 0 : index
    %c0_392 = arith.constant 0 : index
    %c0_393 = arith.constant 0 : index
    %964 = vector.load %arg41[%c0_391, %c0_392, %c0_393] : memref<1x8x32xf32, #tpu.memory_space<vmem>>, vector<1x8x32xf32>
    %965 = vector.shape_cast %964 : vector<1x8x32xf32> to vector<8x32xf32>
    %966 = vector.shape_cast %963 : vector<8x32xf32> to vector<1x8x32xf32>
    tpu.vector_store %arg41[%c0_391, %c0_392, %c0_393], %966 {strides = array<i32>} : memref<1x8x32xf32, #tpu.memory_space<vmem>>, vector<1x8x32xf32>,
    return
  }
  func.func @transform_0(%arg0: i32) -> (i32, i32, i32) {
    %c0_i32 = arith.constant 0 : i32
    %c0_i32_0 = arith.constant 0 : i32
    %c0_i32_1 = arith.constant 0 : i32
    return %arg0, %c0_i32, %c0_i32_0 : i32, i32, i32
  }
  func.func @transform_1(%arg0: i32) -> (i32, i32, i32) {
    %c0_i32 = arith.constant 0 : i32
    %c0_i32_0 = arith.constant 0 : i32
    %c0_i32_1 = arith.constant 0 : i32
    return %arg0, %c0_i32, %c0_i32_0 : i32, i32, i32
  }
  func.func @transform_2(%arg0: i32) -> (i32, i32, i32) {
    %c0_i32 = arith.constant 0 : i32
    %c0_i32_0 = arith.constant 0 : i32
    %c0_i32_1 = arith.constant 0 : i32
    return %arg0, %c0_i32, %c0_i32_0 : i32, i32, i32
  }
  func.func @transform_3(%arg0: i32) -> (i32, i32, i32) {
    %c0_i32 = arith.constant 0 : i32
    %c0_i32_0 = arith.constant 0 : i32
    %c0_i32_1 = arith.constant 0 : i32
    %c0_i32_2 = arith.constant 0 : i32
    return %c0_i32, %c0_i32_0, %c0_i32_1 : i32, i32, i32
  }
  func.func @transform_4(%arg0: i32) -> (i32, i32) {
    %c0_i32 = arith.constant 0 : i32
    %c0_i32_0 = arith.constant 0 : i32
    %c0_i32_1 = arith.constant 0 : i32
    return %c0_i32, %c0_i32_0 : i32, i32
  }
  func.func @transform_5(%arg0: i32) -> (i32, i32) {
    %c0_i32 = arith.constant 0 : i32
    %c0_i32_0 = arith.constant 0 : i32
    %c0_i32_1 = arith.constant 0 : i32
    return %c0_i32, %c0_i32_0 : i32, i32
  }
  func.func @transform_6(%arg0: i32) -> (i32, i32, i32) {
    %c0_i32 = arith.constant 0 : i32
    %c0_i32_0 = arith.constant 0 : i32
    %c0_i32_1 = arith.constant 0 : i32
    %c0_i32_2 = arith.constant 0 : i32
    return %c0_i32, %c0_i32_0, %c0_i32_1 : i32, i32, i32
  }
  func.func @transform_7(%arg0: i32) -> (i32, i32, i32) {
    %c0_i32 = arith.constant 0 : i32
    %c0_i32_0 = arith.constant 0 : i32
    %c0_i32_1 = arith.constant 0 : i32
    %c0_i32_2 = arith.constant 0 : i32
    return %c0_i32, %c0_i32_0, %c0_i32_1 : i32, i32, i32
  }
  func.func @transform_8(%arg0: i32) -> (i32, i32, i32) {
    %c0_i32 = arith.constant 0 : i32
    %c0_i32_0 = arith.constant 0 : i32
    %c0_i32_1 = arith.constant 0 : i32
    %c0_i32_2 = arith.constant 0 : i32
    return %c0_i32, %c0_i32_0, %c0_i32_1 : i32, i32, i32
  }
  func.func @transform_9(%arg0: i32) -> (i32, i32, i32) {
    %c0_i32 = arith.constant 0 : i32
    %c0_i32_0 = arith.constant 0 : i32
    %c0_i32_1 = arith.constant 0 : i32
    %c0_i32_2 = arith.constant 0 : i32
    return %c0_i32, %c0_i32_0, %c0_i32_1 : i32, i32, i32
  }
  func.func @transform_10(%arg0: i32) -> (i32, i32, i32) {
    %c0_i32 = arith.constant 0 : i32
    %c0_i32_0 = arith.constant 0 : i32
    %c0_i32_1 = arith.constant 0 : i32
    %c0_i32_2 = arith.constant 0 : i32
    return %c0_i32, %c0_i32_0, %c0_i32_1 : i32, i32, i32
  }
  func.func @transform_11(%arg0: i32) -> (i32, i32, i32) {
    %c0_i32 = arith.constant 0 : i32
    %c0_i32_0 = arith.constant 0 : i32
    %c0_i32_1 = arith.constant 0 : i32
    %c0_i32_2 = arith.constant 0 : i32
    return %c0_i32, %c0_i32_0, %c0_i32_1 : i32, i32, i32
  }
  func.func @transform_12(%arg0: i32) -> (i32, i32, i32) {
    %c0_i32 = arith.constant 0 : i32
    %c0_i32_0 = arith.constant 0 : i32
    %c0_i32_1 = arith.constant 0 : i32
    %c0_i32_2 = arith.constant 0 : i32
    return %c0_i32, %c0_i32_0, %c0_i32_1 : i32, i32, i32
  }
  func.func @transform_13(%arg0: i32) -> (i32, i32, i32) {
    %c0_i32 = arith.constant 0 : i32
    %c0_i32_0 = arith.constant 0 : i32
    %c0_i32_1 = arith.constant 0 : i32
    %c0_i32_2 = arith.constant 0 : i32
    return %c0_i32, %c0_i32_0, %c0_i32_1 : i32, i32, i32
  }
  func.func @transform_14(%arg0: i32) -> (i32, i32, i32) {
    %c0_i32 = arith.constant 0 : i32
    %c0_i32_0 = arith.constant 0 : i32
    %c0_i32_1 = arith.constant 0 : i32
    %c0_i32_2 = arith.constant 0 : i32
    return %c0_i32, %c0_i32_0, %c0_i32_1 : i32, i32, i32
  }
  func.func @transform_15(%arg0: i32) -> (i32, i32, i32) {
    %c0_i32 = arith.constant 0 : i32
    %c0_i32_0 = arith.constant 0 : i32
    %c0_i32_1 = arith.constant 0 : i32
    %c0_i32_2 = arith.constant 0 : i32
    return %c0_i32, %c0_i32_0, %c0_i32_1 : i32, i32, i32
  }
  func.func @transform_16(%arg0: i32) -> (i32, i32, i32) {
    %c0_i32 = arith.constant 0 : i32
    %c0_i32_0 = arith.constant 0 : i32
    %c0_i32_1 = arith.constant 0 : i32
    %c0_i32_2 = arith.constant 0 : i32
    return %c0_i32, %c0_i32_0, %c0_i32_1 : i32, i32, i32
  }
  func.func @transform_17(%arg0: i32) -> (i32, i32, i32) {
    %c0_i32 = arith.constant 0 : i32
    %c0_i32_0 = arith.constant 0 : i32
    %c0_i32_1 = arith.constant 0 : i32
    %c0_i32_2 = arith.constant 0 : i32
    return %c0_i32, %c0_i32_0, %c0_i32_1 : i32, i32, i32
  }
  func.func @transform_18(%arg0: i32) -> (i32, i32, i32) {
    %c0_i32 = arith.constant 0 : i32
    %c0_i32_0 = arith.constant 0 : i32
    %c0_i32_1 = arith.constant 0 : i32
    %c0_i32_2 = arith.constant 0 : i32
    return %c0_i32, %c0_i32_0, %c0_i32_1 : i32, i32, i32
  }
  func.func @transform_19(%arg0: i32) -> (i32, i32, i32) {
    %c0_i32 = arith.constant 0 : i32
    %c0_i32_0 = arith.constant 0 : i32
    %c0_i32_1 = arith.constant 0 : i32
    %c0_i32_2 = arith.constant 0 : i32
    return %c0_i32, %c0_i32_0, %c0_i32_1 : i32, i32, i32
  }
  func.func @transform_20(%arg0: i32) -> (i32, i32, i32) {
    %c0_i32 = arith.constant 0 : i32
    %c0_i32_0 = arith.constant 0 : i32
    %c0_i32_1 = arith.constant 0 : i32
    %c0_i32_2 = arith.constant 0 : i32
    return %c0_i32, %c0_i32_0, %c0_i32_1 : i32, i32, i32
  }
  func.func @transform_21(%arg0: i32) -> (i32, i32, i32) {
    %c0_i32 = arith.constant 0 : i32
    %c0_i32_0 = arith.constant 0 : i32
    %c0_i32_1 = arith.constant 0 : i32
    %c0_i32_2 = arith.constant 0 : i32
    return %c0_i32, %c0_i32_0, %c0_i32_1 : i32, i32, i32
  }
  func.func @transform_22(%arg0: i32) -> (i32, i32, i32) {
    %c0_i32 = arith.constant 0 : i32
    %c0_i32_0 = arith.constant 0 : i32
    %c0_i32_1 = arith.constant 0 : i32
    %c0_i32_2 = arith.constant 0 : i32
    return %c0_i32, %c0_i32_0, %c0_i32_1 : i32, i32, i32
  }
  func.func @transform_23(%arg0: i32) -> (i32, i32, i32) {
    %c0_i32 = arith.constant 0 : i32
    %c0_i32_0 = arith.constant 0 : i32
    %c0_i32_1 = arith.constant 0 : i32
    %c0_i32_2 = arith.constant 0 : i32
    return %c0_i32, %c0_i32_0, %c0_i32_1 : i32, i32, i32
  }
  func.func @transform_24(%arg0: i32) -> (i32, i32, i32) {
    %c0_i32 = arith.constant 0 : i32
    %c0_i32_0 = arith.constant 0 : i32
    %c0_i32_1 = arith.constant 0 : i32
    %c0_i32_2 = arith.constant 0 : i32
    return %c0_i32, %c0_i32_0, %c0_i32_1 : i32, i32, i32
  }
  func.func @transform_25(%arg0: i32) -> (i32, i32, i32) {
    %c0_i32 = arith.constant 0 : i32
    %c0_i32_0 = arith.constant 0 : i32
    %c0_i32_1 = arith.constant 0 : i32
    %c0_i32_2 = arith.constant 0 : i32
    return %c0_i32, %c0_i32_0, %c0_i32_1 : i32, i32, i32
  }
  func.func @transform_26(%arg0: i32) -> (i32, i32, i32) {
    %c0_i32 = arith.constant 0 : i32
    %c0_i32_0 = arith.constant 0 : i32
    %c0_i32_1 = arith.constant 0 : i32
    %c0_i32_2 = arith.constant 0 : i32
    return %c0_i32, %c0_i32_0, %c0_i32_1 : i32, i32, i32
  }
  func.func @transform_27(%arg0: i32) -> (i32, i32, i32) {
    %c0_i32 = arith.constant 0 : i32
    %c0_i32_0 = arith.constant 0 : i32
    %c0_i32_1 = arith.constant 0 : i32
    %c0_i32_2 = arith.constant 0 : i32
    return %c0_i32, %c0_i32_0, %c0_i32_1 : i32, i32, i32
  }
  func.func @transform_28(%arg0: i32) -> (i32, i32, i32) {
    %c0_i32 = arith.constant 0 : i32
    %c0_i32_0 = arith.constant 0 : i32
    %c0_i32_1 = arith.constant 0 : i32
    %c0_i32_2 = arith.constant 0 : i32
    return %c0_i32, %c0_i32_0, %c0_i32_1 : i32, i32, i32
  }
  func.func @transform_29(%arg0: i32) -> (i32, i32, i32) {
    %c0_i32 = arith.constant 0 : i32
    %c0_i32_0 = arith.constant 0 : i32
    %c0_i32_1 = arith.constant 0 : i32
    %c0_i32_2 = arith.constant 0 : i32
    return %c0_i32, %c0_i32_0, %c0_i32_1 : i32, i32, i32
  }
  func.func @transform_30(%arg0: i32) -> (i32, i32, i32) {
    %c0_i32 = arith.constant 0 : i32
    %c0_i32_0 = arith.constant 0 : i32
    %c0_i32_1 = arith.constant 0 : i32
    %c0_i32_2 = arith.constant 0 : i32
    return %c0_i32, %c0_i32_0, %c0_i32_1 : i32, i32, i32
  }
  func.func @transform_31(%arg0: i32) -> (i32, i32, i32) {
    %c0_i32 = arith.constant 0 : i32
    %c0_i32_0 = arith.constant 0 : i32
    %c0_i32_1 = arith.constant 0 : i32
    %c0_i32_2 = arith.constant 0 : i32
    return %c0_i32, %c0_i32_0, %c0_i32_1 : i32, i32, i32
  }
  func.func @transform_32(%arg0: i32) -> (i32, i32, i32) {
    %c0_i32 = arith.constant 0 : i32
    %c0_i32_0 = arith.constant 0 : i32
    %c0_i32_1 = arith.constant 0 : i32
    %c0_i32_2 = arith.constant 0 : i32
    return %c0_i32, %c0_i32_0, %c0_i32_1 : i32, i32, i32
  }
  func.func @transform_33(%arg0: i32) -> (i32, i32, i32) {
    %c0_i32 = arith.constant 0 : i32
    %c0_i32_0 = arith.constant 0 : i32
    %c0_i32_1 = arith.constant 0 : i32
    %c0_i32_2 = arith.constant 0 : i32
    return %c0_i32, %c0_i32_0, %c0_i32_1 : i32, i32, i32
  }
  func.func @transform_34(%arg0: i32) -> (i32, i32, i32) {
    %c0_i32 = arith.constant 0 : i32
    %c0_i32_0 = arith.constant 0 : i32
    %c0_i32_1 = arith.constant 0 : i32
    %c0_i32_2 = arith.constant 0 : i32
    return %c0_i32, %c0_i32_0, %c0_i32_1 : i32, i32, i32
  }
  func.func @transform_35(%arg0: i32) -> (i32, i32, i32) {
    %c0_i32 = arith.constant 0 : i32
    %c0_i32_0 = arith.constant 0 : i32
    %c0_i32_1 = arith.constant 0 : i32
    %c0_i32_2 = arith.constant 0 : i32
    return %c0_i32, %c0_i32_0, %c0_i32_1 : i32, i32, i32
  }
  func.func @transform_36(%arg0: i32) -> (i32, i32, i32) {
    %c0_i32 = arith.constant 0 : i32
    %c0_i32_0 = arith.constant 0 : i32
    %c0_i32_1 = arith.constant 0 : i32
    %c0_i32_2 = arith.constant 0 : i32
    return %c0_i32, %c0_i32_0, %c0_i32_1 : i32, i32, i32
  }
  func.func @transform_37(%arg0: i32) -> (i32, i32, i32) {
    %c0_i32 = arith.constant 0 : i32
    %c0_i32_0 = arith.constant 0 : i32
    %c0_i32_1 = arith.constant 0 : i32
    %c0_i32_2 = arith.constant 0 : i32
    return %c0_i32, %c0_i32_0, %c0_i32_1 : i32, i32, i32
  }
  func.func @transform_38(%arg0: i32) -> (i32, i32) {
    %c0_i32 = arith.constant 0 : i32
    %c0_i32_0 = arith.constant 0 : i32
    %c0_i32_1 = arith.constant 0 : i32
    return %c0_i32, %c0_i32_0 : i32, i32
  }
  func.func @transform_39(%arg0: i32) -> (i32, i32) {
    %c0_i32 = arith.constant 0 : i32
    %c0_i32_0 = arith.constant 0 : i32
    %c0_i32_1 = arith.constant 0 : i32
    return %c0_i32, %c0_i32_0 : i32, i32
  }
  func.func @transform_40(%arg0: i32) -> (i32, i32, i32) {
    %c0_i32 = arith.constant 0 : i32
    %c0_i32_0 = arith.constant 0 : i32
    %c0_i32_1 = arith.constant 0 : i32
    return %arg0, %c0_i32, %c0_i32_0 : i32, i32, i32
  }
}

</mosaic_0001>

<llo_original>
// kernel: transformer_forward.1
$region0: #{transformer_forward.1}
  #allocation0 [shape = 'u32[]', space=smem, size = 0x4, offset = 0x4, fixed_abs, tag = 'smem constant byte address 0x4 - core index']
  #allocation1 [shape = 'u32[144,128]{1,0:T(1,128)}', space=vmem, size = 0x12000, scoped, tag = 'internal scratch']
  %s0 = inlined_call_operand.smem [shape: u32[41], index: -1, kind: input, shape index: {}]
  %s1 = sld [smem:[%s0]]
  %s2 = scalar_lea.smem %s0, 1
  %s3 = sld [smem:[%s2]]
  %s4 = scalar_lea.smem %s0, 2
  %s5 = sld [smem:[%s4]]
  %s6 = scalar_lea.smem %s0, 3
  %s7 = sld [smem:[%s6]]
  %s8 = scalar_lea.smem %s0, 4
  %s9 = sld [smem:[%s8]]
  %s10 = scalar_lea.smem %s0, 5
  %s11 = sld [smem:[%s10]]
  %s12 = scalar_lea.smem %s0, 6
  %s13 = sld [smem:[%s12]]
  %s14 = scalar_lea.smem %s0, 7
  %s15 = sld [smem:[%s14]]
  %s16 = scalar_lea.smem %s0, 8
  %s17 = sld [smem:[%s16]]
  %s18 = scalar_lea.smem %s0, 9
  %s19 = sld [smem:[%s18]]
  %s20 = scalar_lea.smem %s0, 10
  %s21 = sld [smem:[%s20]]
  %s22 = scalar_lea.smem %s0, 11
  %s23 = sld [smem:[%s22]]
  %s24 = scalar_lea.smem %s0, 12
  %s25 = sld [smem:[%s24]]
  %s26 = scalar_lea.smem %s0, 13
  %s27 = sld [smem:[%s26]]
  %s28 = scalar_lea.smem %s0, 14
  %s29 = sld [smem:[%s28]]
  %s30 = scalar_lea.smem %s0, 15
  %s31 = sld [smem:[%s30]]
  %s32 = scalar_lea.smem %s0, 16
  %s33 = sld [smem:[%s32]]
  %s34 = scalar_lea.smem %s0, 17
  %s35 = sld [smem:[%s34]]
  %s36 = scalar_lea.smem %s0, 18
  %s37 = sld [smem:[%s36]]
  %s38 = scalar_lea.smem %s0, 19
  %s39 = sld [smem:[%s38]]
  %s40 = scalar_lea.smem %s0, 20
  %s41 = sld [smem:[%s40]]
  %s42 = scalar_lea.smem %s0, 21
  %s43 = sld [smem:[%s42]]
  %s44 = scalar_lea.smem %s0, 22
  %s45 = sld [smem:[%s44]]
  %s46 = scalar_lea.smem %s0, 23
  %s47 = sld [smem:[%s46]]
  %s48 = scalar_lea.smem %s0, 24
  %s49 = sld [smem:[%s48]]
  %s50 = scalar_lea.smem %s0, 25
  %s51 = sld [smem:[%s50]]
  %s52 = scalar_lea.smem %s0, 26
  %s53 = sld [smem:[%s52]]
  %s54 = scalar_lea.smem %s0, 27
  %s55 = sld [smem:[%s54]]
  %s56 = scalar_lea.smem %s0, 28
  %s57 = sld [smem:[%s56]]
  %s58 = scalar_lea.smem %s0, 29
  %s59 = sld [smem:[%s58]]
  %s60 = scalar_lea.smem %s0, 30
  %s61 = sld [smem:[%s60]]
  %s62 = scalar_lea.smem %s0, 31
  %s63 = sld [smem:[%s62]]
  %s64 = scalar_lea.smem %s0, 32
  %s65 = sld [smem:[%s64]]
  %s66 = scalar_lea.smem %s0, 33
  %s67 = sld [smem:[%s66]]
  %s68 = scalar_lea.smem %s0, 34
  %s69 = sld [smem:[%s68]]
  %s70 = scalar_lea.smem %s0, 35
  %s71 = sld [smem:[%s70]]
  %s72 = scalar_lea.smem %s0, 36
  %s73 = sld [smem:[%s72]]
  %s74 = scalar_lea.smem %s0, 37
  %s75 = sld [smem:[%s74]]
  %s76 = scalar_lea.smem %s0, 38
  %s77 = sld [smem:[%s76]]
  %s78 = scalar_lea.smem %s0, 39
  %s79 = sld [smem:[%s78]]
  %s80 = scalar_lea.smem %s0, 40
  %s81 = sld [smem:[%s80]]
  %s82 = sld [smem:[#allocation0]]
  $region241: #{transformer_forward.1} parent=0
    _
  %s84 = ssub.s32 1, %s82
  %s85 = scalar_select 0, %s84, %s82
  $region1: #{transformer_forward.1} parent=0
    #allocation2 [shape = 'u8[512]{0}', space=vmem, size = 0x400, scoped, tag = 'input window, operand 5, single buffered']
    #allocation3 [shape = 's32[2]{0}', space=sflag, size = 0x8, scoped, tag = 'scoped memory for transformer_forward.1']
    #allocation4 [shape = 's32[2]{0}', space=sflag, size = 0x8, scoped, tag = 'scoped memory for transformer_forward.1']
    #allocation5 [shape = 'u8[1024]{0}', space=vmem, size = 0x400, scoped, tag = 'input window, operand 19, single buffered']
    #allocation6 [shape = 's32[1]{0}', space=sflag, size = 0x4, scoped, tag = 'scoped memory for transformer_forward.1']
    #allocation7 [shape = 'u8[1024]{0}', space=vmem, size = 0x400, scoped, tag = 'input window, operand 21, single buffered']
    #allocation8 [shape = 'u8[1024]{0}', space=vmem, size = 0x400, scoped, tag = 'input window, operand 23, single buffered']
    #allocation9 [shape = 's32[1]{0}', space=sflag, size = 0x4, scoped, tag = 'scoped memory for transformer_forward.1']
    #allocation10 [shape = 'u8[1024]{0}', space=vmem, size = 0x400, scoped, tag = 'input window, operand 25, single buffered']
    #allocation11 [shape = 'u8[1024]{0}', space=vmem, size = 0x400, scoped, tag = 'input window, operand 27, single buffered']
    #allocation12 [shape = 's32[1]{0}', space=sflag, size = 0x4, scoped, tag = 'scoped memory for transformer_forward.1']
    #allocation13 [shape = 'u8[1024]{0}', space=vmem, size = 0x400, scoped, tag = 'input window, operand 29, single buffered']
    #allocation14 [shape = 'u8[1024]{0}', space=vmem, size = 0x400, scoped, tag = 'input window, operand 31, single buffered']
    #allocation15 [shape = 's32[1]{0}', space=sflag, size = 0x4, scoped, tag = 'scoped memory for transformer_forward.1']
    #allocation16 [shape = 'u8[1024]{0}', space=vmem, size = 0x400, scoped, tag = 'input window, operand 33, single buffered']
    #allocation17 [shape = 'u8[1024]{0}', space=vmem, size = 0x400, scoped, tag = 'input window, operand 35, single buffered']
    #allocation18 [shape = 's32[1]{0}', space=sflag, size = 0x4, scoped, tag = 'scoped memory for transformer_forward.1']
    #allocation19 [shape = 'u8[1024]{0}', space=vmem, size = 0x400, scoped, tag = 'input window, operand 37, single buffered']
    #allocation20 [shape = 'u8[512]{0}', space=vmem, size = 0x400, scoped, tag = 'input window, operand 39, single buffered']
    #allocation21 [shape = 's32[1]{0}', space=sflag, size = 0x4, scoped, tag = 'scoped memory for transformer_forward.1']
    #allocation22 [shape = 'u8[8192]{0}', space=vmem, size = 0x2000, scoped, tag = 'output window, operand 0']
    %86 = vsyncpa [#allocation3], 0
    %87 = vsyncpa [#allocation6], 0
    %88 = vsyncpa [#allocation9], 0
    %89 = vsyncpa [#allocation12], 0
    %90 = vsyncpa [#allocation15], 0
    %91 = vsyncpa [#allocation18], 0
    %92 = vsyncpa [#allocation21], 0
    %93 = vsyncpa [#allocation4], 0
    %s94 = scalar_lea.sflag [#allocation4], 1
    %95 = vsyncpa %s94, 0
    loop: start=0, step=1, limit=4
    $region2: #{transformer_forward.1} parent=1 // loop_pre_header
      _
    $region3: #{transformer_forward.1} parent=1 // loop_header
      %s97 = sphi 0, %s101
      %p98 = scmp.ge.s32.totalorder %s97, 4
      %s107 = sphi 0, %s109
      %s110 = sphi 0, %s107
      %s111 = sphi 0, %s110
      %s127 = sphi 0, %s111
      %s133 = sphi 0, %s135
      %s136 = sphi 0, %s133
      %s137 = sphi 0, %s136
      %s153 = sphi 0, %s137
      %s159 = sphi 0, %s161
      %s162 = sphi 0, %s159
      %s163 = sphi 0, %s162
      %s179 = sphi 0, %s163
      %s183 = sphi 0, %s183
      %s185 = sphi 0, %s183
      %s186 = sphi 0, %s185
      %s200 = sphi 0, %s186
      %s204 = sphi 0, %s204
      %s206 = sphi 0, %s204
      %s207 = sphi 0, %s206
      %s221 = sphi 0, %s207
      %s225 = sphi 0, %s225
      %s227 = sphi 0, %s225
      %s228 = sphi 0, %s227
      %s242 = sphi 0, %s228
      %s246 = sphi 0, %s246
      %s248 = sphi 0, %s246
      %s249 = sphi 0, %s248
      %s263 = sphi 0, %s249
      %s267 = sphi 0, %s267
      %s269 = sphi 0, %s267
      %s270 = sphi 0, %s269
      %s284 = sphi 0, %s270
      %s288 = sphi 0, %s288
      %s290 = sphi 0, %s288
      %s291 = sphi 0, %s290
      %s305 = sphi 0, %s291
      %s309 = sphi 0, %s309
      %s311 = sphi 0, %s309
      %s312 = sphi 0, %s311
      %s326 = sphi 0, %s312
      %s330 = sphi 0, %s330
      %s332 = sphi 0, %s330
      %s333 = sphi 0, %s332
      %s347 = sphi 0, %s333
      %s351 = sphi 0, %s351
      %s353 = sphi 0, %s351
      %s354 = sphi 0, %s353
      %s368 = sphi 0, %s354
      %s372 = sphi 0, %s372
      %s374 = sphi 0, %s372
      %s375 = sphi 0, %s374
      %s389 = sphi 0, %s375
      %s393 = sphi 0, %s393
      %s395 = sphi 0, %s393
      %s396 = sphi 0, %s395
      %s410 = sphi 0, %s396
      %s414 = sphi 0, %s414
      %s416 = sphi 0, %s414
      %s417 = sphi 0, %s416
      %s431 = sphi 0, %s417
      %s435 = sphi 0, %s435
      %s437 = sphi 0, %s435
      %s438 = sphi 0, %s437
      %s452 = sphi 0, %s438
      %s456 = sphi 0, %s456
      %s458 = sphi 0, %s456
      %s459 = sphi 0, %s458
      %s473 = sphi 0, %s459
      %s477 = sphi 0, %s477
      %s479 = sphi 0, %s477
      %s480 = sphi 0, %s479
      %s494 = sphi 0, %s480
      %s498 = sphi 0, %s498
      %s500 = sphi 0, %s498
      %s501 = sphi 0, %s500
      %s515 = sphi 0, %s501
      %s519 = sphi 0, %s519
      %s521 = sphi 0, %s519
      %s522 = sphi 0, %s521
      %s536 = sphi 0, %s522
      %s540 = sphi 0, %s540
      %s542 = sphi 0, %s540
      %s543 = sphi 0, %s542
      %s557 = sphi 0, %s543
      %s561 = sphi 0, %s561
      %s563 = sphi 0, %s561
      %s564 = sphi 0, %s563
      %s578 = sphi 0, %s564
      %s582 = sphi 0, %s582
      %s584 = sphi 0, %s582
      %s585 = sphi 0, %s584
      %s599 = sphi 0, %s585
      %s603 = sphi 0, %s603
      %s605 = sphi 0, %s603
      %s606 = sphi 0, %s605
      %s620 = sphi 0, %s606
      %s624 = sphi 0, %s624
      %s626 = sphi 0, %s624
      %s627 = sphi 0, %s626
      %s641 = sphi 0, %s627
      %s645 = sphi 0, %s645
      %s647 = sphi 0, %s645
      %s648 = sphi 0, %s647
      %s662 = sphi 0, %s648
      %s666 = sphi 0, %s666
      %s668 = sphi 0, %s666
      %s669 = sphi 0, %s668
      %s683 = sphi 0, %s669
      %s687 = sphi 0, %s687
      %s689 = sphi 0, %s687
      %s690 = sphi 0, %s689
      %s704 = sphi 0, %s690
      %s708 = sphi 0, %s708
      %s710 = sphi 0, %s708
      %s711 = sphi 0, %s710
      %s725 = sphi 0, %s711
      %s729 = sphi 0, %s729
      %s731 = sphi 0, %s729
      %s732 = sphi 0, %s731
      %s746 = sphi 0, %s732
      %s750 = sphi 0, %s750
      %s752 = sphi 0, %s750
      %s753 = sphi 0, %s752
      %s767 = sphi 0, %s753
      %s771 = sphi 0, %s771
      %s773 = sphi 0, %s771
      %s774 = sphi 0, %s773
      %s788 = sphi 0, %s774
      %s792 = sphi 0, %s792
      %s794 = sphi 0, %s792
      %s795 = sphi 0, %s794
      %s809 = sphi 0, %s795
      %s813 = sphi 0, %s813
      %s815 = sphi 0, %s813
      %s816 = sphi 0, %s815
      %s830 = sphi 0, %s816
      %s834 = sphi 0, %s834
      %s836 = sphi 0, %s834
      %s837 = sphi 0, %s836
      %s851 = sphi 0, %s837
      %s855 = sphi 0, %s855
      %s857 = sphi 0, %s855
      %s858 = sphi 0, %s857
      %s872 = sphi 0, %s858
      %s876 = sphi 0, %s876
      %s878 = sphi 0, %s876
      %s879 = sphi 0, %s878
      %s893 = sphi 0, %s879
      %s897 = sphi 0, %s897
      %s899 = sphi 0, %s897
      %s900 = sphi 0, %s899
      %s914 = sphi 0, %s900
      %s918 = sphi 0, %s918
      %s920 = sphi 0, %s918
      %s921 = sphi 0, %s920
      %s935 = sphi 0, %s921
      %s939 = sphi 0, %s939
      %s941 = sphi 0, %s939
      %s942 = sphi 0, %s941
      %s956 = sphi 0, %s942
      %s962 = sphi 0, %s964
      %s965 = sphi 0, %s962
      %s966 = sphi 0, %s965
      %s982 = sphi 0, %s966
    $region4: #{transformer_forward.1} parent=1 // loop_header_branch
      %100 = sbr.rel (%p98) target = $region8
    $region5: #{transformer_forward.1} parent=1 // loop_body
      %s102 = ssub.s32 %s97, 1
      %s103 = ssub.s32 %s97, 2
      %s104 = sadd.s32 %s97, 1
      %s105 = ssub.s32 %s97, %s104
      %p106 = scmp.eq.s32.totalorder %s105, 0
      %s108 = sadd.s32 %s107, 1
      %s109 = scalar_select %p106, %s107, %s108
      %p112 = pneg %p106
      %p113 = scmp.eq.s32.totalorder %s97, 1
      %p114 = por %p112, %p113
      %p115 = scmp.ne.s32.totalorder %s107, %s110
      %p116 = scmp.eq.s32.totalorder %s97, 0
      %p117 = por %p115, %p116
      %p118 = scmp.ne.s32.totalorder %s107, %s110
      %p119 = scmp.eq.s32.totalorder %s102, 1
      %p120 = por %p118, %p119
      %p121 = scmp.ne.s32.totalorder %s110, %s111
      %p122 = scmp.eq.s32.totalorder %s102, 0
      %p123 = por %p121, %p122
      %p124 = scmp.ne.s32.totalorder %s110, %s111
      %p125 = scmp.eq.s32.totalorder %s103, 1
      %p126 = por %p124, %p125
      %p128 = scmp.ne.s32.totalorder %s111, %s127
      %p129 = scmp.eq.s32.totalorder %s103, 0
      %p130 = por %p128, %p129
      %s131 = ssub.s32 %s97, %s104
      %p132 = scmp.eq.s32.totalorder %s131, 0
      %s134 = sadd.s32 %s133, 1
      %s135 = scalar_select %p132, %s133, %s134
      %p138 = pneg %p132
      %p139 = scmp.eq.s32.totalorder %s97, 1
      %p140 = por %p138, %p139
      %p141 = scmp.ne.s32.totalorder %s133, %s136
      %p142 = scmp.eq.s32.totalorder %s97, 0
      %p143 = por %p141, %p142
      %p144 = scmp.ne.s32.totalorder %s133, %s136
      %p145 = scmp.eq.s32.totalorder %s102, 1
      %p146 = por %p144, %p145
      %p147 = scmp.ne.s32.totalorder %s136, %s137
      %p148 = scmp.eq.s32.totalorder %s102, 0
      %p149 = por %p147, %p148
      %p150 = scmp.ne.s32.totalorder %s136, %s137
      %p151 = scmp.eq.s32.totalorder %s103, 1
      %p152 = por %p150, %p151
      %p154 = scmp.ne.s32.totalorder %s137, %s153
      %p155 = scmp.eq.s32.totalorder %s103, 0
      %p156 = por %p154, %p155
      %s157 = ssub.s32 %s97, %s104
      %p158 = scmp.eq.s32.totalorder %s157, 0
      %s160 = sadd.s32 %s159, 1
      %s161 = scalar_select %p158, %s159, %s160
      %p164 = pneg %p158
      %p165 = scmp.eq.s32.totalorder %s97, 1
      %p166 = por %p164, %p165
      %p167 = scmp.ne.s32.totalorder %s159, %s162
      %p168 = scmp.eq.s32.totalorder %s97, 0
      %p169 = por %p167, %p168
      %p170 = scmp.ne.s32.totalorder %s159, %s162
      %p171 = scmp.eq.s32.totalorder %s102, 1
      %p172 = por %p170, %p171
      %p173 = scmp.ne.s32.totalorder %s162, %s163
      %p174 = scmp.eq.s32.totalorder %s102, 0
      %p175 = por %p173, %p174
      %p176 = scmp.ne.s32.totalorder %s162, %s163
      %p177 = scmp.eq.s32.totalorder %s103, 1
      %p178 = por %p176, %p177
      %p180 = scmp.ne.s32.totalorder %s163, %s179
      %p181 = scmp.eq.s32.totalorder %s103, 0
      %p182 = por %p180, %p181
      %s184 = sadd.s32 %s183, 1
      %p187 = scmp.eq.s32.totalorder %s97, 1
      %p188 = scmp.ne.s32.totalorder %s183, %s185
      %p189 = scmp.eq.s32.totalorder %s97, 0
      %p190 = por %p188, %p189
      %p191 = scmp.ne.s32.totalorder %s183, %s185
      %p192 = scmp.eq.s32.totalorder %s102, 1
      %p193 = por %p191, %p192
      %p194 = scmp.ne.s32.totalorder %s185, %s186
      %p195 = scmp.eq.s32.totalorder %s102, 0
      %p196 = por %p194, %p195
      %p197 = scmp.ne.s32.totalorder %s185, %s186
      %p198 = scmp.eq.s32.totalorder %s103, 1
      %p199 = por %p197, %p198
      %p201 = scmp.ne.s32.totalorder %s186, %s200
      %p202 = scmp.eq.s32.totalorder %s103, 0
      %p203 = por %p201, %p202
      %s205 = sadd.s32 %s204, 1
      %p208 = scmp.eq.s32.totalorder %s97, 1
      %p209 = scmp.ne.s32.totalorder %s204, %s206
      %p210 = scmp.eq.s32.totalorder %s97, 0
      %p211 = por %p209, %p210
      %p212 = scmp.ne.s32.totalorder %s204, %s206
      %p213 = scmp.eq.s32.totalorder %s102, 1
      %p214 = por %p212, %p213
      %p215 = scmp.ne.s32.totalorder %s206, %s207
      %p216 = scmp.eq.s32.totalorder %s102, 0
      %p217 = por %p215, %p216
      %p218 = scmp.ne.s32.totalorder %s206, %s207
      %p219 = scmp.eq.s32.totalorder %s103, 1
      %p220 = por %p218, %p219
      %p222 = scmp.ne.s32.totalorder %s207, %s221
      %p223 = scmp.eq.s32.totalorder %s103, 0
      %p224 = por %p222, %p223
      %s226 = sadd.s32 %s225, 1
      %p229 = scmp.eq.s32.totalorder %s97, 1
      %p230 = scmp.ne.s32.totalorder %s225, %s227
      %p231 = scmp.eq.s32.totalorder %s97, 0
      %p232 = por %p230, %p231
      %p233 = scmp.ne.s32.totalorder %s225, %s227
      %p234 = scmp.eq.s32.totalorder %s102, 1
      %p235 = por %p233, %p234
      %p236 = scmp.ne.s32.totalorder %s227, %s228
      %p237 = scmp.eq.s32.totalorder %s102, 0
      %p238 = por %p236, %p237
      %p239 = scmp.ne.s32.totalorder %s227, %s228
      %p240 = scmp.eq.s32.totalorder %s103, 1
      %p241 = por %p239, %p240
      %p243 = scmp.ne.s32.totalorder %s228, %s242
      %p244 = scmp.eq.s32.totalorder %s103, 0
      %p245 = por %p243, %p244
      %s247 = sadd.s32 %s246, 1
      %p250 = scmp.eq.s32.totalorder %s97, 1
      %p251 = scmp.ne.s32.totalorder %s246, %s248
      %p252 = scmp.eq.s32.totalorder %s97, 0
      %p253 = por %p251, %p252
      %p254 = scmp.ne.s32.totalorder %s246, %s248
      %p255 = scmp.eq.s32.totalorder %s102, 1
      %p256 = por %p254, %p255
      %p257 = scmp.ne.s32.totalorder %s248, %s249
      %p258 = scmp.eq.s32.totalorder %s102, 0
      %p259 = por %p257, %p258
      %p260 = scmp.ne.s32.totalorder %s248, %s249
      %p261 = scmp.eq.s32.totalorder %s103, 1
      %p262 = por %p260, %p261
      %p264 = scmp.ne.s32.totalorder %s249, %s263
      %p265 = scmp.eq.s32.totalorder %s103, 0
      %p266 = por %p264, %p265
      %s268 = sadd.s32 %s267, 1
      %p271 = scmp.eq.s32.totalorder %s97, 1
      %p272 = scmp.ne.s32.totalorder %s267, %s269
      %p273 = scmp.eq.s32.totalorder %s97, 0
      %p274 = por %p272, %p273
      %p275 = scmp.ne.s32.totalorder %s267, %s269
      %p276 = scmp.eq.s32.totalorder %s102, 1
      %p277 = por %p275, %p276
      %p278 = scmp.ne.s32.totalorder %s269, %s270
      %p279 = scmp.eq.s32.totalorder %s102, 0
      %p280 = por %p278, %p279
      %p281 = scmp.ne.s32.totalorder %s269, %s270
      %p282 = scmp.eq.s32.totalorder %s103, 1
      %p283 = por %p281, %p282
      %p285 = scmp.ne.s32.totalorder %s270, %s284
      %p286 = scmp.eq.s32.totalorder %s103, 0
      %p287 = por %p285, %p286
      %s289 = sadd.s32 %s288, 1
      %p292 = scmp.eq.s32.totalorder %s97, 1
      %p293 = scmp.ne.s32.totalorder %s288, %s290
      %p294 = scmp.eq.s32.totalorder %s97, 0
      %p295 = por %p293, %p294
      %p296 = scmp.ne.s32.totalorder %s288, %s290
      %p297 = scmp.eq.s32.totalorder %s102, 1
      %p298 = por %p296, %p297
      %p299 = scmp.ne.s32.totalorder %s290, %s291
      %p300 = scmp.eq.s32.totalorder %s102, 0
      %p301 = por %p299, %p300
      %p302 = scmp.ne.s32.totalorder %s290, %s291
      %p303 = scmp.eq.s32.totalorder %s103, 1
      %p304 = por %p302, %p303
      %p306 = scmp.ne.s32.totalorder %s291, %s305
      %p307 = scmp.eq.s32.totalorder %s103, 0
      %p308 = por %p306, %p307
      %s310 = sadd.s32 %s309, 1
      %p313 = scmp.eq.s32.totalorder %s97, 1
      %p314 = scmp.ne.s32.totalorder %s309, %s311
      %p315 = scmp.eq.s32.totalorder %s97, 0
      %p316 = por %p314, %p315
      %p317 = scmp.ne.s32.totalorder %s309, %s311
      %p318 = scmp.eq.s32.totalorder %s102, 1
      %p319 = por %p317, %p318
      %p320 = scmp.ne.s32.totalorder %s311, %s312
      %p321 = scmp.eq.s32.totalorder %s102, 0
      %p322 = por %p320, %p321
      %p323 = scmp.ne.s32.totalorder %s311, %s312
      %p324 = scmp.eq.s32.totalorder %s103, 1
      %p325 = por %p323, %p324
      %p327 = scmp.ne.s32.totalorder %s312, %s326
      %p328 = scmp.eq.s32.totalorder %s103, 0
      %p329 = por %p327, %p328
      %s331 = sadd.s32 %s330, 1
      %p334 = scmp.eq.s32.totalorder %s97, 1
      %p335 = scmp.ne.s32.totalorder %s330, %s332
      %p336 = scmp.eq.s32.totalorder %s97, 0
      %p337 = por %p335, %p336
      %p338 = scmp.ne.s32.totalorder %s330, %s332
      %p339 = scmp.eq.s32.totalorder %s102, 1
      %p340 = por %p338, %p339
      %p341 = scmp.ne.s32.totalorder %s332, %s333
      %p342 = scmp.eq.s32.totalorder %s102, 0
      %p343 = por %p341, %p342
      %p344 = scmp.ne.s32.totalorder %s332, %s333
      %p345 = scmp.eq.s32.totalorder %s103, 1
      %p346 = por %p344, %p345
      %p348 = scmp.ne.s32.totalorder %s333, %s347
      %p349 = scmp.eq.s32.totalorder %s103, 0
      %p350 = por %p348, %p349
      %s352 = sadd.s32 %s351, 1
      %p355 = scmp.eq.s32.totalorder %s97, 1
      %p356 = scmp.ne.s32.totalorder %s351, %s353
      %p357 = scmp.eq.s32.totalorder %s97, 0
      %p358 = por %p356, %p357
      %p359 = scmp.ne.s32.totalorder %s351, %s353
      %p360 = scmp.eq.s32.totalorder %s102, 1
      %p361 = por %p359, %p360
      %p362 = scmp.ne.s32.totalorder %s353, %s354
      %p363 = scmp.eq.s32.totalorder %s102, 0
      %p364 = por %p362, %p363
      %p365 = scmp.ne.s32.totalorder %s353, %s354
      %p366 = scmp.eq.s32.totalorder %s103, 1
      %p367 = por %p365, %p366
      %p369 = scmp.ne.s32.totalorder %s354, %s368
      %p370 = scmp.eq.s32.totalorder %s103, 0
      %p371 = por %p369, %p370
      %s373 = sadd.s32 %s372, 1
      %p376 = scmp.eq.s32.totalorder %s97, 1
      %p377 = scmp.ne.s32.totalorder %s372, %s374
      %p378 = scmp.eq.s32.totalorder %s97, 0
      %p379 = por %p377, %p378
      %p380 = scmp.ne.s32.totalorder %s372, %s374
      %p381 = scmp.eq.s32.totalorder %s102, 1
      %p382 = por %p380, %p381
      %p383 = scmp.ne.s32.totalorder %s374, %s375
      %p384 = scmp.eq.s32.totalorder %s102, 0
      %p385 = por %p383, %p384
      %p386 = scmp.ne.s32.totalorder %s374, %s375
      %p387 = scmp.eq.s32.totalorder %s103, 1
      %p388 = por %p386, %p387
      %p390 = scmp.ne.s32.totalorder %s375, %s389
      %p391 = scmp.eq.s32.totalorder %s103, 0
      %p392 = por %p390, %p391
      %s394 = sadd.s32 %s393, 1
      %p397 = scmp.eq.s32.totalorder %s97, 1
      %p398 = scmp.ne.s32.totalorder %s393, %s395
      %p399 = scmp.eq.s32.totalorder %s97, 0
      %p400 = por %p398, %p399
      %p401 = scmp.ne.s32.totalorder %s393, %s395
      %p402 = scmp.eq.s32.totalorder %s102, 1
      %p403 = por %p401, %p402
      %p404 = scmp.ne.s32.totalorder %s395, %s396
      %p405 = scmp.eq.s32.totalorder %s102, 0
      %p406 = por %p404, %p405
      %p407 = scmp.ne.s32.totalorder %s395, %s396
      %p408 = scmp.eq.s32.totalorder %s103, 1
      %p409 = por %p407, %p408
      %p411 = scmp.ne.s32.totalorder %s396, %s410
      %p412 = scmp.eq.s32.totalorder %s103, 0
      %p413 = por %p411, %p412
      %s415 = sadd.s32 %s414, 1
      %p418 = scmp.eq.s32.totalorder %s97, 1
      %p419 = scmp.ne.s32.totalorder %s414, %s416
      %p420 = scmp.eq.s32.totalorder %s97, 0
      %p421 = por %p419, %p420
      %p422 = scmp.ne.s32.totalorder %s414, %s416
      %p423 = scmp.eq.s32.totalorder %s102, 1
      %p424 = por %p422, %p423
      %p425 = scmp.ne.s32.totalorder %s416, %s417
      %p426 = scmp.eq.s32.totalorder %s102, 0
      %p427 = por %p425, %p426
      %p428 = scmp.ne.s32.totalorder %s416, %s417
      %p429 = scmp.eq.s32.totalorder %s103, 1
      %p430 = por %p428, %p429
      %p432 = scmp.ne.s32.totalorder %s417, %s431
      %p433 = scmp.eq.s32.totalorder %s103, 0
      %p434 = por %p432, %p433
      %s436 = sadd.s32 %s435, 1
      %p439 = scmp.eq.s32.totalorder %s97, 1
      %p440 = scmp.ne.s32.totalorder %s435, %s437
      %p441 = scmp.eq.s32.totalorder %s97, 0
      %p442 = por %p440, %p441
      %p443 = scmp.ne.s32.totalorder %s435, %s437
      %p444 = scmp.eq.s32.totalorder %s102, 1
      %p445 = por %p443, %p444
      %p446 = scmp.ne.s32.totalorder %s437, %s438
      %p447 = scmp.eq.s32.totalorder %s102, 0
      %p448 = por %p446, %p447
      %p449 = scmp.ne.s32.totalorder %s437, %s438
      %p450 = scmp.eq.s32.totalorder %s103, 1
      %p451 = por %p449, %p450
      %p453 = scmp.ne.s32.totalorder %s438, %s452
      %p454 = scmp.eq.s32.totalorder %s103, 0
      %p455 = por %p453, %p454
      %s457 = sadd.s32 %s456, 1
      %p460 = scmp.eq.s32.totalorder %s97, 1
      %p461 = scmp.ne.s32.totalorder %s456, %s458
      %p462 = scmp.eq.s32.totalorder %s97, 0
      %p463 = por %p461, %p462
      %p464 = scmp.ne.s32.totalorder %s456, %s458
      %p465 = scmp.eq.s32.totalorder %s102, 1
      %p466 = por %p464, %p465
      %p467 = scmp.ne.s32.totalorder %s458, %s459
      %p468 = scmp.eq.s32.totalorder %s102, 0
      %p469 = por %p467, %p468
      %p470 = scmp.ne.s32.totalorder %s458, %s459
      %p471 = scmp.eq.s32.totalorder %s103, 1
      %p472 = por %p470, %p471
      %p474 = scmp.ne.s32.totalorder %s459, %s473
      %p475 = scmp.eq.s32.totalorder %s103, 0
      %p476 = por %p474, %p475
      %s478 = sadd.s32 %s477, 1
      %p481 = scmp.eq.s32.totalorder %s97, 1
      %p482 = scmp.ne.s32.totalorder %s477, %s479
      %p483 = scmp.eq.s32.totalorder %s97, 0
      %p484 = por %p482, %p483
      %p485 = scmp.ne.s32.totalorder %s477, %s479
      %p486 = scmp.eq.s32.totalorder %s102, 1
      %p487 = por %p485, %p486
      %p488 = scmp.ne.s32.totalorder %s479, %s480
      %p489 = scmp.eq.s32.totalorder %s102, 0
      %p490 = por %p488, %p489
      %p491 = scmp.ne.s32.totalorder %s479, %s480
      %p492 = scmp.eq.s32.totalorder %s103, 1
      %p493 = por %p491, %p492
      %p495 = scmp.ne.s32.totalorder %s480, %s494
      %p496 = scmp.eq.s32.totalorder %s103, 0
      %p497 = por %p495, %p496
      %s499 = sadd.s32 %s498, 1
      %p502 = scmp.eq.s32.totalorder %s97, 1
      %p503 = scmp.ne.s32.totalorder %s498, %s500
      %p504 = scmp.eq.s32.totalorder %s97, 0
      %p505 = por %p503, %p504
      %p506 = scmp.ne.s32.totalorder %s498, %s500
      %p507 = scmp.eq.s32.totalorder %s102, 1
      %p508 = por %p506, %p507
      %p509 = scmp.ne.s32.totalorder %s500, %s501
      %p510 = scmp.eq.s32.totalorder %s102, 0
      %p511 = por %p509, %p510
      %p512 = scmp.ne.s32.totalorder %s500, %s501
      %p513 = scmp.eq.s32.totalorder %s103, 1
      %p514 = por %p512, %p513
      %p516 = scmp.ne.s32.totalorder %s501, %s515
      %p517 = scmp.eq.s32.totalorder %s103, 0
      %p518 = por %p516, %p517
      %s520 = sadd.s32 %s519, 1
      %p523 = scmp.eq.s32.totalorder %s97, 1
      %p524 = scmp.ne.s32.totalorder %s519, %s521
      %p525 = scmp.eq.s32.totalorder %s97, 0
      %p526 = por %p524, %p525
      %p527 = scmp.ne.s32.totalorder %s519, %s521
      %p528 = scmp.eq.s32.totalorder %s102, 1
      %p529 = por %p527, %p528
      %p530 = scmp.ne.s32.totalorder %s521, %s522
      %p531 = scmp.eq.s32.totalorder %s102, 0
      %p532 = por %p530, %p531
      %p533 = scmp.ne.s32.totalorder %s521, %s522
      %p534 = scmp.eq.s32.totalorder %s103, 1
      %p535 = por %p533, %p534
      %p537 = scmp.ne.s32.totalorder %s522, %s536
      %p538 = scmp.eq.s32.totalorder %s103, 0
      %p539 = por %p537, %p538
      %s541 = sadd.s32 %s540, 1
      %p544 = scmp.eq.s32.totalorder %s97, 1
      %p545 = scmp.ne.s32.totalorder %s540, %s542
      %p546 = scmp.eq.s32.totalorder %s97, 0
      %p547 = por %p545, %p546
      %p548 = scmp.ne.s32.totalorder %s540, %s542
      %p549 = scmp.eq.s32.totalorder %s102, 1
      %p550 = por %p548, %p549
      %p551 = scmp.ne.s32.totalorder %s542, %s543
      %p552 = scmp.eq.s32.totalorder %s102, 0
      %p553 = por %p551, %p552
      %p554 = scmp.ne.s32.totalorder %s542, %s543
      %p555 = scmp.eq.s32.totalorder %s103, 1
      %p556 = por %p554, %p555
      %p558 = scmp.ne.s32.totalorder %s543, %s557
      %p559 = scmp.eq.s32.totalorder %s103, 0
      %p560 = por %p558, %p559
      %s562 = sadd.s32 %s561, 1
      %p565 = scmp.eq.s32.totalorder %s97, 1
      %p566 = scmp.ne.s32.totalorder %s561, %s563
      %p567 = scmp.eq.s32.totalorder %s97, 0
      %p568 = por %p566, %p567
      %p569 = scmp.ne.s32.totalorder %s561, %s563
      %p570 = scmp.eq.s32.totalorder %s102, 1
      %p571 = por %p569, %p570
      %p572 = scmp.ne.s32.totalorder %s563, %s564
      %p573 = scmp.eq.s32.totalorder %s102, 0
      %p574 = por %p572, %p573
      %p575 = scmp.ne.s32.totalorder %s563, %s564
      %p576 = scmp.eq.s32.totalorder %s103, 1
      %p577 = por %p575, %p576
      %p579 = scmp.ne.s32.totalorder %s564, %s578
      %p580 = scmp.eq.s32.totalorder %s103, 0
      %p581 = por %p579, %p580
      %s583 = sadd.s32 %s582, 1
      %p586 = scmp.eq.s32.totalorder %s97, 1
      %p587 = scmp.ne.s32.totalorder %s582, %s584
      %p588 = scmp.eq.s32.totalorder %s97, 0
      %p589 = por %p587, %p588
      %p590 = scmp.ne.s32.totalorder %s582, %s584
      %p591 = scmp.eq.s32.totalorder %s102, 1
      %p592 = por %p590, %p591
      %p593 = scmp.ne.s32.totalorder %s584, %s585
      %p594 = scmp.eq.s32.totalorder %s102, 0
      %p595 = por %p593, %p594
      %p596 = scmp.ne.s32.totalorder %s584, %s585
      %p597 = scmp.eq.s32.totalorder %s103, 1
      %p598 = por %p596, %p597
      %p600 = scmp.ne.s32.totalorder %s585, %s599
      %p601 = scmp.eq.s32.totalorder %s103, 0
      %p602 = por %p600, %p601
      %s604 = sadd.s32 %s603, 1
      %p607 = scmp.eq.s32.totalorder %s97, 1
      %p608 = scmp.ne.s32.totalorder %s603, %s605
      %p609 = scmp.eq.s32.totalorder %s97, 0
      %p610 = por %p608, %p609
      %p611 = scmp.ne.s32.totalorder %s603, %s605
      %p612 = scmp.eq.s32.totalorder %s102, 1
      %p613 = por %p611, %p612
      %p614 = scmp.ne.s32.totalorder %s605, %s606
      %p615 = scmp.eq.s32.totalorder %s102, 0
      %p616 = por %p614, %p615
      %p617 = scmp.ne.s32.totalorder %s605, %s606
      %p618 = scmp.eq.s32.totalorder %s103, 1
      %p619 = por %p617, %p618
      %p621 = scmp.ne.s32.totalorder %s606, %s620
      %p622 = scmp.eq.s32.totalorder %s103, 0
      %p623 = por %p621, %p622
      %s625 = sadd.s32 %s624, 1
      %p628 = scmp.eq.s32.totalorder %s97, 1
      %p629 = scmp.ne.s32.totalorder %s624, %s626
      %p630 = scmp.eq.s32.totalorder %s97, 0
      %p631 = por %p629, %p630
      %p632 = scmp.ne.s32.totalorder %s624, %s626
      %p633 = scmp.eq.s32.totalorder %s102, 1
      %p634 = por %p632, %p633
      %p635 = scmp.ne.s32.totalorder %s626, %s627
      %p636 = scmp.eq.s32.totalorder %s102, 0
      %p637 = por %p635, %p636
      %p638 = scmp.ne.s32.totalorder %s626, %s627
      %p639 = scmp.eq.s32.totalorder %s103, 1
      %p640 = por %p638, %p639
      %p642 = scmp.ne.s32.totalorder %s627, %s641
      %p643 = scmp.eq.s32.totalorder %s103, 0
      %p644 = por %p642, %p643
      %s646 = sadd.s32 %s645, 1
      %p649 = scmp.eq.s32.totalorder %s97, 1
      %p650 = scmp.ne.s32.totalorder %s645, %s647
      %p651 = scmp.eq.s32.totalorder %s97, 0
      %p652 = por %p650, %p651
      %p653 = scmp.ne.s32.totalorder %s645, %s647
      %p654 = scmp.eq.s32.totalorder %s102, 1
      %p655 = por %p653, %p654
      %p656 = scmp.ne.s32.totalorder %s647, %s648
      %p657 = scmp.eq.s32.totalorder %s102, 0
      %p658 = por %p656, %p657
      %p659 = scmp.ne.s32.totalorder %s647, %s648
      %p660 = scmp.eq.s32.totalorder %s103, 1
      %p661 = por %p659, %p660
      %p663 = scmp.ne.s32.totalorder %s648, %s662
      %p664 = scmp.eq.s32.totalorder %s103, 0
      %p665 = por %p663, %p664
      %s667 = sadd.s32 %s666, 1
      %p670 = scmp.eq.s32.totalorder %s97, 1
      %p671 = scmp.ne.s32.totalorder %s666, %s668
      %p672 = scmp.eq.s32.totalorder %s97, 0
      %p673 = por %p671, %p672
      %p674 = scmp.ne.s32.totalorder %s666, %s668
      %p675 = scmp.eq.s32.totalorder %s102, 1
      %p676 = por %p674, %p675
      %p677 = scmp.ne.s32.totalorder %s668, %s669
      %p678 = scmp.eq.s32.totalorder %s102, 0
      %p679 = por %p677, %p678
      %p680 = scmp.ne.s32.totalorder %s668, %s669
      %p681 = scmp.eq.s32.totalorder %s103, 1
      %p682 = por %p680, %p681
      %p684 = scmp.ne.s32.totalorder %s669, %s683
      %p685 = scmp.eq.s32.totalorder %s103, 0
      %p686 = por %p684, %p685
      %s688 = sadd.s32 %s687, 1
      %p691 = scmp.eq.s32.totalorder %s97, 1
      %p692 = scmp.ne.s32.totalorder %s687, %s689
      %p693 = scmp.eq.s32.totalorder %s97, 0
      %p694 = por %p692, %p693
      %p695 = scmp.ne.s32.totalorder %s687, %s689
      %p696 = scmp.eq.s32.totalorder %s102, 1
      %p697 = por %p695, %p696
      %p698 = scmp.ne.s32.totalorder %s689, %s690
      %p699 = scmp.eq.s32.totalorder %s102, 0
      %p700 = por %p698, %p699
      %p701 = scmp.ne.s32.totalorder %s689, %s690
      %p702 = scmp.eq.s32.totalorder %s103, 1
      %p703 = por %p701, %p702
      %p705 = scmp.ne.s32.totalorder %s690, %s704
      %p706 = scmp.eq.s32.totalorder %s103, 0
      %p707 = por %p705, %p706
      %s709 = sadd.s32 %s708, 1
      %p712 = scmp.eq.s32.totalorder %s97, 1
      %p713 = scmp.ne.s32.totalorder %s708, %s710
      %p714 = scmp.eq.s32.totalorder %s97, 0
      %p715 = por %p713, %p714
      %p716 = scmp.ne.s32.totalorder %s708, %s710
      %p717 = scmp.eq.s32.totalorder %s102, 1
      %p718 = por %p716, %p717
      %p719 = scmp.ne.s32.totalorder %s710, %s711
      %p720 = scmp.eq.s32.totalorder %s102, 0
      %p721 = por %p719, %p720
      %p722 = scmp.ne.s32.totalorder %s710, %s711
      %p723 = scmp.eq.s32.totalorder %s103, 1
      %p724 = por %p722, %p723
      %p726 = scmp.ne.s32.totalorder %s711, %s725
      %p727 = scmp.eq.s32.totalorder %s103, 0
      %p728 = por %p726, %p727
      %s730 = sadd.s32 %s729, 1
      %p733 = scmp.eq.s32.totalorder %s97, 1
      %p734 = scmp.ne.s32.totalorder %s729, %s731
      %p735 = scmp.eq.s32.totalorder %s97, 0
      %p736 = por %p734, %p735
      %p737 = scmp.ne.s32.totalorder %s729, %s731
      %p738 = scmp.eq.s32.totalorder %s102, 1
      %p739 = por %p737, %p738
      %p740 = scmp.ne.s32.totalorder %s731, %s732
      %p741 = scmp.eq.s32.totalorder %s102, 0
      %p742 = por %p740, %p741
      %p743 = scmp.ne.s32.totalorder %s731, %s732
      %p744 = scmp.eq.s32.totalorder %s103, 1
      %p745 = por %p743, %p744
      %p747 = scmp.ne.s32.totalorder %s732, %s746
      %p748 = scmp.eq.s32.totalorder %s103, 0
      %p749 = por %p747, %p748
      %s751 = sadd.s32 %s750, 1
      %p754 = scmp.eq.s32.totalorder %s97, 1
      %p755 = scmp.ne.s32.totalorder %s750, %s752
      %p756 = scmp.eq.s32.totalorder %s97, 0
      %p757 = por %p755, %p756
      %p758 = scmp.ne.s32.totalorder %s750, %s752
      %p759 = scmp.eq.s32.totalorder %s102, 1
      %p760 = por %p758, %p759
      %p761 = scmp.ne.s32.totalorder %s752, %s753
      %p762 = scmp.eq.s32.totalorder %s102, 0
      %p763 = por %p761, %p762
      %p764 = scmp.ne.s32.totalorder %s752, %s753
      %p765 = scmp.eq.s32.totalorder %s103, 1
      %p766 = por %p764, %p765
      %p768 = scmp.ne.s32.totalorder %s753, %s767
      %p769 = scmp.eq.s32.totalorder %s103, 0
      %p770 = por %p768, %p769
      %s772 = sadd.s32 %s771, 1
      %p775 = scmp.eq.s32.totalorder %s97, 1
      %p776 = scmp.ne.s32.totalorder %s771, %s773
      %p777 = scmp.eq.s32.totalorder %s97, 0
      %p778 = por %p776, %p777
      %p779 = scmp.ne.s32.totalorder %s771, %s773
      %p780 = scmp.eq.s32.totalorder %s102, 1
      %p781 = por %p779, %p780
      %p782 = scmp.ne.s32.totalorder %s773, %s774
      %p783 = scmp.eq.s32.totalorder %s102, 0
      %p784 = por %p782, %p783
      %p785 = scmp.ne.s32.totalorder %s773, %s774
      %p786 = scmp.eq.s32.totalorder %s103, 1
      %p787 = por %p785, %p786
      %p789 = scmp.ne.s32.totalorder %s774, %s788
      %p790 = scmp.eq.s32.totalorder %s103, 0
      %p791 = por %p789, %p790
      %s793 = sadd.s32 %s792, 1
      %p796 = scmp.eq.s32.totalorder %s97, 1
      %p797 = scmp.ne.s32.totalorder %s792, %s794
      %p798 = scmp.eq.s32.totalorder %s97, 0
      %p799 = por %p797, %p798
      %p800 = scmp.ne.s32.totalorder %s792, %s794
      %p801 = scmp.eq.s32.totalorder %s102, 1
      %p802 = por %p800, %p801
      %p803 = scmp.ne.s32.totalorder %s794, %s795
      %p804 = scmp.eq.s32.totalorder %s102, 0
      %p805 = por %p803, %p804
      %p806 = scmp.ne.s32.totalorder %s794, %s795
      %p807 = scmp.eq.s32.totalorder %s103, 1
      %p808 = por %p806, %p807
      %p810 = scmp.ne.s32.totalorder %s795, %s809
      %p811 = scmp.eq.s32.totalorder %s103, 0
      %p812 = por %p810, %p811
      %s814 = sadd.s32 %s813, 1
      %p817 = scmp.eq.s32.totalorder %s97, 1
      %p818 = scmp.ne.s32.totalorder %s813, %s815
      %p819 = scmp.eq.s32.totalorder %s97, 0
      %p820 = por %p818, %p819
      %p821 = scmp.ne.s32.totalorder %s813, %s815
      %p822 = scmp.eq.s32.totalorder %s102, 1
      %p823 = por %p821, %p822
      %p824 = scmp.ne.s32.totalorder %s815, %s816
      %p825 = scmp.eq.s32.totalorder %s102, 0
      %p826 = por %p824, %p825
      %p827 = scmp.ne.s32.totalorder %s815, %s816
      %p828 = scmp.eq.s32.totalorder %s103, 1
      %p829 = por %p827, %p828
      %p831 = scmp.ne.s32.totalorder %s816, %s830
      %p832 = scmp.eq.s32.totalorder %s103, 0
      %p833 = por %p831, %p832
      %s835 = sadd.s32 %s834, 1
      %p838 = scmp.eq.s32.totalorder %s97, 1
      %p839 = scmp.ne.s32.totalorder %s834, %s836
      %p840 = scmp.eq.s32.totalorder %s97, 0
      %p841 = por %p839, %p840
      %p842 = scmp.ne.s32.totalorder %s834, %s836
      %p843 = scmp.eq.s32.totalorder %s102, 1
      %p844 = por %p842, %p843
      %p845 = scmp.ne.s32.totalorder %s836, %s837
      %p846 = scmp.eq.s32.totalorder %s102, 0
      %p847 = por %p845, %p846
      %p848 = scmp.ne.s32.totalorder %s836, %s837
      %p849 = scmp.eq.s32.totalorder %s103, 1
      %p850 = por %p848, %p849
      %p852 = scmp.ne.s32.totalorder %s837, %s851
      %p853 = scmp.eq.s32.totalorder %s103, 0
      %p854 = por %p852, %p853
      %s856 = sadd.s32 %s855, 1
      %p859 = scmp.eq.s32.totalorder %s97, 1
      %p860 = scmp.ne.s32.totalorder %s855, %s857
      %p861 = scmp.eq.s32.totalorder %s97, 0
      %p862 = por %p860, %p861
      %p863 = scmp.ne.s32.totalorder %s855, %s857
      %p864 = scmp.eq.s32.totalorder %s102, 1
      %p865 = por %p863, %p864
      %p866 = scmp.ne.s32.totalorder %s857, %s858
      %p867 = scmp.eq.s32.totalorder %s102, 0
      %p868 = por %p866, %p867
      %p869 = scmp.ne.s32.totalorder %s857, %s858
      %p870 = scmp.eq.s32.totalorder %s103, 1
      %p871 = por %p869, %p870
      %p873 = scmp.ne.s32.totalorder %s858, %s872
      %p874 = scmp.eq.s32.totalorder %s103, 0
      %p875 = por %p873, %p874
      %s877 = sadd.s32 %s876, 1
      %p880 = scmp.eq.s32.totalorder %s97, 1
      %p881 = scmp.ne.s32.totalorder %s876, %s878
      %p882 = scmp.eq.s32.totalorder %s97, 0
      %p883 = por %p881, %p882
      %p884 = scmp.ne.s32.totalorder %s876, %s878
      %p885 = scmp.eq.s32.totalorder %s102, 1
      %p886 = por %p884, %p885
      %p887 = scmp.ne.s32.totalorder %s878, %s879
      %p888 = scmp.eq.s32.totalorder %s102, 0
      %p889 = por %p887, %p888
      %p890 = scmp.ne.s32.totalorder %s878, %s879
      %p891 = scmp.eq.s32.totalorder %s103, 1
      %p892 = por %p890, %p891
      %p894 = scmp.ne.s32.totalorder %s879, %s893
      %p895 = scmp.eq.s32.totalorder %s103, 0
      %p896 = por %p894, %p895
      %s898 = sadd.s32 %s897, 1
      %p901 = scmp.eq.s32.totalorder %s97, 1
      %p902 = scmp.ne.s32.totalorder %s897, %s899
      %p903 = scmp.eq.s32.totalorder %s97, 0
      %p904 = por %p902, %p903
      %p905 = scmp.ne.s32.totalorder %s897, %s899
      %p906 = scmp.eq.s32.totalorder %s102, 1
      %p907 = por %p905, %p906
      %p908 = scmp.ne.s32.totalorder %s899, %s900
      %p909 = scmp.eq.s32.totalorder %s102, 0
      %p910 = por %p908, %p909
      %p911 = scmp.ne.s32.totalorder %s899, %s900
      %p912 = scmp.eq.s32.totalorder %s103, 1
      %p913 = por %p911, %p912
      %p915 = scmp.ne.s32.totalorder %s900, %s914
      %p916 = scmp.eq.s32.totalorder %s103, 0
      %p917 = por %p915, %p916
      %s919 = sadd.s32 %s918, 1
      %p922 = scmp.eq.s32.totalorder %s97, 1
      %p923 = scmp.ne.s32.totalorder %s918, %s920
      %p924 = scmp.eq.s32.totalorder %s97, 0
      %p925 = por %p923, %p924
      %p926 = scmp.ne.s32.totalorder %s918, %s920
      %p927 = scmp.eq.s32.totalorder %s102, 1
      %p928 = por %p926, %p927
      %p929 = scmp.ne.s32.totalorder %s920, %s921
      %p930 = scmp.eq.s32.totalorder %s102, 0
      %p931 = por %p929, %p930
      %p932 = scmp.ne.s32.totalorder %s920, %s921
      %p933 = scmp.eq.s32.totalorder %s103, 1
      %p934 = por %p932, %p933
      %p936 = scmp.ne.s32.totalorder %s921, %s935
      %p937 = scmp.eq.s32.totalorder %s103, 0
      %p938 = por %p936, %p937
      %s940 = sadd.s32 %s939, 1
      %p943 = scmp.eq.s32.totalorder %s97, 1
      %p944 = scmp.ne.s32.totalorder %s939, %s941
      %p945 = scmp.eq.s32.totalorder %s97, 0
      %p946 = por %p944, %p945
      %p947 = scmp.ne.s32.totalorder %s939, %s941
      %p948 = scmp.eq.s32.totalorder %s102, 1
      %p949 = por %p947, %p948
      %p950 = scmp.ne.s32.totalorder %s941, %s942
      %p951 = scmp.eq.s32.totalorder %s102, 0
      %p952 = por %p950, %p951
      %p953 = scmp.ne.s32.totalorder %s941, %s942
      %p954 = scmp.eq.s32.totalorder %s103, 1
      %p955 = por %p953, %p954
      %p957 = scmp.ne.s32.totalorder %s942, %s956
      %p958 = scmp.eq.s32.totalorder %s103, 0
      %p959 = por %p957, %p958
      %s960 = ssub.s32 %s97, %s104
      %p961 = scmp.eq.s32.totalorder %s960, 0
      %s963 = sadd.s32 %s962, 1
      %s964 = scalar_select %p961, %s962, %s963
      %p967 = pneg %p961
      %p968 = scmp.eq.s32.totalorder %s97, 1
      %p969 = por %p967, %p968
      %p970 = scmp.ne.s32.totalorder %s962, %s965
      %p971 = scmp.eq.s32.totalorder %s97, 0
      %p972 = por %p970, %p971
      %p973 = scmp.ne.s32.totalorder %s962, %s965
      %p974 = scmp.eq.s32.totalorder %s102, 1
      %p975 = por %p973, %p974
      %p976 = scmp.ne.s32.totalorder %s965, %s966
      %p977 = scmp.eq.s32.totalorder %s102, 0
      %p978 = por %p976, %p977
      %p979 = scmp.ne.s32.totalorder %s965, %s966
      %p980 = scmp.eq.s32.totalorder %s103, 1
      %p981 = por %p979, %p980
      %p983 = scmp.ne.s32.totalorder %s966, %s982
      %p984 = scmp.eq.s32.totalorder %s103, 0
      %p985 = por %p983, %p984
      %p986 = scmp.le.s32.totalorder 1, %s97
      %p987 = scmp.lt.s32.totalorder %s97, 3
      %p988 = pnand %p986, %p987
      %p989 = pneg %p988
      // Predicated region
      $region9: #{transformer_forward.1} parent=5 // pred_check
        _
      $region10: #{transformer_forward.1} parent=5 // pred_check_branch
        %991 = sbr.rel (%p988) target = $region12
      $region11: #{transformer_forward.1} parent=5 // pred_region
        %s992 = ssub.s32 %s97, 1
        // Predicated region
        $region13: #{transformer_forward.1} parent=11 // pred_check
          %p993 = pneg %p196
        $region14: #{transformer_forward.1} parent=11 // pred_check_branch
          %995 = sbr.rel (%p993) target = $region16
        $region15: #{transformer_forward.1} parent=11 // pred_region
          _
        $region16: #{transformer_forward.1} parent=11 // pred_fallthru
          _
        // Predicated region
        $region17: #{transformer_forward.1} parent=11 // pred_check
          %p996 = pneg %p217
        $region18: #{transformer_forward.1} parent=11 // pred_check_branch
          %998 = sbr.rel (%p996) target = $region20
        $region19: #{transformer_forward.1} parent=11 // pred_region
          _
        $region20: #{transformer_forward.1} parent=11 // pred_fallthru
          _
        // Predicated region
        $region21: #{transformer_forward.1} parent=11 // pred_check
          %p999 = pneg %p238
        $region22: #{transformer_forward.1} parent=11 // pred_check_branch
          %1001 = sbr.rel (%p999) target = $region24
        $region23: #{transformer_forward.1} parent=11 // pred_region
          %s1003 = ssub.s32 16, 16
          %1004 = vsyncadd [#allocation3], %s1003
          %s1006 = sshll.u32 [#allocation2], 4
          %s1007 = int_to_ptr.vmem [resolvable:$true] %s1006
          %1009 = dma.hbm_to_vmem [thread:$0]  %s11, 16, %s1007, [#allocation3]
        $region24: #{transformer_forward.1} parent=11 // pred_fallthru
          _
        // Predicated region
        $region25: #{transformer_forward.1} parent=11 // pred_check
          %p1010 = pneg %p259
        $region26: #{transformer_forward.1} parent=11 // pred_check_branch
          %1012 = sbr.rel (%p1010) target = $region28
        $region27: #{transformer_forward.1} parent=11 // pred_region
          _
        $region28: #{transformer_forward.1} parent=11 // pred_fallthru
          _
        // Predicated region
        $region29: #{transformer_forward.1} parent=11 // pred_check
          %p1013 = pneg %p280
        $region30: #{transformer_forward.1} parent=11 // pred_check_branch
          %1015 = sbr.rel (%p1013) target = $region32
        $region31: #{transformer_forward.1} parent=11 // pred_region
          _
        $region32: #{transformer_forward.1} parent=11 // pred_fallthru
          _
        // Predicated region
        $region33: #{transformer_forward.1} parent=11 // pred_check
          %p1016 = pneg %p301
        $region34: #{transformer_forward.1} parent=11 // pred_check_branch
          %1018 = sbr.rel (%p1016) target = $region36
        $region35: #{transformer_forward.1} parent=11 // pred_region
          _
        $region36: #{transformer_forward.1} parent=11 // pred_fallthru
          _
        // Predicated region
        $region37: #{transformer_forward.1} parent=11 // pred_check
          %p1019 = pneg %p322
        $region38: #{transformer_forward.1} parent=11 // pred_check_branch
          %1021 = sbr.rel (%p1019) target = $region40
        $region39: #{transformer_forward.1} parent=11 // pred_region
          _
        $region40: #{transformer_forward.1} parent=11 // pred_fallthru
          _
        // Predicated region
        $region41: #{transformer_forward.1} parent=11 // pred_check
          %p1022 = pneg %p343
        $region42: #{transformer_forward.1} parent=11 // pred_check_branch
          %1024 = sbr.rel (%p1022) target = $region44
        $region43: #{transformer_forward.1} parent=11 // pred_region
          _
        $region44: #{transformer_forward.1} parent=11 // pred_fallthru
          _
        // Predicated region
        $region45: #{transformer_forward.1} parent=11 // pred_check
          %p1025 = pneg %p364
        $region46: #{transformer_forward.1} parent=11 // pred_check_branch
          %1027 = sbr.rel (%p1025) target = $region48
        $region47: #{transformer_forward.1} parent=11 // pred_region
          _
        $region48: #{transformer_forward.1} parent=11 // pred_fallthru
          _
        // Predicated region
        $region49: #{transformer_forward.1} parent=11 // pred_check
          %p1028 = pneg %p385
        $region50: #{transformer_forward.1} parent=11 // pred_check_branch
          %1030 = sbr.rel (%p1028) target = $region52
        $region51: #{transformer_forward.1} parent=11 // pred_region
          _
        $region52: #{transformer_forward.1} parent=11 // pred_fallthru
          _
        // Predicated region
        $region53: #{transformer_forward.1} parent=11 // pred_check
          %p1031 = pneg %p406
        $region54: #{transformer_forward.1} parent=11 // pred_check_branch
          %1033 = sbr.rel (%p1031) target = $region56
        $region55: #{transformer_forward.1} parent=11 // pred_region
          _
        $region56: #{transformer_forward.1} parent=11 // pred_fallthru
          _
        // Predicated region
        $region57: #{transformer_forward.1} parent=11 // pred_check
          %p1034 = pneg %p427
        $region58: #{transformer_forward.1} parent=11 // pred_check_branch
          %1036 = sbr.rel (%p1034) target = $region60
        $region59: #{transformer_forward.1} parent=11 // pred_region
          _
        $region60: #{transformer_forward.1} parent=11 // pred_fallthru
          _
        // Predicated region
        $region61: #{transformer_forward.1} parent=11 // pred_check
          %p1037 = pneg %p448
        $region62: #{transformer_forward.1} parent=11 // pred_check_branch
          %1039 = sbr.rel (%p1037) target = $region64
        $region63: #{transformer_forward.1} parent=11 // pred_region
          _
        $region64: #{transformer_forward.1} parent=11 // pred_fallthru
          _
        // Predicated region
        $region65: #{transformer_forward.1} parent=11 // pred_check
          %p1040 = pneg %p469
        $region66: #{transformer_forward.1} parent=11 // pred_check_branch
          %1042 = sbr.rel (%p1040) target = $region68
        $region67: #{transformer_forward.1} parent=11 // pred_region
          _
        $region68: #{transformer_forward.1} parent=11 // pred_fallthru
          _
        // Predicated region
        $region69: #{transformer_forward.1} parent=11 // pred_check
          %p1043 = pneg %p490
        $region70: #{transformer_forward.1} parent=11 // pred_check_branch
          %1045 = sbr.rel (%p1043) target = $region72
        $region71: #{transformer_forward.1} parent=11 // pred_region
          _
        $region72: #{transformer_forward.1} parent=11 // pred_fallthru
          _
        // Predicated region
        $region73: #{transformer_forward.1} parent=11 // pred_check
          %p1046 = pneg %p511
        $region74: #{transformer_forward.1} parent=11 // pred_check_branch
          %1048 = sbr.rel (%p1046) target = $region76
        $region75: #{transformer_forward.1} parent=11 // pred_region
          _
        $region76: #{transformer_forward.1} parent=11 // pred_fallthru
          _
        // Predicated region
        $region77: #{transformer_forward.1} parent=11 // pred_check
          %p1049 = pneg %p532
        $region78: #{transformer_forward.1} parent=11 // pred_check_branch
          %1051 = sbr.rel (%p1049) target = $region80
        $region79: #{transformer_forward.1} parent=11 // pred_region
          %s1053 = ssub.s32 32, 32
          %1054 = vsyncadd [#allocation6], %s1053
          %s1055 = sshll.u32 [#allocation5], 4
          %s1056 = int_to_ptr.vmem [resolvable:$true] %s1055
          %1061 = dma.hbm_to_vmem [thread:$0]  %s39, 32, %s1056, [#allocation6], 16, 16, 1
        $region80: #{transformer_forward.1} parent=11 // pred_fallthru
          _
        // Predicated region
        $region81: #{transformer_forward.1} parent=11 // pred_check
          %p1062 = pneg %p553
        $region82: #{transformer_forward.1} parent=11 // pred_check_branch
          %1064 = sbr.rel (%p1062) target = $region84
        $region83: #{transformer_forward.1} parent=11 // pred_region
          _
        $region84: #{transformer_forward.1} parent=11 // pred_fallthru
          _
        // Predicated region
        $region85: #{transformer_forward.1} parent=11 // pred_check
          %p1065 = pneg %p574
        $region86: #{transformer_forward.1} parent=11 // pred_check_branch
          %1067 = sbr.rel (%p1065) target = $region88
        $region87: #{transformer_forward.1} parent=11 // pred_region
          %s1069 = ssub.s32 32, 32
          %1070 = vsyncadd [#allocation6], %s1069
          %s1071 = sshll.u32 [#allocation7], 4
          %s1072 = int_to_ptr.vmem [resolvable:$true] %s1071
          %1077 = dma.hbm_to_vmem [thread:$0]  %s43, 32, %s1072, [#allocation6], 16, 16, 1
        $region88: #{transformer_forward.1} parent=11 // pred_fallthru
          _
        // Predicated region
        $region89: #{transformer_forward.1} parent=11 // pred_check
          %p1078 = pneg %p595
        $region90: #{transformer_forward.1} parent=11 // pred_check_branch
          %1080 = sbr.rel (%p1078) target = $region92
        $region91: #{transformer_forward.1} parent=11 // pred_region
          _
        $region92: #{transformer_forward.1} parent=11 // pred_fallthru
          _
        // Predicated region
        $region93: #{transformer_forward.1} parent=11 // pred_check
          %p1081 = pneg %p616
        $region94: #{transformer_forward.1} parent=11 // pred_check_branch
          %1083 = sbr.rel (%p1081) target = $region96
        $region95: #{transformer_forward.1} parent=11 // pred_region
          %s1085 = ssub.s32 32, 32
          %1086 = vsyncadd [#allocation9], %s1085
          %s1087 = sshll.u32 [#allocation8], 4
          %s1088 = int_to_ptr.vmem [resolvable:$true] %s1087
          %1093 = dma.hbm_to_vmem [thread:$0]  %s47, 32, %s1088, [#allocation9], 16, 16, 1
        $region96: #{transformer_forward.1} parent=11 // pred_fallthru
          _
        // Predicated region
        $region97: #{transformer_forward.1} parent=11 // pred_check
          %p1094 = pneg %p637
        $region98: #{transformer_forward.1} parent=11 // pred_check_branch
          %1096 = sbr.rel (%p1094) target = $region100
        $region99: #{transformer_forward.1} parent=11 // pred_region
          _
        $region100: #{transformer_forward.1} parent=11 // pred_fallthru
          _
        // Predicated region
        $region101: #{transformer_forward.1} parent=11 // pred_check
          %p1097 = pneg %p658
        $region102: #{transformer_forward.1} parent=11 // pred_check_branch
          %1099 = sbr.rel (%p1097) target = $region104
        $region103: #{transformer_forward.1} parent=11 // pred_region
          %s1101 = ssub.s32 32, 32
          %1102 = vsyncadd [#allocation9], %s1101
          %s1103 = sshll.u32 [#allocation10], 4
          %s1104 = int_to_ptr.vmem [resolvable:$true] %s1103
          %1109 = dma.hbm_to_vmem [thread:$0]  %s51, 32, %s1104, [#allocation9], 16, 16, 1
        $region104: #{transformer_forward.1} parent=11 // pred_fallthru
          _
        // Predicated region
        $region105: #{transformer_forward.1} parent=11 // pred_check
          %p1110 = pneg %p679
        $region106: #{transformer_forward.1} parent=11 // pred_check_branch
          %1112 = sbr.rel (%p1110) target = $region108
        $region107: #{transformer_forward.1} parent=11 // pred_region
          _
        $region108: #{transformer_forward.1} parent=11 // pred_fallthru
          _
        // Predicated region
        $region109: #{transformer_forward.1} parent=11 // pred_check
          %p1113 = pneg %p700
        $region110: #{transformer_forward.1} parent=11 // pred_check_branch
          %1115 = sbr.rel (%p1113) target = $region112
        $region111: #{transformer_forward.1} parent=11 // pred_region
          %s1117 = ssub.s32 32, 32
          %1118 = vsyncadd [#allocation12], %s1117
          %s1119 = sshll.u32 [#allocation11], 4
          %s1120 = int_to_ptr.vmem [resolvable:$true] %s1119
          %1125 = dma.hbm_to_vmem [thread:$0]  %s55, 32, %s1120, [#allocation12], 16, 16, 1
        $region112: #{transformer_forward.1} parent=11 // pred_fallthru
          _
        // Predicated region
        $region113: #{transformer_forward.1} parent=11 // pred_check
          %p1126 = pneg %p721
        $region114: #{transformer_forward.1} parent=11 // pred_check_branch
          %1128 = sbr.rel (%p1126) target = $region116
        $region115: #{transformer_forward.1} parent=11 // pred_region
          _
        $region116: #{transformer_forward.1} parent=11 // pred_fallthru
          _
        // Predicated region
        $region117: #{transformer_forward.1} parent=11 // pred_check
          %p1129 = pneg %p742
        $region118: #{transformer_forward.1} parent=11 // pred_check_branch
          %1131 = sbr.rel (%p1129) target = $region120
        $region119: #{transformer_forward.1} parent=11 // pred_region
          %s1133 = ssub.s32 32, 32
          %1134 = vsyncadd [#allocation12], %s1133
          %s1135 = sshll.u32 [#allocation13], 4
          %s1136 = int_to_ptr.vmem [resolvable:$true] %s1135
          %1141 = dma.hbm_to_vmem [thread:$0]  %s59, 32, %s1136, [#allocation12], 16, 16, 1
        $region120: #{transformer_forward.1} parent=11 // pred_fallthru
          _
        // Predicated region
        $region121: #{transformer_forward.1} parent=11 // pred_check
          %p1142 = pneg %p763
        $region122: #{transformer_forward.1} parent=11 // pred_check_branch
          %1144 = sbr.rel (%p1142) target = $region124
        $region123: #{transformer_forward.1} parent=11 // pred_region
          _
        $region124: #{transformer_forward.1} parent=11 // pred_fallthru
          _
        // Predicated region
        $region125: #{transformer_forward.1} parent=11 // pred_check
          %p1145 = pneg %p784
        $region126: #{transformer_forward.1} parent=11 // pred_check_branch
          %1147 = sbr.rel (%p1145) target = $region128
        $region127: #{transformer_forward.1} parent=11 // pred_region
          %s1149 = ssub.s32 32, 32
          %1150 = vsyncadd [#allocation15], %s1149
          %s1151 = sshll.u32 [#allocation14], 4
          %s1152 = int_to_ptr.vmem [resolvable:$true] %s1151
          %1157 = dma.hbm_to_vmem [thread:$0]  %s63, 32, %s1152, [#allocation15], 16, 16, 1
        $region128: #{transformer_forward.1} parent=11 // pred_fallthru
          _
        // Predicated region
        $region129: #{transformer_forward.1} parent=11 // pred_check
          %p1158 = pneg %p805
        $region130: #{transformer_forward.1} parent=11 // pred_check_branch
          %1160 = sbr.rel (%p1158) target = $region132
        $region131: #{transformer_forward.1} parent=11 // pred_region
          _
        $region132: #{transformer_forward.1} parent=11 // pred_fallthru
          _
        // Predicated region
        $region133: #{transformer_forward.1} parent=11 // pred_check
          %p1161 = pneg %p826
        $region134: #{transformer_forward.1} parent=11 // pred_check_branch
          %1163 = sbr.rel (%p1161) target = $region136
        $region135: #{transformer_forward.1} parent=11 // pred_region
          %s1165 = ssub.s32 32, 32
          %1166 = vsyncadd [#allocation15], %s1165
          %s1167 = sshll.u32 [#allocation16], 4
          %s1168 = int_to_ptr.vmem [resolvable:$true] %s1167
          %1173 = dma.hbm_to_vmem [thread:$0]  %s67, 32, %s1168, [#allocation15], 16, 16, 1
        $region136: #{transformer_forward.1} parent=11 // pred_fallthru
          _
        // Predicated region
        $region137: #{transformer_forward.1} parent=11 // pred_check
          %p1174 = pneg %p847
        $region138: #{transformer_forward.1} parent=11 // pred_check_branch
          %1176 = sbr.rel (%p1174) target = $region140
        $region139: #{transformer_forward.1} parent=11 // pred_region
          _
        $region140: #{transformer_forward.1} parent=11 // pred_fallthru
          _
        // Predicated region
        $region141: #{transformer_forward.1} parent=11 // pred_check
          %p1177 = pneg %p868
        $region142: #{transformer_forward.1} parent=11 // pred_check_branch
          %1179 = sbr.rel (%p1177) target = $region144
        $region143: #{transformer_forward.1} parent=11 // pred_region
          %s1181 = ssub.s32 32, 32
          %1182 = vsyncadd [#allocation18], %s1181
          %s1183 = sshll.u32 [#allocation17], 4
          %s1184 = int_to_ptr.vmem [resolvable:$true] %s1183
          %1189 = dma.hbm_to_vmem [thread:$0]  %s71, 32, %s1184, [#allocation18], 16, 16, 1
        $region144: #{transformer_forward.1} parent=11 // pred_fallthru
          _
        // Predicated region
        $region145: #{transformer_forward.1} parent=11 // pred_check
          %p1190 = pneg %p889
        $region146: #{transformer_forward.1} parent=11 // pred_check_branch
          %1192 = sbr.rel (%p1190) target = $region148
        $region147: #{transformer_forward.1} parent=11 // pred_region
          _
        $region148: #{transformer_forward.1} parent=11 // pred_fallthru
          _
        // Predicated region
        $region149: #{transformer_forward.1} parent=11 // pred_check
          %p1193 = pneg %p910
        $region150: #{transformer_forward.1} parent=11 // pred_check_branch
          %1195 = sbr.rel (%p1193) target = $region152
        $region151: #{transformer_forward.1} parent=11 // pred_region
          %s1197 = ssub.s32 32, 32
          %1198 = vsyncadd [#allocation18], %s1197
          %s1199 = sshll.u32 [#allocation19], 4
          %s1200 = int_to_ptr.vmem [resolvable:$true] %s1199
          %1205 = dma.hbm_to_vmem [thread:$0]  %s75, 32, %s1200, [#allocation18], 16, 16, 1
        $region152: #{transformer_forward.1} parent=11 // pred_fallthru
          _
        // Predicated region
        $region153: #{transformer_forward.1} parent=11 // pred_check
          %p1206 = pneg %p931
        $region154: #{transformer_forward.1} parent=11 // pred_check_branch
          %1208 = sbr.rel (%p1206) target = $region156
        $region155: #{transformer_forward.1} parent=11 // pred_region
          _
        $region156: #{transformer_forward.1} parent=11 // pred_fallthru
          _
        // Predicated region
        $region157: #{transformer_forward.1} parent=11 // pred_check
          %p1209 = pneg %p952
        $region158: #{transformer_forward.1} parent=11 // pred_check_branch
          %1211 = sbr.rel (%p1209) target = $region160
        $region159: #{transformer_forward.1} parent=11 // pred_region
          %s1213 = ssub.s32 16, 16
          %1214 = vsyncadd [#allocation21], %s1213
          %s1216 = sshll.u32 [#allocation20], 4
          %s1217 = int_to_ptr.vmem [resolvable:$true] %s1216
          %1219 = dma.hbm_to_vmem [thread:$0]  %s79, 16, %s1217, [#allocation21]
        $region160: #{transformer_forward.1} parent=11 // pred_fallthru
          _
      $region12: #{transformer_forward.1} parent=5 // pred_fallthru
        _
      %p1220 = scmp.lt.s32.totalorder %s97, 2
      // Predicated region
      $region161: #{transformer_forward.1} parent=5 // pred_check
        %p1221 = pneg %p1220
      $region162: #{transformer_forward.1} parent=5 // pred_check_branch
        %1223 = sbr.rel (%p1221) target = $region164
      $region163: #{transformer_forward.1} parent=5 // pred_region
        // Predicated region
        $region165: #{transformer_forward.1} parent=163 // pred_check
          %p1224 = pneg %p117
        $region166: #{transformer_forward.1} parent=163 // pred_check_branch
          %1226 = sbr.rel (%p1224) target = $region168
        $region167: #{transformer_forward.1} parent=163 // pred_region
          %p1227 = scmp.lt.s32.totalorder %s97, 1
          %s1228 = scalar_select %p1227, %s97, 1
          %s1229 = smul.addr %s1228, 2
          %s1230 = smul.addr %s1229, 8
          %s1231 = scalar_lea.vmem %s1, %s1230
        $region168: #{transformer_forward.1} parent=163 // pred_fallthru
          _
        // Predicated region
        $region169: #{transformer_forward.1} parent=163 // pred_check
          %p1232 = pneg %p143
        $region170: #{transformer_forward.1} parent=163 // pred_check_branch
          %1234 = sbr.rel (%p1232) target = $region172
        $region171: #{transformer_forward.1} parent=163 // pred_region
          %p1235 = scmp.lt.s32.totalorder %s97, 1
          %s1236 = scalar_select %p1235, %s97, 1
          %s1237 = smul.addr %s1236, 8
          %s1238 = scalar_lea.vmem %s3, %s1237
        $region172: #{transformer_forward.1} parent=163 // pred_fallthru
          _
        // Predicated region
        $region173: #{transformer_forward.1} parent=163 // pred_check
          %p1239 = pneg %p169
        $region174: #{transformer_forward.1} parent=163 // pred_check_branch
          %1241 = sbr.rel (%p1239) target = $region176
        $region175: #{transformer_forward.1} parent=163 // pred_region
          %p1242 = scmp.lt.s32.totalorder %s97, 1
          %s1243 = scalar_select %p1242, %s97, 1
          %s1244 = scalar_lea.vmem %s5, %s1243
        $region176: #{transformer_forward.1} parent=163 // pred_fallthru
          _
      $region164: #{transformer_forward.1} parent=5 // pred_fallthru
        _
      %p1245 = scmp.le.s32.totalorder 1, %s97
      %p1246 = scmp.lt.s32.totalorder %s97, 3
      %p1247 = pnand %p1245, %p1246
      %p1248 = pneg %p1247
      // Predicated region
      $region177: #{transformer_forward.1} parent=5 // pred_check
        _
      $region178: #{transformer_forward.1} parent=5 // pred_check_branch
        %1250 = sbr.rel (%p1247) target = $region180
      $region179: #{transformer_forward.1} parent=5 // pred_region
        %s1251 = ssub.s32 %s97, 1
        // Predicated region
        $region181: #{transformer_forward.1} parent=179 // pred_check
          %p1252 = pneg %p238
        $region182: #{transformer_forward.1} parent=179 // pred_check_branch
          %1254 = sbr.rel (%p1252) target = $region184
        $region183: #{transformer_forward.1} parent=179 // pred_region
          %1255 = dma.done [#allocation3], 16
        $region184: #{transformer_forward.1} parent=179 // pred_fallthru
          _
        // Predicated region
        $region185: #{transformer_forward.1} parent=179 // pred_check
          %p1256 = pneg %p532
        $region186: #{transformer_forward.1} parent=179 // pred_check_branch
          %1258 = sbr.rel (%p1256) target = $region188
        $region187: #{transformer_forward.1} parent=179 // pred_region
          %1259 = dma.done [#allocation6], 32
        $region188: #{transformer_forward.1} parent=179 // pred_fallthru
          _
        // Predicated region
        $region189: #{transformer_forward.1} parent=179 // pred_check
          %p1260 = pneg %p574
        $region190: #{transformer_forward.1} parent=179 // pred_check_branch
          %1262 = sbr.rel (%p1260) target = $region192
        $region191: #{transformer_forward.1} parent=179 // pred_region
          %1263 = dma.done [#allocation6], 32
        $region192: #{transformer_forward.1} parent=179 // pred_fallthru
          _
        // Predicated region
        $region193: #{transformer_forward.1} parent=179 // pred_check
          %p1264 = pneg %p616
        $region194: #{transformer_forward.1} parent=179 // pred_check_branch
          %1266 = sbr.rel (%p1264) target = $region196
        $region195: #{transformer_forward.1} parent=179 // pred_region
          %1267 = dma.done [#allocation9], 32
        $region196: #{transformer_forward.1} parent=179 // pred_fallthru
          _
        // Predicated region
        $region197: #{transformer_forward.1} parent=179 // pred_check
          %p1268 = pneg %p658
        $region198: #{transformer_forward.1} parent=179 // pred_check_branch
          %1270 = sbr.rel (%p1268) target = $region200
        $region199: #{transformer_forward.1} parent=179 // pred_region
          %1271 = dma.done [#allocation9], 32
        $region200: #{transformer_forward.1} parent=179 // pred_fallthru
          _
        // Predicated region
        $region201: #{transformer_forward.1} parent=179 // pred_check
          %p1272 = pneg %p700
        $region202: #{transformer_forward.1} parent=179 // pred_check_branch
          %1274 = sbr.rel (%p1272) target = $region204
        $region203: #{transformer_forward.1} parent=179 // pred_region
          %1275 = dma.done [#allocation12], 32
        $region204: #{transformer_forward.1} parent=179 // pred_fallthru
          _
        // Predicated region
        $region205: #{transformer_forward.1} parent=179 // pred_check
          %p1276 = pneg %p742
        $region206: #{transformer_forward.1} parent=179 // pred_check_branch
          %1278 = sbr.rel (%p1276) target = $region208
        $region207: #{transformer_forward.1} parent=179 // pred_region
          %1279 = dma.done [#allocation12], 32
        $region208: #{transformer_forward.1} parent=179 // pred_fallthru
          _
        // Predicated region
        $region209: #{transformer_forward.1} parent=179 // pred_check
          %p1280 = pneg %p784
        $region210: #{transformer_forward.1} parent=179 // pred_check_branch
          %1282 = sbr.rel (%p1280) target = $region212
        $region211: #{transformer_forward.1} parent=179 // pred_region
          %1283 = dma.done [#allocation15], 32
        $region212: #{transformer_forward.1} parent=179 // pred_fallthru
          _
        // Predicated region
        $region213: #{transformer_forward.1} parent=179 // pred_check
          %p1284 = pneg %p826
        $region214: #{transformer_forward.1} parent=179 // pred_check_branch
          %1286 = sbr.rel (%p1284) target = $region216
        $region215: #{transformer_forward.1} parent=179 // pred_region
          %1287 = dma.done [#allocation15], 32
        $region216: #{transformer_forward.1} parent=179 // pred_fallthru
          _
        // Predicated region
        $region217: #{transformer_forward.1} parent=179 // pred_check
          %p1288 = pneg %p868
        $region218: #{transformer_forward.1} parent=179 // pred_check_branch
          %1290 = sbr.rel (%p1288) target = $region220
        $region219: #{transformer_forward.1} parent=179 // pred_region
          %1291 = dma.done [#allocation18], 32
        $region220: #{transformer_forward.1} parent=179 // pred_fallthru
          _
        // Predicated region
        $region221: #{transformer_forward.1} parent=179 // pred_check
          %p1292 = pneg %p910
        $region222: #{transformer_forward.1} parent=179 // pred_check_branch
          %1294 = sbr.rel (%p1292) target = $region224
        $region223: #{transformer_forward.1} parent=179 // pred_region
          %1295 = dma.done [#allocation18], 32
        $region224: #{transformer_forward.1} parent=179 // pred_fallthru
          _
        // Predicated region
        $region225: #{transformer_forward.1} parent=179 // pred_check
          %p1296 = pneg %p952
        $region226: #{transformer_forward.1} parent=179 // pred_check_branch
          %1298 = sbr.rel (%p1296) target = $region228
        $region227: #{transformer_forward.1} parent=179 // pred_region
          %1299 = dma.done [#allocation21], 16
        $region228: #{transformer_forward.1} parent=179 // pred_fallthru
          _
        %p1300 = scmp.lt.s32.totalorder %s102, 1
        %s1301 = scalar_select %p1300, %s102, 1
        %s1302 = smul.addr %s1301, 2
        %s1303 = smul.addr %s1302, 8
        %s1304 = scalar_lea.vmem %s1, %s1303
        %p1305 = pneg %p123
        %p1306 = pneg %p120
        %p1307 = scmp.lt.s32.totalorder %s102, 1
        %s1308 = scalar_select %p1307, %s102, 1
        %s1309 = smul.addr %s1308, 8
        %s1310 = scalar_lea.vmem %s3, %s1309
        %p1311 = pneg %p149
        %p1312 = pneg %p146
        %p1313 = scmp.lt.s32.totalorder %s102, 1
        %s1314 = scalar_select %p1313, %s102, 1
        %s1315 = scalar_lea.vmem %s5, %s1314
        %p1316 = pneg %p175
        %p1317 = pneg %p172
        %p1318 = pneg %p196
        %p1319 = pneg %p193
        %p1320 = pneg %p217
        %p1321 = pneg %p214
        %p1322 = pneg %p238
        %p1323 = pneg %p235
        %p1324 = pneg %p259
        %p1325 = pneg %p256
        %p1326 = pneg %p280
        %p1327 = pneg %p277
        %p1328 = pneg %p301
        %p1329 = pneg %p298
        %p1330 = pneg %p322
        %p1331 = pneg %p319
        %p1332 = pneg %p343
        %p1333 = pneg %p340
        %p1334 = pneg %p364
        %p1335 = pneg %p361
        %p1336 = pneg %p385
        %p1337 = pneg %p382
        %p1338 = pneg %p406
        %p1339 = pneg %p403
        %p1340 = pneg %p427
        %p1341 = pneg %p424
        %p1342 = pneg %p448
        %p1343 = pneg %p445
        %p1344 = pneg %p469
        %p1345 = pneg %p466
        %p1346 = pneg %p490
        %p1347 = pneg %p487
        %p1348 = pneg %p511
        %p1349 = pneg %p508
        %p1350 = pneg %p532
        %p1351 = pneg %p529
        %p1352 = pneg %p553
        %p1353 = pneg %p550
        %p1354 = pneg %p574
        %p1355 = pneg %p571
        %p1356 = pneg %p595
        %p1357 = pneg %p592
        %p1358 = pneg %p616
        %p1359 = pneg %p613
        %p1360 = pneg %p637
        %p1361 = pneg %p634
        %p1362 = pneg %p658
        %p1363 = pneg %p655
        %p1364 = pneg %p679
        %p1365 = pneg %p676
        %p1366 = pneg %p700
        %p1367 = pneg %p697
        %p1368 = pneg %p721
        %p1369 = pneg %p718
        %p1370 = pneg %p742
        %p1371 = pneg %p739
        %p1372 = pneg %p763
        %p1373 = pneg %p760
        %p1374 = pneg %p784
        %p1375 = pneg %p781
        %p1376 = pneg %p805
        %p1377 = pneg %p802
        %p1378 = pneg %p826
        %p1379 = pneg %p823
        %p1380 = pneg %p847
        %p1381 = pneg %p844
        %p1382 = pneg %p868
        %p1383 = pneg %p865
        %p1384 = pneg %p889
        %p1385 = pneg %p886
        %p1386 = pneg %p910
        %p1387 = pneg %p907
        %p1388 = pneg %p931
        %p1389 = pneg %p928
        %p1390 = pneg %p952
        %p1391 = pneg %p949
        %p1392 = pneg %p978
        %p1393 = pneg %p975
        %s1394 = sand.u32 %s965, 1
        %s1395 = scalar_lea.sflag [#allocation4], %s1394
        %s1396 = sand.u32 %s965, 1
        %s1397 = smul.addr %s1396, 8
        %s1398 = scalar_lea.vmem [#allocation22], %s1397
        %p1399 = scmp.lt.s32.totalorder %s102, 1
        %s1400 = scalar_select %p1399, %s102, 1
        %s1401 = smul.addr %s1400, 2
        %s1402 = smul.addr %s1401, 8
        %s1403 = scalar_lea.vmem %s1, %s1402
        %p1404 = scmp.lt.s32.totalorder %s102, 1
        %s1405 = scalar_select %p1404, %s102, 1
        %s1406 = smul.addr %s1405, 8
        %s1407 = scalar_lea.vmem %s3, %s1406
        %p1408 = scmp.lt.s32.totalorder %s102, 1
        %s1409 = scalar_select %p1408, %s102, 1
        %s1410 = scalar_lea.vmem %s5, %s1409
        %v1412 = vld [vmem:[%s1407] sm:$0xff]
        %v1413 = vlaneseq
        %v1414 = vshrl.u32 %v1413, 7
        %v1415 = vlaneseq
        %v1416 = vand.u32 %v1415, 127
        %vm1417 = vcmp.gt.s32.totalorder %v1416, %v1414
        %v1418 = vsel %vm1417, 1, 0
        %v1419 = vcvt.s32.f32 %v1418
        %v1420 = vld [vmem:[%s1410] sm:$0x1]
        %v1422 = vlaneseq
        %v1423 = vshrl.u32 %v1422, 7
        %v1424 = vsub.s32 0, %v1423
        %v1425 = vrot.slane %v1420, %v1424
        %v1427 = vmax.f32 %v1425, %v1419
        %v1428 = vmul.f32 %v1427, -1e+09
        %v1429 = vld [vmem:[%s1403] sm:$0xff]
        %v1430 = vld [vmem:[%s1403 + $0x8] sm:$0xff]
        %v1431 = vpack.c.bf16 %v1430, %v1429
        %v1432 = vld [vmem:[%s9] sm:$0xf]
        %v1433 = vld [vmem:[%s9 + $0x4] sm:$0xf]
        %v1434 = vld [vmem:[#allocation2] sm:$0x1]
        %v1436 = vlaneseq
        %v1437 = vshrl.u32 %v1436, 7
        %v1438 = vsub.s32 0, %v1437
        %v1439 = vrot.slane %v1434, %v1438
        %v1443 = vunpack.c.l.b16 %v1432
        %v1444 = vunpack.c.l.b16 %v1433
        %v1445 = vpack.c.b16 %v1444, %v1443
        %vm1447 = vcmask 130048
        %v1449 = vsel %vm1447, %v1431, 0
        %1451 = vmatprep.subr.bf16.mxu0 0
        %1452 = vmatpush1.bf16.msra.mxu0 %v1445
        %1453 = vmatprep.subr.bf16.mxu0 0
        %1454 = vmatpush1.bf16.msra.mxu0 0
        %1455 = vmatprep.subr.bf16.mxu0 0
        %1456 = vmatpush1.bf16.msra.mxu0 0
        %1457 = vmatprep.subr.bf16.mxu0 0
        %1458 = vmatpush1.bf16.msra.mxu0 0
        %1459 = vmatprep.subr.bf16.mxu0 0
        %1460 = vmatpush1.bf16.msra.mxu0 0
        %1461 = vmatprep.subr.bf16.mxu0 0
        %1462 = vmatpush1.bf16.msra.mxu0 0
        %1463 = vmatprep.subr.bf16.mxu0 0
        %1464 = vmatpush1.bf16.msra.mxu0 0
        %1465 = vmatprep.subr.bf16.mxu0 0
        %1466 = vmatpush1.bf16.msra.mxu0 0
        %1467 = vmatprep.subr.bf16.mxu0 0
        %1468 = vmatpush1.bf16.msra.mxu0 0
        %1469 = vmatprep.subr.bf16.mxu0 0
        %1470 = vmatpush1.bf16.msra.mxu0 0
        %1471 = vmatprep.subr.bf16.mxu0 0
        %1472 = vmatpush1.bf16.msra.mxu0 0
        %1473 = vmatprep.subr.bf16.mxu0 0
        %1474 = vmatpush1.bf16.msra.mxu0 0
        %1475 = vmatprep.subr.bf16.mxu0 0
        %1476 = vmatpush1.bf16.msra.mxu0 0
        %1477 = vmatprep.subr.bf16.mxu0 0
        %1478 = vmatpush1.bf16.msra.mxu0 0
        %1479 = vmatprep.subr.bf16.mxu0 0
        %1480 = vmatpush1.bf16.msra.mxu0 0
        %1481 = vmatprep.subr.bf16.mxu0 0
        %1482 = vmatpush1.bf16.msra.mxu0 0
        %1483 = vmatprep.mubr.bf16.mxu0 0
        %1484 = vmatmul.mubr.bf16.gmra.mrb[0].mxu0 %v1449
        %v1485 = vpop.f32.mrb[0].mxu0
        %v1486 = vadd.f32 %v1439, %v1485
        %v1487 = vpop.f32.mrb[0].mxu0
        %v1488 = vpop.f32.mrb[0].mxu0
        %v1489 = vadd.f32 %v1439, %v1488
        %v1490 = vpop.f32.mrb[0].mxu0
        %1491 = vdwg.mxu0
        %v1492 = vmax.f32 %v1486, 0.0
        %v1493 = vmax.f32 %v1489, 0.0
        %v1494 = vld [vmem:[%s7] sm:$0xff]
        %v1495 = vld [vmem:[%s7 + $0x8] sm:$0xff]
        %v1496 = vadd.f32 %v1492, %v1494
        %v1497 = vadd.f32 %v1493, %v1495
        %v1498 = vld [vmem:[%s13] sm:$0xf]
        %v1499 = vld [vmem:[%s13 + $0x4] sm:$0xf]
        %v1500 = vld [vmem:[%s13 + $0x8] sm:$0xf]
        %v1501 = vld [vmem:[%s13 + $0xc] sm:$0xf]
        %v1502 = vld [vmem:[%s15] sm:$0x1]
        %v1503 = vpack.c.bf16 %v1497, %v1496
        %v1505 = vlaneseq
        %v1506 = vshrl.u32 %v1505, 7
        %v1507 = vsub.s32 0, %v1506
        %v1508 = vrot.slane %v1502, %v1507
        %v1514 = vunpack.c.l.b16 %v1498
        %v1515 = vunpack.c.l.b16 %v1499
        %v1516 = vunpack.c.l.b16 %v1500
        %v1517 = vunpack.c.l.b16 %v1501
        %v1518 = vpack.c.b16 %v1515, %v1514
        %v1519 = vpack.c.b16 %v1517, %v1516
        %vm1522 = vcmask 261120
        %v1524 = vsel %vm1522, %v1503, 0
        %1526 = vmatprep.subr.bf16.mxu0 0
        %1527 = vmatpush1.bf16.msra.mxu0 %v1518
        %1528 = vmatprep.subr.bf16.mxu0 0
        %1529 = vmatpush1.bf16.msra.mxu0 %v1519
        %1530 = vmatprep.subr.bf16.mxu0 0
        %1531 = vmatpush1.bf16.msra.mxu0 0
        %1532 = vmatprep.subr.bf16.mxu0 0
        %1533 = vmatpush1.bf16.msra.mxu0 0
        %1534 = vmatprep.subr.bf16.mxu0 0
        %1535 = vmatpush1.bf16.msra.mxu0 0
        %1536 = vmatprep.subr.bf16.mxu0 0
        %1537 = vmatpush1.bf16.msra.mxu0 0
        %1538 = vmatprep.subr.bf16.mxu0 0
        %1539 = vmatpush1.bf16.msra.mxu0 0
        %1540 = vmatprep.subr.bf16.mxu0 0
        %1541 = vmatpush1.bf16.msra.mxu0 0
        %1542 = vmatprep.subr.bf16.mxu0 0
        %1543 = vmatpush1.bf16.msra.mxu0 0
        %1544 = vmatprep.subr.bf16.mxu0 0
        %1545 = vmatpush1.bf16.msra.mxu0 0
        %1546 = vmatprep.subr.bf16.mxu0 0
        %1547 = vmatpush1.bf16.msra.mxu0 0
        %1548 = vmatprep.subr.bf16.mxu0 0
        %1549 = vmatpush1.bf16.msra.mxu0 0
        %1550 = vmatprep.subr.bf16.mxu0 0
        %1551 = vmatpush1.bf16.msra.mxu0 0
        %1552 = vmatprep.subr.bf16.mxu0 0
        %1553 = vmatpush1.bf16.msra.mxu0 0
        %1554 = vmatprep.subr.bf16.mxu0 0
        %1555 = vmatpush1.bf16.msra.mxu0 0
        %1556 = vmatprep.subr.bf16.mxu0 0
        %1557 = vmatpush1.bf16.msra.mxu0 0
        %1558 = vmatprep.mubr.bf16.mxu0 0
        %1559 = vmatmul.mubr.bf16.gmra.mrb[0].mxu0 %v1524
        %v1560 = vpop.f32.mrb[0].mxu0
        %v1561 = vadd.f32 %v1508, %v1560
        %v1562 = vpop.f32.mrb[0].mxu0
        %v1563 = vpop.f32.mrb[0].mxu0
        %v1564 = vadd.f32 %v1508, %v1563
        %v1565 = vpop.f32.mrb[0].mxu0
        %1566 = vdwg.mxu0
        %v1567 = vld [vmem:[%s17] sm:$0xf]
        %v1568 = vld [vmem:[%s17 + $0x4] sm:$0xf]
        %v1569 = vld [vmem:[%s17 + $0x8] sm:$0xf]
        %v1570 = vld [vmem:[%s17 + $0xc] sm:$0xf]
        %v1571 = vld [vmem:[%s19] sm:$0x1]
        %v1572 = vmul.f32 %v1561, 0.35355338
        %v1573 = vmul.f32 %v1564, 0.35355338
        %v1574 = vpack.c.bf16 %v1573, %v1572
        %v1575 = vpack.c.bf16 %v1564, %v1561
        %1577 = vrot.lane.b32.xlu0 %v1575, 96
        %v1578 = vpop.permute.xlu0 %1577
        %vm1579 = vcmask 64512
        %v1581 = vsel %vm1579, %v1574, 0
        %v1584 = vsel %vm1579, %v1578, 0
        %1586 = vmatprep.subr.bf16.mxu0 0
        %1587 = vmatpush1.bf16.xpose.msra.mxu0 %v1584
        %1588 = vmatprep.subr.bf16.mxu0 0
        %1589 = vmatpush1.bf16.xpose.msra.mxu0 0
        %1590 = vmatprep.subr.bf16.mxu0 0
        %1591 = vmatpush1.bf16.xpose.msra.mxu0 0
        %1592 = vmatprep.subr.bf16.mxu0 0
        %1593 = vmatpush1.bf16.xpose.msra.mxu0 0
        %1594 = vmatprep.subr.bf16.mxu0 0
        %1595 = vmatpush1.bf16.xpose.msra.mxu0 0
        %1596 = vmatprep.subr.bf16.mxu0 0
        %1597 = vmatpush1.bf16.xpose.msra.mxu0 0
        %1598 = vmatprep.subr.bf16.mxu0 0
        %1599 = vmatpush1.bf16.xpose.msra.mxu0 0
        %1600 = vmatprep.subr.bf16.mxu0 0
        %1601 = vmatpush1.bf16.xpose.msra.mxu0 0
        %1602 = vmatprep.subr.bf16.mxu0 0
        %1603 = vmatpush1.bf16.xpose.msra.mxu0 0
        %1604 = vmatprep.subr.bf16.mxu0 0
        %1605 = vmatpush1.bf16.xpose.msra.mxu0 0
        %1606 = vmatprep.subr.bf16.mxu0 0
        %1607 = vmatpush1.bf16.xpose.msra.mxu0 0
        %1608 = vmatprep.subr.bf16.mxu0 0
        %1609 = vmatpush1.bf16.xpose.msra.mxu0 0
        %1610 = vmatprep.subr.bf16.mxu0 0
        %1611 = vmatpush1.bf16.xpose.msra.mxu0 0
        %1612 = vmatprep.subr.bf16.mxu0 0
        %1613 = vmatpush1.bf16.xpose.msra.mxu0 0
        %1614 = vmatprep.subr.bf16.mxu0 0
        %1615 = vmatpush1.bf16.xpose.msra.mxu0 0
        %1616 = vmatprep.subr.bf16.mxu0 0
        %1617 = vmatpush1.bf16.xpose.msra.mxu0 0
        %1618 = vmatprep.mubr.bf16.mxu0 0
        %1619 = vmatmul.mubr.bf16.gmra.mrb[0].mxu0 %v1581
        %v1620 = vpop.f32.mrb[0].mxu0
        %v1621 = vadd.f32 0.0, %v1620
        %v1622 = vpop.f32.mrb[0].mxu0
        %v1623 = vpop.f32.mrb[0].mxu0
        %v1624 = vadd.f32 0.0, %v1623
        %v1625 = vpop.f32.mrb[0].mxu0
        %1626 = vdwg.mxu0
        %v1627 = vsel %vm1447, %v1621, -inf
        %1628 = vmax.xlane.f32.xlu0 %v1627
        %v1629 = vpop.xlane.xlu0 %1628
        %v1630 = vsel %vm1447, %v1624, -inf
        %1631 = vmax.xlane.f32.xlu0 %v1630
        %v1632 = vpop.xlane.xlu0 %1631
        %v1633 = vsub.f32 %v1621, %v1629
        %v1634 = vsub.f32 %v1624, %v1632
        %v1635 = vmul.f32 %v1633, 1.442695
        %v1636 = vpow.pop %v1635
        %v1637 = vmul.f32 %v1634, 1.442695
        %v1638 = vpow.pop %v1637
        %v1639 = vsel %vm1447, %v1636, 0.0
        %1640 = vadd.xlane.f32.xlu0 %v1639
        %v1641 = vpop.xlane.xlu0 %1640
        %v1642 = vsel %vm1447, %v1638, 0.0
        %1643 = vadd.xlane.f32.xlu0 %v1642
        %v1644 = vpop.xlane.xlu0 %1643
        %v1645 = vrcp.pop %v1641
        %v1646 = vrcp.pop %v1644
        %v1647 = vmul.f32 %v1636, %v1645
        %v1648 = vmul.f32 %v1638, %v1646
        %v1649 = vpack.c.bf16 %v1648, %v1647
        %1650 = vrot.lane.b32.xlu0 %v1575, 64
        %v1651 = vpop.permute.xlu0 %1650
        %v1654 = vsel %vm1447, %v1649, 0
        %1656 = vmatprep.subr.bf16.mxu0 0
        %1657 = vmatpush1.bf16.msra.mxu0 %v1651
        %1658 = vmatprep.subr.bf16.mxu0 0
        %1659 = vmatpush1.bf16.msra.mxu0 0
        %1660 = vmatprep.subr.bf16.mxu0 0
        %1661 = vmatpush1.bf16.msra.mxu0 0
        %1662 = vmatprep.subr.bf16.mxu0 0
        %1663 = vmatpush1.bf16.msra.mxu0 0
        %1664 = vmatprep.subr.bf16.mxu0 0
        %1665 = vmatpush1.bf16.msra.mxu0 0
        %1666 = vmatprep.subr.bf16.mxu0 0
        %1667 = vmatpush1.bf16.msra.mxu0 0
        %1668 = vmatprep.subr.bf16.mxu0 0
        %1669 = vmatpush1.bf16.msra.mxu0 0
        %1670 = vmatprep.subr.bf16.mxu0 0
        %1671 = vmatpush1.bf16.msra.mxu0 0
        %1672 = vmatprep.subr.bf16.mxu0 0
        %1673 = vmatpush1.bf16.msra.mxu0 0
        %1674 = vmatprep.subr.bf16.mxu0 0
        %1675 = vmatpush1.bf16.msra.mxu0 0
        %1676 = vmatprep.subr.bf16.mxu0 0
        %1677 = vmatpush1.bf16.msra.mxu0 0
        %1678 = vmatprep.subr.bf16.mxu0 0
        %1679 = vmatpush1.bf16.msra.mxu0 0
        %1680 = vmatprep.subr.bf16.mxu0 0
        %1681 = vmatpush1.bf16.msra.mxu0 0
        %1682 = vmatprep.subr.bf16.mxu0 0
        %1683 = vmatpush1.bf16.msra.mxu0 0
        %1684 = vmatprep.subr.bf16.mxu0 0
        %1685 = vmatpush1.bf16.msra.mxu0 0
        %1686 = vmatprep.subr.bf16.mxu0 0
        %1687 = vmatpush1.bf16.msra.mxu0 0
        %1688 = vmatprep.mubr.bf16.mxu0 0
        %1689 = vmatmul.mubr.bf16.gmra.mrb[0].mxu0 %v1654
        %v1690 = vpop.f32.mrb[0].mxu0
        %v1691 = vadd.f32 0.0, %v1690
        %v1692 = vpop.f32.mrb[0].mxu0
        %v1693 = vpop.f32.mrb[0].mxu0
        %v1694 = vadd.f32 0.0, %v1693
        %v1695 = vpop.f32.mrb[0].mxu0
        %1696 = vdwg.mxu0
        %1698 = vrot.lane.b32.xlu0 %v1574, 120
        %v1699 = vpop.permute.xlu0 %1698
        %1700 = vrot.lane.b32.xlu0 %v1575, 88
        %v1701 = vpop.permute.xlu0 %1700
        %v1703 = vsel %vm1579, %v1699, 0
        %v1706 = vsel %vm1579, %v1701, 0
        %1708 = vmatprep.subr.bf16.mxu0 0
        %1709 = vmatpush1.bf16.xpose.msra.mxu0 %v1706
        %1710 = vmatprep.subr.bf16.mxu0 0
        %1711 = vmatpush1.bf16.xpose.msra.mxu0 0
        %1712 = vmatprep.subr.bf16.mxu0 0
        %1713 = vmatpush1.bf16.xpose.msra.mxu0 0
        %1714 = vmatprep.subr.bf16.mxu0 0
        %1715 = vmatpush1.bf16.xpose.msra.mxu0 0
        %1716 = vmatprep.subr.bf16.mxu0 0
        %1717 = vmatpush1.bf16.xpose.msra.mxu0 0
        %1718 = vmatprep.subr.bf16.mxu0 0
        %1719 = vmatpush1.bf16.xpose.msra.mxu0 0
        %1720 = vmatprep.subr.bf16.mxu0 0
        %1721 = vmatpush1.bf16.xpose.msra.mxu0 0
        %1722 = vmatprep.subr.bf16.mxu0 0
        %1723 = vmatpush1.bf16.xpose.msra.mxu0 0
        %1724 = vmatprep.subr.bf16.mxu0 0
        %1725 = vmatpush1.bf16.xpose.msra.mxu0 0
        %1726 = vmatprep.subr.bf16.mxu0 0
        %1727 = vmatpush1.bf16.xpose.msra.mxu0 0
        %1728 = vmatprep.subr.bf16.mxu0 0
        %1729 = vmatpush1.bf16.xpose.msra.mxu0 0
        %1730 = vmatprep.subr.bf16.mxu0 0
        %1731 = vmatpush1.bf16.xpose.msra.mxu0 0
        %1732 = vmatprep.subr.bf16.mxu0 0
        %1733 = vmatpush1.bf16.xpose.msra.mxu0 0
        %1734 = vmatprep.subr.bf16.mxu0 0
        %1735 = vmatpush1.bf16.xpose.msra.mxu0 0
        %1736 = vmatprep.subr.bf16.mxu0 0
        %1737 = vmatpush1.bf16.xpose.msra.mxu0 0
        %1738 = vmatprep.subr.bf16.mxu0 0
        %1739 = vmatpush1.bf16.xpose.msra.mxu0 0
        %1740 = vmatprep.mubr.bf16.mxu0 0
        %1741 = vmatmul.mubr.bf16.gmra.mrb[0].mxu0 %v1703
        %v1742 = vpop.f32.mrb[0].mxu0
        %v1743 = vadd.f32 0.0, %v1742
        %v1744 = vpop.f32.mrb[0].mxu0
        %v1745 = vpop.f32.mrb[0].mxu0
        %v1746 = vadd.f32 0.0, %v1745
        %v1747 = vpop.f32.mrb[0].mxu0
        %1748 = vdwg.mxu0
        %v1749 = vsel %vm1447, %v1743, -inf
        %1750 = vmax.xlane.f32.xlu0 %v1749
        %v1751 = vpop.xlane.xlu0 %1750
        %v1752 = vsel %vm1447, %v1746, -inf
        %1753 = vmax.xlane.f32.xlu0 %v1752
        %v1754 = vpop.xlane.xlu0 %1753
        %v1755 = vsub.f32 %v1743, %v1751
        %v1756 = vsub.f32 %v1746, %v1754
        %v1757 = vmul.f32 %v1755, 1.442695
        %v1758 = vpow.pop %v1757
        %v1759 = vmul.f32 %v1756, 1.442695
        %v1760 = vpow.pop %v1759
        %v1761 = vsel %vm1447, %v1758, 0.0
        %1762 = vadd.xlane.f32.xlu0 %v1761
        %v1763 = vpop.xlane.xlu0 %1762
        %v1764 = vsel %vm1447, %v1760, 0.0
        %1765 = vadd.xlane.f32.xlu0 %v1764
        %v1766 = vpop.xlane.xlu0 %1765
        %v1767 = vrcp.pop %v1763
        %v1768 = vrcp.pop %v1766
        %v1769 = vmul.f32 %v1758, %v1767
        %v1770 = vmul.f32 %v1760, %v1768
        %v1771 = vpack.c.bf16 %v1770, %v1769
        %1772 = vrot.lane.b32.xlu0 %v1575, 56
        %v1773 = vpop.permute.xlu0 %1772
        %v1776 = vsel %vm1447, %v1771, 0
        %1778 = vmatprep.subr.bf16.mxu0 0
        %1779 = vmatpush1.bf16.msra.mxu0 %v1773
        %1780 = vmatprep.subr.bf16.mxu0 0
        %1781 = vmatpush1.bf16.msra.mxu0 0
        %1782 = vmatprep.subr.bf16.mxu0 0
        %1783 = vmatpush1.bf16.msra.mxu0 0
        %1784 = vmatprep.subr.bf16.mxu0 0
        %1785 = vmatpush1.bf16.msra.mxu0 0
        %1786 = vmatprep.subr.bf16.mxu0 0
        %1787 = vmatpush1.bf16.msra.mxu0 0
        %1788 = vmatprep.subr.bf16.mxu0 0
        %1789 = vmatpush1.bf16.msra.mxu0 0
        %1790 = vmatprep.subr.bf16.mxu0 0
        %1791 = vmatpush1.bf16.msra.mxu0 0
        %1792 = vmatprep.subr.bf16.mxu0 0
        %1793 = vmatpush1.bf16.msra.mxu0 0
        %1794 = vmatprep.subr.bf16.mxu0 0
        %1795 = vmatpush1.bf16.msra.mxu0 0
        %1796 = vmatprep.subr.bf16.mxu0 0
        %1797 = vmatpush1.bf16.msra.mxu0 0
        %1798 = vmatprep.subr.bf16.mxu0 0
        %1799 = vmatpush1.bf16.msra.mxu0 0
        %1800 = vmatprep.subr.bf16.mxu0 0
        %1801 = vmatpush1.bf16.msra.mxu0 0
        %1802 = vmatprep.subr.bf16.mxu0 0
        %1803 = vmatpush1.bf16.msra.mxu0 0
        %1804 = vmatprep.subr.bf16.mxu0 0
        %1805 = vmatpush1.bf16.msra.mxu0 0
        %1806 = vmatprep.subr.bf16.mxu0 0
        %1807 = vmatpush1.bf16.msra.mxu0 0
        %1808 = vmatprep.subr.bf16.mxu0 0
        %1809 = vmatpush1.bf16.msra.mxu0 0
        %1810 = vmatprep.mubr.bf16.mxu0 0
        %1811 = vmatmul.mubr.bf16.gmra.mrb[0].mxu0 %v1776
        %v1812 = vpop.f32.mrb[0].mxu0
        %v1813 = vadd.f32 0.0, %v1812
        %v1814 = vpop.f32.mrb[0].mxu0
        %v1815 = vpop.f32.mrb[0].mxu0
        %v1816 = vadd.f32 0.0, %v1815
        %v1817 = vpop.f32.mrb[0].mxu0
        %1818 = vdwg.mxu0
        %1819 = vrot.lane.b32.xlu0 %v1574, 112
        %v1820 = vpop.permute.xlu0 %1819
        %1821 = vrot.lane.b32.xlu0 %v1575, 80
        %v1822 = vpop.permute.xlu0 %1821
        %v1824 = vsel %vm1579, %v1820, 0
        %v1827 = vsel %vm1579, %v1822, 0
        %1829 = vmatprep.subr.bf16.mxu0 0
        %1830 = vmatpush1.bf16.xpose.msra.mxu0 %v1827
        %1831 = vmatprep.subr.bf16.mxu0 0
        %1832 = vmatpush1.bf16.xpose.msra.mxu0 0
        %1833 = vmatprep.subr.bf16.mxu0 0
        %1834 = vmatpush1.bf16.xpose.msra.mxu0 0
        %1835 = vmatprep.subr.bf16.mxu0 0
        %1836 = vmatpush1.bf16.xpose.msra.mxu0 0
        %1837 = vmatprep.subr.bf16.mxu0 0
        %1838 = vmatpush1.bf16.xpose.msra.mxu0 0
        %1839 = vmatprep.subr.bf16.mxu0 0
        %1840 = vmatpush1.bf16.xpose.msra.mxu0 0
        %1841 = vmatprep.subr.bf16.mxu0 0
        %1842 = vmatpush1.bf16.xpose.msra.mxu0 0
        %1843 = vmatprep.subr.bf16.mxu0 0
        %1844 = vmatpush1.bf16.xpose.msra.mxu0 0
        %1845 = vmatprep.subr.bf16.mxu0 0
        %1846 = vmatpush1.bf16.xpose.msra.mxu0 0
        %1847 = vmatprep.subr.bf16.mxu0 0
        %1848 = vmatpush1.bf16.xpose.msra.mxu0 0
        %1849 = vmatprep.subr.bf16.mxu0 0
        %1850 = vmatpush1.bf16.xpose.msra.mxu0 0
        %1851 = vmatprep.subr.bf16.mxu0 0
        %1852 = vmatpush1.bf16.xpose.msra.mxu0 0
        %1853 = vmatprep.subr.bf16.mxu0 0
        %1854 = vmatpush1.bf16.xpose.msra.mxu0 0
        %1855 = vmatprep.subr.bf16.mxu0 0
        %1856 = vmatpush1.bf16.xpose.msra.mxu0 0
        %1857 = vmatprep.subr.bf16.mxu0 0
        %1858 = vmatpush1.bf16.xpose.msra.mxu0 0
        %1859 = vmatprep.subr.bf16.mxu0 0
        %1860 = vmatpush1.bf16.xpose.msra.mxu0 0
        %1861 = vmatprep.mubr.bf16.mxu0 0
        %1862 = vmatmul.mubr.bf16.gmra.mrb[0].mxu0 %v1824
        %v1863 = vpop.f32.mrb[0].mxu0
        %v1864 = vadd.f32 0.0, %v1863
        %v1865 = vpop.f32.mrb[0].mxu0
        %v1866 = vpop.f32.mrb[0].mxu0
        %v1867 = vadd.f32 0.0, %v1866
        %v1868 = vpop.f32.mrb[0].mxu0
        %1869 = vdwg.mxu0
        %v1870 = vsel %vm1447, %v1864, -inf
        %1871 = vmax.xlane.f32.xlu0 %v1870
        %v1872 = vpop.xlane.xlu0 %1871
        %v1873 = vsel %vm1447, %v1867, -inf
        %1874 = vmax.xlane.f32.xlu0 %v1873
        %v1875 = vpop.xlane.xlu0 %1874
        %v1876 = vsub.f32 %v1864, %v1872
        %v1877 = vsub.f32 %v1867, %v1875
        %v1878 = vmul.f32 %v1876, 1.442695
        %v1879 = vpow.pop %v1878
        %v1880 = vmul.f32 %v1877, 1.442695
        %v1881 = vpow.pop %v1880
        %v1882 = vsel %vm1447, %v1879, 0.0
        %1883 = vadd.xlane.f32.xlu0 %v1882
        %v1884 = vpop.xlane.xlu0 %1883
        %v1885 = vsel %vm1447, %v1881, 0.0
        %1886 = vadd.xlane.f32.xlu0 %v1885
        %v1887 = vpop.xlane.xlu0 %1886
        %v1888 = vrcp.pop %v1884
        %v1889 = vrcp.pop %v1887
        %v1890 = vmul.f32 %v1879, %v1888
        %v1891 = vmul.f32 %v1881, %v1889
        %v1892 = vpack.c.bf16 %v1891, %v1890
        %1893 = vrot.lane.b32.xlu0 %v1575, 48
        %v1894 = vpop.permute.xlu0 %1893
        %v1897 = vsel %vm1447, %v1892, 0
        %1899 = vmatprep.subr.bf16.mxu0 0
        %1900 = vmatpush1.bf16.msra.mxu0 %v1894
        %1901 = vmatprep.subr.bf16.mxu0 0
        %1902 = vmatpush1.bf16.msra.mxu0 0
        %1903 = vmatprep.subr.bf16.mxu0 0
        %1904 = vmatpush1.bf16.msra.mxu0 0
        %1905 = vmatprep.subr.bf16.mxu0 0
        %1906 = vmatpush1.bf16.msra.mxu0 0
        %1907 = vmatprep.subr.bf16.mxu0 0
        %1908 = vmatpush1.bf16.msra.mxu0 0
        %1909 = vmatprep.subr.bf16.mxu0 0
        %1910 = vmatpush1.bf16.msra.mxu0 0
        %1911 = vmatprep.subr.bf16.mxu0 0
        %1912 = vmatpush1.bf16.msra.mxu0 0
        %1913 = vmatprep.subr.bf16.mxu0 0
        %1914 = vmatpush1.bf16.msra.mxu0 0
        %1915 = vmatprep.subr.bf16.mxu0 0
        %1916 = vmatpush1.bf16.msra.mxu0 0
        %1917 = vmatprep.subr.bf16.mxu0 0
        %1918 = vmatpush1.bf16.msra.mxu0 0
        %1919 = vmatprep.subr.bf16.mxu0 0
        %1920 = vmatpush1.bf16.msra.mxu0 0
        %1921 = vmatprep.subr.bf16.mxu0 0
        %1922 = vmatpush1.bf16.msra.mxu0 0
        %1923 = vmatprep.subr.bf16.mxu0 0
        %1924 = vmatpush1.bf16.msra.mxu0 0
        %1925 = vmatprep.subr.bf16.mxu0 0
        %1926 = vmatpush1.bf16.msra.mxu0 0
        %1927 = vmatprep.subr.bf16.mxu0 0
        %1928 = vmatpush1.bf16.msra.mxu0 0
        %1929 = vmatprep.subr.bf16.mxu0 0
        %1930 = vmatpush1.bf16.msra.mxu0 0
        %1931 = vmatprep.mubr.bf16.mxu0 0
        %1932 = vmatmul.mubr.bf16.gmra.mrb[0].mxu0 %v1897
        %v1933 = vpop.f32.mrb[0].mxu0
        %v1934 = vadd.f32 0.0, %v1933
        %v1935 = vpop.f32.mrb[0].mxu0
        %v1936 = vpop.f32.mrb[0].mxu0
        %v1937 = vadd.f32 0.0, %v1936
        %v1938 = vpop.f32.mrb[0].mxu0
        %1939 = vdwg.mxu0
        %1940 = vrot.lane.b32.xlu0 %v1574, 104
        %v1941 = vpop.permute.xlu0 %1940
        %1942 = vrot.lane.b32.xlu0 %v1575, 72
        %v1943 = vpop.permute.xlu0 %1942
        %v1945 = vsel %vm1579, %v1941, 0
        %v1948 = vsel %vm1579, %v1943, 0
        %1950 = vmatprep.subr.bf16.mxu0 0
        %1951 = vmatpush1.bf16.xpose.msra.mxu0 %v1948
        %1952 = vmatprep.subr.bf16.mxu0 0
        %1953 = vmatpush1.bf16.xpose.msra.mxu0 0
        %1954 = vmatprep.subr.bf16.mxu0 0
        %1955 = vmatpush1.bf16.xpose.msra.mxu0 0
        %1956 = vmatprep.subr.bf16.mxu0 0
        %1957 = vmatpush1.bf16.xpose.msra.mxu0 0
        %1958 = vmatprep.subr.bf16.mxu0 0
        %1959 = vmatpush1.bf16.xpose.msra.mxu0 0
        %1960 = vmatprep.subr.bf16.mxu0 0
        %1961 = vmatpush1.bf16.xpose.msra.mxu0 0
        %1962 = vmatprep.subr.bf16.mxu0 0
        %1963 = vmatpush1.bf16.xpose.msra.mxu0 0
        %1964 = vmatprep.subr.bf16.mxu0 0
        %1965 = vmatpush1.bf16.xpose.msra.mxu0 0
        %1966 = vmatprep.subr.bf16.mxu0 0
        %1967 = vmatpush1.bf16.xpose.msra.mxu0 0
        %1968 = vmatprep.subr.bf16.mxu0 0
        %1969 = vmatpush1.bf16.xpose.msra.mxu0 0
        %1970 = vmatprep.subr.bf16.mxu0 0
        %1971 = vmatpush1.bf16.xpose.msra.mxu0 0
        %1972 = vmatprep.subr.bf16.mxu0 0
        %1973 = vmatpush1.bf16.xpose.msra.mxu0 0
        %1974 = vmatprep.subr.bf16.mxu0 0
        %1975 = vmatpush1.bf16.xpose.msra.mxu0 0
        %1976 = vmatprep.subr.bf16.mxu0 0
        %1977 = vmatpush1.bf16.xpose.msra.mxu0 0
        %1978 = vmatprep.subr.bf16.mxu0 0
        %1979 = vmatpush1.bf16.xpose.msra.mxu0 0
        %1980 = vmatprep.subr.bf16.mxu0 0
        %1981 = vmatpush1.bf16.xpose.msra.mxu0 0
        %1982 = vmatprep.mubr.bf16.mxu0 0
        %1983 = vmatmul.mubr.bf16.gmra.mrb[0].mxu0 %v1945
        %v1984 = vpop.f32.mrb[0].mxu0
        %v1985 = vadd.f32 0.0, %v1984
        %v1986 = vpop.f32.mrb[0].mxu0
        %v1987 = vpop.f32.mrb[0].mxu0
        %v1988 = vadd.f32 0.0, %v1987
        %v1989 = vpop.f32.mrb[0].mxu0
        %1990 = vdwg.mxu0
        %v1991 = vsel %vm1447, %v1985, -inf
        %1992 = vmax.xlane.f32.xlu0 %v1991
        %v1993 = vpop.xlane.xlu0 %1992
        %v1994 = vsel %vm1447, %v1988, -inf
        %1995 = vmax.xlane.f32.xlu0 %v1994
        %v1996 = vpop.xlane.xlu0 %1995
        %v1997 = vsub.f32 %v1985, %v1993
        %v1998 = vsub.f32 %v1988, %v1996
        %v1999 = vmul.f32 %v1997, 1.442695
        %v2000 = vpow.pop %v1999
        %v2001 = vmul.f32 %v1998, 1.442695
        %v2002 = vpow.pop %v2001
        %v2003 = vsel %vm1447, %v2000, 0.0
        %2004 = vadd.xlane.f32.xlu0 %v2003
        %v2005 = vpop.xlane.xlu0 %2004
        %v2006 = vsel %vm1447, %v2002, 0.0
        %2007 = vadd.xlane.f32.xlu0 %v2006
        %v2008 = vpop.xlane.xlu0 %2007
        %v2009 = vrcp.pop %v2005
        %v2010 = vrcp.pop %v2008
        %v2011 = vmul.f32 %v2000, %v2009
        %v2012 = vmul.f32 %v2002, %v2010
        %v2013 = vpack.c.bf16 %v2012, %v2011
        %2014 = vrot.lane.b32.xlu0 %v1575, 40
        %v2015 = vpop.permute.xlu0 %2014
        %v2018 = vsel %vm1447, %v2013, 0
        %2020 = vmatprep.subr.bf16.mxu0 0
        %2021 = vmatpush1.bf16.msra.mxu0 %v2015
        %2022 = vmatprep.subr.bf16.mxu0 0
        %2023 = vmatpush1.bf16.msra.mxu0 0
        %2024 = vmatprep.subr.bf16.mxu0 0
        %2025 = vmatpush1.bf16.msra.mxu0 0
        %2026 = vmatprep.subr.bf16.mxu0 0
        %2027 = vmatpush1.bf16.msra.mxu0 0
        %2028 = vmatprep.subr.bf16.mxu0 0
        %2029 = vmatpush1.bf16.msra.mxu0 0
        %2030 = vmatprep.subr.bf16.mxu0 0
        %2031 = vmatpush1.bf16.msra.mxu0 0
        %2032 = vmatprep.subr.bf16.mxu0 0
        %2033 = vmatpush1.bf16.msra.mxu0 0
        %2034 = vmatprep.subr.bf16.mxu0 0
        %2035 = vmatpush1.bf16.msra.mxu0 0
        %2036 = vmatprep.subr.bf16.mxu0 0
        %2037 = vmatpush1.bf16.msra.mxu0 0
        %2038 = vmatprep.subr.bf16.mxu0 0
        %2039 = vmatpush1.bf16.msra.mxu0 0
        %2040 = vmatprep.subr.bf16.mxu0 0
        %2041 = vmatpush1.bf16.msra.mxu0 0
        %2042 = vmatprep.subr.bf16.mxu0 0
        %2043 = vmatpush1.bf16.msra.mxu0 0
        %2044 = vmatprep.subr.bf16.mxu0 0
        %2045 = vmatpush1.bf16.msra.mxu0 0
        %2046 = vmatprep.subr.bf16.mxu0 0
        %2047 = vmatpush1.bf16.msra.mxu0 0
        %2048 = vmatprep.subr.bf16.mxu0 0
        %2049 = vmatpush1.bf16.msra.mxu0 0
        %2050 = vmatprep.subr.bf16.mxu0 0
        %2051 = vmatpush1.bf16.msra.mxu0 0
        %2052 = vmatprep.mubr.bf16.mxu0 0
        %2053 = vmatmul.mubr.bf16.gmra.mrb[0].mxu0 %v2018
        %v2054 = vpop.f32.mrb[0].mxu0
        %v2055 = vadd.f32 0.0, %v2054
        %v2056 = vpop.f32.mrb[0].mxu0
        %v2057 = vpop.f32.mrb[0].mxu0
        %v2058 = vadd.f32 0.0, %v2057
        %v2059 = vpop.f32.mrb[0].mxu0
        %2060 = vdwg.mxu0
        %2063 = vrot.lane.b32.xlu0 %v1813, 8
        %v2064 = vpop.permute.xlu0 %2063
        %2065 = vrot.lane.b32.xlu0 %v1816, 8
        %v2066 = vpop.permute.xlu0 %2065
        %2071 = vrot.lane.b32.xlu0 %v1934, 16
        %v2072 = vpop.permute.xlu0 %2071
        %2073 = vrot.lane.b32.xlu0 %v1937, 16
        %v2074 = vpop.permute.xlu0 %2073
        %2079 = vrot.lane.b32.xlu0 %v2055, 24
        %v2080 = vpop.permute.xlu0 %2079
        %2081 = vrot.lane.b32.xlu0 %v2058, 24
        %v2082 = vpop.permute.xlu0 %2081
        %v2085 = vsel %vm1579, %v1691, %v2064
        %v2086 = vsel %vm1579, %v1694, %v2066
        %v2087 = vsel %vm1447, %v2085, %v2072
        %v2088 = vsel %vm1447, %v2086, %v2074
        %vm2089 = vcmask 195584
        %v2090 = vsel %vm2089, %v2087, %v2080
        %v2091 = vsel %vm2089, %v2088, %v2082
        %v2092 = vpack.c.bf16 %v2091, %v2090
        %v2094 = vlaneseq
        %v2095 = vshrl.u32 %v2094, 7
        %v2096 = vsub.s32 0, %v2095
        %v2097 = vrot.slane %v1571, %v2096
        %v2103 = vunpack.c.l.b16 %v1567
        %v2104 = vunpack.c.l.b16 %v1568
        %v2105 = vunpack.c.l.b16 %v1569
        %v2106 = vunpack.c.l.b16 %v1570
        %v2107 = vpack.c.b16 %v2104, %v2103
        %v2108 = vpack.c.b16 %v2106, %v2105
        %v2112 = vsel %vm1522, %v2092, 0
        %2114 = vmatprep.subr.bf16.mxu0 0
        %2115 = vmatpush1.bf16.msra.mxu0 %v2107
        %2116 = vmatprep.subr.bf16.mxu0 0
        %2117 = vmatpush1.bf16.msra.mxu0 %v2108
        %2118 = vmatprep.subr.bf16.mxu0 0
        %2119 = vmatpush1.bf16.msra.mxu0 0
        %2120 = vmatprep.subr.bf16.mxu0 0
        %2121 = vmatpush1.bf16.msra.mxu0 0
        %2122 = vmatprep.subr.bf16.mxu0 0
        %2123 = vmatpush1.bf16.msra.mxu0 0
        %2124 = vmatprep.subr.bf16.mxu0 0
        %2125 = vmatpush1.bf16.msra.mxu0 0
        %2126 = vmatprep.subr.bf16.mxu0 0
        %2127 = vmatpush1.bf16.msra.mxu0 0
        %2128 = vmatprep.subr.bf16.mxu0 0
        %2129 = vmatpush1.bf16.msra.mxu0 0
        %2130 = vmatprep.subr.bf16.mxu0 0
        %2131 = vmatpush1.bf16.msra.mxu0 0
        %2132 = vmatprep.subr.bf16.mxu0 0
        %2133 = vmatpush1.bf16.msra.mxu0 0
        %2134 = vmatprep.subr.bf16.mxu0 0
        %2135 = vmatpush1.bf16.msra.mxu0 0
        %2136 = vmatprep.subr.bf16.mxu0 0
        %2137 = vmatpush1.bf16.msra.mxu0 0
        %2138 = vmatprep.subr.bf16.mxu0 0
        %2139 = vmatpush1.bf16.msra.mxu0 0
        %2140 = vmatprep.subr.bf16.mxu0 0
        %2141 = vmatpush1.bf16.msra.mxu0 0
        %2142 = vmatprep.subr.bf16.mxu0 0
        %2143 = vmatpush1.bf16.msra.mxu0 0
        %2144 = vmatprep.subr.bf16.mxu0 0
        %2145 = vmatpush1.bf16.msra.mxu0 0
        %2146 = vmatprep.mubr.bf16.mxu0 0
        %2147 = vmatmul.mubr.bf16.gmra.mrb[0].mxu0 %v2112
        %v2148 = vpop.f32.mrb[0].mxu0
        %v2149 = vadd.f32 %v2097, %v2148
        %v2150 = vpop.f32.mrb[0].mxu0
        %v2151 = vpop.f32.mrb[0].mxu0
        %v2152 = vadd.f32 %v2097, %v2151
        %v2153 = vpop.f32.mrb[0].mxu0
        %2154 = vdwg.mxu0
        %v2155 = vadd.f32 %v1496, %v2149
        %v2156 = vadd.f32 %v1497, %v2152
        %v2157 = vld [vmem:[%s21] sm:$0x1]
        %v2158 = vld [vmem:[%s23] sm:$0x1]
        %v2159 = vsel %vm1522, %v2155, 0.0
        %2160 = vadd.xlane.f32.xlu0 %v2159
        %v2161 = vpop.xlane.xlu0 %2160
        %v2162 = vsel %vm1522, %v2156, 0.0
        %2163 = vadd.xlane.f32.xlu0 %v2162
        %v2164 = vpop.xlane.xlu0 %2163
        %v2165 = vrcp.pop 32.0
        %v2166 = vmul.f32 %v2161, %v2165
        %v2167 = vmul.f32 %v2164, %v2165
        %v2168 = vsub.f32 %v2155, %v2166
        %v2169 = vsub.f32 %v2156, %v2167
        %v2170 = vmul.f32 %v2168, %v2168
        %v2171 = vmul.f32 %v2169, %v2169
        %v2172 = vsel %vm1522, %v2170, 0.0
        %2173 = vadd.xlane.f32.xlu0 %v2172
        %v2174 = vpop.xlane.xlu0 %2173
        %v2175 = vsel %vm1522, %v2171, 0.0
        %2176 = vadd.xlane.f32.xlu0 %v2175
        %v2177 = vpop.xlane.xlu0 %2176
        %v2178 = vmul.f32 %v2174, %v2165
        %v2179 = vmul.f32 %v2177, %v2165
        %v2180 = vadd.f32 %v2178, 1e-06
        %v2181 = vadd.f32 %v2179, 1e-06
        %v2182 = vrsqrt.pop %v2180
        %v2183 = vrsqrt.pop %v2181
        %v2184 = vmul.f32 %v2168, %v2182
        %v2185 = vmul.f32 %v2169, %v2183
        %v2187 = vlaneseq
        %v2188 = vshrl.u32 %v2187, 7
        %v2189 = vsub.s32 0, %v2188
        %v2190 = vrot.slane %v2157, %v2189
        %v2192 = vmul.f32 %v2184, %v2190
        %v2193 = vmul.f32 %v2185, %v2190
        %v2195 = vlaneseq
        %v2196 = vshrl.u32 %v2195, 7
        %v2197 = vsub.s32 0, %v2196
        %v2198 = vrot.slane %v2158, %v2197
        %v2200 = vadd.f32 %v2192, %v2198
        %v2201 = vadd.f32 %v2193, %v2198
        %v2202 = vld [vmem:[%s25] sm:$0xf]
        %v2203 = vld [vmem:[%s25 + $0x4] sm:$0xf]
        %v2204 = vld [vmem:[%s25 + $0x8] sm:$0xf]
        %v2205 = vld [vmem:[%s25 + $0xc] sm:$0xf]
        %v2206 = vld [vmem:[%s27] sm:$0x1]
        %v2207 = vpack.c.bf16 %v2201, %v2200
        %v2209 = vlaneseq
        %v2210 = vshrl.u32 %v2209, 7
        %v2211 = vsub.s32 0, %v2210
        %v2212 = vrot.slane %v2206, %v2211
        %v2218 = vunpack.c.l.b16 %v2202
        %v2219 = vunpack.c.l.b16 %v2203
        %v2220 = vunpack.c.l.b16 %v2204
        %v2221 = vunpack.c.l.b16 %v2205
        %v2222 = vpack.c.b16 %v2219, %v2218
        %v2223 = vpack.c.b16 %v2221, %v2220
        %v2227 = vsel %vm1522, %v2207, 0
        %2229 = vmatprep.subr.bf16.mxu0 0
        %2230 = vmatpush1.bf16.msra.mxu0 %v2222
        %2231 = vmatprep.subr.bf16.mxu0 0
        %2232 = vmatpush1.bf16.msra.mxu0 %v2223
        %2233 = vmatprep.subr.bf16.mxu0 0
        %2234 = vmatpush1.bf16.msra.mxu0 0
        %2235 = vmatprep.subr.bf16.mxu0 0
        %2236 = vmatpush1.bf16.msra.mxu0 0
        %2237 = vmatprep.subr.bf16.mxu0 0
        %2238 = vmatpush1.bf16.msra.mxu0 0
        %2239 = vmatprep.subr.bf16.mxu0 0
        %2240 = vmatpush1.bf16.msra.mxu0 0
        %2241 = vmatprep.subr.bf16.mxu0 0
        %2242 = vmatpush1.bf16.msra.mxu0 0
        %2243 = vmatprep.subr.bf16.mxu0 0
        %2244 = vmatpush1.bf16.msra.mxu0 0
        %2245 = vmatprep.subr.bf16.mxu0 0
        %2246 = vmatpush1.bf16.msra.mxu0 0
        %2247 = vmatprep.subr.bf16.mxu0 0
        %2248 = vmatpush1.bf16.msra.mxu0 0
        %2249 = vmatprep.subr.bf16.mxu0 0
        %2250 = vmatpush1.bf16.msra.mxu0 0
        %2251 = vmatprep.subr.bf16.mxu0 0
        %2252 = vmatpush1.bf16.msra.mxu0 0
        %2253 = vmatprep.subr.bf16.mxu0 0
        %2254 = vmatpush1.bf16.msra.mxu0 0
        %2255 = vmatprep.subr.bf16.mxu0 0
        %2256 = vmatpush1.bf16.msra.mxu0 0
        %2257 = vmatprep.subr.bf16.mxu0 0
        %2258 = vmatpush1.bf16.msra.mxu0 0
        %2259 = vmatprep.subr.bf16.mxu0 0
        %2260 = vmatpush1.bf16.msra.mxu0 0
        %2261 = vmatprep.mubr.bf16.mxu0 0
        %2262 = vmatmul.mubr.bf16.gmra.mrb[0].mxu0 %v2227
        %v2263 = vpop.f32.mrb[0].mxu0
        %v2264 = vadd.f32 %v2212, %v2263
        %v2265 = vpop.f32.mrb[0].mxu0
        %v2266 = vpop.f32.mrb[0].mxu0
        %v2267 = vadd.f32 %v2212, %v2266
        %v2268 = vpop.f32.mrb[0].mxu0
        %2269 = vdwg.mxu0
        %v2270 = vmax.f32 %v2264, 0.0
        %v2271 = vmax.f32 %v2267, 0.0
        %v2272 = vld [vmem:[%s29] sm:$0xf]
        %v2273 = vld [vmem:[%s29 + $0x4] sm:$0xf]
        %v2274 = vld [vmem:[%s29 + $0x8] sm:$0xf]
        %v2275 = vld [vmem:[%s29 + $0xc] sm:$0xf]
        %v2276 = vld [vmem:[%s29 + $0x10] sm:$0xf]
        %v2277 = vld [vmem:[%s29 + $0x14] sm:$0xf]
        %v2278 = vld [vmem:[%s29 + $0x18] sm:$0xf]
        %v2279 = vld [vmem:[%s29 + $0x1c] sm:$0xf]
        %v2280 = vld [vmem:[%s31] sm:$0x1]
        %v2281 = vpack.c.bf16 %v2271, %v2270
        %v2283 = vlaneseq
        %v2284 = vshrl.u32 %v2283, 7
        %v2285 = vsub.s32 0, %v2284
        %v2286 = vrot.slane %v2280, %v2285
        %v2296 = vunpack.c.l.b16 %v2272
        %v2297 = vunpack.c.l.b16 %v2273
        %v2298 = vunpack.c.l.b16 %v2274
        %v2299 = vunpack.c.l.b16 %v2275
        %v2300 = vunpack.c.l.b16 %v2276
        %v2301 = vunpack.c.l.b16 %v2277
        %v2302 = vunpack.c.l.b16 %v2278
        %v2303 = vunpack.c.l.b16 %v2279
        %v2304 = vpack.c.b16 %v2297, %v2296
        %v2305 = vpack.c.b16 %v2299, %v2298
        %v2306 = vpack.c.b16 %v2301, %v2300
        %v2307 = vpack.c.b16 %v2303, %v2302
        %vm2312 = vcmask 523264
        %v2314 = vsel %vm2312, %v2281, 0
        %2316 = vmatprep.subr.bf16.mxu0 0
        %2317 = vmatpush1.bf16.msra.mxu0 %v2304
        %2318 = vmatprep.subr.bf16.mxu0 0
        %2319 = vmatpush1.bf16.msra.mxu0 %v2305
        %2320 = vmatprep.subr.bf16.mxu0 0
        %2321 = vmatpush1.bf16.msra.mxu0 %v2306
        %2322 = vmatprep.subr.bf16.mxu0 0
        %2323 = vmatpush1.bf16.msra.mxu0 %v2307
        %2324 = vmatprep.subr.bf16.mxu0 0
        %2325 = vmatpush1.bf16.msra.mxu0 0
        %2326 = vmatprep.subr.bf16.mxu0 0
        %2327 = vmatpush1.bf16.msra.mxu0 0
        %2328 = vmatprep.subr.bf16.mxu0 0
        %2329 = vmatpush1.bf16.msra.mxu0 0
        %2330 = vmatprep.subr.bf16.mxu0 0
        %2331 = vmatpush1.bf16.msra.mxu0 0
        %2332 = vmatprep.subr.bf16.mxu0 0
        %2333 = vmatpush1.bf16.msra.mxu0 0
        %2334 = vmatprep.subr.bf16.mxu0 0
        %2335 = vmatpush1.bf16.msra.mxu0 0
        %2336 = vmatprep.subr.bf16.mxu0 0
        %2337 = vmatpush1.bf16.msra.mxu0 0
        %2338 = vmatprep.subr.bf16.mxu0 0
        %2339 = vmatpush1.bf16.msra.mxu0 0
        %2340 = vmatprep.subr.bf16.mxu0 0
        %2341 = vmatpush1.bf16.msra.mxu0 0
        %2342 = vmatprep.subr.bf16.mxu0 0
        %2343 = vmatpush1.bf16.msra.mxu0 0
        %2344 = vmatprep.subr.bf16.mxu0 0
        %2345 = vmatpush1.bf16.msra.mxu0 0
        %2346 = vmatprep.subr.bf16.mxu0 0
        %2347 = vmatpush1.bf16.msra.mxu0 0
        %2348 = vmatprep.mubr.bf16.mxu0 0
        %2349 = vmatmul.mubr.bf16.gmra.mrb[0].mxu0 %v2314
        %v2350 = vpop.f32.mrb[0].mxu0
        %v2351 = vadd.f32 %v2286, %v2350
        %v2352 = vpop.f32.mrb[0].mxu0
        %v2353 = vpop.f32.mrb[0].mxu0
        %v2354 = vadd.f32 %v2286, %v2353
        %v2355 = vpop.f32.mrb[0].mxu0
        %2356 = vdwg.mxu0
        %v2357 = vadd.f32 %v2200, %v2351
        %v2358 = vadd.f32 %v2201, %v2354
        %v2359 = vld [vmem:[%s33] sm:$0x1]
        %v2360 = vld [vmem:[%s35] sm:$0x1]
        %v2361 = vsel %vm1522, %v2357, 0.0
        %2362 = vadd.xlane.f32.xlu0 %v2361
        %v2363 = vpop.xlane.xlu0 %2362
        %v2364 = vsel %vm1522, %v2358, 0.0
        %2365 = vadd.xlane.f32.xlu0 %v2364
        %v2366 = vpop.xlane.xlu0 %2365
        %v2367 = vmul.f32 %v2363, %v2165
        %v2368 = vmul.f32 %v2366, %v2165
        %v2369 = vsub.f32 %v2357, %v2367
        %v2370 = vsub.f32 %v2358, %v2368
        %v2371 = vmul.f32 %v2369, %v2369
        %v2372 = vmul.f32 %v2370, %v2370
        %v2373 = vsel %vm1522, %v2371, 0.0
        %2374 = vadd.xlane.f32.xlu0 %v2373
        %v2375 = vpop.xlane.xlu0 %2374
        %v2376 = vsel %vm1522, %v2372, 0.0
        %2377 = vadd.xlane.f32.xlu0 %v2376
        %v2378 = vpop.xlane.xlu0 %2377
        %v2379 = vmul.f32 %v2375, %v2165
        %v2380 = vmul.f32 %v2378, %v2165
        %v2381 = vadd.f32 %v2379, 1e-06
        %v2382 = vadd.f32 %v2380, 1e-06
        %v2383 = vrsqrt.pop %v2381
        %v2384 = vrsqrt.pop %v2382
        %v2385 = vmul.f32 %v2369, %v2383
        %v2386 = vmul.f32 %v2370, %v2384
        %v2388 = vlaneseq
        %v2389 = vshrl.u32 %v2388, 7
        %v2390 = vsub.s32 0, %v2389
        %v2391 = vrot.slane %v2359, %v2390
        %v2393 = vmul.f32 %v2385, %v2391
        %v2394 = vmul.f32 %v2386, %v2391
        %v2396 = vlaneseq
        %v2397 = vshrl.u32 %v2396, 7
        %v2398 = vsub.s32 0, %v2397
        %v2399 = vrot.slane %v2360, %v2398
        %v2401 = vadd.f32 %v2393, %v2399
        %v2402 = vadd.f32 %v2394, %v2399
        %s2403 = scalar_lea.vmem %s13, 16
        %v2404 = vld [vmem:[%s2403] sm:$0xf]
        %v2405 = vld [vmem:[%s2403 + $0x4] sm:$0xf]
        %v2406 = vld [vmem:[%s2403 + $0x8] sm:$0xf]
        %v2407 = vld [vmem:[%s2403 + $0xc] sm:$0xf]
        %s2408 = scalar_lea.vmem %s15, 1
        %v2409 = vld [vmem:[%s2408] sm:$0x1]
        %v2410 = vpack.c.bf16 %v2402, %v2401
        %v2412 = vlaneseq
        %v2413 = vshrl.u32 %v2412, 7
        %v2414 = vsub.s32 0, %v2413
        %v2415 = vrot.slane %v2409, %v2414
        %v2421 = vunpack.c.l.b16 %v2404
        %v2422 = vunpack.c.l.b16 %v2405
        %v2423 = vunpack.c.l.b16 %v2406
        %v2424 = vunpack.c.l.b16 %v2407
        %v2425 = vpack.c.b16 %v2422, %v2421
        %v2426 = vpack.c.b16 %v2424, %v2423
        %v2430 = vsel %vm1522, %v2410, 0
        %2432 = vmatprep.subr.bf16.mxu0 0
        %2433 = vmatpush1.bf16.msra.mxu0 %v2425
        %2434 = vmatprep.subr.bf16.mxu0 0
        %2435 = vmatpush1.bf16.msra.mxu0 %v2426
        %2436 = vmatprep.subr.bf16.mxu0 0
        %2437 = vmatpush1.bf16.msra.mxu0 0
        %2438 = vmatprep.subr.bf16.mxu0 0
        %2439 = vmatpush1.bf16.msra.mxu0 0
        %2440 = vmatprep.subr.bf16.mxu0 0
        %2441 = vmatpush1.bf16.msra.mxu0 0
        %2442 = vmatprep.subr.bf16.mxu0 0
        %2443 = vmatpush1.bf16.msra.mxu0 0
        %2444 = vmatprep.subr.bf16.mxu0 0
        %2445 = vmatpush1.bf16.msra.mxu0 0
        %2446 = vmatprep.subr.bf16.mxu0 0
        %2447 = vmatpush1.bf16.msra.mxu0 0
        %2448 = vmatprep.subr.bf16.mxu0 0
        %2449 = vmatpush1.bf16.msra.mxu0 0
        %2450 = vmatprep.subr.bf16.mxu0 0
        %2451 = vmatpush1.bf16.msra.mxu0 0
        %2452 = vmatprep.subr.bf16.mxu0 0
        %2453 = vmatpush1.bf16.msra.mxu0 0
        %2454 = vmatprep.subr.bf16.mxu0 0
        %2455 = vmatpush1.bf16.msra.mxu0 0
        %2456 = vmatprep.subr.bf16.mxu0 0
        %2457 = vmatpush1.bf16.msra.mxu0 0
        %2458 = vmatprep.subr.bf16.mxu0 0
        %2459 = vmatpush1.bf16.msra.mxu0 0
        %2460 = vmatprep.subr.bf16.mxu0 0
        %2461 = vmatpush1.bf16.msra.mxu0 0
        %2462 = vmatprep.subr.bf16.mxu0 0
        %2463 = vmatpush1.bf16.msra.mxu0 0
        %2464 = vmatprep.mubr.bf16.mxu0 0
        %2465 = vmatmul.mubr.bf16.gmra.mrb[0].mxu0 %v2430
        %v2466 = vpop.f32.mrb[0].mxu0
        %v2467 = vadd.f32 %v2415, %v2466
        %v2468 = vpop.f32.mrb[0].mxu0
        %v2469 = vpop.f32.mrb[0].mxu0
        %v2470 = vadd.f32 %v2415, %v2469
        %v2471 = vpop.f32.mrb[0].mxu0
        %2472 = vdwg.mxu0
        %s2473 = scalar_lea.vmem %s17, 16
        %v2474 = vld [vmem:[%s2473] sm:$0xf]
        %v2475 = vld [vmem:[%s2473 + $0x4] sm:$0xf]
        %v2476 = vld [vmem:[%s2473 + $0x8] sm:$0xf]
        %v2477 = vld [vmem:[%s2473 + $0xc] sm:$0xf]
        %s2478 = scalar_lea.vmem %s19, 1
        %v2479 = vld [vmem:[%s2478] sm:$0x1]
        %v2480 = vmul.f32 %v2467, 0.35355338
        %v2481 = vmul.f32 %v2470, 0.35355338
        %v2482 = vpack.c.bf16 %v2481, %v2480
        %v2483 = vpack.c.bf16 %v2470, %v2467
        %2485 = vrot.lane.b32.xlu0 %v2483, 96
        %v2486 = vpop.permute.xlu0 %2485
        %v2488 = vsel %vm1579, %v2482, 0
        %v2491 = vsel %vm1579, %v2486, 0
        %2493 = vmatprep.subr.bf16.mxu0 0
        %2494 = vmatpush1.bf16.xpose.msra.mxu0 %v2491
        %2495 = vmatprep.subr.bf16.mxu0 0
        %2496 = vmatpush1.bf16.xpose.msra.mxu0 0
        %2497 = vmatprep.subr.bf16.mxu0 0
        %2498 = vmatpush1.bf16.xpose.msra.mxu0 0
        %2499 = vmatprep.subr.bf16.mxu0 0
        %2500 = vmatpush1.bf16.xpose.msra.mxu0 0
        %2501 = vmatprep.subr.bf16.mxu0 0
        %2502 = vmatpush1.bf16.xpose.msra.mxu0 0
        %2503 = vmatprep.subr.bf16.mxu0 0
        %2504 = vmatpush1.bf16.xpose.msra.mxu0 0
        %2505 = vmatprep.subr.bf16.mxu0 0
        %2506 = vmatpush1.bf16.xpose.msra.mxu0 0
        %2507 = vmatprep.subr.bf16.mxu0 0
        %2508 = vmatpush1.bf16.xpose.msra.mxu0 0
        %2509 = vmatprep.subr.bf16.mxu0 0
        %2510 = vmatpush1.bf16.xpose.msra.mxu0 0
        %2511 = vmatprep.subr.bf16.mxu0 0
        %2512 = vmatpush1.bf16.xpose.msra.mxu0 0
        %2513 = vmatprep.subr.bf16.mxu0 0
        %2514 = vmatpush1.bf16.xpose.msra.mxu0 0
        %2515 = vmatprep.subr.bf16.mxu0 0
        %2516 = vmatpush1.bf16.xpose.msra.mxu0 0
        %2517 = vmatprep.subr.bf16.mxu0 0
        %2518 = vmatpush1.bf16.xpose.msra.mxu0 0
        %2519 = vmatprep.subr.bf16.mxu0 0
        %2520 = vmatpush1.bf16.xpose.msra.mxu0 0
        %2521 = vmatprep.subr.bf16.mxu0 0
        %2522 = vmatpush1.bf16.xpose.msra.mxu0 0
        %2523 = vmatprep.subr.bf16.mxu0 0
        %2524 = vmatpush1.bf16.xpose.msra.mxu0 0
        %2525 = vmatprep.mubr.bf16.mxu0 0
        %2526 = vmatmul.mubr.bf16.gmra.mrb[0].mxu0 %v2488
        %v2527 = vpop.f32.mrb[0].mxu0
        %v2528 = vadd.f32 0.0, %v2527
        %v2529 = vpop.f32.mrb[0].mxu0
        %v2530 = vpop.f32.mrb[0].mxu0
        %v2531 = vadd.f32 0.0, %v2530
        %v2532 = vpop.f32.mrb[0].mxu0
        %2533 = vdwg.mxu0
        %v2534 = vsel %vm1447, %v2528, -inf
        %2535 = vmax.xlane.f32.xlu0 %v2534
        %v2536 = vpop.xlane.xlu0 %2535
        %v2537 = vsel %vm1447, %v2531, -inf
        %2538 = vmax.xlane.f32.xlu0 %v2537
        %v2539 = vpop.xlane.xlu0 %2538
        %v2540 = vsub.f32 %v2528, %v2536
        %v2541 = vsub.f32 %v2531, %v2539
        %v2542 = vmul.f32 %v2540, 1.442695
        %v2543 = vpow.pop %v2542
        %v2544 = vmul.f32 %v2541, 1.442695
        %v2545 = vpow.pop %v2544
        %v2546 = vsel %vm1447, %v2543, 0.0
        %2547 = vadd.xlane.f32.xlu0 %v2546
        %v2548 = vpop.xlane.xlu0 %2547
        %v2549 = vsel %vm1447, %v2545, 0.0
        %2550 = vadd.xlane.f32.xlu0 %v2549
        %v2551 = vpop.xlane.xlu0 %2550
        %v2552 = vrcp.pop %v2548
        %v2553 = vrcp.pop %v2551
        %v2554 = vmul.f32 %v2543, %v2552
        %v2555 = vmul.f32 %v2545, %v2553
        %v2556 = vpack.c.bf16 %v2555, %v2554
        %2557 = vrot.lane.b32.xlu0 %v2483, 64
        %v2558 = vpop.permute.xlu0 %2557
        %v2561 = vsel %vm1447, %v2556, 0
        %2563 = vmatprep.subr.bf16.mxu0 0
        %2564 = vmatpush1.bf16.msra.mxu0 %v2558
        %2565 = vmatprep.subr.bf16.mxu0 0
        %2566 = vmatpush1.bf16.msra.mxu0 0
        %2567 = vmatprep.subr.bf16.mxu0 0
        %2568 = vmatpush1.bf16.msra.mxu0 0
        %2569 = vmatprep.subr.bf16.mxu0 0
        %2570 = vmatpush1.bf16.msra.mxu0 0
        %2571 = vmatprep.subr.bf16.mxu0 0
        %2572 = vmatpush1.bf16.msra.mxu0 0
        %2573 = vmatprep.subr.bf16.mxu0 0
        %2574 = vmatpush1.bf16.msra.mxu0 0
        %2575 = vmatprep.subr.bf16.mxu0 0
        %2576 = vmatpush1.bf16.msra.mxu0 0
        %2577 = vmatprep.subr.bf16.mxu0 0
        %2578 = vmatpush1.bf16.msra.mxu0 0
        %2579 = vmatprep.subr.bf16.mxu0 0
        %2580 = vmatpush1.bf16.msra.mxu0 0
        %2581 = vmatprep.subr.bf16.mxu0 0
        %2582 = vmatpush1.bf16.msra.mxu0 0
        %2583 = vmatprep.subr.bf16.mxu0 0
        %2584 = vmatpush1.bf16.msra.mxu0 0
        %2585 = vmatprep.subr.bf16.mxu0 0
        %2586 = vmatpush1.bf16.msra.mxu0 0
        %2587 = vmatprep.subr.bf16.mxu0 0
        %2588 = vmatpush1.bf16.msra.mxu0 0
        %2589 = vmatprep.subr.bf16.mxu0 0
        %2590 = vmatpush1.bf16.msra.mxu0 0
        %2591 = vmatprep.subr.bf16.mxu0 0
        %2592 = vmatpush1.bf16.msra.mxu0 0
        %2593 = vmatprep.subr.bf16.mxu0 0
        %2594 = vmatpush1.bf16.msra.mxu0 0
        %2595 = vmatprep.mubr.bf16.mxu0 0
        %2596 = vmatmul.mubr.bf16.gmra.mrb[0].mxu0 %v2561
        %v2597 = vpop.f32.mrb[0].mxu0
        %v2598 = vadd.f32 0.0, %v2597
        %v2599 = vpop.f32.mrb[0].mxu0
        %v2600 = vpop.f32.mrb[0].mxu0
        %v2601 = vadd.f32 0.0, %v2600
        %v2602 = vpop.f32.mrb[0].mxu0
        %2603 = vdwg.mxu0
        %2605 = vrot.lane.b32.xlu0 %v2482, 120
        %v2606 = vpop.permute.xlu0 %2605
        %2607 = vrot.lane.b32.xlu0 %v2483, 88
        %v2608 = vpop.permute.xlu0 %2607
        %v2610 = vsel %vm1579, %v2606, 0
        %v2613 = vsel %vm1579, %v2608, 0
        %2615 = vmatprep.subr.bf16.mxu0 0
        %2616 = vmatpush1.bf16.xpose.msra.mxu0 %v2613
        %2617 = vmatprep.subr.bf16.mxu0 0
        %2618 = vmatpush1.bf16.xpose.msra.mxu0 0
        %2619 = vmatprep.subr.bf16.mxu0 0
        %2620 = vmatpush1.bf16.xpose.msra.mxu0 0
        %2621 = vmatprep.subr.bf16.mxu0 0
        %2622 = vmatpush1.bf16.xpose.msra.mxu0 0
        %2623 = vmatprep.subr.bf16.mxu0 0
        %2624 = vmatpush1.bf16.xpose.msra.mxu0 0
        %2625 = vmatprep.subr.bf16.mxu0 0
        %2626 = vmatpush1.bf16.xpose.msra.mxu0 0
        %2627 = vmatprep.subr.bf16.mxu0 0
        %2628 = vmatpush1.bf16.xpose.msra.mxu0 0
        %2629 = vmatprep.subr.bf16.mxu0 0
        %2630 = vmatpush1.bf16.xpose.msra.mxu0 0
        %2631 = vmatprep.subr.bf16.mxu0 0
        %2632 = vmatpush1.bf16.xpose.msra.mxu0 0
        %2633 = vmatprep.subr.bf16.mxu0 0
        %2634 = vmatpush1.bf16.xpose.msra.mxu0 0
        %2635 = vmatprep.subr.bf16.mxu0 0
        %2636 = vmatpush1.bf16.xpose.msra.mxu0 0
        %2637 = vmatprep.subr.bf16.mxu0 0
        %2638 = vmatpush1.bf16.xpose.msra.mxu0 0
        %2639 = vmatprep.subr.bf16.mxu0 0
        %2640 = vmatpush1.bf16.xpose.msra.mxu0 0
        %2641 = vmatprep.subr.bf16.mxu0 0
        %2642 = vmatpush1.bf16.xpose.msra.mxu0 0
        %2643 = vmatprep.subr.bf16.mxu0 0
        %2644 = vmatpush1.bf16.xpose.msra.mxu0 0
        %2645 = vmatprep.subr.bf16.mxu0 0
        %2646 = vmatpush1.bf16.xpose.msra.mxu0 0
        %2647 = vmatprep.mubr.bf16.mxu0 0
        %2648 = vmatmul.mubr.bf16.gmra.mrb[0].mxu0 %v2610
        %v2649 = vpop.f32.mrb[0].mxu0
        %v2650 = vadd.f32 0.0, %v2649
        %v2651 = vpop.f32.mrb[0].mxu0
        %v2652 = vpop.f32.mrb[0].mxu0
        %v2653 = vadd.f32 0.0, %v2652
        %v2654 = vpop.f32.mrb[0].mxu0
        %2655 = vdwg.mxu0
        %v2656 = vsel %vm1447, %v2650, -inf
        %2657 = vmax.xlane.f32.xlu0 %v2656
        %v2658 = vpop.xlane.xlu0 %2657
        %v2659 = vsel %vm1447, %v2653, -inf
        %2660 = vmax.xlane.f32.xlu0 %v2659
        %v2661 = vpop.xlane.xlu0 %2660
        %v2662 = vsub.f32 %v2650, %v2658
        %v2663 = vsub.f32 %v2653, %v2661
        %v2664 = vmul.f32 %v2662, 1.442695
        %v2665 = vpow.pop %v2664
        %v2666 = vmul.f32 %v2663, 1.442695
        %v2667 = vpow.pop %v2666
        %v2668 = vsel %vm1447, %v2665, 0.0
        %2669 = vadd.xlane.f32.xlu0 %v2668
        %v2670 = vpop.xlane.xlu0 %2669
        %v2671 = vsel %vm1447, %v2667, 0.0
        %2672 = vadd.xlane.f32.xlu0 %v2671
        %v2673 = vpop.xlane.xlu0 %2672
        %v2674 = vrcp.pop %v2670
        %v2675 = vrcp.pop %v2673
        %v2676 = vmul.f32 %v2665, %v2674
        %v2677 = vmul.f32 %v2667, %v2675
        %v2678 = vpack.c.bf16 %v2677, %v2676
        %2679 = vrot.lane.b32.xlu0 %v2483, 56
        %v2680 = vpop.permute.xlu0 %2679
        %v2683 = vsel %vm1447, %v2678, 0
        %2685 = vmatprep.subr.bf16.mxu0 0
        %2686 = vmatpush1.bf16.msra.mxu0 %v2680
        %2687 = vmatprep.subr.bf16.mxu0 0
        %2688 = vmatpush1.bf16.msra.mxu0 0
        %2689 = vmatprep.subr.bf16.mxu0 0
        %2690 = vmatpush1.bf16.msra.mxu0 0
        %2691 = vmatprep.subr.bf16.mxu0 0
        %2692 = vmatpush1.bf16.msra.mxu0 0
        %2693 = vmatprep.subr.bf16.mxu0 0
        %2694 = vmatpush1.bf16.msra.mxu0 0
        %2695 = vmatprep.subr.bf16.mxu0 0
        %2696 = vmatpush1.bf16.msra.mxu0 0
        %2697 = vmatprep.subr.bf16.mxu0 0
        %2698 = vmatpush1.bf16.msra.mxu0 0
        %2699 = vmatprep.subr.bf16.mxu0 0
        %2700 = vmatpush1.bf16.msra.mxu0 0
        %2701 = vmatprep.subr.bf16.mxu0 0
        %2702 = vmatpush1.bf16.msra.mxu0 0
        %2703 = vmatprep.subr.bf16.mxu0 0
        %2704 = vmatpush1.bf16.msra.mxu0 0
        %2705 = vmatprep.subr.bf16.mxu0 0
        %2706 = vmatpush1.bf16.msra.mxu0 0
        %2707 = vmatprep.subr.bf16.mxu0 0
        %2708 = vmatpush1.bf16.msra.mxu0 0
        %2709 = vmatprep.subr.bf16.mxu0 0
        %2710 = vmatpush1.bf16.msra.mxu0 0
        %2711 = vmatprep.subr.bf16.mxu0 0
        %2712 = vmatpush1.bf16.msra.mxu0 0
        %2713 = vmatprep.subr.bf16.mxu0 0
        %2714 = vmatpush1.bf16.msra.mxu0 0
        %2715 = vmatprep.subr.bf16.mxu0 0
        %2716 = vmatpush1.bf16.msra.mxu0 0
        %2717 = vmatprep.mubr.bf16.mxu0 0
        %2718 = vmatmul.mubr.bf16.gmra.mrb[0].mxu0 %v2683
        %v2719 = vpop.f32.mrb[0].mxu0
        %v2720 = vadd.f32 0.0, %v2719
        %v2721 = vpop.f32.mrb[0].mxu0
        %v2722 = vpop.f32.mrb[0].mxu0
        %v2723 = vadd.f32 0.0, %v2722
        %v2724 = vpop.f32.mrb[0].mxu0
        %2725 = vdwg.mxu0
        %2726 = vrot.lane.b32.xlu0 %v2482, 112
        %v2727 = vpop.permute.xlu0 %2726
        %2728 = vrot.lane.b32.xlu0 %v2483, 80
        %v2729 = vpop.permute.xlu0 %2728
        %v2731 = vsel %vm1579, %v2727, 0
        %v2734 = vsel %vm1579, %v2729, 0
        %2736 = vmatprep.subr.bf16.mxu0 0
        %2737 = vmatpush1.bf16.xpose.msra.mxu0 %v2734
        %2738 = vmatprep.subr.bf16.mxu0 0
        %2739 = vmatpush1.bf16.xpose.msra.mxu0 0
        %2740 = vmatprep.subr.bf16.mxu0 0
        %2741 = vmatpush1.bf16.xpose.msra.mxu0 0
        %2742 = vmatprep.subr.bf16.mxu0 0
        %2743 = vmatpush1.bf16.xpose.msra.mxu0 0
        %2744 = vmatprep.subr.bf16.mxu0 0
        %2745 = vmatpush1.bf16.xpose.msra.mxu0 0
        %2746 = vmatprep.subr.bf16.mxu0 0
        %2747 = vmatpush1.bf16.xpose.msra.mxu0 0
        %2748 = vmatprep.subr.bf16.mxu0 0
        %2749 = vmatpush1.bf16.xpose.msra.mxu0 0
        %2750 = vmatprep.subr.bf16.mxu0 0
        %2751 = vmatpush1.bf16.xpose.msra.mxu0 0
        %2752 = vmatprep.subr.bf16.mxu0 0
        %2753 = vmatpush1.bf16.xpose.msra.mxu0 0
        %2754 = vmatprep.subr.bf16.mxu0 0
        %2755 = vmatpush1.bf16.xpose.msra.mxu0 0
        %2756 = vmatprep.subr.bf16.mxu0 0
        %2757 = vmatpush1.bf16.xpose.msra.mxu0 0
        %2758 = vmatprep.subr.bf16.mxu0 0
        %2759 = vmatpush1.bf16.xpose.msra.mxu0 0
        %2760 = vmatprep.subr.bf16.mxu0 0
        %2761 = vmatpush1.bf16.xpose.msra.mxu0 0
        %2762 = vmatprep.subr.bf16.mxu0 0
        %2763 = vmatpush1.bf16.xpose.msra.mxu0 0
        %2764 = vmatprep.subr.bf16.mxu0 0
        %2765 = vmatpush1.bf16.xpose.msra.mxu0 0
        %2766 = vmatprep.subr.bf16.mxu0 0
        %2767 = vmatpush1.bf16.xpose.msra.mxu0 0
        %2768 = vmatprep.mubr.bf16.mxu0 0
        %2769 = vmatmul.mubr.bf16.gmra.mrb[0].mxu0 %v2731
        %v2770 = vpop.f32.mrb[0].mxu0
        %v2771 = vadd.f32 0.0, %v2770
        %v2772 = vpop.f32.mrb[0].mxu0
        %v2773 = vpop.f32.mrb[0].mxu0
        %v2774 = vadd.f32 0.0, %v2773
        %v2775 = vpop.f32.mrb[0].mxu0
        %2776 = vdwg.mxu0
        %v2777 = vsel %vm1447, %v2771, -inf
        %2778 = vmax.xlane.f32.xlu0 %v2777
        %v2779 = vpop.xlane.xlu0 %2778
        %v2780 = vsel %vm1447, %v2774, -inf
        %2781 = vmax.xlane.f32.xlu0 %v2780
        %v2782 = vpop.xlane.xlu0 %2781
        %v2783 = vsub.f32 %v2771, %v2779
        %v2784 = vsub.f32 %v2774, %v2782
        %v2785 = vmul.f32 %v2783, 1.442695
        %v2786 = vpow.pop %v2785
        %v2787 = vmul.f32 %v2784, 1.442695
        %v2788 = vpow.pop %v2787
        %v2789 = vsel %vm1447, %v2786, 0.0
        %2790 = vadd.xlane.f32.xlu0 %v2789
        %v2791 = vpop.xlane.xlu0 %2790
        %v2792 = vsel %vm1447, %v2788, 0.0
        %2793 = vadd.xlane.f32.xlu0 %v2792
        %v2794 = vpop.xlane.xlu0 %2793
        %v2795 = vrcp.pop %v2791
        %v2796 = vrcp.pop %v2794
        %v2797 = vmul.f32 %v2786, %v2795
        %v2798 = vmul.f32 %v2788, %v2796
        %v2799 = vpack.c.bf16 %v2798, %v2797
        %2800 = vrot.lane.b32.xlu0 %v2483, 48
        %v2801 = vpop.permute.xlu0 %2800
        %v2804 = vsel %vm1447, %v2799, 0
        %2806 = vmatprep.subr.bf16.mxu0 0
        %2807 = vmatpush1.bf16.msra.mxu0 %v2801
        %2808 = vmatprep.subr.bf16.mxu0 0
        %2809 = vmatpush1.bf16.msra.mxu0 0
        %2810 = vmatprep.subr.bf16.mxu0 0
        %2811 = vmatpush1.bf16.msra.mxu0 0
        %2812 = vmatprep.subr.bf16.mxu0 0
        %2813 = vmatpush1.bf16.msra.mxu0 0
        %2814 = vmatprep.subr.bf16.mxu0 0
        %2815 = vmatpush1.bf16.msra.mxu0 0
        %2816 = vmatprep.subr.bf16.mxu0 0
        %2817 = vmatpush1.bf16.msra.mxu0 0
        %2818 = vmatprep.subr.bf16.mxu0 0
        %2819 = vmatpush1.bf16.msra.mxu0 0
        %2820 = vmatprep.subr.bf16.mxu0 0
        %2821 = vmatpush1.bf16.msra.mxu0 0
        %2822 = vmatprep.subr.bf16.mxu0 0
        %2823 = vmatpush1.bf16.msra.mxu0 0
        %2824 = vmatprep.subr.bf16.mxu0 0
        %2825 = vmatpush1.bf16.msra.mxu0 0
        %2826 = vmatprep.subr.bf16.mxu0 0
        %2827 = vmatpush1.bf16.msra.mxu0 0
        %2828 = vmatprep.subr.bf16.mxu0 0
        %2829 = vmatpush1.bf16.msra.mxu0 0
        %2830 = vmatprep.subr.bf16.mxu0 0
        %2831 = vmatpush1.bf16.msra.mxu0 0
        %2832 = vmatprep.subr.bf16.mxu0 0
        %2833 = vmatpush1.bf16.msra.mxu0 0
        %2834 = vmatprep.subr.bf16.mxu0 0
        %2835 = vmatpush1.bf16.msra.mxu0 0
        %2836 = vmatprep.subr.bf16.mxu0 0
        %2837 = vmatpush1.bf16.msra.mxu0 0
        %2838 = vmatprep.mubr.bf16.mxu0 0
        %2839 = vmatmul.mubr.bf16.gmra.mrb[0].mxu0 %v2804
        %v2840 = vpop.f32.mrb[0].mxu0
        %v2841 = vadd.f32 0.0, %v2840
        %v2842 = vpop.f32.mrb[0].mxu0
        %v2843 = vpop.f32.mrb[0].mxu0
        %v2844 = vadd.f32 0.0, %v2843
        %v2845 = vpop.f32.mrb[0].mxu0
        %2846 = vdwg.mxu0
        %2847 = vrot.lane.b32.xlu0 %v2482, 104
        %v2848 = vpop.permute.xlu0 %2847
        %2849 = vrot.lane.b32.xlu0 %v2483, 72
        %v2850 = vpop.permute.xlu0 %2849
        %v2852 = vsel %vm1579, %v2848, 0
        %v2855 = vsel %vm1579, %v2850, 0
        %2857 = vmatprep.subr.bf16.mxu0 0
        %2858 = vmatpush1.bf16.xpose.msra.mxu0 %v2855
        %2859 = vmatprep.subr.bf16.mxu0 0
        %2860 = vmatpush1.bf16.xpose.msra.mxu0 0
        %2861 = vmatprep.subr.bf16.mxu0 0
        %2862 = vmatpush1.bf16.xpose.msra.mxu0 0
        %2863 = vmatprep.subr.bf16.mxu0 0
        %2864 = vmatpush1.bf16.xpose.msra.mxu0 0
        %2865 = vmatprep.subr.bf16.mxu0 0
        %2866 = vmatpush1.bf16.xpose.msra.mxu0 0
        %2867 = vmatprep.subr.bf16.mxu0 0
        %2868 = vmatpush1.bf16.xpose.msra.mxu0 0
        %2869 = vmatprep.subr.bf16.mxu0 0
        %2870 = vmatpush1.bf16.xpose.msra.mxu0 0
        %2871 = vmatprep.subr.bf16.mxu0 0
        %2872 = vmatpush1.bf16.xpose.msra.mxu0 0
        %2873 = vmatprep.subr.bf16.mxu0 0
        %2874 = vmatpush1.bf16.xpose.msra.mxu0 0
        %2875 = vmatprep.subr.bf16.mxu0 0
        %2876 = vmatpush1.bf16.xpose.msra.mxu0 0
        %2877 = vmatprep.subr.bf16.mxu0 0
        %2878 = vmatpush1.bf16.xpose.msra.mxu0 0
        %2879 = vmatprep.subr.bf16.mxu0 0
        %2880 = vmatpush1.bf16.xpose.msra.mxu0 0
        %2881 = vmatprep.subr.bf16.mxu0 0
        %2882 = vmatpush1.bf16.xpose.msra.mxu0 0
        %2883 = vmatprep.subr.bf16.mxu0 0
        %2884 = vmatpush1.bf16.xpose.msra.mxu0 0
        %2885 = vmatprep.subr.bf16.mxu0 0
        %2886 = vmatpush1.bf16.xpose.msra.mxu0 0
        %2887 = vmatprep.subr.bf16.mxu0 0
        %2888 = vmatpush1.bf16.xpose.msra.mxu0 0
        %2889 = vmatprep.mubr.bf16.mxu0 0
        %2890 = vmatmul.mubr.bf16.gmra.mrb[0].mxu0 %v2852
        %v2891 = vpop.f32.mrb[0].mxu0
        %v2892 = vadd.f32 0.0, %v2891
        %v2893 = vpop.f32.mrb[0].mxu0
        %v2894 = vpop.f32.mrb[0].mxu0
        %v2895 = vadd.f32 0.0, %v2894
        %v2896 = vpop.f32.mrb[0].mxu0
        %2897 = vdwg.mxu0
        %v2898 = vsel %vm1447, %v2892, -inf
        %2899 = vmax.xlane.f32.xlu0 %v2898
        %v2900 = vpop.xlane.xlu0 %2899
        %v2901 = vsel %vm1447, %v2895, -inf
        %2902 = vmax.xlane.f32.xlu0 %v2901
        %v2903 = vpop.xlane.xlu0 %2902
        %v2904 = vsub.f32 %v2892, %v2900
        %v2905 = vsub.f32 %v2895, %v2903
        %v2906 = vmul.f32 %v2904, 1.442695
        %v2907 = vpow.pop %v2906
        %v2908 = vmul.f32 %v2905, 1.442695
        %v2909 = vpow.pop %v2908
        %v2910 = vsel %vm1447, %v2907, 0.0
        %2911 = vadd.xlane.f32.xlu0 %v2910
        %v2912 = vpop.xlane.xlu0 %2911
        %v2913 = vsel %vm1447, %v2909, 0.0
        %2914 = vadd.xlane.f32.xlu0 %v2913
        %v2915 = vpop.xlane.xlu0 %2914
        %v2916 = vrcp.pop %v2912
        %v2917 = vrcp.pop %v2915
        %v2918 = vmul.f32 %v2907, %v2916
        %v2919 = vmul.f32 %v2909, %v2917
        %v2920 = vpack.c.bf16 %v2919, %v2918
        %2921 = vrot.lane.b32.xlu0 %v2483, 40
        %v2922 = vpop.permute.xlu0 %2921
        %v2925 = vsel %vm1447, %v2920, 0
        %2927 = vmatprep.subr.bf16.mxu0 0
        %2928 = vmatpush1.bf16.msra.mxu0 %v2922
        %2929 = vmatprep.subr.bf16.mxu0 0
        %2930 = vmatpush1.bf16.msra.mxu0 0
        %2931 = vmatprep.subr.bf16.mxu0 0
        %2932 = vmatpush1.bf16.msra.mxu0 0
        %2933 = vmatprep.subr.bf16.mxu0 0
        %2934 = vmatpush1.bf16.msra.mxu0 0
        %2935 = vmatprep.subr.bf16.mxu0 0
        %2936 = vmatpush1.bf16.msra.mxu0 0
        %2937 = vmatprep.subr.bf16.mxu0 0
        %2938 = vmatpush1.bf16.msra.mxu0 0
        %2939 = vmatprep.subr.bf16.mxu0 0
        %2940 = vmatpush1.bf16.msra.mxu0 0
        %2941 = vmatprep.subr.bf16.mxu0 0
        %2942 = vmatpush1.bf16.msra.mxu0 0
        %2943 = vmatprep.subr.bf16.mxu0 0
        %2944 = vmatpush1.bf16.msra.mxu0 0
        %2945 = vmatprep.subr.bf16.mxu0 0
        %2946 = vmatpush1.bf16.msra.mxu0 0
        %2947 = vmatprep.subr.bf16.mxu0 0
        %2948 = vmatpush1.bf16.msra.mxu0 0
        %2949 = vmatprep.subr.bf16.mxu0 0
        %2950 = vmatpush1.bf16.msra.mxu0 0
        %2951 = vmatprep.subr.bf16.mxu0 0
        %2952 = vmatpush1.bf16.msra.mxu0 0
        %2953 = vmatprep.subr.bf16.mxu0 0
        %2954 = vmatpush1.bf16.msra.mxu0 0
        %2955 = vmatprep.subr.bf16.mxu0 0
        %2956 = vmatpush1.bf16.msra.mxu0 0
        %2957 = vmatprep.subr.bf16.mxu0 0
        %2958 = vmatpush1.bf16.msra.mxu0 0
        %2959 = vmatprep.mubr.bf16.mxu0 0
        %2960 = vmatmul.mubr.bf16.gmra.mrb[0].mxu0 %v2925
        %v2961 = vpop.f32.mrb[0].mxu0
        %v2962 = vadd.f32 0.0, %v2961
        %v2963 = vpop.f32.mrb[0].mxu0
        %v2964 = vpop.f32.mrb[0].mxu0
        %v2965 = vadd.f32 0.0, %v2964
        %v2966 = vpop.f32.mrb[0].mxu0
        %2967 = vdwg.mxu0
        %2970 = vrot.lane.b32.xlu0 %v2720, 8
        %v2971 = vpop.permute.xlu0 %2970
        %2972 = vrot.lane.b32.xlu0 %v2723, 8
        %v2973 = vpop.permute.xlu0 %2972
        %2978 = vrot.lane.b32.xlu0 %v2841, 16
        %v2979 = vpop.permute.xlu0 %2978
        %2980 = vrot.lane.b32.xlu0 %v2844, 16
        %v2981 = vpop.permute.xlu0 %2980
        %2986 = vrot.lane.b32.xlu0 %v2962, 24
        %v2987 = vpop.permute.xlu0 %2986
        %2988 = vrot.lane.b32.xlu0 %v2965, 24
        %v2989 = vpop.permute.xlu0 %2988
        %v2992 = vsel %vm1579, %v2598, %v2971
        %v2993 = vsel %vm1579, %v2601, %v2973
        %v2994 = vsel %vm1447, %v2992, %v2979
        %v2995 = vsel %vm1447, %v2993, %v2981
        %v2996 = vsel %vm2089, %v2994, %v2987
        %v2997 = vsel %vm2089, %v2995, %v2989
        %v2998 = vpack.c.bf16 %v2997, %v2996
        %v3000 = vlaneseq
        %v3001 = vshrl.u32 %v3000, 7
        %v3002 = vsub.s32 0, %v3001
        %v3003 = vrot.slane %v2479, %v3002
        %v3009 = vunpack.c.l.b16 %v2474
        %v3010 = vunpack.c.l.b16 %v2475
        %v3011 = vunpack.c.l.b16 %v2476
        %v3012 = vunpack.c.l.b16 %v2477
        %v3013 = vpack.c.b16 %v3010, %v3009
        %v3014 = vpack.c.b16 %v3012, %v3011
        %v3018 = vsel %vm1522, %v2998, 0
        %3020 = vmatprep.subr.bf16.mxu0 0
        %3021 = vmatpush1.bf16.msra.mxu0 %v3013
        %3022 = vmatprep.subr.bf16.mxu0 0
        %3023 = vmatpush1.bf16.msra.mxu0 %v3014
        %3024 = vmatprep.subr.bf16.mxu0 0
        %3025 = vmatpush1.bf16.msra.mxu0 0
        %3026 = vmatprep.subr.bf16.mxu0 0
        %3027 = vmatpush1.bf16.msra.mxu0 0
        %3028 = vmatprep.subr.bf16.mxu0 0
        %3029 = vmatpush1.bf16.msra.mxu0 0
        %3030 = vmatprep.subr.bf16.mxu0 0
        %3031 = vmatpush1.bf16.msra.mxu0 0
        %3032 = vmatprep.subr.bf16.mxu0 0
        %3033 = vmatpush1.bf16.msra.mxu0 0
        %3034 = vmatprep.subr.bf16.mxu0 0
        %3035 = vmatpush1.bf16.msra.mxu0 0
        %3036 = vmatprep.subr.bf16.mxu0 0
        %3037 = vmatpush1.bf16.msra.mxu0 0
        %3038 = vmatprep.subr.bf16.mxu0 0
        %3039 = vmatpush1.bf16.msra.mxu0 0
        %3040 = vmatprep.subr.bf16.mxu0 0
        %3041 = vmatpush1.bf16.msra.mxu0 0
        %3042 = vmatprep.subr.bf16.mxu0 0
        %3043 = vmatpush1.bf16.msra.mxu0 0
        %3044 = vmatprep.subr.bf16.mxu0 0
        %3045 = vmatpush1.bf16.msra.mxu0 0
        %3046 = vmatprep.subr.bf16.mxu0 0
        %3047 = vmatpush1.bf16.msra.mxu0 0
        %3048 = vmatprep.subr.bf16.mxu0 0
        %3049 = vmatpush1.bf16.msra.mxu0 0
        %3050 = vmatprep.subr.bf16.mxu0 0
        %3051 = vmatpush1.bf16.msra.mxu0 0
        %3052 = vmatprep.mubr.bf16.mxu0 0
        %3053 = vmatmul.mubr.bf16.gmra.mrb[0].mxu0 %v3018
        %v3054 = vpop.f32.mrb[0].mxu0
        %v3055 = vadd.f32 %v3003, %v3054
        %v3056 = vpop.f32.mrb[0].mxu0
        %v3057 = vpop.f32.mrb[0].mxu0
        %v3058 = vadd.f32 %v3003, %v3057
        %v3059 = vpop.f32.mrb[0].mxu0
        %3060 = vdwg.mxu0
        %v3061 = vadd.f32 %v2401, %v3055
        %v3062 = vadd.f32 %v2402, %v3058
        %s3063 = scalar_lea.vmem %s21, 1
        %v3064 = vld [vmem:[%s3063] sm:$0x1]
        %s3065 = scalar_lea.vmem %s23, 1
        %v3066 = vld [vmem:[%s3065] sm:$0x1]
        %v3067 = vsel %vm1522, %v3061, 0.0
        %3068 = vadd.xlane.f32.xlu0 %v3067
        %v3069 = vpop.xlane.xlu0 %3068
        %v3070 = vsel %vm1522, %v3062, 0.0
        %3071 = vadd.xlane.f32.xlu0 %v3070
        %v3072 = vpop.xlane.xlu0 %3071
        %v3073 = vmul.f32 %v3069, %v2165
        %v3074 = vmul.f32 %v3072, %v2165
        %v3075 = vsub.f32 %v3061, %v3073
        %v3076 = vsub.f32 %v3062, %v3074
        %v3077 = vmul.f32 %v3075, %v3075
        %v3078 = vmul.f32 %v3076, %v3076
        %v3079 = vsel %vm1522, %v3077, 0.0
        %3080 = vadd.xlane.f32.xlu0 %v3079
        %v3081 = vpop.xlane.xlu0 %3080
        %v3082 = vsel %vm1522, %v3078, 0.0
        %3083 = vadd.xlane.f32.xlu0 %v3082
        %v3084 = vpop.xlane.xlu0 %3083
        %v3085 = vmul.f32 %v3081, %v2165
        %v3086 = vmul.f32 %v3084, %v2165
        %v3087 = vadd.f32 %v3085, 1e-06
        %v3088 = vadd.f32 %v3086, 1e-06
        %v3089 = vrsqrt.pop %v3087
        %v3090 = vrsqrt.pop %v3088
        %v3091 = vmul.f32 %v3075, %v3089
        %v3092 = vmul.f32 %v3076, %v3090
        %v3094 = vlaneseq
        %v3095 = vshrl.u32 %v3094, 7
        %v3096 = vsub.s32 0, %v3095
        %v3097 = vrot.slane %v3064, %v3096
        %v3099 = vmul.f32 %v3091, %v3097
        %v3100 = vmul.f32 %v3092, %v3097
        %v3102 = vlaneseq
        %v3103 = vshrl.u32 %v3102, 7
        %v3104 = vsub.s32 0, %v3103
        %v3105 = vrot.slane %v3066, %v3104
        %v3107 = vadd.f32 %v3099, %v3105
        %v3108 = vadd.f32 %v3100, %v3105
        %s3109 = scalar_lea.vmem %s25, 16
        %v3110 = vld [vmem:[%s3109] sm:$0xf]
        %v3111 = vld [vmem:[%s3109 + $0x4] sm:$0xf]
        %v3112 = vld [vmem:[%s3109 + $0x8] sm:$0xf]
        %v3113 = vld [vmem:[%s3109 + $0xc] sm:$0xf]
        %s3114 = scalar_lea.vmem %s27, 1
        %v3115 = vld [vmem:[%s3114] sm:$0x1]
        %v3116 = vpack.c.bf16 %v3108, %v3107
        %v3118 = vlaneseq
        %v3119 = vshrl.u32 %v3118, 7
        %v3120 = vsub.s32 0, %v3119
        %v3121 = vrot.slane %v3115, %v3120
        %v3127 = vunpack.c.l.b16 %v3110
        %v3128 = vunpack.c.l.b16 %v3111
        %v3129 = vunpack.c.l.b16 %v3112
        %v3130 = vunpack.c.l.b16 %v3113
        %v3131 = vpack.c.b16 %v3128, %v3127
        %v3132 = vpack.c.b16 %v3130, %v3129
        %v3136 = vsel %vm1522, %v3116, 0
        %3138 = vmatprep.subr.bf16.mxu0 0
        %3139 = vmatpush1.bf16.msra.mxu0 %v3131
        %3140 = vmatprep.subr.bf16.mxu0 0
        %3141 = vmatpush1.bf16.msra.mxu0 %v3132
        %3142 = vmatprep.subr.bf16.mxu0 0
        %3143 = vmatpush1.bf16.msra.mxu0 0
        %3144 = vmatprep.subr.bf16.mxu0 0
        %3145 = vmatpush1.bf16.msra.mxu0 0
        %3146 = vmatprep.subr.bf16.mxu0 0
        %3147 = vmatpush1.bf16.msra.mxu0 0
        %3148 = vmatprep.subr.bf16.mxu0 0
        %3149 = vmatpush1.bf16.msra.mxu0 0
        %3150 = vmatprep.subr.bf16.mxu0 0
        %3151 = vmatpush1.bf16.msra.mxu0 0
        %3152 = vmatprep.subr.bf16.mxu0 0
        %3153 = vmatpush1.bf16.msra.mxu0 0
        %3154 = vmatprep.subr.bf16.mxu0 0
        %3155 = vmatpush1.bf16.msra.mxu0 0
        %3156 = vmatprep.subr.bf16.mxu0 0
        %3157 = vmatpush1.bf16.msra.mxu0 0
        %3158 = vmatprep.subr.bf16.mxu0 0
        %3159 = vmatpush1.bf16.msra.mxu0 0
        %3160 = vmatprep.subr.bf16.mxu0 0
        %3161 = vmatpush1.bf16.msra.mxu0 0
        %3162 = vmatprep.subr.bf16.mxu0 0
        %3163 = vmatpush1.bf16.msra.mxu0 0
        %3164 = vmatprep.subr.bf16.mxu0 0
        %3165 = vmatpush1.bf16.msra.mxu0 0
        %3166 = vmatprep.subr.bf16.mxu0 0
        %3167 = vmatpush1.bf16.msra.mxu0 0
        %3168 = vmatprep.subr.bf16.mxu0 0
        %3169 = vmatpush1.bf16.msra.mxu0 0
        %3170 = vmatprep.mubr.bf16.mxu0 0
        %3171 = vmatmul.mubr.bf16.gmra.mrb[0].mxu0 %v3136
        %v3172 = vpop.f32.mrb[0].mxu0
        %v3173 = vadd.f32 %v3121, %v3172
        %v3174 = vpop.f32.mrb[0].mxu0
        %v3175 = vpop.f32.mrb[0].mxu0
        %v3176 = vadd.f32 %v3121, %v3175
        %v3177 = vpop.f32.mrb[0].mxu0
        %3178 = vdwg.mxu0
        %v3179 = vmax.f32 %v3173, 0.0
        %v3180 = vmax.f32 %v3176, 0.0
        %s3181 = scalar_lea.vmem %s29, 32
        %v3182 = vld [vmem:[%s3181] sm:$0xf]
        %v3183 = vld [vmem:[%s3181 + $0x4] sm:$0xf]
        %v3184 = vld [vmem:[%s3181 + $0x8] sm:$0xf]
        %v3185 = vld [vmem:[%s3181 + $0xc] sm:$0xf]
        %v3186 = vld [vmem:[%s3181 + $0x10] sm:$0xf]
        %v3187 = vld [vmem:[%s3181 + $0x14] sm:$0xf]
        %v3188 = vld [vmem:[%s3181 + $0x18] sm:$0xf]
        %v3189 = vld [vmem:[%s3181 + $0x1c] sm:$0xf]
        %s3190 = scalar_lea.vmem %s31, 1
        %v3191 = vld [vmem:[%s3190] sm:$0x1]
        %v3192 = vpack.c.bf16 %v3180, %v3179
        %v3194 = vlaneseq
        %v3195 = vshrl.u32 %v3194, 7
        %v3196 = vsub.s32 0, %v3195
        %v3197 = vrot.slane %v3191, %v3196
        %v3207 = vunpack.c.l.b16 %v3182
        %v3208 = vunpack.c.l.b16 %v3183
        %v3209 = vunpack.c.l.b16 %v3184
        %v3210 = vunpack.c.l.b16 %v3185
        %v3211 = vunpack.c.l.b16 %v3186
        %v3212 = vunpack.c.l.b16 %v3187
        %v3213 = vunpack.c.l.b16 %v3188
        %v3214 = vunpack.c.l.b16 %v3189
        %v3215 = vpack.c.b16 %v3208, %v3207
        %v3216 = vpack.c.b16 %v3210, %v3209
        %v3217 = vpack.c.b16 %v3212, %v3211
        %v3218 = vpack.c.b16 %v3214, %v3213
        %v3224 = vsel %vm2312, %v3192, 0
        %3226 = vmatprep.subr.bf16.mxu0 0
        %3227 = vmatpush1.bf16.msra.mxu0 %v3215
        %3228 = vmatprep.subr.bf16.mxu0 0
        %3229 = vmatpush1.bf16.msra.mxu0 %v3216
        %3230 = vmatprep.subr.bf16.mxu0 0
        %3231 = vmatpush1.bf16.msra.mxu0 %v3217
        %3232 = vmatprep.subr.bf16.mxu0 0
        %3233 = vmatpush1.bf16.msra.mxu0 %v3218
        %3234 = vmatprep.subr.bf16.mxu0 0
        %3235 = vmatpush1.bf16.msra.mxu0 0
        %3236 = vmatprep.subr.bf16.mxu0 0
        %3237 = vmatpush1.bf16.msra.mxu0 0
        %3238 = vmatprep.subr.bf16.mxu0 0
        %3239 = vmatpush1.bf16.msra.mxu0 0
        %3240 = vmatprep.subr.bf16.mxu0 0
        %3241 = vmatpush1.bf16.msra.mxu0 0
        %3242 = vmatprep.subr.bf16.mxu0 0
        %3243 = vmatpush1.bf16.msra.mxu0 0
        %3244 = vmatprep.subr.bf16.mxu0 0
        %3245 = vmatpush1.bf16.msra.mxu0 0
        %3246 = vmatprep.subr.bf16.mxu0 0
        %3247 = vmatpush1.bf16.msra.mxu0 0
        %3248 = vmatprep.subr.bf16.mxu0 0
        %3249 = vmatpush1.bf16.msra.mxu0 0
        %3250 = vmatprep.subr.bf16.mxu0 0
        %3251 = vmatpush1.bf16.msra.mxu0 0
        %3252 = vmatprep.subr.bf16.mxu0 0
        %3253 = vmatpush1.bf16.msra.mxu0 0
        %3254 = vmatprep.subr.bf16.mxu0 0
        %3255 = vmatpush1.bf16.msra.mxu0 0
        %3256 = vmatprep.subr.bf16.mxu0 0
        %3257 = vmatpush1.bf16.msra.mxu0 0
        %3258 = vmatprep.mubr.bf16.mxu0 0
        %3259 = vmatmul.mubr.bf16.gmra.mrb[0].mxu0 %v3224
        %v3260 = vpop.f32.mrb[0].mxu0
        %v3261 = vadd.f32 %v3197, %v3260
        %v3262 = vpop.f32.mrb[0].mxu0
        %v3263 = vpop.f32.mrb[0].mxu0
        %v3264 = vadd.f32 %v3197, %v3263
        %v3265 = vpop.f32.mrb[0].mxu0
        %3266 = vdwg.mxu0
        %v3267 = vadd.f32 %v3107, %v3261
        %v3268 = vadd.f32 %v3108, %v3264
        %s3269 = scalar_lea.vmem %s33, 1
        %v3270 = vld [vmem:[%s3269] sm:$0x1]
        %s3271 = scalar_lea.vmem %s35, 1
        %v3272 = vld [vmem:[%s3271] sm:$0x1]
        %v3273 = vsel %vm1522, %v3267, 0.0
        %3274 = vadd.xlane.f32.xlu0 %v3273
        %v3275 = vpop.xlane.xlu0 %3274
        %v3276 = vsel %vm1522, %v3268, 0.0
        %3277 = vadd.xlane.f32.xlu0 %v3276
        %v3278 = vpop.xlane.xlu0 %3277
        %v3279 = vmul.f32 %v3275, %v2165
        %v3280 = vmul.f32 %v3278, %v2165
        %v3281 = vsub.f32 %v3267, %v3279
        %v3282 = vsub.f32 %v3268, %v3280
        %v3283 = vmul.f32 %v3281, %v3281
        %v3284 = vmul.f32 %v3282, %v3282
        %v3285 = vsel %vm1522, %v3283, 0.0
        %3286 = vadd.xlane.f32.xlu0 %v3285
        %v3287 = vpop.xlane.xlu0 %3286
        %v3288 = vsel %vm1522, %v3284, 0.0
        %3289 = vadd.xlane.f32.xlu0 %v3288
        %v3290 = vpop.xlane.xlu0 %3289
        %v3291 = vmul.f32 %v3287, %v2165
        %v3292 = vmul.f32 %v3290, %v2165
        %v3293 = vadd.f32 %v3291, 1e-06
        %v3294 = vadd.f32 %v3292, 1e-06
        %v3295 = vrsqrt.pop %v3293
        %v3296 = vrsqrt.pop %v3294
        %v3297 = vmul.f32 %v3281, %v3295
        %v3298 = vmul.f32 %v3282, %v3296
        %v3300 = vlaneseq
        %v3301 = vshrl.u32 %v3300, 7
        %v3302 = vsub.s32 0, %v3301
        %v3303 = vrot.slane %v3270, %v3302
        %v3305 = vmul.f32 %v3297, %v3303
        %v3306 = vmul.f32 %v3298, %v3303
        %v3308 = vlaneseq
        %v3309 = vshrl.u32 %v3308, 7
        %v3310 = vsub.s32 0, %v3309
        %v3311 = vrot.slane %v3272, %v3310
        %v3313 = vadd.f32 %v3305, %v3311
        %v3314 = vadd.f32 %v3306, %v3311
        %v3315 = vld [vmem:[%s37] sm:$0xf]
        %v3316 = vld [vmem:[%s37 + $0x4] sm:$0xf]
        %v3317 = vld [vmem:[%s37 + $0x8] sm:$0xf]
        %v3318 = vld [vmem:[%s37 + $0xc] sm:$0xf]
        %v3319 = vld [vmem:[#allocation5] sm:$0x1]
        %v3320 = vpack.c.bf16 %v1412, %v1412
        %v3322 = vlaneseq
        %v3323 = vshrl.u32 %v3322, 7
        %v3324 = vsub.s32 0, %v3323
        %v3325 = vrot.slane %v3319, %v3324
        %v3331 = vunpack.c.l.b16 %v3315
        %v3332 = vunpack.c.l.b16 %v3316
        %v3333 = vunpack.c.l.b16 %v3317
        %v3334 = vunpack.c.l.b16 %v3318
        %v3335 = vpack.c.b16 %v3332, %v3331
        %v3336 = vpack.c.b16 %v3334, %v3333
        %v3340 = vsel %vm1522, %v3320, 0
        %3342 = vmatprep.subr.bf16.mxu0 0
        %3343 = vmatpush1.bf16.msra.mxu0 %v3335
        %3344 = vmatprep.subr.bf16.mxu0 0
        %3345 = vmatpush1.bf16.msra.mxu0 %v3336
        %3346 = vmatprep.subr.bf16.mxu0 0
        %3347 = vmatpush1.bf16.msra.mxu0 0
        %3348 = vmatprep.subr.bf16.mxu0 0
        %3349 = vmatpush1.bf16.msra.mxu0 0
        %3350 = vmatprep.subr.bf16.mxu0 0
        %3351 = vmatpush1.bf16.msra.mxu0 0
        %3352 = vmatprep.subr.bf16.mxu0 0
        %3353 = vmatpush1.bf16.msra.mxu0 0
        %3354 = vmatprep.subr.bf16.mxu0 0
        %3355 = vmatpush1.bf16.msra.mxu0 0
        %3356 = vmatprep.subr.bf16.mxu0 0
        %3357 = vmatpush1.bf16.msra.mxu0 0
        %3358 = vmatprep.subr.bf16.mxu0 0
        %3359 = vmatpush1.bf16.msra.mxu0 0
        %3360 = vmatprep.subr.bf16.mxu0 0
        %3361 = vmatpush1.bf16.msra.mxu0 0
        %3362 = vmatprep.subr.bf16.mxu0 0
        %3363 = vmatpush1.bf16.msra.mxu0 0
        %3364 = vmatprep.subr.bf16.mxu0 0
        %3365 = vmatpush1.bf16.msra.mxu0 0
        %3366 = vmatprep.subr.bf16.mxu0 0
        %3367 = vmatpush1.bf16.msra.mxu0 0
        %3368 = vmatprep.subr.bf16.mxu0 0
        %3369 = vmatpush1.bf16.msra.mxu0 0
        %3370 = vmatprep.subr.bf16.mxu0 0
        %3371 = vmatpush1.bf16.msra.mxu0 0
        %3372 = vmatprep.subr.bf16.mxu0 0
        %3373 = vmatpush1.bf16.msra.mxu0 0
        %3374 = vmatprep.mubr.bf16.mxu0 0
        %3375 = vmatmul.mubr.bf16.gmra.mrb[0].mxu0 %v3340
        %v3376 = vpop.f32.mrb[0].mxu0
        %v3377 = vadd.f32 %v3325, %v3376
        %v3378 = vpop.f32.mrb[0].mxu0
        %v3379 = vpop.f32.mrb[0].mxu0
        %v3380 = vpop.f32.mrb[0].mxu0
        %3381 = vdwg.mxu0
        %v3382 = vld [vmem:[%s41] sm:$0xf]
        %v3383 = vld [vmem:[%s41 + $0x4] sm:$0xf]
        %v3384 = vld [vmem:[%s41 + $0x8] sm:$0xf]
        %v3385 = vld [vmem:[%s41 + $0xc] sm:$0xf]
        %v3386 = vld [vmem:[#allocation7] sm:$0x1]
        %v3387 = vmul.f32 %v3377, 0.35355338
        %v3388 = vpack.c.bf16 %v3387, %v3387
        %v3389 = vpack.c.bf16 %v3377, %v3377
        %3391 = vrot.lane.b32.xlu0 %v3389, 96
        %v3392 = vpop.permute.xlu0 %3391
        %v3394 = vsel %vm1579, %v3388, 0
        %v3397 = vsel %vm1579, %v3392, 0
        %3399 = vmatprep.subr.bf16.mxu0 0
        %3400 = vmatpush1.bf16.xpose.msra.mxu0 %v3397
        %3401 = vmatprep.subr.bf16.mxu0 0
        %3402 = vmatpush1.bf16.xpose.msra.mxu0 0
        %3403 = vmatprep.subr.bf16.mxu0 0
        %3404 = vmatpush1.bf16.xpose.msra.mxu0 0
        %3405 = vmatprep.subr.bf16.mxu0 0
        %3406 = vmatpush1.bf16.xpose.msra.mxu0 0
        %3407 = vmatprep.subr.bf16.mxu0 0
        %3408 = vmatpush1.bf16.xpose.msra.mxu0 0
        %3409 = vmatprep.subr.bf16.mxu0 0
        %3410 = vmatpush1.bf16.xpose.msra.mxu0 0
        %3411 = vmatprep.subr.bf16.mxu0 0
        %3412 = vmatpush1.bf16.xpose.msra.mxu0 0
        %3413 = vmatprep.subr.bf16.mxu0 0
        %3414 = vmatpush1.bf16.xpose.msra.mxu0 0
        %3415 = vmatprep.subr.bf16.mxu0 0
        %3416 = vmatpush1.bf16.xpose.msra.mxu0 0
        %3417 = vmatprep.subr.bf16.mxu0 0
        %3418 = vmatpush1.bf16.xpose.msra.mxu0 0
        %3419 = vmatprep.subr.bf16.mxu0 0
        %3420 = vmatpush1.bf16.xpose.msra.mxu0 0
        %3421 = vmatprep.subr.bf16.mxu0 0
        %3422 = vmatpush1.bf16.xpose.msra.mxu0 0
        %3423 = vmatprep.subr.bf16.mxu0 0
        %3424 = vmatpush1.bf16.xpose.msra.mxu0 0
        %3425 = vmatprep.subr.bf16.mxu0 0
        %3426 = vmatpush1.bf16.xpose.msra.mxu0 0
        %3427 = vmatprep.subr.bf16.mxu0 0
        %3428 = vmatpush1.bf16.xpose.msra.mxu0 0
        %3429 = vmatprep.subr.bf16.mxu0 0
        %3430 = vmatpush1.bf16.xpose.msra.mxu0 0
        %3431 = vmatprep.mubr.bf16.mxu0 0
        %3432 = vmatmul.mubr.bf16.gmra.mrb[0].mxu0 %v3394
        %v3433 = vpop.f32.mrb[0].mxu0
        %v3434 = vadd.f32 %v1428, %v3433
        %v3435 = vpop.f32.mrb[0].mxu0
        %v3436 = vpop.f32.mrb[0].mxu0
        %v3437 = vpop.f32.mrb[0].mxu0
        %3438 = vdwg.mxu0
        %v3439 = vsel %vm1579, %v3434, -inf
        %3440 = vmax.xlane.f32.xlu0 %v3439
        %v3441 = vpop.xlane.xlu0 %3440
        %v3442 = vsub.f32 %v3434, %v3441
        %v3443 = vmul.f32 %v3442, 1.442695
        %v3444 = vpow.pop %v3443
        %v3445 = vsel %vm1579, %v3444, 0.0
        %3446 = vadd.xlane.f32.xlu0 %v3445
        %v3447 = vpop.xlane.xlu0 %3446
        %v3448 = vrcp.pop %v3447
        %v3449 = vmul.f32 %v3444, %v3448
        %v3450 = vpack.c.bf16 %v3449, %v3449
        %3451 = vrot.lane.b32.xlu0 %v3389, 64
        %v3452 = vpop.permute.xlu0 %3451
        %v3454 = vsel %vm1579, %v3450, 0
        %vm3456 = vcmask 1043456
        %v3458 = vsel %vm3456, %v3452, 0
        %3460 = vmatprep.subr.bf16.mxu0 0
        %3461 = vmatpush1.bf16.msra.mxu0 %v3458
        %3462 = vmatprep.subr.bf16.mxu0 0
        %3463 = vmatpush1.bf16.msra.mxu0 0
        %3464 = vmatprep.subr.bf16.mxu0 0
        %3465 = vmatpush1.bf16.msra.mxu0 0
        %3466 = vmatprep.subr.bf16.mxu0 0
        %3467 = vmatpush1.bf16.msra.mxu0 0
        %3468 = vmatprep.subr.bf16.mxu0 0
        %3469 = vmatpush1.bf16.msra.mxu0 0
        %3470 = vmatprep.subr.bf16.mxu0 0
        %3471 = vmatpush1.bf16.msra.mxu0 0
        %3472 = vmatprep.subr.bf16.mxu0 0
        %3473 = vmatpush1.bf16.msra.mxu0 0
        %3474 = vmatprep.subr.bf16.mxu0 0
        %3475 = vmatpush1.bf16.msra.mxu0 0
        %3476 = vmatprep.subr.bf16.mxu0 0
        %3477 = vmatpush1.bf16.msra.mxu0 0
        %3478 = vmatprep.subr.bf16.mxu0 0
        %3479 = vmatpush1.bf16.msra.mxu0 0
        %3480 = vmatprep.subr.bf16.mxu0 0
        %3481 = vmatpush1.bf16.msra.mxu0 0
        %3482 = vmatprep.subr.bf16.mxu0 0
        %3483 = vmatpush1.bf16.msra.mxu0 0
        %3484 = vmatprep.subr.bf16.mxu0 0
        %3485 = vmatpush1.bf16.msra.mxu0 0
        %3486 = vmatprep.subr.bf16.mxu0 0
        %3487 = vmatpush1.bf16.msra.mxu0 0
        %3488 = vmatprep.subr.bf16.mxu0 0
        %3489 = vmatpush1.bf16.msra.mxu0 0
        %3490 = vmatprep.subr.bf16.mxu0 0
        %3491 = vmatpush1.bf16.msra.mxu0 0
        %3492 = vmatprep.mubr.bf16.mxu0 0
        %3493 = vmatmul.mubr.bf16.gmra.mrb[0].mxu0 %v3454
        %v3494 = vpop.f32.mrb[0].mxu0
        %v3495 = vadd.f32 0.0, %v3494
        %v3496 = vpop.f32.mrb[0].mxu0
        %v3497 = vpop.f32.mrb[0].mxu0
        %v3498 = vpop.f32.mrb[0].mxu0
        %3499 = vdwg.mxu0
        %3501 = vrot.lane.b32.xlu0 %v3388, 120
        %v3502 = vpop.permute.xlu0 %3501
        %3503 = vrot.lane.b32.xlu0 %v3389, 88
        %v3504 = vpop.permute.xlu0 %3503
        %v3506 = vsel %vm1579, %v3502, 0
        %v3509 = vsel %vm1579, %v3504, 0
        %3511 = vmatprep.subr.bf16.mxu0 0
        %3512 = vmatpush1.bf16.xpose.msra.mxu0 %v3509
        %3513 = vmatprep.subr.bf16.mxu0 0
        %3514 = vmatpush1.bf16.xpose.msra.mxu0 0
        %3515 = vmatprep.subr.bf16.mxu0 0
        %3516 = vmatpush1.bf16.xpose.msra.mxu0 0
        %3517 = vmatprep.subr.bf16.mxu0 0
        %3518 = vmatpush1.bf16.xpose.msra.mxu0 0
        %3519 = vmatprep.subr.bf16.mxu0 0
        %3520 = vmatpush1.bf16.xpose.msra.mxu0 0
        %3521 = vmatprep.subr.bf16.mxu0 0
        %3522 = vmatpush1.bf16.xpose.msra.mxu0 0
        %3523 = vmatprep.subr.bf16.mxu0 0
        %3524 = vmatpush1.bf16.xpose.msra.mxu0 0
        %3525 = vmatprep.subr.bf16.mxu0 0
        %3526 = vmatpush1.bf16.xpose.msra.mxu0 0
        %3527 = vmatprep.subr.bf16.mxu0 0
        %3528 = vmatpush1.bf16.xpose.msra.mxu0 0
        %3529 = vmatprep.subr.bf16.mxu0 0
        %3530 = vmatpush1.bf16.xpose.msra.mxu0 0
        %3531 = vmatprep.subr.bf16.mxu0 0
        %3532 = vmatpush1.bf16.xpose.msra.mxu0 0
        %3533 = vmatprep.subr.bf16.mxu0 0
        %3534 = vmatpush1.bf16.xpose.msra.mxu0 0
        %3535 = vmatprep.subr.bf16.mxu0 0
        %3536 = vmatpush1.bf16.xpose.msra.mxu0 0
        %3537 = vmatprep.subr.bf16.mxu0 0
        %3538 = vmatpush1.bf16.xpose.msra.mxu0 0
        %3539 = vmatprep.subr.bf16.mxu0 0
        %3540 = vmatpush1.bf16.xpose.msra.mxu0 0
        %3541 = vmatprep.subr.bf16.mxu0 0
        %3542 = vmatpush1.bf16.xpose.msra.mxu0 0
        %3543 = vmatprep.mubr.bf16.mxu0 0
        %3544 = vmatmul.mubr.bf16.gmra.mrb[0].mxu0 %v3506
        %v3545 = vpop.f32.mrb[0].mxu0
        %v3546 = vadd.f32 %v1428, %v3545
        %v3547 = vpop.f32.mrb[0].mxu0
        %v3548 = vpop.f32.mrb[0].mxu0
        %v3549 = vpop.f32.mrb[0].mxu0
        %3550 = vdwg.mxu0
        %v3551 = vsel %vm1579, %v3546, -inf
        %3552 = vmax.xlane.f32.xlu0 %v3551
        %v3553 = vpop.xlane.xlu0 %3552
        %v3554 = vsub.f32 %v3546, %v3553
        %v3555 = vmul.f32 %v3554, 1.442695
        %v3556 = vpow.pop %v3555
        %v3557 = vsel %vm1579, %v3556, 0.0
        %3558 = vadd.xlane.f32.xlu0 %v3557
        %v3559 = vpop.xlane.xlu0 %3558
        %v3560 = vrcp.pop %v3559
        %v3561 = vmul.f32 %v3556, %v3560
        %v3562 = vpack.c.bf16 %v3561, %v3561
        %3563 = vrot.lane.b32.xlu0 %v3389, 56
        %v3564 = vpop.permute.xlu0 %3563
        %v3566 = vsel %vm1579, %v3562, 0
        %v3569 = vsel %vm3456, %v3564, 0
        %3571 = vmatprep.subr.bf16.mxu0 0
        %3572 = vmatpush1.bf16.msra.mxu0 %v3569
        %3573 = vmatprep.subr.bf16.mxu0 0
        %3574 = vmatpush1.bf16.msra.mxu0 0
        %3575 = vmatprep.subr.bf16.mxu0 0
        %3576 = vmatpush1.bf16.msra.mxu0 0
        %3577 = vmatprep.subr.bf16.mxu0 0
        %3578 = vmatpush1.bf16.msra.mxu0 0
        %3579 = vmatprep.subr.bf16.mxu0 0
        %3580 = vmatpush1.bf16.msra.mxu0 0
        %3581 = vmatprep.subr.bf16.mxu0 0
        %3582 = vmatpush1.bf16.msra.mxu0 0
        %3583 = vmatprep.subr.bf16.mxu0 0
        %3584 = vmatpush1.bf16.msra.mxu0 0
        %3585 = vmatprep.subr.bf16.mxu0 0
        %3586 = vmatpush1.bf16.msra.mxu0 0
        %3587 = vmatprep.subr.bf16.mxu0 0
        %3588 = vmatpush1.bf16.msra.mxu0 0
        %3589 = vmatprep.subr.bf16.mxu0 0
        %3590 = vmatpush1.bf16.msra.mxu0 0
        %3591 = vmatprep.subr.bf16.mxu0 0
        %3592 = vmatpush1.bf16.msra.mxu0 0
        %3593 = vmatprep.subr.bf16.mxu0 0
        %3594 = vmatpush1.bf16.msra.mxu0 0
        %3595 = vmatprep.subr.bf16.mxu0 0
        %3596 = vmatpush1.bf16.msra.mxu0 0
        %3597 = vmatprep.subr.bf16.mxu0 0
        %3598 = vmatpush1.bf16.msra.mxu0 0
        %3599 = vmatprep.subr.bf16.mxu0 0
        %3600 = vmatpush1.bf16.msra.mxu0 0
        %3601 = vmatprep.subr.bf16.mxu0 0
        %3602 = vmatpush1.bf16.msra.mxu0 0
        %3603 = vmatprep.mubr.bf16.mxu0 0
        %3604 = vmatmul.mubr.bf16.gmra.mrb[0].mxu0 %v3566
        %v3605 = vpop.f32.mrb[0].mxu0
        %v3606 = vadd.f32 0.0, %v3605
        %v3607 = vpop.f32.mrb[0].mxu0
        %v3608 = vpop.f32.mrb[0].mxu0
        %v3609 = vpop.f32.mrb[0].mxu0
        %3610 = vdwg.mxu0
        %3611 = vrot.lane.b32.xlu0 %v3388, 112
        %v3612 = vpop.permute.xlu0 %3611
        %3613 = vrot.lane.b32.xlu0 %v3389, 80
        %v3614 = vpop.permute.xlu0 %3613
        %v3616 = vsel %vm1579, %v3612, 0
        %v3619 = vsel %vm1579, %v3614, 0
        %3621 = vmatprep.subr.bf16.mxu0 0
        %3622 = vmatpush1.bf16.xpose.msra.mxu0 %v3619
        %3623 = vmatprep.subr.bf16.mxu0 0
        %3624 = vmatpush1.bf16.xpose.msra.mxu0 0
        %3625 = vmatprep.subr.bf16.mxu0 0
        %3626 = vmatpush1.bf16.xpose.msra.mxu0 0
        %3627 = vmatprep.subr.bf16.mxu0 0
        %3628 = vmatpush1.bf16.xpose.msra.mxu0 0
        %3629 = vmatprep.subr.bf16.mxu0 0
        %3630 = vmatpush1.bf16.xpose.msra.mxu0 0
        %3631 = vmatprep.subr.bf16.mxu0 0
        %3632 = vmatpush1.bf16.xpose.msra.mxu0 0
        %3633 = vmatprep.subr.bf16.mxu0 0
        %3634 = vmatpush1.bf16.xpose.msra.mxu0 0
        %3635 = vmatprep.subr.bf16.mxu0 0
        %3636 = vmatpush1.bf16.xpose.msra.mxu0 0
        %3637 = vmatprep.subr.bf16.mxu0 0
        %3638 = vmatpush1.bf16.xpose.msra.mxu0 0
        %3639 = vmatprep.subr.bf16.mxu0 0
        %3640 = vmatpush1.bf16.xpose.msra.mxu0 0
        %3641 = vmatprep.subr.bf16.mxu0 0
        %3642 = vmatpush1.bf16.xpose.msra.mxu0 0
        %3643 = vmatprep.subr.bf16.mxu0 0
        %3644 = vmatpush1.bf16.xpose.msra.mxu0 0
        %3645 = vmatprep.subr.bf16.mxu0 0
        %3646 = vmatpush1.bf16.xpose.msra.mxu0 0
        %3647 = vmatprep.subr.bf16.mxu0 0
        %3648 = vmatpush1.bf16.xpose.msra.mxu0 0
        %3649 = vmatprep.subr.bf16.mxu0 0
        %3650 = vmatpush1.bf16.xpose.msra.mxu0 0
        %3651 = vmatprep.subr.bf16.mxu0 0
        %3652 = vmatpush1.bf16.xpose.msra.mxu0 0
        %3653 = vmatprep.mubr.bf16.mxu0 0
        %3654 = vmatmul.mubr.bf16.gmra.mrb[0].mxu0 %v3616
        %v3655 = vpop.f32.mrb[0].mxu0
        %v3656 = vadd.f32 %v1428, %v3655
        %v3657 = vpop.f32.mrb[0].mxu0
        %v3658 = vpop.f32.mrb[0].mxu0
        %v3659 = vpop.f32.mrb[0].mxu0
        %3660 = vdwg.mxu0
        %v3661 = vsel %vm1579, %v3656, -inf
        %3662 = vmax.xlane.f32.xlu0 %v3661
        %v3663 = vpop.xlane.xlu0 %3662
        %v3664 = vsub.f32 %v3656, %v3663
        %v3665 = vmul.f32 %v3664, 1.442695
        %v3666 = vpow.pop %v3665
        %v3667 = vsel %vm1579, %v3666, 0.0
        %3668 = vadd.xlane.f32.xlu0 %v3667
        %v3669 = vpop.xlane.xlu0 %3668
        %v3670 = vrcp.pop %v3669
        %v3671 = vmul.f32 %v3666, %v3670
        %v3672 = vpack.c.bf16 %v3671, %v3671
        %3673 = vrot.lane.b32.xlu0 %v3389, 48
        %v3674 = vpop.permute.xlu0 %3673
        %v3676 = vsel %vm1579, %v3672, 0
        %v3679 = vsel %vm3456, %v3674, 0
        %3681 = vmatprep.subr.bf16.mxu0 0
        %3682 = vmatpush1.bf16.msra.mxu0 %v3679
        %3683 = vmatprep.subr.bf16.mxu0 0
        %3684 = vmatpush1.bf16.msra.mxu0 0
        %3685 = vmatprep.subr.bf16.mxu0 0
        %3686 = vmatpush1.bf16.msra.mxu0 0
        %3687 = vmatprep.subr.bf16.mxu0 0
        %3688 = vmatpush1.bf16.msra.mxu0 0
        %3689 = vmatprep.subr.bf16.mxu0 0
        %3690 = vmatpush1.bf16.msra.mxu0 0
        %3691 = vmatprep.subr.bf16.mxu0 0
        %3692 = vmatpush1.bf16.msra.mxu0 0
        %3693 = vmatprep.subr.bf16.mxu0 0
        %3694 = vmatpush1.bf16.msra.mxu0 0
        %3695 = vmatprep.subr.bf16.mxu0 0
        %3696 = vmatpush1.bf16.msra.mxu0 0
        %3697 = vmatprep.subr.bf16.mxu0 0
        %3698 = vmatpush1.bf16.msra.mxu0 0
        %3699 = vmatprep.subr.bf16.mxu0 0
        %3700 = vmatpush1.bf16.msra.mxu0 0
        %3701 = vmatprep.subr.bf16.mxu0 0
        %3702 = vmatpush1.bf16.msra.mxu0 0
        %3703 = vmatprep.subr.bf16.mxu0 0
        %3704 = vmatpush1.bf16.msra.mxu0 0
        %3705 = vmatprep.subr.bf16.mxu0 0
        %3706 = vmatpush1.bf16.msra.mxu0 0
        %3707 = vmatprep.subr.bf16.mxu0 0
        %3708 = vmatpush1.bf16.msra.mxu0 0
        %3709 = vmatprep.subr.bf16.mxu0 0
        %3710 = vmatpush1.bf16.msra.mxu0 0
        %3711 = vmatprep.subr.bf16.mxu0 0
        %3712 = vmatpush1.bf16.msra.mxu0 0
        %3713 = vmatprep.mubr.bf16.mxu0 0
        %3714 = vmatmul.mubr.bf16.gmra.mrb[0].mxu0 %v3676
        %v3715 = vpop.f32.mrb[0].mxu0
        %v3716 = vadd.f32 0.0, %v3715
        %v3717 = vpop.f32.mrb[0].mxu0
        %v3718 = vpop.f32.mrb[0].mxu0
        %v3719 = vpop.f32.mrb[0].mxu0
        %3720 = vdwg.mxu0
        %3721 = vrot.lane.b32.xlu0 %v3388, 104
        %v3722 = vpop.permute.xlu0 %3721
        %3723 = vrot.lane.b32.xlu0 %v3389, 72
        %v3724 = vpop.permute.xlu0 %3723
        %v3726 = vsel %vm1579, %v3722, 0
        %v3729 = vsel %vm1579, %v3724, 0
        %3731 = vmatprep.subr.bf16.mxu0 0
        %3732 = vmatpush1.bf16.xpose.msra.mxu0 %v3729
        %3733 = vmatprep.subr.bf16.mxu0 0
        %3734 = vmatpush1.bf16.xpose.msra.mxu0 0
        %3735 = vmatprep.subr.bf16.mxu0 0
        %3736 = vmatpush1.bf16.xpose.msra.mxu0 0
        %3737 = vmatprep.subr.bf16.mxu0 0
        %3738 = vmatpush1.bf16.xpose.msra.mxu0 0
        %3739 = vmatprep.subr.bf16.mxu0 0
        %3740 = vmatpush1.bf16.xpose.msra.mxu0 0
        %3741 = vmatprep.subr.bf16.mxu0 0
        %3742 = vmatpush1.bf16.xpose.msra.mxu0 0
        %3743 = vmatprep.subr.bf16.mxu0 0
        %3744 = vmatpush1.bf16.xpose.msra.mxu0 0
        %3745 = vmatprep.subr.bf16.mxu0 0
        %3746 = vmatpush1.bf16.xpose.msra.mxu0 0
        %3747 = vmatprep.subr.bf16.mxu0 0
        %3748 = vmatpush1.bf16.xpose.msra.mxu0 0
        %3749 = vmatprep.subr.bf16.mxu0 0
        %3750 = vmatpush1.bf16.xpose.msra.mxu0 0
        %3751 = vmatprep.subr.bf16.mxu0 0
        %3752 = vmatpush1.bf16.xpose.msra.mxu0 0
        %3753 = vmatprep.subr.bf16.mxu0 0
        %3754 = vmatpush1.bf16.xpose.msra.mxu0 0
        %3755 = vmatprep.subr.bf16.mxu0 0
        %3756 = vmatpush1.bf16.xpose.msra.mxu0 0
        %3757 = vmatprep.subr.bf16.mxu0 0
        %3758 = vmatpush1.bf16.xpose.msra.mxu0 0
        %3759 = vmatprep.subr.bf16.mxu0 0
        %3760 = vmatpush1.bf16.xpose.msra.mxu0 0
        %3761 = vmatprep.subr.bf16.mxu0 0
        %3762 = vmatpush1.bf16.xpose.msra.mxu0 0
        %3763 = vmatprep.mubr.bf16.mxu0 0
        %3764 = vmatmul.mubr.bf16.gmra.mrb[0].mxu0 %v3726
        %v3765 = vpop.f32.mrb[0].mxu0
        %v3766 = vadd.f32 %v1428, %v3765
        %v3767 = vpop.f32.mrb[0].mxu0
        %v3768 = vpop.f32.mrb[0].mxu0
        %v3769 = vpop.f32.mrb[0].mxu0
        %3770 = vdwg.mxu0
        %v3771 = vsel %vm1579, %v3766, -inf
        %3772 = vmax.xlane.f32.xlu0 %v3771
        %v3773 = vpop.xlane.xlu0 %3772
        %v3774 = vsub.f32 %v3766, %v3773
        %v3775 = vmul.f32 %v3774, 1.442695
        %v3776 = vpow.pop %v3775
        %v3777 = vsel %vm1579, %v3776, 0.0
        %3778 = vadd.xlane.f32.xlu0 %v3777
        %v3779 = vpop.xlane.xlu0 %3778
        %v3780 = vrcp.pop %v3779
        %v3781 = vmul.f32 %v3776, %v3780
        %v3782 = vpack.c.bf16 %v3781, %v3781
        %3783 = vrot.lane.b32.xlu0 %v3389, 40
        %v3784 = vpop.permute.xlu0 %3783
        %v3786 = vsel %vm1579, %v3782, 0
        %v3789 = vsel %vm3456, %v3784, 0
        %3791 = vmatprep.subr.bf16.mxu0 0
        %3792 = vmatpush1.bf16.msra.mxu0 %v3789
        %3793 = vmatprep.subr.bf16.mxu0 0
        %3794 = vmatpush1.bf16.msra.mxu0 0
        %3795 = vmatprep.subr.bf16.mxu0 0
        %3796 = vmatpush1.bf16.msra.mxu0 0
        %3797 = vmatprep.subr.bf16.mxu0 0
        %3798 = vmatpush1.bf16.msra.mxu0 0
        %3799 = vmatprep.subr.bf16.mxu0 0
        %3800 = vmatpush1.bf16.msra.mxu0 0
        %3801 = vmatprep.subr.bf16.mxu0 0
        %3802 = vmatpush1.bf16.msra.mxu0 0
        %3803 = vmatprep.subr.bf16.mxu0 0
        %3804 = vmatpush1.bf16.msra.mxu0 0
        %3805 = vmatprep.subr.bf16.mxu0 0
        %3806 = vmatpush1.bf16.msra.mxu0 0
        %3807 = vmatprep.subr.bf16.mxu0 0
        %3808 = vmatpush1.bf16.msra.mxu0 0
        %3809 = vmatprep.subr.bf16.mxu0 0
        %3810 = vmatpush1.bf16.msra.mxu0 0
        %3811 = vmatprep.subr.bf16.mxu0 0
        %3812 = vmatpush1.bf16.msra.mxu0 0
        %3813 = vmatprep.subr.bf16.mxu0 0
        %3814 = vmatpush1.bf16.msra.mxu0 0
        %3815 = vmatprep.subr.bf16.mxu0 0
        %3816 = vmatpush1.bf16.msra.mxu0 0
        %3817 = vmatprep.subr.bf16.mxu0 0
        %3818 = vmatpush1.bf16.msra.mxu0 0
        %3819 = vmatprep.subr.bf16.mxu0 0
        %3820 = vmatpush1.bf16.msra.mxu0 0
        %3821 = vmatprep.subr.bf16.mxu0 0
        %3822 = vmatpush1.bf16.msra.mxu0 0
        %3823 = vmatprep.mubr.bf16.mxu0 0
        %3824 = vmatmul.mubr.bf16.gmra.mrb[0].mxu0 %v3786
        %v3825 = vpop.f32.mrb[0].mxu0
        %v3826 = vadd.f32 0.0, %v3825
        %v3827 = vpop.f32.mrb[0].mxu0
        %v3828 = vpop.f32.mrb[0].mxu0
        %v3829 = vpop.f32.mrb[0].mxu0
        %3830 = vdwg.mxu0
        %3832 = vrot.lane.b32.xlu0 %v3606, 8
        %v3833 = vpop.permute.xlu0 %3832
        %3836 = vrot.lane.b32.xlu0 %v3716, 16
        %v3837 = vpop.permute.xlu0 %3836
        %3840 = vrot.lane.b32.xlu0 %v3826, 24
        %v3841 = vpop.permute.xlu0 %3840
        %v3843 = vsel %vm1579, %v3495, %v3833
        %v3844 = vsel %vm1447, %v3843, %v3837
        %v3845 = vsel %vm2089, %v3844, %v3841
        %v3846 = vpack.c.bf16 %v3845, %v3845
        %v3848 = vlaneseq
        %v3849 = vshrl.u32 %v3848, 7
        %v3850 = vsub.s32 0, %v3849
        %v3851 = vrot.slane %v3386, %v3850
        %v3857 = vunpack.c.l.b16 %v3382
        %v3858 = vunpack.c.l.b16 %v3383
        %v3859 = vunpack.c.l.b16 %v3384
        %v3860 = vunpack.c.l.b16 %v3385
        %v3861 = vpack.c.b16 %v3858, %v3857
        %v3862 = vpack.c.b16 %v3860, %v3859
        %v3866 = vsel %vm1522, %v3846, 0
        %3868 = vmatprep.subr.bf16.mxu0 0
        %3869 = vmatpush1.bf16.msra.mxu0 %v3861
        %3870 = vmatprep.subr.bf16.mxu0 0
        %3871 = vmatpush1.bf16.msra.mxu0 %v3862
        %3872 = vmatprep.subr.bf16.mxu0 0
        %3873 = vmatpush1.bf16.msra.mxu0 0
        %3874 = vmatprep.subr.bf16.mxu0 0
        %3875 = vmatpush1.bf16.msra.mxu0 0
        %3876 = vmatprep.subr.bf16.mxu0 0
        %3877 = vmatpush1.bf16.msra.mxu0 0
        %3878 = vmatprep.subr.bf16.mxu0 0
        %3879 = vmatpush1.bf16.msra.mxu0 0
        %3880 = vmatprep.subr.bf16.mxu0 0
        %3881 = vmatpush1.bf16.msra.mxu0 0
        %3882 = vmatprep.subr.bf16.mxu0 0
        %3883 = vmatpush1.bf16.msra.mxu0 0
        %3884 = vmatprep.subr.bf16.mxu0 0
        %3885 = vmatpush1.bf16.msra.mxu0 0
        %3886 = vmatprep.subr.bf16.mxu0 0
        %3887 = vmatpush1.bf16.msra.mxu0 0
        %3888 = vmatprep.subr.bf16.mxu0 0
        %3889 = vmatpush1.bf16.msra.mxu0 0
        %3890 = vmatprep.subr.bf16.mxu0 0
        %3891 = vmatpush1.bf16.msra.mxu0 0
        %3892 = vmatprep.subr.bf16.mxu0 0
        %3893 = vmatpush1.bf16.msra.mxu0 0
        %3894 = vmatprep.subr.bf16.mxu0 0
        %3895 = vmatpush1.bf16.msra.mxu0 0
        %3896 = vmatprep.subr.bf16.mxu0 0
        %3897 = vmatpush1.bf16.msra.mxu0 0
        %3898 = vmatprep.subr.bf16.mxu0 0
        %3899 = vmatpush1.bf16.msra.mxu0 0
        %3900 = vmatprep.mubr.bf16.mxu0 0
        %3901 = vmatmul.mubr.bf16.gmra.mrb[0].mxu0 %v3866
        %v3902 = vpop.f32.mrb[0].mxu0
        %v3903 = vadd.f32 %v3851, %v3902
        %v3904 = vpop.f32.mrb[0].mxu0
        %v3905 = vpop.f32.mrb[0].mxu0
        %v3906 = vpop.f32.mrb[0].mxu0
        %3907 = vdwg.mxu0
        %v3908 = vadd.f32 %v3903, %v1412
        %v3909 = vld [vmem:[%s45] sm:$0x1]
        %v3910 = vld [vmem:[#allocation8] sm:$0x1]
        %v3911 = vsel %vm1522, %v3908, 0.0
        %3912 = vadd.xlane.f32.xlu0 %v3911
        %v3913 = vpop.xlane.xlu0 %3912
        %v3914 = vmul.f32 %v3913, %v2165
        %v3915 = vsub.f32 %v3908, %v3914
        %v3916 = vmul.f32 %v3915, %v3915
        %v3917 = vsel %vm1522, %v3916, 0.0
        %3918 = vadd.xlane.f32.xlu0 %v3917
        %v3919 = vpop.xlane.xlu0 %3918
        %v3920 = vmul.f32 %v3919, %v2165
        %v3921 = vadd.f32 %v3920, 1e-06
        %v3922 = vrsqrt.pop %v3921
        %v3923 = vmul.f32 %v3915, %v3922
        %v3925 = vlaneseq
        %v3926 = vshrl.u32 %v3925, 7
        %v3927 = vsub.s32 0, %v3926
        %v3928 = vrot.slane %v3909, %v3927
        %v3930 = vmul.f32 %v3923, %v3928
        %v3932 = vlaneseq
        %v3933 = vshrl.u32 %v3932, 7
        %v3934 = vsub.s32 0, %v3933
        %v3935 = vrot.slane %v3910, %v3934
        %v3937 = vadd.f32 %v3930, %v3935
        %v3938 = vld [vmem:[%s49] sm:$0xf]
        %v3939 = vld [vmem:[%s49 + $0x4] sm:$0xf]
        %v3940 = vld [vmem:[%s49 + $0x8] sm:$0xf]
        %v3941 = vld [vmem:[%s49 + $0xc] sm:$0xf]
        %v3942 = vld [vmem:[#allocation10] sm:$0x1]
        %v3943 = vpack.c.bf16 %v3937, %v3937
        %v3945 = vlaneseq
        %v3946 = vshrl.u32 %v3945, 7
        %v3947 = vsub.s32 0, %v3946
        %v3948 = vrot.slane %v3942, %v3947
        %v3954 = vunpack.c.l.b16 %v3938
        %v3955 = vunpack.c.l.b16 %v3939
        %v3956 = vunpack.c.l.b16 %v3940
        %v3957 = vunpack.c.l.b16 %v3941
        %v3958 = vpack.c.b16 %v3955, %v3954
        %v3959 = vpack.c.b16 %v3957, %v3956
        %v3963 = vsel %vm1522, %v3943, 0
        %3965 = vmatprep.subr.bf16.mxu0 0
        %3966 = vmatpush1.bf16.msra.mxu0 %v3958
        %3967 = vmatprep.subr.bf16.mxu0 0
        %3968 = vmatpush1.bf16.msra.mxu0 %v3959
        %3969 = vmatprep.subr.bf16.mxu0 0
        %3970 = vmatpush1.bf16.msra.mxu0 0
        %3971 = vmatprep.subr.bf16.mxu0 0
        %3972 = vmatpush1.bf16.msra.mxu0 0
        %3973 = vmatprep.subr.bf16.mxu0 0
        %3974 = vmatpush1.bf16.msra.mxu0 0
        %3975 = vmatprep.subr.bf16.mxu0 0
        %3976 = vmatpush1.bf16.msra.mxu0 0
        %3977 = vmatprep.subr.bf16.mxu0 0
        %3978 = vmatpush1.bf16.msra.mxu0 0
        %3979 = vmatprep.subr.bf16.mxu0 0
        %3980 = vmatpush1.bf16.msra.mxu0 0
        %3981 = vmatprep.subr.bf16.mxu0 0
        %3982 = vmatpush1.bf16.msra.mxu0 0
        %3983 = vmatprep.subr.bf16.mxu0 0
        %3984 = vmatpush1.bf16.msra.mxu0 0
        %3985 = vmatprep.subr.bf16.mxu0 0
        %3986 = vmatpush1.bf16.msra.mxu0 0
        %3987 = vmatprep.subr.bf16.mxu0 0
        %3988 = vmatpush1.bf16.msra.mxu0 0
        %3989 = vmatprep.subr.bf16.mxu0 0
        %3990 = vmatpush1.bf16.msra.mxu0 0
        %3991 = vmatprep.subr.bf16.mxu0 0
        %3992 = vmatpush1.bf16.msra.mxu0 0
        %3993 = vmatprep.subr.bf16.mxu0 0
        %3994 = vmatpush1.bf16.msra.mxu0 0
        %3995 = vmatprep.subr.bf16.mxu0 0
        %3996 = vmatpush1.bf16.msra.mxu0 0
        %3997 = vmatprep.mubr.bf16.mxu0 0
        %3998 = vmatmul.mubr.bf16.gmra.mrb[0].mxu0 %v3963
        %v3999 = vpop.f32.mrb[0].mxu0
        %v4000 = vadd.f32 %v3948, %v3999
        %v4001 = vpop.f32.mrb[0].mxu0
        %v4002 = vpop.f32.mrb[0].mxu0
        %v4003 = vpop.f32.mrb[0].mxu0
        %4004 = vdwg.mxu0
        %v4005 = vld [vmem:[%s53] sm:$0xf]
        %v4006 = vld [vmem:[%s53 + $0x4] sm:$0xf]
        %v4007 = vld [vmem:[%s53 + $0x8] sm:$0xf]
        %v4008 = vld [vmem:[%s53 + $0xc] sm:$0xf]
        %v4009 = vld [vmem:[#allocation11] sm:$0x1]
        %v4010 = vpack.c.bf16 %v3314, %v3313
        %v4012 = vlaneseq
        %v4013 = vshrl.u32 %v4012, 7
        %v4014 = vsub.s32 0, %v4013
        %v4015 = vrot.slane %v4009, %v4014
        %v4021 = vunpack.c.l.b16 %v4005
        %v4022 = vunpack.c.l.b16 %v4006
        %v4023 = vunpack.c.l.b16 %v4007
        %v4024 = vunpack.c.l.b16 %v4008
        %v4025 = vpack.c.b16 %v4022, %v4021
        %v4026 = vpack.c.b16 %v4024, %v4023
        %v4030 = vsel %vm1522, %v4010, 0
        %4032 = vmatprep.subr.bf16.mxu0 0
        %4033 = vmatpush1.bf16.msra.mxu0 %v4025
        %4034 = vmatprep.subr.bf16.mxu0 0
        %4035 = vmatpush1.bf16.msra.mxu0 %v4026
        %4036 = vmatprep.subr.bf16.mxu0 0
        %4037 = vmatpush1.bf16.msra.mxu0 0
        %4038 = vmatprep.subr.bf16.mxu0 0
        %4039 = vmatpush1.bf16.msra.mxu0 0
        %4040 = vmatprep.subr.bf16.mxu0 0
        %4041 = vmatpush1.bf16.msra.mxu0 0
        %4042 = vmatprep.subr.bf16.mxu0 0
        %4043 = vmatpush1.bf16.msra.mxu0 0
        %4044 = vmatprep.subr.bf16.mxu0 0
        %4045 = vmatpush1.bf16.msra.mxu0 0
        %4046 = vmatprep.subr.bf16.mxu0 0
        %4047 = vmatpush1.bf16.msra.mxu0 0
        %4048 = vmatprep.subr.bf16.mxu0 0
        %4049 = vmatpush1.bf16.msra.mxu0 0
        %4050 = vmatprep.subr.bf16.mxu0 0
        %4051 = vmatpush1.bf16.msra.mxu0 0
        %4052 = vmatprep.subr.bf16.mxu0 0
        %4053 = vmatpush1.bf16.msra.mxu0 0
        %4054 = vmatprep.subr.bf16.mxu0 0
        %4055 = vmatpush1.bf16.msra.mxu0 0
        %4056 = vmatprep.subr.bf16.mxu0 0
        %4057 = vmatpush1.bf16.msra.mxu0 0
        %4058 = vmatprep.subr.bf16.mxu0 0
        %4059 = vmatpush1.bf16.msra.mxu0 0
        %4060 = vmatprep.subr.bf16.mxu0 0
        %4061 = vmatpush1.bf16.msra.mxu0 0
        %4062 = vmatprep.subr.bf16.mxu0 0
        %4063 = vmatpush1.bf16.msra.mxu0 0
        %4064 = vmatprep.mubr.bf16.mxu0 0
        %4065 = vmatmul.mubr.bf16.gmra.mrb[0].mxu0 %v4030
        %v4066 = vpop.f32.mrb[0].mxu0
        %v4067 = vadd.f32 %v4015, %v4066
        %v4068 = vpop.f32.mrb[0].mxu0
        %v4069 = vpop.f32.mrb[0].mxu0
        %v4070 = vadd.f32 %v4015, %v4069
        %v4071 = vpop.f32.mrb[0].mxu0
        %4072 = vdwg.mxu0
        %v4073 = vld [vmem:[%s57] sm:$0xf]
        %v4074 = vld [vmem:[%s57 + $0x4] sm:$0xf]
        %v4075 = vld [vmem:[%s57 + $0x8] sm:$0xf]
        %v4076 = vld [vmem:[%s57 + $0xc] sm:$0xf]
        %v4077 = vld [vmem:[#allocation13] sm:$0x1]
        %v4078 = vmul.f32 %v4000, 0.35355338
        %v4079 = vpack.c.bf16 %v4078, %v4078
        %v4080 = vpack.c.bf16 %v4070, %v4067
        %v4082 = vsel %vm1579, %v4079, 0
        %v4085 = vsel %vm1579, %v4080, 0
        %4087 = vmatprep.subr.bf16.mxu0 0
        %4088 = vmatpush1.bf16.xpose.msra.mxu0 %v4085
        %4089 = vmatprep.subr.bf16.mxu0 0
        %4090 = vmatpush1.bf16.xpose.msra.mxu0 0
        %4091 = vmatprep.subr.bf16.mxu0 0
        %4092 = vmatpush1.bf16.xpose.msra.mxu0 0
        %4093 = vmatprep.subr.bf16.mxu0 0
        %4094 = vmatpush1.bf16.xpose.msra.mxu0 0
        %4095 = vmatprep.subr.bf16.mxu0 0
        %4096 = vmatpush1.bf16.xpose.msra.mxu0 0
        %4097 = vmatprep.subr.bf16.mxu0 0
        %4098 = vmatpush1.bf16.xpose.msra.mxu0 0
        %4099 = vmatprep.subr.bf16.mxu0 0
        %4100 = vmatpush1.bf16.xpose.msra.mxu0 0
        %4101 = vmatprep.subr.bf16.mxu0 0
        %4102 = vmatpush1.bf16.xpose.msra.mxu0 0
        %4103 = vmatprep.subr.bf16.mxu0 0
        %4104 = vmatpush1.bf16.xpose.msra.mxu0 0
        %4105 = vmatprep.subr.bf16.mxu0 0
        %4106 = vmatpush1.bf16.xpose.msra.mxu0 0
        %4107 = vmatprep.subr.bf16.mxu0 0
        %4108 = vmatpush1.bf16.xpose.msra.mxu0 0
        %4109 = vmatprep.subr.bf16.mxu0 0
        %4110 = vmatpush1.bf16.xpose.msra.mxu0 0
        %4111 = vmatprep.subr.bf16.mxu0 0
        %4112 = vmatpush1.bf16.xpose.msra.mxu0 0
        %4113 = vmatprep.subr.bf16.mxu0 0
        %4114 = vmatpush1.bf16.xpose.msra.mxu0 0
        %4115 = vmatprep.subr.bf16.mxu0 0
        %4116 = vmatpush1.bf16.xpose.msra.mxu0 0
        %4117 = vmatprep.subr.bf16.mxu0 0
        %4118 = vmatpush1.bf16.xpose.msra.mxu0 0
        %4119 = vmatprep.mubr.bf16.mxu0 0
        %4120 = vmatmul.mubr.bf16.gmra.mrb[0].mxu0 %v4082
        %v4121 = vpop.f32.mrb[0].mxu0
        %v4122 = vadd.f32 0.0, %v4121
        %v4123 = vpop.f32.mrb[0].mxu0
        %v4124 = vpop.f32.mrb[0].mxu0
        %v4125 = vpop.f32.mrb[0].mxu0
        %4126 = vdwg.mxu0
        %v4127 = vsel %vm1447, %v4122, -inf
        %4128 = vmax.xlane.f32.xlu0 %v4127
        %v4129 = vpop.xlane.xlu0 %4128
        %v4130 = vsub.f32 %v4122, %v4129
        %v4131 = vmul.f32 %v4130, 1.442695
        %v4132 = vpow.pop %v4131
        %v4133 = vsel %vm1447, %v4132, 0.0
        %4134 = vadd.xlane.f32.xlu0 %v4133
        %v4135 = vpop.xlane.xlu0 %4134
        %v4136 = vrcp.pop %v4135
        %v4137 = vmul.f32 %v4132, %v4136
        %v4138 = vpack.c.bf16 %v4137, %v4137
        %4140 = vrot.lane.b32.xlu0 %v4080, 96
        %v4141 = vpop.permute.xlu0 %4140
        %v4144 = vsel %vm1447, %v4138, 0
        %4146 = vmatprep.subr.bf16.mxu0 0
        %4147 = vmatpush1.bf16.msra.mxu0 %v4141
        %4148 = vmatprep.subr.bf16.mxu0 0
        %4149 = vmatpush1.bf16.msra.mxu0 0
        %4150 = vmatprep.subr.bf16.mxu0 0
        %4151 = vmatpush1.bf16.msra.mxu0 0
        %4152 = vmatprep.subr.bf16.mxu0 0
        %4153 = vmatpush1.bf16.msra.mxu0 0
        %4154 = vmatprep.subr.bf16.mxu0 0
        %4155 = vmatpush1.bf16.msra.mxu0 0
        %4156 = vmatprep.subr.bf16.mxu0 0
        %4157 = vmatpush1.bf16.msra.mxu0 0
        %4158 = vmatprep.subr.bf16.mxu0 0
        %4159 = vmatpush1.bf16.msra.mxu0 0
        %4160 = vmatprep.subr.bf16.mxu0 0
        %4161 = vmatpush1.bf16.msra.mxu0 0
        %4162 = vmatprep.subr.bf16.mxu0 0
        %4163 = vmatpush1.bf16.msra.mxu0 0
        %4164 = vmatprep.subr.bf16.mxu0 0
        %4165 = vmatpush1.bf16.msra.mxu0 0
        %4166 = vmatprep.subr.bf16.mxu0 0
        %4167 = vmatpush1.bf16.msra.mxu0 0
        %4168 = vmatprep.subr.bf16.mxu0 0
        %4169 = vmatpush1.bf16.msra.mxu0 0
        %4170 = vmatprep.subr.bf16.mxu0 0
        %4171 = vmatpush1.bf16.msra.mxu0 0
        %4172 = vmatprep.subr.bf16.mxu0 0
        %4173 = vmatpush1.bf16.msra.mxu0 0
        %4174 = vmatprep.subr.bf16.mxu0 0
        %4175 = vmatpush1.bf16.msra.mxu0 0
        %4176 = vmatprep.subr.bf16.mxu0 0
        %4177 = vmatpush1.bf16.msra.mxu0 0
        %4178 = vmatprep.mubr.bf16.mxu0 0
        %4179 = vmatmul.mubr.bf16.gmra.mrb[0].mxu0 %v4144
        %v4180 = vpop.f32.mrb[0].mxu0
        %v4181 = vadd.f32 0.0, %v4180
        %v4182 = vpop.f32.mrb[0].mxu0
        %v4183 = vpop.f32.mrb[0].mxu0
        %v4184 = vpop.f32.mrb[0].mxu0
        %4185 = vdwg.mxu0
        %4187 = vrot.lane.b32.xlu0 %v4079, 120
        %v4188 = vpop.permute.xlu0 %4187
        %4189 = vrot.lane.b32.xlu0 %v4080, 120
        %v4190 = vpop.permute.xlu0 %4189
        %v4192 = vsel %vm1579, %v4188, 0
        %v4195 = vsel %vm1579, %v4190, 0
        %4197 = vmatprep.subr.bf16.mxu0 0
        %4198 = vmatpush1.bf16.xpose.msra.mxu0 %v4195
        %4199 = vmatprep.subr.bf16.mxu0 0
        %4200 = vmatpush1.bf16.xpose.msra.mxu0 0
        %4201 = vmatprep.subr.bf16.mxu0 0
        %4202 = vmatpush1.bf16.xpose.msra.mxu0 0
        %4203 = vmatprep.subr.bf16.mxu0 0
        %4204 = vmatpush1.bf16.xpose.msra.mxu0 0
        %4205 = vmatprep.subr.bf16.mxu0 0
        %4206 = vmatpush1.bf16.xpose.msra.mxu0 0
        %4207 = vmatprep.subr.bf16.mxu0 0
        %4208 = vmatpush1.bf16.xpose.msra.mxu0 0
        %4209 = vmatprep.subr.bf16.mxu0 0
        %4210 = vmatpush1.bf16.xpose.msra.mxu0 0
        %4211 = vmatprep.subr.bf16.mxu0 0
        %4212 = vmatpush1.bf16.xpose.msra.mxu0 0
        %4213 = vmatprep.subr.bf16.mxu0 0
        %4214 = vmatpush1.bf16.xpose.msra.mxu0 0
        %4215 = vmatprep.subr.bf16.mxu0 0
        %4216 = vmatpush1.bf16.xpose.msra.mxu0 0
        %4217 = vmatprep.subr.bf16.mxu0 0
        %4218 = vmatpush1.bf16.xpose.msra.mxu0 0
        %4219 = vmatprep.subr.bf16.mxu0 0
        %4220 = vmatpush1.bf16.xpose.msra.mxu0 0
        %4221 = vmatprep.subr.bf16.mxu0 0
        %4222 = vmatpush1.bf16.xpose.msra.mxu0 0
        %4223 = vmatprep.subr.bf16.mxu0 0
        %4224 = vmatpush1.bf16.xpose.msra.mxu0 0
        %4225 = vmatprep.subr.bf16.mxu0 0
        %4226 = vmatpush1.bf16.xpose.msra.mxu0 0
        %4227 = vmatprep.subr.bf16.mxu0 0
        %4228 = vmatpush1.bf16.xpose.msra.mxu0 0
        %4229 = vmatprep.mubr.bf16.mxu0 0
        %4230 = vmatmul.mubr.bf16.gmra.mrb[0].mxu0 %v4192
        %v4231 = vpop.f32.mrb[0].mxu0
        %v4232 = vadd.f32 0.0, %v4231
        %v4233 = vpop.f32.mrb[0].mxu0
        %v4234 = vpop.f32.mrb[0].mxu0
        %v4235 = vpop.f32.mrb[0].mxu0
        %4236 = vdwg.mxu0
        %v4237 = vsel %vm1447, %v4232, -inf
        %4238 = vmax.xlane.f32.xlu0 %v4237
        %v4239 = vpop.xlane.xlu0 %4238
        %v4240 = vsub.f32 %v4232, %v4239
        %v4241 = vmul.f32 %v4240, 1.442695
        %v4242 = vpow.pop %v4241
        %v4243 = vsel %vm1447, %v4242, 0.0
        %4244 = vadd.xlane.f32.xlu0 %v4243
        %v4245 = vpop.xlane.xlu0 %4244
        %v4246 = vrcp.pop %v4245
        %v4247 = vmul.f32 %v4242, %v4246
        %v4248 = vpack.c.bf16 %v4247, %v4247
        %4249 = vrot.lane.b32.xlu0 %v4080, 88
        %v4250 = vpop.permute.xlu0 %4249
        %v4253 = vsel %vm1447, %v4248, 0
        %4255 = vmatprep.subr.bf16.mxu0 0
        %4256 = vmatpush1.bf16.msra.mxu0 %v4250
        %4257 = vmatprep.subr.bf16.mxu0 0
        %4258 = vmatpush1.bf16.msra.mxu0 0
        %4259 = vmatprep.subr.bf16.mxu0 0
        %4260 = vmatpush1.bf16.msra.mxu0 0
        %4261 = vmatprep.subr.bf16.mxu0 0
        %4262 = vmatpush1.bf16.msra.mxu0 0
        %4263 = vmatprep.subr.bf16.mxu0 0
        %4264 = vmatpush1.bf16.msra.mxu0 0
        %4265 = vmatprep.subr.bf16.mxu0 0
        %4266 = vmatpush1.bf16.msra.mxu0 0
        %4267 = vmatprep.subr.bf16.mxu0 0
        %4268 = vmatpush1.bf16.msra.mxu0 0
        %4269 = vmatprep.subr.bf16.mxu0 0
        %4270 = vmatpush1.bf16.msra.mxu0 0
        %4271 = vmatprep.subr.bf16.mxu0 0
        %4272 = vmatpush1.bf16.msra.mxu0 0
        %4273 = vmatprep.subr.bf16.mxu0 0
        %4274 = vmatpush1.bf16.msra.mxu0 0
        %4275 = vmatprep.subr.bf16.mxu0 0
        %4276 = vmatpush1.bf16.msra.mxu0 0
        %4277 = vmatprep.subr.bf16.mxu0 0
        %4278 = vmatpush1.bf16.msra.mxu0 0
        %4279 = vmatprep.subr.bf16.mxu0 0
        %4280 = vmatpush1.bf16.msra.mxu0 0
        %4281 = vmatprep.subr.bf16.mxu0 0
        %4282 = vmatpush1.bf16.msra.mxu0 0
        %4283 = vmatprep.subr.bf16.mxu0 0
        %4284 = vmatpush1.bf16.msra.mxu0 0
        %4285 = vmatprep.subr.bf16.mxu0 0
        %4286 = vmatpush1.bf16.msra.mxu0 0
        %4287 = vmatprep.mubr.bf16.mxu0 0
        %4288 = vmatmul.mubr.bf16.gmra.mrb[0].mxu0 %v4253
        %v4289 = vpop.f32.mrb[0].mxu0
        %v4290 = vadd.f32 0.0, %v4289
        %v4291 = vpop.f32.mrb[0].mxu0
        %v4292 = vpop.f32.mrb[0].mxu0
        %v4293 = vpop.f32.mrb[0].mxu0
        %4294 = vdwg.mxu0
        %4295 = vrot.lane.b32.xlu0 %v4079, 112
        %v4296 = vpop.permute.xlu0 %4295
        %4297 = vrot.lane.b32.xlu0 %v4080, 112
        %v4298 = vpop.permute.xlu0 %4297
        %v4300 = vsel %vm1579, %v4296, 0
        %v4303 = vsel %vm1579, %v4298, 0
        %4305 = vmatprep.subr.bf16.mxu0 0
        %4306 = vmatpush1.bf16.xpose.msra.mxu0 %v4303
        %4307 = vmatprep.subr.bf16.mxu0 0
        %4308 = vmatpush1.bf16.xpose.msra.mxu0 0
        %4309 = vmatprep.subr.bf16.mxu0 0
        %4310 = vmatpush1.bf16.xpose.msra.mxu0 0
        %4311 = vmatprep.subr.bf16.mxu0 0
        %4312 = vmatpush1.bf16.xpose.msra.mxu0 0
        %4313 = vmatprep.subr.bf16.mxu0 0
        %4314 = vmatpush1.bf16.xpose.msra.mxu0 0
        %4315 = vmatprep.subr.bf16.mxu0 0
        %4316 = vmatpush1.bf16.xpose.msra.mxu0 0
        %4317 = vmatprep.subr.bf16.mxu0 0
        %4318 = vmatpush1.bf16.xpose.msra.mxu0 0
        %4319 = vmatprep.subr.bf16.mxu0 0
        %4320 = vmatpush1.bf16.xpose.msra.mxu0 0
        %4321 = vmatprep.subr.bf16.mxu0 0
        %4322 = vmatpush1.bf16.xpose.msra.mxu0 0
        %4323 = vmatprep.subr.bf16.mxu0 0
        %4324 = vmatpush1.bf16.xpose.msra.mxu0 0
        %4325 = vmatprep.subr.bf16.mxu0 0
        %4326 = vmatpush1.bf16.xpose.msra.mxu0 0
        %4327 = vmatprep.subr.bf16.mxu0 0
        %4328 = vmatpush1.bf16.xpose.msra.mxu0 0
        %4329 = vmatprep.subr.bf16.mxu0 0
        %4330 = vmatpush1.bf16.xpose.msra.mxu0 0
        %4331 = vmatprep.subr.bf16.mxu0 0
        %4332 = vmatpush1.bf16.xpose.msra.mxu0 0
        %4333 = vmatprep.subr.bf16.mxu0 0
        %4334 = vmatpush1.bf16.xpose.msra.mxu0 0
        %4335 = vmatprep.subr.bf16.mxu0 0
        %4336 = vmatpush1.bf16.xpose.msra.mxu0 0
        %4337 = vmatprep.mubr.bf16.mxu0 0
        %4338 = vmatmul.mubr.bf16.gmra.mrb[0].mxu0 %v4300
        %v4339 = vpop.f32.mrb[0].mxu0
        %v4340 = vadd.f32 0.0, %v4339
        %v4341 = vpop.f32.mrb[0].mxu0
        %v4342 = vpop.f32.mrb[0].mxu0
        %v4343 = vpop.f32.mrb[0].mxu0
        %4344 = vdwg.mxu0
        %v4345 = vsel %vm1447, %v4340, -inf
        %4346 = vmax.xlane.f32.xlu0 %v4345
        %v4347 = vpop.xlane.xlu0 %4346
        %v4348 = vsub.f32 %v4340, %v4347
        %v4349 = vmul.f32 %v4348, 1.442695
        %v4350 = vpow.pop %v4349
        %v4351 = vsel %vm1447, %v4350, 0.0
        %4352 = vadd.xlane.f32.xlu0 %v4351
        %v4353 = vpop.xlane.xlu0 %4352
        %v4354 = vrcp.pop %v4353
        %v4355 = vmul.f32 %v4350, %v4354
        %v4356 = vpack.c.bf16 %v4355, %v4355
        %4357 = vrot.lane.b32.xlu0 %v4080, 80
        %v4358 = vpop.permute.xlu0 %4357
        %v4361 = vsel %vm1447, %v4356, 0
        %4363 = vmatprep.subr.bf16.mxu0 0
        %4364 = vmatpush1.bf16.msra.mxu0 %v4358
        %4365 = vmatprep.subr.bf16.mxu0 0
        %4366 = vmatpush1.bf16.msra.mxu0 0
        %4367 = vmatprep.subr.bf16.mxu0 0
        %4368 = vmatpush1.bf16.msra.mxu0 0
        %4369 = vmatprep.subr.bf16.mxu0 0
        %4370 = vmatpush1.bf16.msra.mxu0 0
        %4371 = vmatprep.subr.bf16.mxu0 0
        %4372 = vmatpush1.bf16.msra.mxu0 0
        %4373 = vmatprep.subr.bf16.mxu0 0
        %4374 = vmatpush1.bf16.msra.mxu0 0
        %4375 = vmatprep.subr.bf16.mxu0 0
        %4376 = vmatpush1.bf16.msra.mxu0 0
        %4377 = vmatprep.subr.bf16.mxu0 0
        %4378 = vmatpush1.bf16.msra.mxu0 0
        %4379 = vmatprep.subr.bf16.mxu0 0
        %4380 = vmatpush1.bf16.msra.mxu0 0
        %4381 = vmatprep.subr.bf16.mxu0 0
        %4382 = vmatpush1.bf16.msra.mxu0 0
        %4383 = vmatprep.subr.bf16.mxu0 0
        %4384 = vmatpush1.bf16.msra.mxu0 0
        %4385 = vmatprep.subr.bf16.mxu0 0
        %4386 = vmatpush1.bf16.msra.mxu0 0
        %4387 = vmatprep.subr.bf16.mxu0 0
        %4388 = vmatpush1.bf16.msra.mxu0 0
        %4389 = vmatprep.subr.bf16.mxu0 0
        %4390 = vmatpush1.bf16.msra.mxu0 0
        %4391 = vmatprep.subr.bf16.mxu0 0
        %4392 = vmatpush1.bf16.msra.mxu0 0
        %4393 = vmatprep.subr.bf16.mxu0 0
        %4394 = vmatpush1.bf16.msra.mxu0 0
        %4395 = vmatprep.mubr.bf16.mxu0 0
        %4396 = vmatmul.mubr.bf16.gmra.mrb[0].mxu0 %v4361
        %v4397 = vpop.f32.mrb[0].mxu0
        %v4398 = vadd.f32 0.0, %v4397
        %v4399 = vpop.f32.mrb[0].mxu0
        %v4400 = vpop.f32.mrb[0].mxu0
        %v4401 = vpop.f32.mrb[0].mxu0
        %4402 = vdwg.mxu0
        %4403 = vrot.lane.b32.xlu0 %v4079, 104
        %v4404 = vpop.permute.xlu0 %4403
        %4405 = vrot.lane.b32.xlu0 %v4080, 104
        %v4406 = vpop.permute.xlu0 %4405
        %v4408 = vsel %vm1579, %v4404, 0
        %v4411 = vsel %vm1579, %v4406, 0
        %4413 = vmatprep.subr.bf16.mxu0 0
        %4414 = vmatpush1.bf16.xpose.msra.mxu0 %v4411
        %4415 = vmatprep.subr.bf16.mxu0 0
        %4416 = vmatpush1.bf16.xpose.msra.mxu0 0
        %4417 = vmatprep.subr.bf16.mxu0 0
        %4418 = vmatpush1.bf16.xpose.msra.mxu0 0
        %4419 = vmatprep.subr.bf16.mxu0 0
        %4420 = vmatpush1.bf16.xpose.msra.mxu0 0
        %4421 = vmatprep.subr.bf16.mxu0 0
        %4422 = vmatpush1.bf16.xpose.msra.mxu0 0
        %4423 = vmatprep.subr.bf16.mxu0 0
        %4424 = vmatpush1.bf16.xpose.msra.mxu0 0
        %4425 = vmatprep.subr.bf16.mxu0 0
        %4426 = vmatpush1.bf16.xpose.msra.mxu0 0
        %4427 = vmatprep.subr.bf16.mxu0 0
        %4428 = vmatpush1.bf16.xpose.msra.mxu0 0
        %4429 = vmatprep.subr.bf16.mxu0 0
        %4430 = vmatpush1.bf16.xpose.msra.mxu0 0
        %4431 = vmatprep.subr.bf16.mxu0 0
        %4432 = vmatpush1.bf16.xpose.msra.mxu0 0
        %4433 = vmatprep.subr.bf16.mxu0 0
        %4434 = vmatpush1.bf16.xpose.msra.mxu0 0
        %4435 = vmatprep.subr.bf16.mxu0 0
        %4436 = vmatpush1.bf16.xpose.msra.mxu0 0
        %4437 = vmatprep.subr.bf16.mxu0 0
        %4438 = vmatpush1.bf16.xpose.msra.mxu0 0
        %4439 = vmatprep.subr.bf16.mxu0 0
        %4440 = vmatpush1.bf16.xpose.msra.mxu0 0
        %4441 = vmatprep.subr.bf16.mxu0 0
        %4442 = vmatpush1.bf16.xpose.msra.mxu0 0
        %4443 = vmatprep.subr.bf16.mxu0 0
        %4444 = vmatpush1.bf16.xpose.msra.mxu0 0
        %4445 = vmatprep.mubr.bf16.mxu0 0
        %4446 = vmatmul.mubr.bf16.gmra.mrb[0].mxu0 %v4408
        %v4447 = vpop.f32.mrb[0].mxu0
        %v4448 = vadd.f32 0.0, %v4447
        %v4449 = vpop.f32.mrb[0].mxu0
        %v4450 = vpop.f32.mrb[0].mxu0
        %v4451 = vpop.f32.mrb[0].mxu0
        %4452 = vdwg.mxu0
        %v4453 = vsel %vm1447, %v4448, -inf
        %4454 = vmax.xlane.f32.xlu0 %v4453
        %v4455 = vpop.xlane.xlu0 %4454
        %v4456 = vsub.f32 %v4448, %v4455
        %v4457 = vmul.f32 %v4456, 1.442695
        %v4458 = vpow.pop %v4457
        %v4459 = vsel %vm1447, %v4458, 0.0
        %4460 = vadd.xlane.f32.xlu0 %v4459
        %v4461 = vpop.xlane.xlu0 %4460
        %v4462 = vrcp.pop %v4461
        %v4463 = vmul.f32 %v4458, %v4462
        %v4464 = vpack.c.bf16 %v4463, %v4463
        %4465 = vrot.lane.b32.xlu0 %v4080, 72
        %v4466 = vpop.permute.xlu0 %4465
        %v4469 = vsel %vm1447, %v4464, 0
        %4471 = vmatprep.subr.bf16.mxu0 0
        %4472 = vmatpush1.bf16.msra.mxu0 %v4466
        %4473 = vmatprep.subr.bf16.mxu0 0
        %4474 = vmatpush1.bf16.msra.mxu0 0
        %4475 = vmatprep.subr.bf16.mxu0 0
        %4476 = vmatpush1.bf16.msra.mxu0 0
        %4477 = vmatprep.subr.bf16.mxu0 0
        %4478 = vmatpush1.bf16.msra.mxu0 0
        %4479 = vmatprep.subr.bf16.mxu0 0
        %4480 = vmatpush1.bf16.msra.mxu0 0
        %4481 = vmatprep.subr.bf16.mxu0 0
        %4482 = vmatpush1.bf16.msra.mxu0 0
        %4483 = vmatprep.subr.bf16.mxu0 0
        %4484 = vmatpush1.bf16.msra.mxu0 0
        %4485 = vmatprep.subr.bf16.mxu0 0
        %4486 = vmatpush1.bf16.msra.mxu0 0
        %4487 = vmatprep.subr.bf16.mxu0 0
        %4488 = vmatpush1.bf16.msra.mxu0 0
        %4489 = vmatprep.subr.bf16.mxu0 0
        %4490 = vmatpush1.bf16.msra.mxu0 0
        %4491 = vmatprep.subr.bf16.mxu0 0
        %4492 = vmatpush1.bf16.msra.mxu0 0
        %4493 = vmatprep.subr.bf16.mxu0 0
        %4494 = vmatpush1.bf16.msra.mxu0 0
        %4495 = vmatprep.subr.bf16.mxu0 0
        %4496 = vmatpush1.bf16.msra.mxu0 0
        %4497 = vmatprep.subr.bf16.mxu0 0
        %4498 = vmatpush1.bf16.msra.mxu0 0
        %4499 = vmatprep.subr.bf16.mxu0 0
        %4500 = vmatpush1.bf16.msra.mxu0 0
        %4501 = vmatprep.subr.bf16.mxu0 0
        %4502 = vmatpush1.bf16.msra.mxu0 0
        %4503 = vmatprep.mubr.bf16.mxu0 0
        %4504 = vmatmul.mubr.bf16.gmra.mrb[0].mxu0 %v4469
        %v4505 = vpop.f32.mrb[0].mxu0
        %v4506 = vadd.f32 0.0, %v4505
        %v4507 = vpop.f32.mrb[0].mxu0
        %v4508 = vpop.f32.mrb[0].mxu0
        %v4509 = vpop.f32.mrb[0].mxu0
        %4510 = vdwg.mxu0
        %4512 = vrot.lane.b32.xlu0 %v4290, 8
        %v4513 = vpop.permute.xlu0 %4512
        %4516 = vrot.lane.b32.xlu0 %v4398, 16
        %v4517 = vpop.permute.xlu0 %4516
        %4520 = vrot.lane.b32.xlu0 %v4506, 24
        %v4521 = vpop.permute.xlu0 %4520
        %v4523 = vsel %vm1579, %v4181, %v4513
        %v4524 = vsel %vm1447, %v4523, %v4517
        %v4525 = vsel %vm2089, %v4524, %v4521
        %v4526 = vpack.c.bf16 %v4525, %v4525
        %v4528 = vlaneseq
        %v4529 = vshrl.u32 %v4528, 7
        %v4530 = vsub.s32 0, %v4529
        %v4531 = vrot.slane %v4077, %v4530
        %v4537 = vunpack.c.l.b16 %v4073
        %v4538 = vunpack.c.l.b16 %v4074
        %v4539 = vunpack.c.l.b16 %v4075
        %v4540 = vunpack.c.l.b16 %v4076
        %v4541 = vpack.c.b16 %v4538, %v4537
        %v4542 = vpack.c.b16 %v4540, %v4539
        %v4546 = vsel %vm1522, %v4526, 0
        %4548 = vmatprep.subr.bf16.mxu0 0
        %4549 = vmatpush1.bf16.msra.mxu0 %v4541
        %4550 = vmatprep.subr.bf16.mxu0 0
        %4551 = vmatpush1.bf16.msra.mxu0 %v4542
        %4552 = vmatprep.subr.bf16.mxu0 0
        %4553 = vmatpush1.bf16.msra.mxu0 0
        %4554 = vmatprep.subr.bf16.mxu0 0
        %4555 = vmatpush1.bf16.msra.mxu0 0
        %4556 = vmatprep.subr.bf16.mxu0 0
        %4557 = vmatpush1.bf16.msra.mxu0 0
        %4558 = vmatprep.subr.bf16.mxu0 0
        %4559 = vmatpush1.bf16.msra.mxu0 0
        %4560 = vmatprep.subr.bf16.mxu0 0
        %4561 = vmatpush1.bf16.msra.mxu0 0
        %4562 = vmatprep.subr.bf16.mxu0 0
        %4563 = vmatpush1.bf16.msra.mxu0 0
        %4564 = vmatprep.subr.bf16.mxu0 0
        %4565 = vmatpush1.bf16.msra.mxu0 0
        %4566 = vmatprep.subr.bf16.mxu0 0
        %4567 = vmatpush1.bf16.msra.mxu0 0
        %4568 = vmatprep.subr.bf16.mxu0 0
        %4569 = vmatpush1.bf16.msra.mxu0 0
        %4570 = vmatprep.subr.bf16.mxu0 0
        %4571 = vmatpush1.bf16.msra.mxu0 0
        %4572 = vmatprep.subr.bf16.mxu0 0
        %4573 = vmatpush1.bf16.msra.mxu0 0
        %4574 = vmatprep.subr.bf16.mxu0 0
        %4575 = vmatpush1.bf16.msra.mxu0 0
        %4576 = vmatprep.subr.bf16.mxu0 0
        %4577 = vmatpush1.bf16.msra.mxu0 0
        %4578 = vmatprep.subr.bf16.mxu0 0
        %4579 = vmatpush1.bf16.msra.mxu0 0
        %4580 = vmatprep.mubr.bf16.mxu0 0
        %4581 = vmatmul.mubr.bf16.gmra.mrb[0].mxu0 %v4546
        %v4582 = vpop.f32.mrb[0].mxu0
        %v4583 = vadd.f32 %v4531, %v4582
        %v4584 = vpop.f32.mrb[0].mxu0
        %v4585 = vpop.f32.mrb[0].mxu0
        %v4586 = vpop.f32.mrb[0].mxu0
        %4587 = vdwg.mxu0
        %v4588 = vadd.f32 %v4583, %v3937
        %v4589 = vld [vmem:[%s61] sm:$0x1]
        %v4590 = vld [vmem:[#allocation14] sm:$0x1]
        %v4591 = vsel %vm1522, %v4588, 0.0
        %4592 = vadd.xlane.f32.xlu0 %v4591
        %v4593 = vpop.xlane.xlu0 %4592
        %v4594 = vmul.f32 %v4593, %v2165
        %v4595 = vsub.f32 %v4588, %v4594
        %v4596 = vmul.f32 %v4595, %v4595
        %v4597 = vsel %vm1522, %v4596, 0.0
        %4598 = vadd.xlane.f32.xlu0 %v4597
        %v4599 = vpop.xlane.xlu0 %4598
        %v4600 = vmul.f32 %v4599, %v2165
        %v4601 = vadd.f32 %v4600, 1e-06
        %v4602 = vrsqrt.pop %v4601
        %v4603 = vmul.f32 %v4595, %v4602
        %v4605 = vlaneseq
        %v4606 = vshrl.u32 %v4605, 7
        %v4607 = vsub.s32 0, %v4606
        %v4608 = vrot.slane %v4589, %v4607
        %v4610 = vmul.f32 %v4603, %v4608
        %v4612 = vlaneseq
        %v4613 = vshrl.u32 %v4612, 7
        %v4614 = vsub.s32 0, %v4613
        %v4615 = vrot.slane %v4590, %v4614
        %v4617 = vadd.f32 %v4610, %v4615
        %v4618 = vld [vmem:[%s65] sm:$0xf]
        %v4619 = vld [vmem:[%s65 + $0x4] sm:$0xf]
        %v4620 = vld [vmem:[%s65 + $0x8] sm:$0xf]
        %v4621 = vld [vmem:[%s65 + $0xc] sm:$0xf]
        %v4622 = vld [vmem:[#allocation16] sm:$0x1]
        %v4623 = vpack.c.bf16 %v4617, %v4617
        %v4625 = vlaneseq
        %v4626 = vshrl.u32 %v4625, 7
        %v4627 = vsub.s32 0, %v4626
        %v4628 = vrot.slane %v4622, %v4627
        %v4634 = vunpack.c.l.b16 %v4618
        %v4635 = vunpack.c.l.b16 %v4619
        %v4636 = vunpack.c.l.b16 %v4620
        %v4637 = vunpack.c.l.b16 %v4621
        %v4638 = vpack.c.b16 %v4635, %v4634
        %v4639 = vpack.c.b16 %v4637, %v4636
        %v4643 = vsel %vm1522, %v4623, 0
        %4645 = vmatprep.subr.bf16.mxu0 0
        %4646 = vmatpush1.bf16.msra.mxu0 %v4638
        %4647 = vmatprep.subr.bf16.mxu0 0
        %4648 = vmatpush1.bf16.msra.mxu0 %v4639
        %4649 = vmatprep.subr.bf16.mxu0 0
        %4650 = vmatpush1.bf16.msra.mxu0 0
        %4651 = vmatprep.subr.bf16.mxu0 0
        %4652 = vmatpush1.bf16.msra.mxu0 0
        %4653 = vmatprep.subr.bf16.mxu0 0
        %4654 = vmatpush1.bf16.msra.mxu0 0
        %4655 = vmatprep.subr.bf16.mxu0 0
        %4656 = vmatpush1.bf16.msra.mxu0 0
        %4657 = vmatprep.subr.bf16.mxu0 0
        %4658 = vmatpush1.bf16.msra.mxu0 0
        %4659 = vmatprep.subr.bf16.mxu0 0
        %4660 = vmatpush1.bf16.msra.mxu0 0
        %4661 = vmatprep.subr.bf16.mxu0 0
        %4662 = vmatpush1.bf16.msra.mxu0 0
        %4663 = vmatprep.subr.bf16.mxu0 0
        %4664 = vmatpush1.bf16.msra.mxu0 0
        %4665 = vmatprep.subr.bf16.mxu0 0
        %4666 = vmatpush1.bf16.msra.mxu0 0
        %4667 = vmatprep.subr.bf16.mxu0 0
        %4668 = vmatpush1.bf16.msra.mxu0 0
        %4669 = vmatprep.subr.bf16.mxu0 0
        %4670 = vmatpush1.bf16.msra.mxu0 0
        %4671 = vmatprep.subr.bf16.mxu0 0
        %4672 = vmatpush1.bf16.msra.mxu0 0
        %4673 = vmatprep.subr.bf16.mxu0 0
        %4674 = vmatpush1.bf16.msra.mxu0 0
        %4675 = vmatprep.subr.bf16.mxu0 0
        %4676 = vmatpush1.bf16.msra.mxu0 0
        %4677 = vmatprep.mubr.bf16.mxu0 0
        %4678 = vmatmul.mubr.bf16.gmra.mrb[0].mxu0 %v4643
        %v4679 = vpop.f32.mrb[0].mxu0
        %v4680 = vadd.f32 %v4628, %v4679
        %v4681 = vpop.f32.mrb[0].mxu0
        %v4682 = vpop.f32.mrb[0].mxu0
        %v4683 = vpop.f32.mrb[0].mxu0
        %4684 = vdwg.mxu0
        %v4685 = vmax.f32 %v4680, 0.0
        %v4686 = vld [vmem:[%s69] sm:$0xf]
        %v4687 = vld [vmem:[%s69 + $0x4] sm:$0xf]
        %v4688 = vld [vmem:[%s69 + $0x8] sm:$0xf]
        %v4689 = vld [vmem:[%s69 + $0xc] sm:$0xf]
        %v4690 = vld [vmem:[%s69 + $0x10] sm:$0xf]
        %v4691 = vld [vmem:[%s69 + $0x14] sm:$0xf]
        %v4692 = vld [vmem:[%s69 + $0x18] sm:$0xf]
        %v4693 = vld [vmem:[%s69 + $0x1c] sm:$0xf]
        %v4694 = vld [vmem:[#allocation17] sm:$0x1]
        %v4695 = vpack.c.bf16 %v4685, %v4685
        %v4697 = vlaneseq
        %v4698 = vshrl.u32 %v4697, 7
        %v4699 = vsub.s32 0, %v4698
        %v4700 = vrot.slane %v4694, %v4699
        %v4710 = vunpack.c.l.b16 %v4686
        %v4711 = vunpack.c.l.b16 %v4687
        %v4712 = vunpack.c.l.b16 %v4688
        %v4713 = vunpack.c.l.b16 %v4689
        %v4714 = vunpack.c.l.b16 %v4690
        %v4715 = vunpack.c.l.b16 %v4691
        %v4716 = vunpack.c.l.b16 %v4692
        %v4717 = vunpack.c.l.b16 %v4693
        %v4718 = vpack.c.b16 %v4711, %v4710
        %v4719 = vpack.c.b16 %v4713, %v4712
        %v4720 = vpack.c.b16 %v4715, %v4714
        %v4721 = vpack.c.b16 %v4717, %v4716
        %v4727 = vsel %vm2312, %v4695, 0
        %4729 = vmatprep.subr.bf16.mxu0 0
        %4730 = vmatpush1.bf16.msra.mxu0 %v4718
        %4731 = vmatprep.subr.bf16.mxu0 0
        %4732 = vmatpush1.bf16.msra.mxu0 %v4719
        %4733 = vmatprep.subr.bf16.mxu0 0
        %4734 = vmatpush1.bf16.msra.mxu0 %v4720
        %4735 = vmatprep.subr.bf16.mxu0 0
        %4736 = vmatpush1.bf16.msra.mxu0 %v4721
        %4737 = vmatprep.subr.bf16.mxu0 0
        %4738 = vmatpush1.bf16.msra.mxu0 0
        %4739 = vmatprep.subr.bf16.mxu0 0
        %4740 = vmatpush1.bf16.msra.mxu0 0
        %4741 = vmatprep.subr.bf16.mxu0 0
        %4742 = vmatpush1.bf16.msra.mxu0 0
        %4743 = vmatprep.subr.bf16.mxu0 0
        %4744 = vmatpush1.bf16.msra.mxu0 0
        %4745 = vmatprep.subr.bf16.mxu0 0
        %4746 = vmatpush1.bf16.msra.mxu0 0
        %4747 = vmatprep.subr.bf16.mxu0 0
        %4748 = vmatpush1.bf16.msra.mxu0 0
        %4749 = vmatprep.subr.bf16.mxu0 0
        %4750 = vmatpush1.bf16.msra.mxu0 0
        %4751 = vmatprep.subr.bf16.mxu0 0
        %4752 = vmatpush1.bf16.msra.mxu0 0
        %4753 = vmatprep.subr.bf16.mxu0 0
        %4754 = vmatpush1.bf16.msra.mxu0 0
        %4755 = vmatprep.subr.bf16.mxu0 0
        %4756 = vmatpush1.bf16.msra.mxu0 0
        %4757 = vmatprep.subr.bf16.mxu0 0
        %4758 = vmatpush1.bf16.msra.mxu0 0
        %4759 = vmatprep.subr.bf16.mxu0 0
        %4760 = vmatpush1.bf16.msra.mxu0 0
        %4761 = vmatprep.mubr.bf16.mxu0 0
        %4762 = vmatmul.mubr.bf16.gmra.mrb[0].mxu0 %v4727
        %v4763 = vpop.f32.mrb[0].mxu0
        %v4764 = vadd.f32 %v4700, %v4763
        %v4765 = vpop.f32.mrb[0].mxu0
        %v4766 = vpop.f32.mrb[0].mxu0
        %v4767 = vpop.f32.mrb[0].mxu0
        %4768 = vdwg.mxu0
        %v4769 = vadd.f32 %v4764, %v4617
        %v4770 = vld [vmem:[%s73] sm:$0x1]
        %v4771 = vld [vmem:[#allocation19] sm:$0x1]
        %v4772 = vsel %vm1522, %v4769, 0.0
        %4773 = vadd.xlane.f32.xlu0 %v4772
        %v4774 = vpop.xlane.xlu0 %4773
        %v4775 = vmul.f32 %v4774, %v2165
        %v4776 = vsub.f32 %v4769, %v4775
        %v4777 = vmul.f32 %v4776, %v4776
        %v4778 = vsel %vm1522, %v4777, 0.0
        %4779 = vadd.xlane.f32.xlu0 %v4778
        %v4780 = vpop.xlane.xlu0 %4779
        %v4781 = vmul.f32 %v4780, %v2165
        %v4782 = vadd.f32 %v4781, 1e-06
        %v4783 = vrsqrt.pop %v4782
        %v4784 = vmul.f32 %v4776, %v4783
        %v4786 = vlaneseq
        %v4787 = vshrl.u32 %v4786, 7
        %v4788 = vsub.s32 0, %v4787
        %v4789 = vrot.slane %v4770, %v4788
        %v4791 = vmul.f32 %v4784, %v4789
        %v4793 = vlaneseq
        %v4794 = vshrl.u32 %v4793, 7
        %v4795 = vsub.s32 0, %v4794
        %v4796 = vrot.slane %v4771, %v4795
        %v4798 = vadd.f32 %v4791, %v4796
        %s4799 = scalar_lea.vmem %s37, 16
        %v4800 = vld [vmem:[%s4799] sm:$0xf]
        %v4801 = vld [vmem:[%s4799 + $0x4] sm:$0xf]
        %v4802 = vld [vmem:[%s4799 + $0x8] sm:$0xf]
        %v4803 = vld [vmem:[%s4799 + $0xc] sm:$0xf]
        %s4804 = scalar_lea.vmem [#allocation5], 1
        %v4805 = vld [vmem:[%s4804] sm:$0x1]
        %v4806 = vpack.c.bf16 %v4798, %v4798
        %v4808 = vlaneseq
        %v4809 = vshrl.u32 %v4808, 7
        %v4810 = vsub.s32 0, %v4809
        %v4811 = vrot.slane %v4805, %v4810
        %v4817 = vunpack.c.l.b16 %v4800
        %v4818 = vunpack.c.l.b16 %v4801
        %v4819 = vunpack.c.l.b16 %v4802
        %v4820 = vunpack.c.l.b16 %v4803
        %v4821 = vpack.c.b16 %v4818, %v4817
        %v4822 = vpack.c.b16 %v4820, %v4819
        %v4826 = vsel %vm1522, %v4806, 0
        %4828 = vmatprep.subr.bf16.mxu0 0
        %4829 = vmatpush1.bf16.msra.mxu0 %v4821
        %4830 = vmatprep.subr.bf16.mxu0 0
        %4831 = vmatpush1.bf16.msra.mxu0 %v4822
        %4832 = vmatprep.subr.bf16.mxu0 0
        %4833 = vmatpush1.bf16.msra.mxu0 0
        %4834 = vmatprep.subr.bf16.mxu0 0
        %4835 = vmatpush1.bf16.msra.mxu0 0
        %4836 = vmatprep.subr.bf16.mxu0 0
        %4837 = vmatpush1.bf16.msra.mxu0 0
        %4838 = vmatprep.subr.bf16.mxu0 0
        %4839 = vmatpush1.bf16.msra.mxu0 0
        %4840 = vmatprep.subr.bf16.mxu0 0
        %4841 = vmatpush1.bf16.msra.mxu0 0
        %4842 = vmatprep.subr.bf16.mxu0 0
        %4843 = vmatpush1.bf16.msra.mxu0 0
        %4844 = vmatprep.subr.bf16.mxu0 0
        %4845 = vmatpush1.bf16.msra.mxu0 0
        %4846 = vmatprep.subr.bf16.mxu0 0
        %4847 = vmatpush1.bf16.msra.mxu0 0
        %4848 = vmatprep.subr.bf16.mxu0 0
        %4849 = vmatpush1.bf16.msra.mxu0 0
        %4850 = vmatprep.subr.bf16.mxu0 0
        %4851 = vmatpush1.bf16.msra.mxu0 0
        %4852 = vmatprep.subr.bf16.mxu0 0
        %4853 = vmatpush1.bf16.msra.mxu0 0
        %4854 = vmatprep.subr.bf16.mxu0 0
        %4855 = vmatpush1.bf16.msra.mxu0 0
        %4856 = vmatprep.subr.bf16.mxu0 0
        %4857 = vmatpush1.bf16.msra.mxu0 0
        %4858 = vmatprep.subr.bf16.mxu0 0
        %4859 = vmatpush1.bf16.msra.mxu0 0
        %4860 = vmatprep.mubr.bf16.mxu0 0
        %4861 = vmatmul.mubr.bf16.gmra.mrb[0].mxu0 %v4826
        %v4862 = vpop.f32.mrb[0].mxu0
        %v4863 = vadd.f32 %v4811, %v4862
        %v4864 = vpop.f32.mrb[0].mxu0
        %v4865 = vpop.f32.mrb[0].mxu0
        %v4866 = vpop.f32.mrb[0].mxu0
        %4867 = vdwg.mxu0
        %s4868 = scalar_lea.vmem %s41, 16
        %v4869 = vld [vmem:[%s4868] sm:$0xf]
        %v4870 = vld [vmem:[%s4868 + $0x4] sm:$0xf]
        %v4871 = vld [vmem:[%s4868 + $0x8] sm:$0xf]
        %v4872 = vld [vmem:[%s4868 + $0xc] sm:$0xf]
        %s4873 = scalar_lea.vmem [#allocation7], 1
        %v4874 = vld [vmem:[%s4873] sm:$0x1]
        %v4875 = vmul.f32 %v4863, 0.35355338
        %v4876 = vpack.c.bf16 %v4875, %v4875
        %v4877 = vpack.c.bf16 %v4863, %v4863
        %4879 = vrot.lane.b32.xlu0 %v4877, 96
        %v4880 = vpop.permute.xlu0 %4879
        %v4882 = vsel %vm1579, %v4876, 0
        %v4885 = vsel %vm1579, %v4880, 0
        %4887 = vmatprep.subr.bf16.mxu0 0
        %4888 = vmatpush1.bf16.xpose.msra.mxu0 %v4885
        %4889 = vmatprep.subr.bf16.mxu0 0
        %4890 = vmatpush1.bf16.xpose.msra.mxu0 0
        %4891 = vmatprep.subr.bf16.mxu0 0
        %4892 = vmatpush1.bf16.xpose.msra.mxu0 0
        %4893 = vmatprep.subr.bf16.mxu0 0
        %4894 = vmatpush1.bf16.xpose.msra.mxu0 0
        %4895 = vmatprep.subr.bf16.mxu0 0
        %4896 = vmatpush1.bf16.xpose.msra.mxu0 0
        %4897 = vmatprep.subr.bf16.mxu0 0
        %4898 = vmatpush1.bf16.xpose.msra.mxu0 0
        %4899 = vmatprep.subr.bf16.mxu0 0
        %4900 = vmatpush1.bf16.xpose.msra.mxu0 0
        %4901 = vmatprep.subr.bf16.mxu0 0
        %4902 = vmatpush1.bf16.xpose.msra.mxu0 0
        %4903 = vmatprep.subr.bf16.mxu0 0
        %4904 = vmatpush1.bf16.xpose.msra.mxu0 0
        %4905 = vmatprep.subr.bf16.mxu0 0
        %4906 = vmatpush1.bf16.xpose.msra.mxu0 0
        %4907 = vmatprep.subr.bf16.mxu0 0
        %4908 = vmatpush1.bf16.xpose.msra.mxu0 0
        %4909 = vmatprep.subr.bf16.mxu0 0
        %4910 = vmatpush1.bf16.xpose.msra.mxu0 0
        %4911 = vmatprep.subr.bf16.mxu0 0
        %4912 = vmatpush1.bf16.xpose.msra.mxu0 0
        %4913 = vmatprep.subr.bf16.mxu0 0
        %4914 = vmatpush1.bf16.xpose.msra.mxu0 0
        %4915 = vmatprep.subr.bf16.mxu0 0
        %4916 = vmatpush1.bf16.xpose.msra.mxu0 0
        %4917 = vmatprep.subr.bf16.mxu0 0
        %4918 = vmatpush1.bf16.xpose.msra.mxu0 0
        %4919 = vmatprep.mubr.bf16.mxu0 0
        %4920 = vmatmul.mubr.bf16.gmra.mrb[0].mxu0 %v4882
        %v4921 = vpop.f32.mrb[0].mxu0
        %v4922 = vadd.f32 %v1428, %v4921
        %v4923 = vpop.f32.mrb[0].mxu0
        %v4924 = vpop.f32.mrb[0].mxu0
        %v4925 = vpop.f32.mrb[0].mxu0
        %4926 = vdwg.mxu0
        %v4927 = vsel %vm1579, %v4922, -inf
        %4928 = vmax.xlane.f32.xlu0 %v4927
        %v4929 = vpop.xlane.xlu0 %4928
        %v4930 = vsub.f32 %v4922, %v4929
        %v4931 = vmul.f32 %v4930, 1.442695
        %v4932 = vpow.pop %v4931
        %v4933 = vsel %vm1579, %v4932, 0.0
        %4934 = vadd.xlane.f32.xlu0 %v4933
        %v4935 = vpop.xlane.xlu0 %4934
        %v4936 = vrcp.pop %v4935
        %v4937 = vmul.f32 %v4932, %v4936
        %v4938 = vpack.c.bf16 %v4937, %v4937
        %4939 = vrot.lane.b32.xlu0 %v4877, 64
        %v4940 = vpop.permute.xlu0 %4939
        %v4942 = vsel %vm1579, %v4938, 0
        %v4945 = vsel %vm3456, %v4940, 0
        %4947 = vmatprep.subr.bf16.mxu0 0
        %4948 = vmatpush1.bf16.msra.mxu0 %v4945
        %4949 = vmatprep.subr.bf16.mxu0 0
        %4950 = vmatpush1.bf16.msra.mxu0 0
        %4951 = vmatprep.subr.bf16.mxu0 0
        %4952 = vmatpush1.bf16.msra.mxu0 0
        %4953 = vmatprep.subr.bf16.mxu0 0
        %4954 = vmatpush1.bf16.msra.mxu0 0
        %4955 = vmatprep.subr.bf16.mxu0 0
        %4956 = vmatpush1.bf16.msra.mxu0 0
        %4957 = vmatprep.subr.bf16.mxu0 0
        %4958 = vmatpush1.bf16.msra.mxu0 0
        %4959 = vmatprep.subr.bf16.mxu0 0
        %4960 = vmatpush1.bf16.msra.mxu0 0
        %4961 = vmatprep.subr.bf16.mxu0 0
        %4962 = vmatpush1.bf16.msra.mxu0 0
        %4963 = vmatprep.subr.bf16.mxu0 0
        %4964 = vmatpush1.bf16.msra.mxu0 0
        %4965 = vmatprep.subr.bf16.mxu0 0
        %4966 = vmatpush1.bf16.msra.mxu0 0
        %4967 = vmatprep.subr.bf16.mxu0 0
        %4968 = vmatpush1.bf16.msra.mxu0 0
        %4969 = vmatprep.subr.bf16.mxu0 0
        %4970 = vmatpush1.bf16.msra.mxu0 0
        %4971 = vmatprep.subr.bf16.mxu0 0
        %4972 = vmatpush1.bf16.msra.mxu0 0
        %4973 = vmatprep.subr.bf16.mxu0 0
        %4974 = vmatpush1.bf16.msra.mxu0 0
        %4975 = vmatprep.subr.bf16.mxu0 0
        %4976 = vmatpush1.bf16.msra.mxu0 0
        %4977 = vmatprep.subr.bf16.mxu0 0
        %4978 = vmatpush1.bf16.msra.mxu0 0
        %4979 = vmatprep.mubr.bf16.mxu0 0
        %4980 = vmatmul.mubr.bf16.gmra.mrb[0].mxu0 %v4942
        %v4981 = vpop.f32.mrb[0].mxu0
        %v4982 = vadd.f32 0.0, %v4981
        %v4983 = vpop.f32.mrb[0].mxu0
        %v4984 = vpop.f32.mrb[0].mxu0
        %v4985 = vpop.f32.mrb[0].mxu0
        %4986 = vdwg.mxu0
        %4988 = vrot.lane.b32.xlu0 %v4876, 120
        %v4989 = vpop.permute.xlu0 %4988
        %4990 = vrot.lane.b32.xlu0 %v4877, 88
        %v4991 = vpop.permute.xlu0 %4990
        %v4993 = vsel %vm1579, %v4989, 0
        %v4996 = vsel %vm1579, %v4991, 0
        %4998 = vmatprep.subr.bf16.mxu0 0
        %4999 = vmatpush1.bf16.xpose.msra.mxu0 %v4996
        %5000 = vmatprep.subr.bf16.mxu0 0
        %5001 = vmatpush1.bf16.xpose.msra.mxu0 0
        %5002 = vmatprep.subr.bf16.mxu0 0
        %5003 = vmatpush1.bf16.xpose.msra.mxu0 0
        %5004 = vmatprep.subr.bf16.mxu0 0
        %5005 = vmatpush1.bf16.xpose.msra.mxu0 0
        %5006 = vmatprep.subr.bf16.mxu0 0
        %5007 = vmatpush1.bf16.xpose.msra.mxu0 0
        %5008 = vmatprep.subr.bf16.mxu0 0
        %5009 = vmatpush1.bf16.xpose.msra.mxu0 0
        %5010 = vmatprep.subr.bf16.mxu0 0
        %5011 = vmatpush1.bf16.xpose.msra.mxu0 0
        %5012 = vmatprep.subr.bf16.mxu0 0
        %5013 = vmatpush1.bf16.xpose.msra.mxu0 0
        %5014 = vmatprep.subr.bf16.mxu0 0
        %5015 = vmatpush1.bf16.xpose.msra.mxu0 0
        %5016 = vmatprep.subr.bf16.mxu0 0
        %5017 = vmatpush1.bf16.xpose.msra.mxu0 0
        %5018 = vmatprep.subr.bf16.mxu0 0
        %5019 = vmatpush1.bf16.xpose.msra.mxu0 0
        %5020 = vmatprep.subr.bf16.mxu0 0
        %5021 = vmatpush1.bf16.xpose.msra.mxu0 0
        %5022 = vmatprep.subr.bf16.mxu0 0
        %5023 = vmatpush1.bf16.xpose.msra.mxu0 0
        %5024 = vmatprep.subr.bf16.mxu0 0
        %5025 = vmatpush1.bf16.xpose.msra.mxu0 0
        %5026 = vmatprep.subr.bf16.mxu0 0
        %5027 = vmatpush1.bf16.xpose.msra.mxu0 0
        %5028 = vmatprep.subr.bf16.mxu0 0
        %5029 = vmatpush1.bf16.xpose.msra.mxu0 0
        %5030 = vmatprep.mubr.bf16.mxu0 0
        %5031 = vmatmul.mubr.bf16.gmra.mrb[0].mxu0 %v4993
        %v5032 = vpop.f32.mrb[0].mxu0
        %v5033 = vadd.f32 %v1428, %v5032
        %v5034 = vpop.f32.mrb[0].mxu0
        %v5035 = vpop.f32.mrb[0].mxu0
        %v5036 = vpop.f32.mrb[0].mxu0
        %5037 = vdwg.mxu0
        %v5038 = vsel %vm1579, %v5033, -inf
        %5039 = vmax.xlane.f32.xlu0 %v5038
        %v5040 = vpop.xlane.xlu0 %5039
        %v5041 = vsub.f32 %v5033, %v5040
        %v5042 = vmul.f32 %v5041, 1.442695
        %v5043 = vpow.pop %v5042
        %v5044 = vsel %vm1579, %v5043, 0.0
        %5045 = vadd.xlane.f32.xlu0 %v5044
        %v5046 = vpop.xlane.xlu0 %5045
        %v5047 = vrcp.pop %v5046
        %v5048 = vmul.f32 %v5043, %v5047
        %v5049 = vpack.c.bf16 %v5048, %v5048
        %5050 = vrot.lane.b32.xlu0 %v4877, 56
        %v5051 = vpop.permute.xlu0 %5050
        %v5053 = vsel %vm1579, %v5049, 0
        %v5056 = vsel %vm3456, %v5051, 0
        %5058 = vmatprep.subr.bf16.mxu0 0
        %5059 = vmatpush1.bf16.msra.mxu0 %v5056
        %5060 = vmatprep.subr.bf16.mxu0 0
        %5061 = vmatpush1.bf16.msra.mxu0 0
        %5062 = vmatprep.subr.bf16.mxu0 0
        %5063 = vmatpush1.bf16.msra.mxu0 0
        %5064 = vmatprep.subr.bf16.mxu0 0
        %5065 = vmatpush1.bf16.msra.mxu0 0
        %5066 = vmatprep.subr.bf16.mxu0 0
        %5067 = vmatpush1.bf16.msra.mxu0 0
        %5068 = vmatprep.subr.bf16.mxu0 0
        %5069 = vmatpush1.bf16.msra.mxu0 0
        %5070 = vmatprep.subr.bf16.mxu0 0
        %5071 = vmatpush1.bf16.msra.mxu0 0
        %5072 = vmatprep.subr.bf16.mxu0 0
        %5073 = vmatpush1.bf16.msra.mxu0 0
        %5074 = vmatprep.subr.bf16.mxu0 0
        %5075 = vmatpush1.bf16.msra.mxu0 0
        %5076 = vmatprep.subr.bf16.mxu0 0
        %5077 = vmatpush1.bf16.msra.mxu0 0
        %5078 = vmatprep.subr.bf16.mxu0 0
        %5079 = vmatpush1.bf16.msra.mxu0 0
        %5080 = vmatprep.subr.bf16.mxu0 0
        %5081 = vmatpush1.bf16.msra.mxu0 0
        %5082 = vmatprep.subr.bf16.mxu0 0
        %5083 = vmatpush1.bf16.msra.mxu0 0
        %5084 = vmatprep.subr.bf16.mxu0 0
        %5085 = vmatpush1.bf16.msra.mxu0 0
        %5086 = vmatprep.subr.bf16.mxu0 0
        %5087 = vmatpush1.bf16.msra.mxu0 0
        %5088 = vmatprep.subr.bf16.mxu0 0
        %5089 = vmatpush1.bf16.msra.mxu0 0
        %5090 = vmatprep.mubr.bf16.mxu0 0
        %5091 = vmatmul.mubr.bf16.gmra.mrb[0].mxu0 %v5053
        %v5092 = vpop.f32.mrb[0].mxu0
        %v5093 = vadd.f32 0.0, %v5092
        %v5094 = vpop.f32.mrb[0].mxu0
        %v5095 = vpop.f32.mrb[0].mxu0
        %v5096 = vpop.f32.mrb[0].mxu0
        %5097 = vdwg.mxu0
        %5098 = vrot.lane.b32.xlu0 %v4876, 112
        %v5099 = vpop.permute.xlu0 %5098
        %5100 = vrot.lane.b32.xlu0 %v4877, 80
        %v5101 = vpop.permute.xlu0 %5100
        %v5103 = vsel %vm1579, %v5099, 0
        %v5106 = vsel %vm1579, %v5101, 0
        %5108 = vmatprep.subr.bf16.mxu0 0
        %5109 = vmatpush1.bf16.xpose.msra.mxu0 %v5106
        %5110 = vmatprep.subr.bf16.mxu0 0
        %5111 = vmatpush1.bf16.xpose.msra.mxu0 0
        %5112 = vmatprep.subr.bf16.mxu0 0
        %5113 = vmatpush1.bf16.xpose.msra.mxu0 0
        %5114 = vmatprep.subr.bf16.mxu0 0
        %5115 = vmatpush1.bf16.xpose.msra.mxu0 0
        %5116 = vmatprep.subr.bf16.mxu0 0
        %5117 = vmatpush1.bf16.xpose.msra.mxu0 0
        %5118 = vmatprep.subr.bf16.mxu0 0
        %5119 = vmatpush1.bf16.xpose.msra.mxu0 0
        %5120 = vmatprep.subr.bf16.mxu0 0
        %5121 = vmatpush1.bf16.xpose.msra.mxu0 0
        %5122 = vmatprep.subr.bf16.mxu0 0
        %5123 = vmatpush1.bf16.xpose.msra.mxu0 0
        %5124 = vmatprep.subr.bf16.mxu0 0
        %5125 = vmatpush1.bf16.xpose.msra.mxu0 0
        %5126 = vmatprep.subr.bf16.mxu0 0
        %5127 = vmatpush1.bf16.xpose.msra.mxu0 0
        %5128 = vmatprep.subr.bf16.mxu0 0
        %5129 = vmatpush1.bf16.xpose.msra.mxu0 0
        %5130 = vmatprep.subr.bf16.mxu0 0
        %5131 = vmatpush1.bf16.xpose.msra.mxu0 0
        %5132 = vmatprep.subr.bf16.mxu0 0
        %5133 = vmatpush1.bf16.xpose.msra.mxu0 0
        %5134 = vmatprep.subr.bf16.mxu0 0
        %5135 = vmatpush1.bf16.xpose.msra.mxu0 0
        %5136 = vmatprep.subr.bf16.mxu0 0
        %5137 = vmatpush1.bf16.xpose.msra.mxu0 0
        %5138 = vmatprep.subr.bf16.mxu0 0
        %5139 = vmatpush1.bf16.xpose.msra.mxu0 0
        %5140 = vmatprep.mubr.bf16.mxu0 0
        %5141 = vmatmul.mubr.bf16.gmra.mrb[0].mxu0 %v5103
        %v5142 = vpop.f32.mrb[0].mxu0
        %v5143 = vadd.f32 %v1428, %v5142
        %v5144 = vpop.f32.mrb[0].mxu0
        %v5145 = vpop.f32.mrb[0].mxu0
        %v5146 = vpop.f32.mrb[0].mxu0
        %5147 = vdwg.mxu0
        %v5148 = vsel %vm1579, %v5143, -inf
        %5149 = vmax.xlane.f32.xlu0 %v5148
        %v5150 = vpop.xlane.xlu0 %5149
        %v5151 = vsub.f32 %v5143, %v5150
        %v5152 = vmul.f32 %v5151, 1.442695
        %v5153 = vpow.pop %v5152
        %v5154 = vsel %vm1579, %v5153, 0.0
        %5155 = vadd.xlane.f32.xlu0 %v5154
        %v5156 = vpop.xlane.xlu0 %5155
        %v5157 = vrcp.pop %v5156
        %v5158 = vmul.f32 %v5153, %v5157
        %v5159 = vpack.c.bf16 %v5158, %v5158
        %5160 = vrot.lane.b32.xlu0 %v4877, 48
        %v5161 = vpop.permute.xlu0 %5160
        %v5163 = vsel %vm1579, %v5159, 0
        %v5166 = vsel %vm3456, %v5161, 0
        %5168 = vmatprep.subr.bf16.mxu0 0
        %5169 = vmatpush1.bf16.msra.mxu0 %v5166
        %5170 = vmatprep.subr.bf16.mxu0 0
        %5171 = vmatpush1.bf16.msra.mxu0 0
        %5172 = vmatprep.subr.bf16.mxu0 0
        %5173 = vmatpush1.bf16.msra.mxu0 0
        %5174 = vmatprep.subr.bf16.mxu0 0
        %5175 = vmatpush1.bf16.msra.mxu0 0
        %5176 = vmatprep.subr.bf16.mxu0 0
        %5177 = vmatpush1.bf16.msra.mxu0 0
        %5178 = vmatprep.subr.bf16.mxu0 0
        %5179 = vmatpush1.bf16.msra.mxu0 0
        %5180 = vmatprep.subr.bf16.mxu0 0
        %5181 = vmatpush1.bf16.msra.mxu0 0
        %5182 = vmatprep.subr.bf16.mxu0 0
        %5183 = vmatpush1.bf16.msra.mxu0 0
        %5184 = vmatprep.subr.bf16.mxu0 0
        %5185 = vmatpush1.bf16.msra.mxu0 0
        %5186 = vmatprep.subr.bf16.mxu0 0
        %5187 = vmatpush1.bf16.msra.mxu0 0
        %5188 = vmatprep.subr.bf16.mxu0 0
        %5189 = vmatpush1.bf16.msra.mxu0 0
        %5190 = vmatprep.subr.bf16.mxu0 0
        %5191 = vmatpush1.bf16.msra.mxu0 0
        %5192 = vmatprep.subr.bf16.mxu0 0
        %5193 = vmatpush1.bf16.msra.mxu0 0
        %5194 = vmatprep.subr.bf16.mxu0 0
        %5195 = vmatpush1.bf16.msra.mxu0 0
        %5196 = vmatprep.subr.bf16.mxu0 0
        %5197 = vmatpush1.bf16.msra.mxu0 0
        %5198 = vmatprep.subr.bf16.mxu0 0
        %5199 = vmatpush1.bf16.msra.mxu0 0
        %5200 = vmatprep.mubr.bf16.mxu0 0
        %5201 = vmatmul.mubr.bf16.gmra.mrb[0].mxu0 %v5163
        %v5202 = vpop.f32.mrb[0].mxu0
        %v5203 = vadd.f32 0.0, %v5202
        %v5204 = vpop.f32.mrb[0].mxu0
        %v5205 = vpop.f32.mrb[0].mxu0
        %v5206 = vpop.f32.mrb[0].mxu0
        %5207 = vdwg.mxu0
        %5208 = vrot.lane.b32.xlu0 %v4876, 104
        %v5209 = vpop.permute.xlu0 %5208
        %5210 = vrot.lane.b32.xlu0 %v4877, 72
        %v5211 = vpop.permute.xlu0 %5210
        %v5213 = vsel %vm1579, %v5209, 0
        %v5216 = vsel %vm1579, %v5211, 0
        %5218 = vmatprep.subr.bf16.mxu0 0
        %5219 = vmatpush1.bf16.xpose.msra.mxu0 %v5216
        %5220 = vmatprep.subr.bf16.mxu0 0
        %5221 = vmatpush1.bf16.xpose.msra.mxu0 0
        %5222 = vmatprep.subr.bf16.mxu0 0
        %5223 = vmatpush1.bf16.xpose.msra.mxu0 0
        %5224 = vmatprep.subr.bf16.mxu0 0
        %5225 = vmatpush1.bf16.xpose.msra.mxu0 0
        %5226 = vmatprep.subr.bf16.mxu0 0
        %5227 = vmatpush1.bf16.xpose.msra.mxu0 0
        %5228 = vmatprep.subr.bf16.mxu0 0
        %5229 = vmatpush1.bf16.xpose.msra.mxu0 0
        %5230 = vmatprep.subr.bf16.mxu0 0
        %5231 = vmatpush1.bf16.xpose.msra.mxu0 0
        %5232 = vmatprep.subr.bf16.mxu0 0
        %5233 = vmatpush1.bf16.xpose.msra.mxu0 0
        %5234 = vmatprep.subr.bf16.mxu0 0
        %5235 = vmatpush1.bf16.xpose.msra.mxu0 0
        %5236 = vmatprep.subr.bf16.mxu0 0
        %5237 = vmatpush1.bf16.xpose.msra.mxu0 0
        %5238 = vmatprep.subr.bf16.mxu0 0
        %5239 = vmatpush1.bf16.xpose.msra.mxu0 0
        %5240 = vmatprep.subr.bf16.mxu0 0
        %5241 = vmatpush1.bf16.xpose.msra.mxu0 0
        %5242 = vmatprep.subr.bf16.mxu0 0
        %5243 = vmatpush1.bf16.xpose.msra.mxu0 0
        %5244 = vmatprep.subr.bf16.mxu0 0
        %5245 = vmatpush1.bf16.xpose.msra.mxu0 0
        %5246 = vmatprep.subr.bf16.mxu0 0
        %5247 = vmatpush1.bf16.xpose.msra.mxu0 0
        %5248 = vmatprep.subr.bf16.mxu0 0
        %5249 = vmatpush1.bf16.xpose.msra.mxu0 0
        %5250 = vmatprep.mubr.bf16.mxu0 0
        %5251 = vmatmul.mubr.bf16.gmra.mrb[0].mxu0 %v5213
        %v5252 = vpop.f32.mrb[0].mxu0
        %v5253 = vadd.f32 %v1428, %v5252
        %v5254 = vpop.f32.mrb[0].mxu0
        %v5255 = vpop.f32.mrb[0].mxu0
        %v5256 = vpop.f32.mrb[0].mxu0
        %5257 = vdwg.mxu0
        %v5258 = vsel %vm1579, %v5253, -inf
        %5259 = vmax.xlane.f32.xlu0 %v5258
        %v5260 = vpop.xlane.xlu0 %5259
        %v5261 = vsub.f32 %v5253, %v5260
        %v5262 = vmul.f32 %v5261, 1.442695
        %v5263 = vpow.pop %v5262
        %v5264 = vsel %vm1579, %v5263, 0.0
        %5265 = vadd.xlane.f32.xlu0 %v5264
        %v5266 = vpop.xlane.xlu0 %5265
        %v5267 = vrcp.pop %v5266
        %v5268 = vmul.f32 %v5263, %v5267
        %v5269 = vpack.c.bf16 %v5268, %v5268
        %5270 = vrot.lane.b32.xlu0 %v4877, 40
        %v5271 = vpop.permute.xlu0 %5270
        %v5273 = vsel %vm1579, %v5269, 0
        %v5276 = vsel %vm3456, %v5271, 0
        %5278 = vmatprep.subr.bf16.mxu0 0
        %5279 = vmatpush1.bf16.msra.mxu0 %v5276
        %5280 = vmatprep.subr.bf16.mxu0 0
        %5281 = vmatpush1.bf16.msra.mxu0 0
        %5282 = vmatprep.subr.bf16.mxu0 0
        %5283 = vmatpush1.bf16.msra.mxu0 0
        %5284 = vmatprep.subr.bf16.mxu0 0
        %5285 = vmatpush1.bf16.msra.mxu0 0
        %5286 = vmatprep.subr.bf16.mxu0 0
        %5287 = vmatpush1.bf16.msra.mxu0 0
        %5288 = vmatprep.subr.bf16.mxu0 0
        %5289 = vmatpush1.bf16.msra.mxu0 0
        %5290 = vmatprep.subr.bf16.mxu0 0
        %5291 = vmatpush1.bf16.msra.mxu0 0
        %5292 = vmatprep.subr.bf16.mxu0 0
        %5293 = vmatpush1.bf16.msra.mxu0 0
        %5294 = vmatprep.subr.bf16.mxu0 0
        %5295 = vmatpush1.bf16.msra.mxu0 0
        %5296 = vmatprep.subr.bf16.mxu0 0
        %5297 = vmatpush1.bf16.msra.mxu0 0
        %5298 = vmatprep.subr.bf16.mxu0 0
        %5299 = vmatpush1.bf16.msra.mxu0 0
        %5300 = vmatprep.subr.bf16.mxu0 0
        %5301 = vmatpush1.bf16.msra.mxu0 0
        %5302 = vmatprep.subr.bf16.mxu0 0
        %5303 = vmatpush1.bf16.msra.mxu0 0
        %5304 = vmatprep.subr.bf16.mxu0 0
        %5305 = vmatpush1.bf16.msra.mxu0 0
        %5306 = vmatprep.subr.bf16.mxu0 0
        %5307 = vmatpush1.bf16.msra.mxu0 0
        %5308 = vmatprep.subr.bf16.mxu0 0
        %5309 = vmatpush1.bf16.msra.mxu0 0
        %5310 = vmatprep.mubr.bf16.mxu0 0
        %5311 = vmatmul.mubr.bf16.gmra.mrb[0].mxu0 %v5273
        %v5312 = vpop.f32.mrb[0].mxu0
        %v5313 = vadd.f32 0.0, %v5312
        %v5314 = vpop.f32.mrb[0].mxu0
        %v5315 = vpop.f32.mrb[0].mxu0
        %v5316 = vpop.f32.mrb[0].mxu0
        %5317 = vdwg.mxu0
        %5319 = vrot.lane.b32.xlu0 %v5093, 8
        %v5320 = vpop.permute.xlu0 %5319
        %5323 = vrot.lane.b32.xlu0 %v5203, 16
        %v5324 = vpop.permute.xlu0 %5323
        %5327 = vrot.lane.b32.xlu0 %v5313, 24
        %v5328 = vpop.permute.xlu0 %5327
        %v5330 = vsel %vm1579, %v4982, %v5320
        %v5331 = vsel %vm1447, %v5330, %v5324
        %v5332 = vsel %vm2089, %v5331, %v5328
        %v5333 = vpack.c.bf16 %v5332, %v5332
        %v5335 = vlaneseq
        %v5336 = vshrl.u32 %v5335, 7
        %v5337 = vsub.s32 0, %v5336
        %v5338 = vrot.slane %v4874, %v5337
        %v5344 = vunpack.c.l.b16 %v4869
        %v5345 = vunpack.c.l.b16 %v4870
        %v5346 = vunpack.c.l.b16 %v4871
        %v5347 = vunpack.c.l.b16 %v4872
        %v5348 = vpack.c.b16 %v5345, %v5344
        %v5349 = vpack.c.b16 %v5347, %v5346
        %v5353 = vsel %vm1522, %v5333, 0
        %5355 = vmatprep.subr.bf16.mxu0 0
        %5356 = vmatpush1.bf16.msra.mxu0 %v5348
        %5357 = vmatprep.subr.bf16.mxu0 0
        %5358 = vmatpush1.bf16.msra.mxu0 %v5349
        %5359 = vmatprep.subr.bf16.mxu0 0
        %5360 = vmatpush1.bf16.msra.mxu0 0
        %5361 = vmatprep.subr.bf16.mxu0 0
        %5362 = vmatpush1.bf16.msra.mxu0 0
        %5363 = vmatprep.subr.bf16.mxu0 0
        %5364 = vmatpush1.bf16.msra.mxu0 0
        %5365 = vmatprep.subr.bf16.mxu0 0
        %5366 = vmatpush1.bf16.msra.mxu0 0
        %5367 = vmatprep.subr.bf16.mxu0 0
        %5368 = vmatpush1.bf16.msra.mxu0 0
        %5369 = vmatprep.subr.bf16.mxu0 0
        %5370 = vmatpush1.bf16.msra.mxu0 0
        %5371 = vmatprep.subr.bf16.mxu0 0
        %5372 = vmatpush1.bf16.msra.mxu0 0
        %5373 = vmatprep.subr.bf16.mxu0 0
        %5374 = vmatpush1.bf16.msra.mxu0 0
        %5375 = vmatprep.subr.bf16.mxu0 0
        %5376 = vmatpush1.bf16.msra.mxu0 0
        %5377 = vmatprep.subr.bf16.mxu0 0
        %5378 = vmatpush1.bf16.msra.mxu0 0
        %5379 = vmatprep.subr.bf16.mxu0 0
        %5380 = vmatpush1.bf16.msra.mxu0 0
        %5381 = vmatprep.subr.bf16.mxu0 0
        %5382 = vmatpush1.bf16.msra.mxu0 0
        %5383 = vmatprep.subr.bf16.mxu0 0
        %5384 = vmatpush1.bf16.msra.mxu0 0
        %5385 = vmatprep.subr.bf16.mxu0 0
        %5386 = vmatpush1.bf16.msra.mxu0 0
        %5387 = vmatprep.mubr.bf16.mxu0 0
        %5388 = vmatmul.mubr.bf16.gmra.mrb[0].mxu0 %v5353
        %v5389 = vpop.f32.mrb[0].mxu0
        %v5390 = vadd.f32 %v5338, %v5389
        %v5391 = vpop.f32.mrb[0].mxu0
        %v5392 = vpop.f32.mrb[0].mxu0
        %v5393 = vpop.f32.mrb[0].mxu0
        %5394 = vdwg.mxu0
        %v5395 = vadd.f32 %v5390, %v4798
        %s5396 = scalar_lea.vmem %s45, 1
        %v5397 = vld [vmem:[%s5396] sm:$0x1]
        %s5398 = scalar_lea.vmem [#allocation8], 1
        %v5399 = vld [vmem:[%s5398] sm:$0x1]
        %v5400 = vsel %vm1522, %v5395, 0.0
        %5401 = vadd.xlane.f32.xlu0 %v5400
        %v5402 = vpop.xlane.xlu0 %5401
        %v5403 = vmul.f32 %v5402, %v2165
        %v5404 = vsub.f32 %v5395, %v5403
        %v5405 = vmul.f32 %v5404, %v5404
        %v5406 = vsel %vm1522, %v5405, 0.0
        %5407 = vadd.xlane.f32.xlu0 %v5406
        %v5408 = vpop.xlane.xlu0 %5407
        %v5409 = vmul.f32 %v5408, %v2165
        %v5410 = vadd.f32 %v5409, 1e-06
        %v5411 = vrsqrt.pop %v5410
        %v5412 = vmul.f32 %v5404, %v5411
        %v5414 = vlaneseq
        %v5415 = vshrl.u32 %v5414, 7
        %v5416 = vsub.s32 0, %v5415
        %v5417 = vrot.slane %v5397, %v5416
        %v5419 = vmul.f32 %v5412, %v5417
        %v5421 = vlaneseq
        %v5422 = vshrl.u32 %v5421, 7
        %v5423 = vsub.s32 0, %v5422
        %v5424 = vrot.slane %v5399, %v5423
        %v5426 = vadd.f32 %v5419, %v5424
        %s5427 = scalar_lea.vmem %s49, 16
        %v5428 = vld [vmem:[%s5427] sm:$0xf]
        %v5429 = vld [vmem:[%s5427 + $0x4] sm:$0xf]
        %v5430 = vld [vmem:[%s5427 + $0x8] sm:$0xf]
        %v5431 = vld [vmem:[%s5427 + $0xc] sm:$0xf]
        %s5432 = scalar_lea.vmem [#allocation10], 1
        %v5433 = vld [vmem:[%s5432] sm:$0x1]
        %v5434 = vpack.c.bf16 %v5426, %v5426
        %v5436 = vlaneseq
        %v5437 = vshrl.u32 %v5436, 7
        %v5438 = vsub.s32 0, %v5437
        %v5439 = vrot.slane %v5433, %v5438
        %v5445 = vunpack.c.l.b16 %v5428
        %v5446 = vunpack.c.l.b16 %v5429
        %v5447 = vunpack.c.l.b16 %v5430
        %v5448 = vunpack.c.l.b16 %v5431
        %v5449 = vpack.c.b16 %v5446, %v5445
        %v5450 = vpack.c.b16 %v5448, %v5447
        %v5454 = vsel %vm1522, %v5434, 0
        %5456 = vmatprep.subr.bf16.mxu0 0
        %5457 = vmatpush1.bf16.msra.mxu0 %v5449
        %5458 = vmatprep.subr.bf16.mxu0 0
        %5459 = vmatpush1.bf16.msra.mxu0 %v5450
        %5460 = vmatprep.subr.bf16.mxu0 0
        %5461 = vmatpush1.bf16.msra.mxu0 0
        %5462 = vmatprep.subr.bf16.mxu0 0
        %5463 = vmatpush1.bf16.msra.mxu0 0
        %5464 = vmatprep.subr.bf16.mxu0 0
        %5465 = vmatpush1.bf16.msra.mxu0 0
        %5466 = vmatprep.subr.bf16.mxu0 0
        %5467 = vmatpush1.bf16.msra.mxu0 0
        %5468 = vmatprep.subr.bf16.mxu0 0
        %5469 = vmatpush1.bf16.msra.mxu0 0
        %5470 = vmatprep.subr.bf16.mxu0 0
        %5471 = vmatpush1.bf16.msra.mxu0 0
        %5472 = vmatprep.subr.bf16.mxu0 0
        %5473 = vmatpush1.bf16.msra.mxu0 0
        %5474 = vmatprep.subr.bf16.mxu0 0
        %5475 = vmatpush1.bf16.msra.mxu0 0
        %5476 = vmatprep.subr.bf16.mxu0 0
        %5477 = vmatpush1.bf16.msra.mxu0 0
        %5478 = vmatprep.subr.bf16.mxu0 0
        %5479 = vmatpush1.bf16.msra.mxu0 0
        %5480 = vmatprep.subr.bf16.mxu0 0
        %5481 = vmatpush1.bf16.msra.mxu0 0
        %5482 = vmatprep.subr.bf16.mxu0 0
        %5483 = vmatpush1.bf16.msra.mxu0 0
        %5484 = vmatprep.subr.bf16.mxu0 0
        %5485 = vmatpush1.bf16.msra.mxu0 0
        %5486 = vmatprep.subr.bf16.mxu0 0
        %5487 = vmatpush1.bf16.msra.mxu0 0
        %5488 = vmatprep.mubr.bf16.mxu0 0
        %5489 = vmatmul.mubr.bf16.gmra.mrb[0].mxu0 %v5454
        %v5490 = vpop.f32.mrb[0].mxu0
        %v5491 = vadd.f32 %v5439, %v5490
        %v5492 = vpop.f32.mrb[0].mxu0
        %v5493 = vpop.f32.mrb[0].mxu0
        %v5494 = vpop.f32.mrb[0].mxu0
        %5495 = vdwg.mxu0
        %s5496 = scalar_lea.vmem %s53, 16
        %v5497 = vld [vmem:[%s5496] sm:$0xf]
        %v5498 = vld [vmem:[%s5496 + $0x4] sm:$0xf]
        %v5499 = vld [vmem:[%s5496 + $0x8] sm:$0xf]
        %v5500 = vld [vmem:[%s5496 + $0xc] sm:$0xf]
        %s5501 = scalar_lea.vmem [#allocation11], 1
        %v5502 = vld [vmem:[%s5501] sm:$0x1]
        %v5504 = vlaneseq
        %v5505 = vshrl.u32 %v5504, 7
        %v5506 = vsub.s32 0, %v5505
        %v5507 = vrot.slane %v5502, %v5506
        %v5513 = vunpack.c.l.b16 %v5497
        %v5514 = vunpack.c.l.b16 %v5498
        %v5515 = vunpack.c.l.b16 %v5499
        %v5516 = vunpack.c.l.b16 %v5500
        %v5517 = vpack.c.b16 %v5514, %v5513
        %v5518 = vpack.c.b16 %v5516, %v5515
        %5521 = vmatprep.subr.bf16.mxu0 0
        %5522 = vmatpush1.bf16.msra.mxu0 %v5517
        %5523 = vmatprep.subr.bf16.mxu0 0
        %5524 = vmatpush1.bf16.msra.mxu0 %v5518
        %5525 = vmatprep.subr.bf16.mxu0 0
        %5526 = vmatpush1.bf16.msra.mxu0 0
        %5527 = vmatprep.subr.bf16.mxu0 0
        %5528 = vmatpush1.bf16.msra.mxu0 0
        %5529 = vmatprep.subr.bf16.mxu0 0
        %5530 = vmatpush1.bf16.msra.mxu0 0
        %5531 = vmatprep.subr.bf16.mxu0 0
        %5532 = vmatpush1.bf16.msra.mxu0 0
        %5533 = vmatprep.subr.bf16.mxu0 0
        %5534 = vmatpush1.bf16.msra.mxu0 0
        %5535 = vmatprep.subr.bf16.mxu0 0
        %5536 = vmatpush1.bf16.msra.mxu0 0
        %5537 = vmatprep.subr.bf16.mxu0 0
        %5538 = vmatpush1.bf16.msra.mxu0 0
        %5539 = vmatprep.subr.bf16.mxu0 0
        %5540 = vmatpush1.bf16.msra.mxu0 0
        %5541 = vmatprep.subr.bf16.mxu0 0
        %5542 = vmatpush1.bf16.msra.mxu0 0
        %5543 = vmatprep.subr.bf16.mxu0 0
        %5544 = vmatpush1.bf16.msra.mxu0 0
        %5545 = vmatprep.subr.bf16.mxu0 0
        %5546 = vmatpush1.bf16.msra.mxu0 0
        %5547 = vmatprep.subr.bf16.mxu0 0
        %5548 = vmatpush1.bf16.msra.mxu0 0
        %5549 = vmatprep.subr.bf16.mxu0 0
        %5550 = vmatpush1.bf16.msra.mxu0 0
        %5551 = vmatprep.subr.bf16.mxu0 0
        %5552 = vmatpush1.bf16.msra.mxu0 0
        %5553 = vmatprep.mubr.bf16.mxu0 0
        %5554 = vmatmul.mubr.bf16.gmra.mrb[0].mxu0 %v4030
        %v5555 = vpop.f32.mrb[0].mxu0
        %v5556 = vadd.f32 %v5507, %v5555
        %v5557 = vpop.f32.mrb[0].mxu0
        %v5558 = vpop.f32.mrb[0].mxu0
        %v5559 = vadd.f32 %v5507, %v5558
        %v5560 = vpop.f32.mrb[0].mxu0
        %5561 = vdwg.mxu0
        %s5562 = scalar_lea.vmem %s57, 16
        %v5563 = vld [vmem:[%s5562] sm:$0xf]
        %v5564 = vld [vmem:[%s5562 + $0x4] sm:$0xf]
        %v5565 = vld [vmem:[%s5562 + $0x8] sm:$0xf]
        %v5566 = vld [vmem:[%s5562 + $0xc] sm:$0xf]
        %s5567 = scalar_lea.vmem [#allocation13], 1
        %v5568 = vld [vmem:[%s5567] sm:$0x1]
        %v5569 = vmul.f32 %v5491, 0.35355338
        %v5570 = vpack.c.bf16 %v5569, %v5569
        %v5571 = vpack.c.bf16 %v5559, %v5556
        %v5573 = vsel %vm1579, %v5570, 0
        %v5576 = vsel %vm1579, %v5571, 0
        %5578 = vmatprep.subr.bf16.mxu0 0
        %5579 = vmatpush1.bf16.xpose.msra.mxu0 %v5576
        %5580 = vmatprep.subr.bf16.mxu0 0
        %5581 = vmatpush1.bf16.xpose.msra.mxu0 0
        %5582 = vmatprep.subr.bf16.mxu0 0
        %5583 = vmatpush1.bf16.xpose.msra.mxu0 0
        %5584 = vmatprep.subr.bf16.mxu0 0
        %5585 = vmatpush1.bf16.xpose.msra.mxu0 0
        %5586 = vmatprep.subr.bf16.mxu0 0
        %5587 = vmatpush1.bf16.xpose.msra.mxu0 0
        %5588 = vmatprep.subr.bf16.mxu0 0
        %5589 = vmatpush1.bf16.xpose.msra.mxu0 0
        %5590 = vmatprep.subr.bf16.mxu0 0
        %5591 = vmatpush1.bf16.xpose.msra.mxu0 0
        %5592 = vmatprep.subr.bf16.mxu0 0
        %5593 = vmatpush1.bf16.xpose.msra.mxu0 0
        %5594 = vmatprep.subr.bf16.mxu0 0
        %5595 = vmatpush1.bf16.xpose.msra.mxu0 0
        %5596 = vmatprep.subr.bf16.mxu0 0
        %5597 = vmatpush1.bf16.xpose.msra.mxu0 0
        %5598 = vmatprep.subr.bf16.mxu0 0
        %5599 = vmatpush1.bf16.xpose.msra.mxu0 0
        %5600 = vmatprep.subr.bf16.mxu0 0
        %5601 = vmatpush1.bf16.xpose.msra.mxu0 0
        %5602 = vmatprep.subr.bf16.mxu0 0
        %5603 = vmatpush1.bf16.xpose.msra.mxu0 0
        %5604 = vmatprep.subr.bf16.mxu0 0
        %5605 = vmatpush1.bf16.xpose.msra.mxu0 0
        %5606 = vmatprep.subr.bf16.mxu0 0
        %5607 = vmatpush1.bf16.xpose.msra.mxu0 0
        %5608 = vmatprep.subr.bf16.mxu0 0
        %5609 = vmatpush1.bf16.xpose.msra.mxu0 0
        %5610 = vmatprep.mubr.bf16.mxu0 0
        %5611 = vmatmul.mubr.bf16.gmra.mrb[0].mxu0 %v5573
        %v5612 = vpop.f32.mrb[0].mxu0
        %v5613 = vadd.f32 0.0, %v5612
        %v5614 = vpop.f32.mrb[0].mxu0
        %v5615 = vpop.f32.mrb[0].mxu0
        %v5616 = vpop.f32.mrb[0].mxu0
        %5617 = vdwg.mxu0
        %v5618 = vsel %vm1447, %v5613, -inf
        %5619 = vmax.xlane.f32.xlu0 %v5618
        %v5620 = vpop.xlane.xlu0 %5619
        %v5621 = vsub.f32 %v5613, %v5620
        %v5622 = vmul.f32 %v5621, 1.442695
        %v5623 = vpow.pop %v5622
        %v5624 = vsel %vm1447, %v5623, 0.0
        %5625 = vadd.xlane.f32.xlu0 %v5624
        %v5626 = vpop.xlane.xlu0 %5625
        %v5627 = vrcp.pop %v5626
        %v5628 = vmul.f32 %v5623, %v5627
        %v5629 = vpack.c.bf16 %v5628, %v5628
        %5631 = vrot.lane.b32.xlu0 %v5571, 96
        %v5632 = vpop.permute.xlu0 %5631
        %v5635 = vsel %vm1447, %v5629, 0
        %5637 = vmatprep.subr.bf16.mxu0 0
        %5638 = vmatpush1.bf16.msra.mxu0 %v5632
        %5639 = vmatprep.subr.bf16.mxu0 0
        %5640 = vmatpush1.bf16.msra.mxu0 0
        %5641 = vmatprep.subr.bf16.mxu0 0
        %5642 = vmatpush1.bf16.msra.mxu0 0
        %5643 = vmatprep.subr.bf16.mxu0 0
        %5644 = vmatpush1.bf16.msra.mxu0 0
        %5645 = vmatprep.subr.bf16.mxu0 0
        %5646 = vmatpush1.bf16.msra.mxu0 0
        %5647 = vmatprep.subr.bf16.mxu0 0
        %5648 = vmatpush1.bf16.msra.mxu0 0
        %5649 = vmatprep.subr.bf16.mxu0 0
        %5650 = vmatpush1.bf16.msra.mxu0 0
        %5651 = vmatprep.subr.bf16.mxu0 0
        %5652 = vmatpush1.bf16.msra.mxu0 0
        %5653 = vmatprep.subr.bf16.mxu0 0
        %5654 = vmatpush1.bf16.msra.mxu0 0
        %5655 = vmatprep.subr.bf16.mxu0 0
        %5656 = vmatpush1.bf16.msra.mxu0 0
        %5657 = vmatprep.subr.bf16.mxu0 0
        %5658 = vmatpush1.bf16.msra.mxu0 0
        %5659 = vmatprep.subr.bf16.mxu0 0
        %5660 = vmatpush1.bf16.msra.mxu0 0
        %5661 = vmatprep.subr.bf16.mxu0 0
        %5662 = vmatpush1.bf16.msra.mxu0 0
        %5663 = vmatprep.subr.bf16.mxu0 0
        %5664 = vmatpush1.bf16.msra.mxu0 0
        %5665 = vmatprep.subr.bf16.mxu0 0
        %5666 = vmatpush1.bf16.msra.mxu0 0
        %5667 = vmatprep.subr.bf16.mxu0 0
        %5668 = vmatpush1.bf16.msra.mxu0 0
        %5669 = vmatprep.mubr.bf16.mxu0 0
        %5670 = vmatmul.mubr.bf16.gmra.mrb[0].mxu0 %v5635
        %v5671 = vpop.f32.mrb[0].mxu0
        %v5672 = vadd.f32 0.0, %v5671
        %v5673 = vpop.f32.mrb[0].mxu0
        %v5674 = vpop.f32.mrb[0].mxu0
        %v5675 = vpop.f32.mrb[0].mxu0
        %5676 = vdwg.mxu0
        %5678 = vrot.lane.b32.xlu0 %v5570, 120
        %v5679 = vpop.permute.xlu0 %5678
        %5680 = vrot.lane.b32.xlu0 %v5571, 120
        %v5681 = vpop.permute.xlu0 %5680
        %v5683 = vsel %vm1579, %v5679, 0
        %v5686 = vsel %vm1579, %v5681, 0
        %5688 = vmatprep.subr.bf16.mxu0 0
        %5689 = vmatpush1.bf16.xpose.msra.mxu0 %v5686
        %5690 = vmatprep.subr.bf16.mxu0 0
        %5691 = vmatpush1.bf16.xpose.msra.mxu0 0
        %5692 = vmatprep.subr.bf16.mxu0 0
        %5693 = vmatpush1.bf16.xpose.msra.mxu0 0
        %5694 = vmatprep.subr.bf16.mxu0 0
        %5695 = vmatpush1.bf16.xpose.msra.mxu0 0
        %5696 = vmatprep.subr.bf16.mxu0 0
        %5697 = vmatpush1.bf16.xpose.msra.mxu0 0
        %5698 = vmatprep.subr.bf16.mxu0 0
        %5699 = vmatpush1.bf16.xpose.msra.mxu0 0
        %5700 = vmatprep.subr.bf16.mxu0 0
        %5701 = vmatpush1.bf16.xpose.msra.mxu0 0
        %5702 = vmatprep.subr.bf16.mxu0 0
        %5703 = vmatpush1.bf16.xpose.msra.mxu0 0
        %5704 = vmatprep.subr.bf16.mxu0 0
        %5705 = vmatpush1.bf16.xpose.msra.mxu0 0
        %5706 = vmatprep.subr.bf16.mxu0 0
        %5707 = vmatpush1.bf16.xpose.msra.mxu0 0
        %5708 = vmatprep.subr.bf16.mxu0 0
        %5709 = vmatpush1.bf16.xpose.msra.mxu0 0
        %5710 = vmatprep.subr.bf16.mxu0 0
        %5711 = vmatpush1.bf16.xpose.msra.mxu0 0
        %5712 = vmatprep.subr.bf16.mxu0 0
        %5713 = vmatpush1.bf16.xpose.msra.mxu0 0
        %5714 = vmatprep.subr.bf16.mxu0 0
        %5715 = vmatpush1.bf16.xpose.msra.mxu0 0
        %5716 = vmatprep.subr.bf16.mxu0 0
        %5717 = vmatpush1.bf16.xpose.msra.mxu0 0
        %5718 = vmatprep.subr.bf16.mxu0 0
        %5719 = vmatpush1.bf16.xpose.msra.mxu0 0
        %5720 = vmatprep.mubr.bf16.mxu0 0
        %5721 = vmatmul.mubr.bf16.gmra.mrb[0].mxu0 %v5683
        %v5722 = vpop.f32.mrb[0].mxu0
        %v5723 = vadd.f32 0.0, %v5722
        %v5724 = vpop.f32.mrb[0].mxu0
        %v5725 = vpop.f32.mrb[0].mxu0
        %v5726 = vpop.f32.mrb[0].mxu0
        %5727 = vdwg.mxu0
        %v5728 = vsel %vm1447, %v5723, -inf
        %5729 = vmax.xlane.f32.xlu0 %v5728
        %v5730 = vpop.xlane.xlu0 %5729
        %v5731 = vsub.f32 %v5723, %v5730
        %v5732 = vmul.f32 %v5731, 1.442695
        %v5733 = vpow.pop %v5732
        %v5734 = vsel %vm1447, %v5733, 0.0
        %5735 = vadd.xlane.f32.xlu0 %v5734
        %v5736 = vpop.xlane.xlu0 %5735
        %v5737 = vrcp.pop %v5736
        %v5738 = vmul.f32 %v5733, %v5737
        %v5739 = vpack.c.bf16 %v5738, %v5738
        %5740 = vrot.lane.b32.xlu0 %v5571, 88
        %v5741 = vpop.permute.xlu0 %5740
        %v5744 = vsel %vm1447, %v5739, 0
        %5746 = vmatprep.subr.bf16.mxu0 0
        %5747 = vmatpush1.bf16.msra.mxu0 %v5741
        %5748 = vmatprep.subr.bf16.mxu0 0
        %5749 = vmatpush1.bf16.msra.mxu0 0
        %5750 = vmatprep.subr.bf16.mxu0 0
        %5751 = vmatpush1.bf16.msra.mxu0 0
        %5752 = vmatprep.subr.bf16.mxu0 0
        %5753 = vmatpush1.bf16.msra.mxu0 0
        %5754 = vmatprep.subr.bf16.mxu0 0
        %5755 = vmatpush1.bf16.msra.mxu0 0
        %5756 = vmatprep.subr.bf16.mxu0 0
        %5757 = vmatpush1.bf16.msra.mxu0 0
        %5758 = vmatprep.subr.bf16.mxu0 0
        %5759 = vmatpush1.bf16.msra.mxu0 0
        %5760 = vmatprep.subr.bf16.mxu0 0
        %5761 = vmatpush1.bf16.msra.mxu0 0
        %5762 = vmatprep.subr.bf16.mxu0 0
        %5763 = vmatpush1.bf16.msra.mxu0 0
        %5764 = vmatprep.subr.bf16.mxu0 0
        %5765 = vmatpush1.bf16.msra.mxu0 0
        %5766 = vmatprep.subr.bf16.mxu0 0
        %5767 = vmatpush1.bf16.msra.mxu0 0
        %5768 = vmatprep.subr.bf16.mxu0 0
        %5769 = vmatpush1.bf16.msra.mxu0 0
        %5770 = vmatprep.subr.bf16.mxu0 0
        %5771 = vmatpush1.bf16.msra.mxu0 0
        %5772 = vmatprep.subr.bf16.mxu0 0
        %5773 = vmatpush1.bf16.msra.mxu0 0
        %5774 = vmatprep.subr.bf16.mxu0 0
        %5775 = vmatpush1.bf16.msra.mxu0 0
        %5776 = vmatprep.subr.bf16.mxu0 0
        %5777 = vmatpush1.bf16.msra.mxu0 0
        %5778 = vmatprep.mubr.bf16.mxu0 0
        %5779 = vmatmul.mubr.bf16.gmra.mrb[0].mxu0 %v5744
        %v5780 = vpop.f32.mrb[0].mxu0
        %v5781 = vadd.f32 0.0, %v5780
        %v5782 = vpop.f32.mrb[0].mxu0
        %v5783 = vpop.f32.mrb[0].mxu0
        %v5784 = vpop.f32.mrb[0].mxu0
        %5785 = vdwg.mxu0
        %5786 = vrot.lane.b32.xlu0 %v5570, 112
        %v5787 = vpop.permute.xlu0 %5786
        %5788 = vrot.lane.b32.xlu0 %v5571, 112
        %v5789 = vpop.permute.xlu0 %5788
        %v5791 = vsel %vm1579, %v5787, 0
        %v5794 = vsel %vm1579, %v5789, 0
        %5796 = vmatprep.subr.bf16.mxu0 0
        %5797 = vmatpush1.bf16.xpose.msra.mxu0 %v5794
        %5798 = vmatprep.subr.bf16.mxu0 0
        %5799 = vmatpush1.bf16.xpose.msra.mxu0 0
        %5800 = vmatprep.subr.bf16.mxu0 0
        %5801 = vmatpush1.bf16.xpose.msra.mxu0 0
        %5802 = vmatprep.subr.bf16.mxu0 0
        %5803 = vmatpush1.bf16.xpose.msra.mxu0 0
        %5804 = vmatprep.subr.bf16.mxu0 0
        %5805 = vmatpush1.bf16.xpose.msra.mxu0 0
        %5806 = vmatprep.subr.bf16.mxu0 0
        %5807 = vmatpush1.bf16.xpose.msra.mxu0 0
        %5808 = vmatprep.subr.bf16.mxu0 0
        %5809 = vmatpush1.bf16.xpose.msra.mxu0 0
        %5810 = vmatprep.subr.bf16.mxu0 0
        %5811 = vmatpush1.bf16.xpose.msra.mxu0 0
        %5812 = vmatprep.subr.bf16.mxu0 0
        %5813 = vmatpush1.bf16.xpose.msra.mxu0 0
        %5814 = vmatprep.subr.bf16.mxu0 0
        %5815 = vmatpush1.bf16.xpose.msra.mxu0 0
        %5816 = vmatprep.subr.bf16.mxu0 0
        %5817 = vmatpush1.bf16.xpose.msra.mxu0 0
        %5818 = vmatprep.subr.bf16.mxu0 0
        %5819 = vmatpush1.bf16.xpose.msra.mxu0 0
        %5820 = vmatprep.subr.bf16.mxu0 0
        %5821 = vmatpush1.bf16.xpose.msra.mxu0 0
        %5822 = vmatprep.subr.bf16.mxu0 0
        %5823 = vmatpush1.bf16.xpose.msra.mxu0 0
        %5824 = vmatprep.subr.bf16.mxu0 0
        %5825 = vmatpush1.bf16.xpose.msra.mxu0 0
        %5826 = vmatprep.subr.bf16.mxu0 0
        %5827 = vmatpush1.bf16.xpose.msra.mxu0 0
        %5828 = vmatprep.mubr.bf16.mxu0 0
        %5829 = vmatmul.mubr.bf16.gmra.mrb[0].mxu0 %v5791
        %v5830 = vpop.f32.mrb[0].mxu0
        %v5831 = vadd.f32 0.0, %v5830
        %v5832 = vpop.f32.mrb[0].mxu0
        %v5833 = vpop.f32.mrb[0].mxu0
        %v5834 = vpop.f32.mrb[0].mxu0
        %5835 = vdwg.mxu0
        %v5836 = vsel %vm1447, %v5831, -inf
        %5837 = vmax.xlane.f32.xlu0 %v5836
        %v5838 = vpop.xlane.xlu0 %5837
        %v5839 = vsub.f32 %v5831, %v5838
        %v5840 = vmul.f32 %v5839, 1.442695
        %v5841 = vpow.pop %v5840
        %v5842 = vsel %vm1447, %v5841, 0.0
        %5843 = vadd.xlane.f32.xlu0 %v5842
        %v5844 = vpop.xlane.xlu0 %5843
        %v5845 = vrcp.pop %v5844
        %v5846 = vmul.f32 %v5841, %v5845
        %v5847 = vpack.c.bf16 %v5846, %v5846
        %5848 = vrot.lane.b32.xlu0 %v5571, 80
        %v5849 = vpop.permute.xlu0 %5848
        %v5852 = vsel %vm1447, %v5847, 0
        %5854 = vmatprep.subr.bf16.mxu0 0
        %5855 = vmatpush1.bf16.msra.mxu0 %v5849
        %5856 = vmatprep.subr.bf16.mxu0 0
        %5857 = vmatpush1.bf16.msra.mxu0 0
        %5858 = vmatprep.subr.bf16.mxu0 0
        %5859 = vmatpush1.bf16.msra.mxu0 0
        %5860 = vmatprep.subr.bf16.mxu0 0
        %5861 = vmatpush1.bf16.msra.mxu0 0
        %5862 = vmatprep.subr.bf16.mxu0 0
        %5863 = vmatpush1.bf16.msra.mxu0 0
        %5864 = vmatprep.subr.bf16.mxu0 0
        %5865 = vmatpush1.bf16.msra.mxu0 0
        %5866 = vmatprep.subr.bf16.mxu0 0
        %5867 = vmatpush1.bf16.msra.mxu0 0
        %5868 = vmatprep.subr.bf16.mxu0 0
        %5869 = vmatpush1.bf16.msra.mxu0 0
        %5870 = vmatprep.subr.bf16.mxu0 0
        %5871 = vmatpush1.bf16.msra.mxu0 0
        %5872 = vmatprep.subr.bf16.mxu0 0
        %5873 = vmatpush1.bf16.msra.mxu0 0
        %5874 = vmatprep.subr.bf16.mxu0 0
        %5875 = vmatpush1.bf16.msra.mxu0 0
        %5876 = vmatprep.subr.bf16.mxu0 0
        %5877 = vmatpush1.bf16.msra.mxu0 0
        %5878 = vmatprep.subr.bf16.mxu0 0
        %5879 = vmatpush1.bf16.msra.mxu0 0
        %5880 = vmatprep.subr.bf16.mxu0 0
        %5881 = vmatpush1.bf16.msra.mxu0 0
        %5882 = vmatprep.subr.bf16.mxu0 0
        %5883 = vmatpush1.bf16.msra.mxu0 0
        %5884 = vmatprep.subr.bf16.mxu0 0
        %5885 = vmatpush1.bf16.msra.mxu0 0
        %5886 = vmatprep.mubr.bf16.mxu0 0
        %5887 = vmatmul.mubr.bf16.gmra.mrb[0].mxu0 %v5852
        %v5888 = vpop.f32.mrb[0].mxu0
        %v5889 = vadd.f32 0.0, %v5888
        %v5890 = vpop.f32.mrb[0].mxu0
        %v5891 = vpop.f32.mrb[0].mxu0
        %v5892 = vpop.f32.mrb[0].mxu0
        %5893 = vdwg.mxu0
        %5894 = vrot.lane.b32.xlu0 %v5570, 104
        %v5895 = vpop.permute.xlu0 %5894
        %5896 = vrot.lane.b32.xlu0 %v5571, 104
        %v5897 = vpop.permute.xlu0 %5896
        %v5899 = vsel %vm1579, %v5895, 0
        %v5902 = vsel %vm1579, %v5897, 0
        %5904 = vmatprep.subr.bf16.mxu0 0
        %5905 = vmatpush1.bf16.xpose.msra.mxu0 %v5902
        %5906 = vmatprep.subr.bf16.mxu0 0
        %5907 = vmatpush1.bf16.xpose.msra.mxu0 0
        %5908 = vmatprep.subr.bf16.mxu0 0
        %5909 = vmatpush1.bf16.xpose.msra.mxu0 0
        %5910 = vmatprep.subr.bf16.mxu0 0
        %5911 = vmatpush1.bf16.xpose.msra.mxu0 0
        %5912 = vmatprep.subr.bf16.mxu0 0
        %5913 = vmatpush1.bf16.xpose.msra.mxu0 0
        %5914 = vmatprep.subr.bf16.mxu0 0
        %5915 = vmatpush1.bf16.xpose.msra.mxu0 0
        %5916 = vmatprep.subr.bf16.mxu0 0
        %5917 = vmatpush1.bf16.xpose.msra.mxu0 0
        %5918 = vmatprep.subr.bf16.mxu0 0
        %5919 = vmatpush1.bf16.xpose.msra.mxu0 0
        %5920 = vmatprep.subr.bf16.mxu0 0
        %5921 = vmatpush1.bf16.xpose.msra.mxu0 0
        %5922 = vmatprep.subr.bf16.mxu0 0
        %5923 = vmatpush1.bf16.xpose.msra.mxu0 0
        %5924 = vmatprep.subr.bf16.mxu0 0
        %5925 = vmatpush1.bf16.xpose.msra.mxu0 0
        %5926 = vmatprep.subr.bf16.mxu0 0
        %5927 = vmatpush1.bf16.xpose.msra.mxu0 0
        %5928 = vmatprep.subr.bf16.mxu0 0
        %5929 = vmatpush1.bf16.xpose.msra.mxu0 0
        %5930 = vmatprep.subr.bf16.mxu0 0
        %5931 = vmatpush1.bf16.xpose.msra.mxu0 0
        %5932 = vmatprep.subr.bf16.mxu0 0
        %5933 = vmatpush1.bf16.xpose.msra.mxu0 0
        %5934 = vmatprep.subr.bf16.mxu0 0
        %5935 = vmatpush1.bf16.xpose.msra.mxu0 0
        %5936 = vmatprep.mubr.bf16.mxu0 0
        %5937 = vmatmul.mubr.bf16.gmra.mrb[0].mxu0 %v5899
        %v5938 = vpop.f32.mrb[0].mxu0
        %v5939 = vadd.f32 0.0, %v5938
        %v5940 = vpop.f32.mrb[0].mxu0
        %v5941 = vpop.f32.mrb[0].mxu0
        %v5942 = vpop.f32.mrb[0].mxu0
        %5943 = vdwg.mxu0
        %v5944 = vsel %vm1447, %v5939, -inf
        %5945 = vmax.xlane.f32.xlu0 %v5944
        %v5946 = vpop.xlane.xlu0 %5945
        %v5947 = vsub.f32 %v5939, %v5946
        %v5948 = vmul.f32 %v5947, 1.442695
        %v5949 = vpow.pop %v5948
        %v5950 = vsel %vm1447, %v5949, 0.0
        %5951 = vadd.xlane.f32.xlu0 %v5950
        %v5952 = vpop.xlane.xlu0 %5951
        %v5953 = vrcp.pop %v5952
        %v5954 = vmul.f32 %v5949, %v5953
        %v5955 = vpack.c.bf16 %v5954, %v5954
        %5956 = vrot.lane.b32.xlu0 %v5571, 72
        %v5957 = vpop.permute.xlu0 %5956
        %v5960 = vsel %vm1447, %v5955, 0
        %5962 = vmatprep.subr.bf16.mxu0 0
        %5963 = vmatpush1.bf16.msra.mxu0 %v5957
        %5964 = vmatprep.subr.bf16.mxu0 0
        %5965 = vmatpush1.bf16.msra.mxu0 0
        %5966 = vmatprep.subr.bf16.mxu0 0
        %5967 = vmatpush1.bf16.msra.mxu0 0
        %5968 = vmatprep.subr.bf16.mxu0 0
        %5969 = vmatpush1.bf16.msra.mxu0 0
        %5970 = vmatprep.subr.bf16.mxu0 0
        %5971 = vmatpush1.bf16.msra.mxu0 0
        %5972 = vmatprep.subr.bf16.mxu0 0
        %5973 = vmatpush1.bf16.msra.mxu0 0
        %5974 = vmatprep.subr.bf16.mxu0 0
        %5975 = vmatpush1.bf16.msra.mxu0 0
        %5976 = vmatprep.subr.bf16.mxu0 0
        %5977 = vmatpush1.bf16.msra.mxu0 0
        %5978 = vmatprep.subr.bf16.mxu0 0
        %5979 = vmatpush1.bf16.msra.mxu0 0
        %5980 = vmatprep.subr.bf16.mxu0 0
        %5981 = vmatpush1.bf16.msra.mxu0 0
        %5982 = vmatprep.subr.bf16.mxu0 0
        %5983 = vmatpush1.bf16.msra.mxu0 0
        %5984 = vmatprep.subr.bf16.mxu0 0
        %5985 = vmatpush1.bf16.msra.mxu0 0
        %5986 = vmatprep.subr.bf16.mxu0 0
        %5987 = vmatpush1.bf16.msra.mxu0 0
        %5988 = vmatprep.subr.bf16.mxu0 0
        %5989 = vmatpush1.bf16.msra.mxu0 0
        %5990 = vmatprep.subr.bf16.mxu0 0
        %5991 = vmatpush1.bf16.msra.mxu0 0
        %5992 = vmatprep.subr.bf16.mxu0 0
        %5993 = vmatpush1.bf16.msra.mxu0 0
        %5994 = vmatprep.mubr.bf16.mxu0 0
        %5995 = vmatmul.mubr.bf16.gmra.mrb[0].mxu0 %v5960
        %v5996 = vpop.f32.mrb[0].mxu0
        %v5997 = vadd.f32 0.0, %v5996
        %v5998 = vpop.f32.mrb[0].mxu0
        %v5999 = vpop.f32.mrb[0].mxu0
        %v6000 = vpop.f32.mrb[0].mxu0
        %6001 = vdwg.mxu0
        %6003 = vrot.lane.b32.xlu0 %v5781, 8
        %v6004 = vpop.permute.xlu0 %6003
        %6007 = vrot.lane.b32.xlu0 %v5889, 16
        %v6008 = vpop.permute.xlu0 %6007
        %6011 = vrot.lane.b32.xlu0 %v5997, 24
        %v6012 = vpop.permute.xlu0 %6011
        %v6014 = vsel %vm1579, %v5672, %v6004
        %v6015 = vsel %vm1447, %v6014, %v6008
        %v6016 = vsel %vm2089, %v6015, %v6012
        %v6017 = vpack.c.bf16 %v6016, %v6016
        %v6019 = vlaneseq
        %v6020 = vshrl.u32 %v6019, 7
        %v6021 = vsub.s32 0, %v6020
        %v6022 = vrot.slane %v5568, %v6021
        %v6028 = vunpack.c.l.b16 %v5563
        %v6029 = vunpack.c.l.b16 %v5564
        %v6030 = vunpack.c.l.b16 %v5565
        %v6031 = vunpack.c.l.b16 %v5566
        %v6032 = vpack.c.b16 %v6029, %v6028
        %v6033 = vpack.c.b16 %v6031, %v6030
        %v6037 = vsel %vm1522, %v6017, 0
        %6039 = vmatprep.subr.bf16.mxu0 0
        %6040 = vmatpush1.bf16.msra.mxu0 %v6032
        %6041 = vmatprep.subr.bf16.mxu0 0
        %6042 = vmatpush1.bf16.msra.mxu0 %v6033
        %6043 = vmatprep.subr.bf16.mxu0 0
        %6044 = vmatpush1.bf16.msra.mxu0 0
        %6045 = vmatprep.subr.bf16.mxu0 0
        %6046 = vmatpush1.bf16.msra.mxu0 0
        %6047 = vmatprep.subr.bf16.mxu0 0
        %6048 = vmatpush1.bf16.msra.mxu0 0
        %6049 = vmatprep.subr.bf16.mxu0 0
        %6050 = vmatpush1.bf16.msra.mxu0 0
        %6051 = vmatprep.subr.bf16.mxu0 0
        %6052 = vmatpush1.bf16.msra.mxu0 0
        %6053 = vmatprep.subr.bf16.mxu0 0
        %6054 = vmatpush1.bf16.msra.mxu0 0
        %6055 = vmatprep.subr.bf16.mxu0 0
        %6056 = vmatpush1.bf16.msra.mxu0 0
        %6057 = vmatprep.subr.bf16.mxu0 0
        %6058 = vmatpush1.bf16.msra.mxu0 0
        %6059 = vmatprep.subr.bf16.mxu0 0
        %6060 = vmatpush1.bf16.msra.mxu0 0
        %6061 = vmatprep.subr.bf16.mxu0 0
        %6062 = vmatpush1.bf16.msra.mxu0 0
        %6063 = vmatprep.subr.bf16.mxu0 0
        %6064 = vmatpush1.bf16.msra.mxu0 0
        %6065 = vmatprep.subr.bf16.mxu0 0
        %6066 = vmatpush1.bf16.msra.mxu0 0
        %6067 = vmatprep.subr.bf16.mxu0 0
        %6068 = vmatpush1.bf16.msra.mxu0 0
        %6069 = vmatprep.subr.bf16.mxu0 0
        %6070 = vmatpush1.bf16.msra.mxu0 0
        %6071 = vmatprep.mubr.bf16.mxu0 0
        %6072 = vmatmul.mubr.bf16.gmra.mrb[0].mxu0 %v6037
        %v6073 = vpop.f32.mrb[0].mxu0
        %v6074 = vadd.f32 %v6022, %v6073
        %v6075 = vpop.f32.mrb[0].mxu0
        %v6076 = vpop.f32.mrb[0].mxu0
        %v6077 = vpop.f32.mrb[0].mxu0
        %6078 = vdwg.mxu0
        %v6079 = vadd.f32 %v6074, %v5426
        %s6080 = scalar_lea.vmem %s61, 1
        %v6081 = vld [vmem:[%s6080] sm:$0x1]
        %s6082 = scalar_lea.vmem [#allocation14], 1
        %v6083 = vld [vmem:[%s6082] sm:$0x1]
        %v6084 = vsel %vm1522, %v6079, 0.0
        %6085 = vadd.xlane.f32.xlu0 %v6084
        %v6086 = vpop.xlane.xlu0 %6085
        %v6087 = vmul.f32 %v6086, %v2165
        %v6088 = vsub.f32 %v6079, %v6087
        %v6089 = vmul.f32 %v6088, %v6088
        %v6090 = vsel %vm1522, %v6089, 0.0
        %6091 = vadd.xlane.f32.xlu0 %v6090
        %v6092 = vpop.xlane.xlu0 %6091
        %v6093 = vmul.f32 %v6092, %v2165
        %v6094 = vadd.f32 %v6093, 1e-06
        %v6095 = vrsqrt.pop %v6094
        %v6096 = vmul.f32 %v6088, %v6095
        %v6098 = vlaneseq
        %v6099 = vshrl.u32 %v6098, 7
        %v6100 = vsub.s32 0, %v6099
        %v6101 = vrot.slane %v6081, %v6100
        %v6103 = vmul.f32 %v6096, %v6101
        %v6105 = vlaneseq
        %v6106 = vshrl.u32 %v6105, 7
        %v6107 = vsub.s32 0, %v6106
        %v6108 = vrot.slane %v6083, %v6107
        %v6110 = vadd.f32 %v6103, %v6108
        %s6111 = scalar_lea.vmem %s65, 16
        %v6112 = vld [vmem:[%s6111] sm:$0xf]
        %v6113 = vld [vmem:[%s6111 + $0x4] sm:$0xf]
        %v6114 = vld [vmem:[%s6111 + $0x8] sm:$0xf]
        %v6115 = vld [vmem:[%s6111 + $0xc] sm:$0xf]
        %s6116 = scalar_lea.vmem [#allocation16], 1
        %v6117 = vld [vmem:[%s6116] sm:$0x1]
        %v6118 = vpack.c.bf16 %v6110, %v6110
        %v6120 = vlaneseq
        %v6121 = vshrl.u32 %v6120, 7
        %v6122 = vsub.s32 0, %v6121
        %v6123 = vrot.slane %v6117, %v6122
        %v6129 = vunpack.c.l.b16 %v6112
        %v6130 = vunpack.c.l.b16 %v6113
        %v6131 = vunpack.c.l.b16 %v6114
        %v6132 = vunpack.c.l.b16 %v6115
        %v6133 = vpack.c.b16 %v6130, %v6129
        %v6134 = vpack.c.b16 %v6132, %v6131
        %v6138 = vsel %vm1522, %v6118, 0
        %6140 = vmatprep.subr.bf16.mxu0 0
        %6141 = vmatpush1.bf16.msra.mxu0 %v6133
        %6142 = vmatprep.subr.bf16.mxu0 0
        %6143 = vmatpush1.bf16.msra.mxu0 %v6134
        %6144 = vmatprep.subr.bf16.mxu0 0
        %6145 = vmatpush1.bf16.msra.mxu0 0
        %6146 = vmatprep.subr.bf16.mxu0 0
        %6147 = vmatpush1.bf16.msra.mxu0 0
        %6148 = vmatprep.subr.bf16.mxu0 0
        %6149 = vmatpush1.bf16.msra.mxu0 0
        %6150 = vmatprep.subr.bf16.mxu0 0
        %6151 = vmatpush1.bf16.msra.mxu0 0
        %6152 = vmatprep.subr.bf16.mxu0 0
        %6153 = vmatpush1.bf16.msra.mxu0 0
        %6154 = vmatprep.subr.bf16.mxu0 0
        %6155 = vmatpush1.bf16.msra.mxu0 0
        %6156 = vmatprep.subr.bf16.mxu0 0
        %6157 = vmatpush1.bf16.msra.mxu0 0
        %6158 = vmatprep.subr.bf16.mxu0 0
        %6159 = vmatpush1.bf16.msra.mxu0 0
        %6160 = vmatprep.subr.bf16.mxu0 0
        %6161 = vmatpush1.bf16.msra.mxu0 0
        %6162 = vmatprep.subr.bf16.mxu0 0
        %6163 = vmatpush1.bf16.msra.mxu0 0
        %6164 = vmatprep.subr.bf16.mxu0 0
        %6165 = vmatpush1.bf16.msra.mxu0 0
        %6166 = vmatprep.subr.bf16.mxu0 0
        %6167 = vmatpush1.bf16.msra.mxu0 0
        %6168 = vmatprep.subr.bf16.mxu0 0
        %6169 = vmatpush1.bf16.msra.mxu0 0
        %6170 = vmatprep.subr.bf16.mxu0 0
        %6171 = vmatpush1.bf16.msra.mxu0 0
        %6172 = vmatprep.mubr.bf16.mxu0 0
        %6173 = vmatmul.mubr.bf16.gmra.mrb[0].mxu0 %v6138
        %v6174 = vpop.f32.mrb[0].mxu0
        %v6175 = vadd.f32 %v6123, %v6174
        %v6176 = vpop.f32.mrb[0].mxu0
        %v6177 = vpop.f32.mrb[0].mxu0
        %v6178 = vpop.f32.mrb[0].mxu0
        %6179 = vdwg.mxu0
        %v6180 = vmax.f32 %v6175, 0.0
        %s6181 = scalar_lea.vmem %s69, 32
        %v6182 = vld [vmem:[%s6181] sm:$0xf]
        %v6183 = vld [vmem:[%s6181 + $0x4] sm:$0xf]
        %v6184 = vld [vmem:[%s6181 + $0x8] sm:$0xf]
        %v6185 = vld [vmem:[%s6181 + $0xc] sm:$0xf]
        %v6186 = vld [vmem:[%s6181 + $0x10] sm:$0xf]
        %v6187 = vld [vmem:[%s6181 + $0x14] sm:$0xf]
        %v6188 = vld [vmem:[%s6181 + $0x18] sm:$0xf]
        %v6189 = vld [vmem:[%s6181 + $0x1c] sm:$0xf]
        %s6190 = scalar_lea.vmem [#allocation17], 1
        %v6191 = vld [vmem:[%s6190] sm:$0x1]
        %v6192 = vpack.c.bf16 %v6180, %v6180
        %v6194 = vlaneseq
        %v6195 = vshrl.u32 %v6194, 7
        %v6196 = vsub.s32 0, %v6195
        %v6197 = vrot.slane %v6191, %v6196
        %v6207 = vunpack.c.l.b16 %v6182
        %v6208 = vunpack.c.l.b16 %v6183
        %v6209 = vunpack.c.l.b16 %v6184
        %v6210 = vunpack.c.l.b16 %v6185
        %v6211 = vunpack.c.l.b16 %v6186
        %v6212 = vunpack.c.l.b16 %v6187
        %v6213 = vunpack.c.l.b16 %v6188
        %v6214 = vunpack.c.l.b16 %v6189
        %v6215 = vpack.c.b16 %v6208, %v6207
        %v6216 = vpack.c.b16 %v6210, %v6209
        %v6217 = vpack.c.b16 %v6212, %v6211
        %v6218 = vpack.c.b16 %v6214, %v6213
        %v6224 = vsel %vm2312, %v6192, 0
        %6226 = vmatprep.subr.bf16.mxu0 0
        %6227 = vmatpush1.bf16.msra.mxu0 %v6215
        %6228 = vmatprep.subr.bf16.mxu0 0
        %6229 = vmatpush1.bf16.msra.mxu0 %v6216
        %6230 = vmatprep.subr.bf16.mxu0 0
        %6231 = vmatpush1.bf16.msra.mxu0 %v6217
        %6232 = vmatprep.subr.bf16.mxu0 0
        %6233 = vmatpush1.bf16.msra.mxu0 %v6218
        %6234 = vmatprep.subr.bf16.mxu0 0
        %6235 = vmatpush1.bf16.msra.mxu0 0
        %6236 = vmatprep.subr.bf16.mxu0 0
        %6237 = vmatpush1.bf16.msra.mxu0 0
        %6238 = vmatprep.subr.bf16.mxu0 0
        %6239 = vmatpush1.bf16.msra.mxu0 0
        %6240 = vmatprep.subr.bf16.mxu0 0
        %6241 = vmatpush1.bf16.msra.mxu0 0
        %6242 = vmatprep.subr.bf16.mxu0 0
        %6243 = vmatpush1.bf16.msra.mxu0 0
        %6244 = vmatprep.subr.bf16.mxu0 0
        %6245 = vmatpush1.bf16.msra.mxu0 0
        %6246 = vmatprep.subr.bf16.mxu0 0
        %6247 = vmatpush1.bf16.msra.mxu0 0
        %6248 = vmatprep.subr.bf16.mxu0 0
        %6249 = vmatpush1.bf16.msra.mxu0 0
        %6250 = vmatprep.subr.bf16.mxu0 0
        %6251 = vmatpush1.bf16.msra.mxu0 0
        %6252 = vmatprep.subr.bf16.mxu0 0
        %6253 = vmatpush1.bf16.msra.mxu0 0
        %6254 = vmatprep.subr.bf16.mxu0 0
        %6255 = vmatpush1.bf16.msra.mxu0 0
        %6256 = vmatprep.subr.bf16.mxu0 0
        %6257 = vmatpush1.bf16.msra.mxu0 0
        %6258 = vmatprep.mubr.bf16.mxu0 0
        %6259 = vmatmul.mubr.bf16.gmra.mrb[0].mxu0 %v6224
        %v6260 = vpop.f32.mrb[0].mxu0
        %v6261 = vadd.f32 %v6197, %v6260
        %v6262 = vpop.f32.mrb[0].mxu0
        %v6263 = vpop.f32.mrb[0].mxu0
        %v6264 = vpop.f32.mrb[0].mxu0
        %6265 = vdwg.mxu0
        %v6266 = vadd.f32 %v6261, %v6110
        %s6267 = scalar_lea.vmem %s73, 1
        %v6268 = vld [vmem:[%s6267] sm:$0x1]
        %s6269 = scalar_lea.vmem [#allocation19], 1
        %v6270 = vld [vmem:[%s6269] sm:$0x1]
        %v6271 = vsel %vm1522, %v6266, 0.0
        %6272 = vadd.xlane.f32.xlu0 %v6271
        %v6273 = vpop.xlane.xlu0 %6272
        %v6274 = vmul.f32 %v6273, %v2165
        %v6275 = vsub.f32 %v6266, %v6274
        %v6276 = vmul.f32 %v6275, %v6275
        %v6277 = vsel %vm1522, %v6276, 0.0
        %6278 = vadd.xlane.f32.xlu0 %v6277
        %v6279 = vpop.xlane.xlu0 %6278
        %v6280 = vmul.f32 %v6279, %v2165
        %v6281 = vadd.f32 %v6280, 1e-06
        %v6282 = vrsqrt.pop %v6281
        %v6283 = vmul.f32 %v6275, %v6282
        %v6285 = vlaneseq
        %v6286 = vshrl.u32 %v6285, 7
        %v6287 = vsub.s32 0, %v6286
        %v6288 = vrot.slane %v6268, %v6287
        %v6290 = vmul.f32 %v6283, %v6288
        %v6292 = vlaneseq
        %v6293 = vshrl.u32 %v6292, 7
        %v6294 = vsub.s32 0, %v6293
        %v6295 = vrot.slane %v6270, %v6294
        %v6297 = vadd.f32 %v6290, %v6295
        %v6298 = vpack.c.bf16 %v6297, %v6297
        %v6299 = vld [vmem:[%s77] sm:$0xf]
        %v6300 = vld [vmem:[%s77 + $0x4] sm:$0xf]
        %v6301 = vld [vmem:[%s77 + $0x8] sm:$0xf]
        %v6302 = vld [vmem:[%s77 + $0xc] sm:$0xf]
        %v6303 = vld [vmem:[#allocation20] sm:$0x1]
        %v6305 = vlaneseq
        %v6306 = vshrl.u32 %v6305, 7
        %v6307 = vsub.s32 0, %v6306
        %v6308 = vrot.slane %v6303, %v6307
        %v6314 = vunpack.c.l.b16 %v6299
        %v6315 = vunpack.c.l.b16 %v6300
        %v6316 = vunpack.c.l.b16 %v6301
        %v6317 = vunpack.c.l.b16 %v6302
        %v6318 = vpack.c.b16 %v6315, %v6314
        %v6319 = vpack.c.b16 %v6317, %v6316
        %v6323 = vsel %vm1522, %v6298, 0
        %6325 = vmatprep.subr.bf16.mxu0 0
        %6326 = vmatpush1.bf16.msra.mxu0 %v6318
        %6327 = vmatprep.subr.bf16.mxu0 0
        %6328 = vmatpush1.bf16.msra.mxu0 %v6319
        %6329 = vmatprep.subr.bf16.mxu0 0
        %6330 = vmatpush1.bf16.msra.mxu0 0
        %6331 = vmatprep.subr.bf16.mxu0 0
        %6332 = vmatpush1.bf16.msra.mxu0 0
        %6333 = vmatprep.subr.bf16.mxu0 0
        %6334 = vmatpush1.bf16.msra.mxu0 0
        %6335 = vmatprep.subr.bf16.mxu0 0
        %6336 = vmatpush1.bf16.msra.mxu0 0
        %6337 = vmatprep.subr.bf16.mxu0 0
        %6338 = vmatpush1.bf16.msra.mxu0 0
        %6339 = vmatprep.subr.bf16.mxu0 0
        %6340 = vmatpush1.bf16.msra.mxu0 0
        %6341 = vmatprep.subr.bf16.mxu0 0
        %6342 = vmatpush1.bf16.msra.mxu0 0
        %6343 = vmatprep.subr.bf16.mxu0 0
        %6344 = vmatpush1.bf16.msra.mxu0 0
        %6345 = vmatprep.subr.bf16.mxu0 0
        %6346 = vmatpush1.bf16.msra.mxu0 0
        %6347 = vmatprep.subr.bf16.mxu0 0
        %6348 = vmatpush1.bf16.msra.mxu0 0
        %6349 = vmatprep.subr.bf16.mxu0 0
        %6350 = vmatpush1.bf16.msra.mxu0 0
        %6351 = vmatprep.subr.bf16.mxu0 0
        %6352 = vmatpush1.bf16.msra.mxu0 0
        %6353 = vmatprep.subr.bf16.mxu0 0
        %6354 = vmatpush1.bf16.msra.mxu0 0
        %6355 = vmatprep.subr.bf16.mxu0 0
        %6356 = vmatpush1.bf16.msra.mxu0 0
        %6357 = vmatprep.mubr.bf16.mxu0 0
        %6358 = vmatmul.mubr.bf16.gmra.mrb[0].mxu0 %v6323
        %v6359 = vpop.f32.mrb[0].mxu0
        %v6360 = vadd.f32 %v6308, %v6359
        %v6361 = vpop.f32.mrb[0].mxu0
        %v6362 = vpop.f32.mrb[0].mxu0
        %v6363 = vpop.f32.mrb[0].mxu0
        %6364 = vdwg.mxu0
        %6365 = vst.msk [vmem:[%s1398] sm:$0xff] %vm1522, %v6360
        %s6366 = sand.u32 %s965, 1
        %s6367 = scalar_lea.sflag [#allocation4], %s6366
        %s6368 = sand.u32 %s965, 1
        %s6369 = smul.addr %s6368, 8
        %s6370 = scalar_lea.vmem [#allocation22], %s6369
        // Predicated region
        $region229: #{transformer_forward.1} parent=179 // pred_check
          %p6371 = pneg %p975
        $region230: #{transformer_forward.1} parent=179 // pred_check_branch
          %6373 = sbr.rel (%p6371) target = $region232
        $region231: #{transformer_forward.1} parent=179 // pred_region
          %s6375 = ssub.s32 128, 128
          %6376 = vsyncadd %s6367, %s6375
          %s6377 = smul.addr %s102, 128
          %s6378 = scalar_lea.hbm %s81, %s6377
          %s6380 = sshll.u32 %s6370, 4
          %s6381 = int_to_ptr.vmem [resolvable:$true] %s6380
          %6383 = dma.vmem_to_hbm [thread:$0]  %s6381, 128, %s6378, %s6367
        $region232: #{transformer_forward.1} parent=179 // pred_fallthru
          _
      $region180: #{transformer_forward.1} parent=5 // pred_fallthru
        _
      %p6384 = scmp.le.s32.totalorder 2, %s97
      // Predicated region
      $region233: #{transformer_forward.1} parent=5 // pred_check
        %p6385 = pneg %p6384
      $region234: #{transformer_forward.1} parent=5 // pred_check_branch
        %6387 = sbr.rel (%p6385) target = $region236
      $region235: #{transformer_forward.1} parent=5 // pred_region
        %s6388 = ssub.s32 %s97, 2
        // Predicated region
        $region237: #{transformer_forward.1} parent=235 // pred_check
          %p6389 = pneg %p981
        $region238: #{transformer_forward.1} parent=235 // pred_check_branch
          %6391 = sbr.rel (%p6389) target = $region240
        $region239: #{transformer_forward.1} parent=235 // pred_region
          %s6392 = sand.u32 %s966, 1
          %s6393 = scalar_lea.sflag [#allocation4], %s6392
          %s6394 = sand.u32 %s966, 1
          %s6395 = smul.addr %s6394, 8
          %s6396 = scalar_lea.vmem [#allocation22], %s6395
          %6397 = dma.done %s6393, 128
        $region240: #{transformer_forward.1} parent=235 // pred_fallthru
          _
      $region236: #{transformer_forward.1} parent=5 // pred_fallthru
        _
    $region6: #{transformer_forward.1} parent=1 // loop_footer
      %s101 = sadd.s32 1, %s97
    $region7: #{transformer_forward.1} parent=1 // loop_footer_branch
      %96 = sbr.rel target = $region3
    $region8: #{transformer_forward.1} parent=1 // loop_exit
      _
    %6398 = vsyncpa [#allocation3], 1
    %s6399 = scalar_lea.sflag [#allocation3], 1
    %6400 = vsyncpa %s6399, 1
    %6401 = vsyncpa [#allocation6], 1
    %6402 = vsyncpa [#allocation9], 1
    %6403 = vsyncpa [#allocation12], 1
    %6404 = vsyncpa [#allocation15], 1
    %6405 = vsyncpa [#allocation18], 1
    %6406 = vsyncpa [#allocation21], 1
    %6407 = vsyncpa [#allocation4], 1
    %s6408 = scalar_lea.sflag [#allocation4], 1
    %6409 = vsyncpa %s6408, 1

</llo_original>
